<compile_context>
chip_gen: v7x
topology: tpu7x:2x2x1
jax: 0.10.0
libtpu: 0.0.40
codegen_flags: <defaults>
</compile_context>

<pallas_src>
import functools

import jax
import jax.numpy as jnp
from jax.experimental import pallas as pl
from jax.experimental.pallas import tpu as pltpu


# ----------------------------------------------------------------------------
# Pallas kernels
# ----------------------------------------------------------------------------
def _mm_bias_act_kernel(a_ref, w_ref, b_ref, o_ref, *, alpha, apply_act):
    """One-shot matmul: A(bf16) @ W(bf16) -> f32 acc, + bias, LeakyReLU(alpha)."""
    acc = jnp.dot(a_ref[...], w_ref[...], preferred_element_type=jnp.float32)
    z = acc + b_ref[...]                       # (1, N) bias broadcasts, f32
    if apply_act:
        z = jnp.where(z >= 0, z, alpha * z)    # LeakyReLU(0.01)
    o_ref[...] = z.astype(o_ref.dtype)


def _tail_kernel(h_ref, y_ref, wl_ref, bl_ref, weh_ref, wey_ref, be_ref, o_ref):
    """Fused label_embed + (implicit concat) + end_linear.

    end_linear(cat([h, y_emb], 1)) == h @ We[:256] + y_emb @ We[256:] + be,
    so the concat never needs to materialize.  We[:256]/We[256:] are passed
    transposed as (1, 256) rows and reduced on the lane axis (N == 1)."""
    y_emb = jnp.dot(y_ref[...], wl_ref[...],
                    preferred_element_type=jnp.float32) + bl_ref[...]
    z_h = jnp.sum(h_ref[...] * weh_ref[...], axis=1, keepdims=True)
    z_y = jnp.sum(y_emb * wey_ref[...], axis=1, keepdims=True)
    o_ref[...] = (z_h + z_y + be_ref[...]).astype(o_ref.dtype)


_VMEM_SPEC = pl.BlockSpec(memory_space=pltpu.MemorySpace.VMEM)  # full-array, VMEM


# ----------------------------------------------------------------------------
# Wrappers
# ----------------------------------------------------------------------------
def _round_up(x, m):
    return (x + m - 1) // m * m


def matmul_bias_act(a, w, bias, *, apply_act, alpha=0.01, out_dtype=jnp.bfloat16):
    """a: (M, Kp) bf16, w: (Kp, N) bf16, bias: (1, N) f32 -> (M, N) out_dtype."""
    M, K = a.shape
    K2, N = w.shape
    assert K == K2 and bias.shape == (1, N)
    return pl.pallas_call(
        functools.partial(_mm_bias_act_kernel, alpha=alpha, apply_act=apply_act),
        out_shape=jax.ShapeDtypeStruct((M, N), out_dtype),
        in_specs=[_VMEM_SPEC, _VMEM_SPEC, _VMEM_SPEC],
        out_specs=_VMEM_SPEC,
    )(a, w, bias)


def conv2d_lrelu_nhwc(h, wm, bias, *, ksize, stride, pad, act=True):
    """PyTorch-equivalent Conv2d + LeakyReLU(0.01), NHWC activations.

    h: (B, H, W, Cin) bf16; wm: (Kp, Cout) bf16 with K zero-padded to 128;
    bias: (1, Cout) f32."""
    B = h.shape[0]
    Kp, Cout = wm.shape
    # Patches in one XLA op; output channel ordering is (Cin, kh, kw), which
    # matches PyTorch's w.reshape(Cout, Cin*kh*kw) flattening.
    patches = jax.lax.conv_general_dilated_patches(
        h, filter_shape=(ksize, ksize), window_strides=(stride, stride),
        padding=((pad, pad), (pad, pad)),
        dimension_numbers=("NHWC", "HWIO", "NHWC"))
    _, Ho, Wo, K = patches.shape
    a = patches.reshape(B * Ho * Wo, K)
    if K != Kp:                                   # pad contraction dim only
        a = jnp.pad(a, ((0, 0), (0, Kp - K)))
    out = matmul_bias_act(a, wm, bias, apply_act=act)
    return out.reshape(B, Ho, Wo, Cout)


def avg_pool_3x3_s2(h):
    """AvgPool2d(kernel=3, stride=2), NHWC, no padding, floor mode."""
    s = jax.lax.reduce_window(h.astype(jnp.float32), jnp.zeros((), jnp.float32),
                              jax.lax.add, (1, 3, 3, 1), (1, 2, 2, 1), "VALID")
    return (s * (1.0 / 9.0)).astype(h.dtype)


# ----------------------------------------------------------------------------
# Parameters (PyTorch layout) + one-time repack into matmul-ready form
# ----------------------------------------------------------------------------
def init_params(key):
    def dense(k, fan_in, fan_out):
        k1, k2 = jax.random.split(k)
        s = 1.0 / jnp.sqrt(fan_in)
        w = jax.random.uniform(k1, (fan_in, fan_out), jnp.float32, -s, s)
        b = jax.random.uniform(k2, (fan_out,), jnp.float32, -s, s)
        return w, b

    def conv(k, cout, cin, kh, kw):
        k1, k2 = jax.random.split(k)
        s = 1.0 / jnp.sqrt(cin * kh * kw)
        w = jax.random.uniform(k1, (cout, cin, kh, kw), jnp.float32, -s, s)
        b = jax.random.uniform(k2, (cout,), jnp.float32, -s, s)
        return w, b

    keys = jax.random.split(key, 7)
    return {
        "label_embed": dense(keys[0], 768, 256),
        "conv1": conv(keys[1], 64, 3, 11, 11),
        "conv2": conv(keys[2], 192, 64, 5, 5),
        "conv3": conv(keys[3], 384, 192, 3, 3),
        "conv4": conv(keys[4], 256, 384, 3, 3),
        "conv5": conv(keys[5], 256, 256, 3, 3),
        "end_linear": dense(keys[6], 512, 1),
    }


def prepare_params(params):
    """One-time repack: conv weights -> (K_pad128, Cout) bf16, biases -> (1, N) f32,
    end_linear split into the h- and y-halves of the concat."""
    prep = {}
    for name in ("conv1", "conv2", "conv3", "conv4", "conv5"):
        w, b = params[name]
        cout = w.shape[0]
        wm = w.reshape(cout, -1).T                      # (Cin*kh*kw, Cout)
        kp = _round_up(wm.shape[0], 128)
        wm = jnp.pad(wm, ((0, kp - wm.shape[0]), (0, 0))).astype(jnp.bfloat16)
        prep[name] = (wm, b.reshape(1, -1).astype(jnp.float32))
    wl, bl = params["label_embed"]                      # (768, 256), (256,)
    prep["label_embed"] = (wl.astype(jnp.float32),
                           bl.reshape(1, -1).astype(jnp.float32))
    we, be = params["end_linear"]                       # (512, 1), (1,)
    prep["end_linear"] = (we[:256, 0].reshape(1, 256).astype(jnp.float32),
                          we[256:, 0].reshape(1, 256).astype(jnp.float32),
                          be.reshape(1, 1).astype(jnp.float32))
    return prep


# ----------------------------------------------------------------------------
# Forward pass (matches Discriminator.forward)
# ----------------------------------------------------------------------------
def discriminator_forward(prep, x, y):
    """x: (B, 3, 64, 64) f32 NCHW (PyTorch layout); y: (B, 768) f32."""
    B = x.shape[0]
    h = x.transpose(0, 2, 3, 1).astype(jnp.bfloat16)    # NHWC, bf16 activations

    w, b = prep["conv1"]
    h = conv2d_lrelu_nhwc(h, w, b, ksize=11, stride=4, pad=2)   # (B,15,15,64)
    h = avg_pool_3x3_s2(h)                                      # (B,7,7,64)
    w, b = prep["conv2"]
    h = conv2d_lrelu_nhwc(h, w, b, ksize=5, stride=1, pad=2)    # (B,7,7,192)
    h = avg_pool_3x3_s2(h)                                      # (B,3,3,192)
    w, b = prep["conv3"]
    h = conv2d_lrelu_nhwc(h, w, b, ksize=3, stride=1, pad=1)    # (B,3,3,384)
    w, b = prep["conv4"]
    h = conv2d_lrelu_nhwc(h, w, b, ksize=3, stride=1, pad=1)    # (B,3,3,256)
    w, b = prep["conv5"]
    h = conv2d_lrelu_nhwc(h, w, b, ksize=3, stride=1, pad=1)    # (B,3,3,256)
    h = avg_pool_3x3_s2(h)                                      # (B,1,1,256)

    # z = end_linear(cat([x.squeeze(), label_embed(y).squeeze()], dim=1))
    h = h.reshape(B, 256).astype(jnp.float32)
    wl, bl = prep["label_embed"]
    weh, wey, be = prep["end_linear"]
    z = pl.pallas_call(
        _tail_kernel,
        out_shape=jax.ShapeDtypeStruct((B, 1), jnp.float32),
        in_specs=[_VMEM_SPEC] * 7,
        out_specs=_VMEM_SPEC,
    )(h, y.astype(jnp.float32), wl, bl, weh, wey, be)
    return z


if __name__ == "__main__":
    key = jax.random.PRNGKey(0)
    kx, ky, kp = jax.random.split(key, 3)
    # Spatial size 64x64 so the feature stack reaches (B, 256, 1, 1), as
    # required by the concat with the 256-d label embedding.
    x = jax.random.normal(kx, (2, 3, 64, 64), jnp.float32)
    y = jax.random.normal(ky, (2, 768), jnp.float32)
    params = init_params(kp)
    prep = prepare_params(params)          # one-time weight repack (outside fwd)

    fwd = jax.jit(discriminator_forward)
    out = jax.block_until_ready(fwd(prep, x, y))
    assert out.shape == (2, 1), out.shape
    assert bool(jnp.all(jnp.isfinite(out)))
    print("KERNEL_OK")
</pallas_src>

<mosaic_0001>
module attributes {stable_mosaic.version = 11 : i64} {
  func.func @_mm_bias_act_kernel(%arg0: memref<450x384xbf16, #tpu.memory_space<vmem>>, %arg1: memref<384x64xbf16, #tpu.memory_space<vmem>>, %arg2: memref<1x64xf32, #tpu.memory_space<vmem>>, %arg3: memref<450x64xbf16, #tpu.memory_space<vmem>>) attributes {dimension_semantics = [], scalar_prefetch = 0 : i64, scratch_operands = 0 : i64, tpu.core_type = #tpu.core_type<tc>} {
    %c0 = arith.constant 0 : index
    %c0_0 = arith.constant 0 : index
    %0 = vector.load %arg0[%c0, %c0_0] : memref<450x384xbf16, #tpu.memory_space<vmem>>, vector<450x384xbf16>
    %c0_1 = arith.constant 0 : index
    %c0_2 = arith.constant 0 : index
    %1 = vector.load %arg1[%c0_1, %c0_2] : memref<384x64xbf16, #tpu.memory_space<vmem>>, vector<384x64xbf16>
    %cst = arith.constant dense<0.000000e+00> : vector<450x64xf32>
    %2 = tpu.matmul %0, %1, %cst {dimension_numbers = #tpu.dot_dimension_numbers<[1], [0], [0], [1], [0, 0, 1, 1], [], []>} : vector<450x384xbf16>, vector<384x64xbf16>, vector<450x64xf32> -> vector<450x64xf32>
    %c0_3 = arith.constant 0 : index
    %c0_4 = arith.constant 0 : index
    %3 = vector.load %arg2[%c0_3, %c0_4] : memref<1x64xf32, #tpu.memory_space<vmem>>, vector<1x64xf32>
    %4 = vector.broadcast %3 : vector<1x64xf32> to vector<450x64xf32>
    %5 = arith.addf %2, %4 : vector<450x64xf32>
    %cst_5 = arith.constant 0.000000e+00 : f32
    %6 = vector.broadcast %cst_5 : f32 to vector<450x64xf32>
    %7 = arith.cmpf oge, %5, %6 : vector<450x64xf32>
    %cst_6 = arith.constant 0.00999999977 : f32
    %8 = vector.broadcast %cst_6 : f32 to vector<450x64xf32>
    %9 = arith.mulf %8, %5 : vector<450x64xf32>
    %10 = arith.select %7, %5, %9 : vector<450x64xi1>, vector<450x64xf32>
    %11 = arith.truncf %10 : vector<450x64xf32> to vector<450x64xbf16>
    %c0_7 = arith.constant 0 : index
    %c0_8 = arith.constant 0 : index
    %12 = vector.load %arg3[%c0_7, %c0_8] : memref<450x64xbf16, #tpu.memory_space<vmem>>, vector<450x64xbf16>
    tpu.vector_store %arg3[%c0_7, %c0_8], %11 {strides = array<i32>} : memref<450x64xbf16, #tpu.memory_space<vmem>>, vector<450x64xbf16>,
    return
  }
}

module attributes {stable_mosaic.version = 11 : i64} {
  func.func @_mm_bias_act_kernel(%arg0: memref<98x1664xbf16, #tpu.memory_space<vmem>>, %arg1: memref<1664x192xbf16, #tpu.memory_space<vmem>>, %arg2: memref<1x192xf32, #tpu.memory_space<vmem>>, %arg3: memref<98x192xbf16, #tpu.memory_space<vmem>>) attributes {dimension_semantics = [], scalar_prefetch = 0 : i64, scratch_operands = 0 : i64, tpu.core_type = #tpu.core_type<tc>} {
    %c0 = arith.constant 0 : index
    %c0_0 = arith.constant 0 : index
    %0 = vector.load %arg0[%c0, %c0_0] : memref<98x1664xbf16, #tpu.memory_space<vmem>>, vector<98x1664xbf16>
    %c0_1 = arith.constant 0 : index
    %c0_2 = arith.constant 0 : index
    %1 = vector.load %arg1[%c0_1, %c0_2] : memref<1664x192xbf16, #tpu.memory_space<vmem>>, vector<1664x192xbf16>
    %cst = arith.constant dense<0.000000e+00> : vector<98x192xf32>
    %2 = tpu.matmul %0, %1, %cst {dimension_numbers = #tpu.dot_dimension_numbers<[1], [0], [0], [1], [0, 0, 1, 1], [], []>} : vector<98x1664xbf16>, vector<1664x192xbf16>, vector<98x192xf32> -> vector<98x192xf32>
    %c0_3 = arith.constant 0 : index
    %c0_4 = arith.constant 0 : index
    %3 = vector.load %arg2[%c0_3, %c0_4] : memref<1x192xf32, #tpu.memory_space<vmem>>, vector<1x192xf32>
    %4 = vector.broadcast %3 : vector<1x192xf32> to vector<98x192xf32>
    %5 = arith.addf %2, %4 : vector<98x192xf32>
    %cst_5 = arith.constant 0.000000e+00 : f32
    %6 = vector.broadcast %cst_5 : f32 to vector<98x192xf32>
    %7 = arith.cmpf oge, %5, %6 : vector<98x192xf32>
    %cst_6 = arith.constant 0.00999999977 : f32
    %8 = vector.broadcast %cst_6 : f32 to vector<98x192xf32>
    %9 = arith.mulf %8, %5 : vector<98x192xf32>
    %10 = arith.select %7, %5, %9 : vector<98x192xi1>, vector<98x192xf32>
    %11 = arith.truncf %10 : vector<98x192xf32> to vector<98x192xbf16>
    %c0_7 = arith.constant 0 : index
    %c0_8 = arith.constant 0 : index
    %12 = vector.load %arg3[%c0_7, %c0_8] : memref<98x192xbf16, #tpu.memory_space<vmem>>, vector<98x192xbf16>
    tpu.vector_store %arg3[%c0_7, %c0_8], %11 {strides = array<i32>} : memref<98x192xbf16, #tpu.memory_space<vmem>>, vector<98x192xbf16>,
    return
  }
}

module attributes {stable_mosaic.version = 11 : i64} {
  func.func @_mm_bias_act_kernel(%arg0: memref<18x1792xbf16, #tpu.memory_space<vmem>>, %arg1: memref<1792x384xbf16, #tpu.memory_space<vmem>>, %arg2: memref<1x384xf32, #tpu.memory_space<vmem>>, %arg3: memref<18x384xbf16, #tpu.memory_space<vmem>>) attributes {dimension_semantics = [], scalar_prefetch = 0 : i64, scratch_operands = 0 : i64, tpu.core_type = #tpu.core_type<tc>} {
    %c0 = arith.constant 0 : index
    %c0_0 = arith.constant 0 : index
    %0 = vector.load %arg0[%c0, %c0_0] : memref<18x1792xbf16, #tpu.memory_space<vmem>>, vector<18x1792xbf16>
    %c0_1 = arith.constant 0 : index
    %c0_2 = arith.constant 0 : index
    %1 = vector.load %arg1[%c0_1, %c0_2] : memref<1792x384xbf16, #tpu.memory_space<vmem>>, vector<1792x384xbf16>
    %cst = arith.constant dense<0.000000e+00> : vector<18x384xf32>
    %2 = tpu.matmul %0, %1, %cst {dimension_numbers = #tpu.dot_dimension_numbers<[1], [0], [0], [1], [0, 0, 1, 1], [], []>} : vector<18x1792xbf16>, vector<1792x384xbf16>, vector<18x384xf32> -> vector<18x384xf32>
    %c0_3 = arith.constant 0 : index
    %c0_4 = arith.constant 0 : index
    %3 = vector.load %arg2[%c0_3, %c0_4] : memref<1x384xf32, #tpu.memory_space<vmem>>, vector<1x384xf32>
    %4 = vector.broadcast %3 : vector<1x384xf32> to vector<18x384xf32>
    %5 = arith.addf %2, %4 : vector<18x384xf32>
    %cst_5 = arith.constant 0.000000e+00 : f32
    %6 = vector.broadcast %cst_5 : f32 to vector<18x384xf32>
    %7 = arith.cmpf oge, %5, %6 : vector<18x384xf32>
    %cst_6 = arith.constant 0.00999999977 : f32
    %8 = vector.broadcast %cst_6 : f32 to vector<18x384xf32>
    %9 = arith.mulf %8, %5 : vector<18x384xf32>
    %10 = arith.select %7, %5, %9 : vector<18x384xi1>, vector<18x384xf32>
    %11 = arith.truncf %10 : vector<18x384xf32> to vector<18x384xbf16>
    %c0_7 = arith.constant 0 : index
    %c0_8 = arith.constant 0 : index
    %12 = vector.load %arg3[%c0_7, %c0_8] : memref<18x384xbf16, #tpu.memory_space<vmem>>, vector<18x384xbf16>
    tpu.vector_store %arg3[%c0_7, %c0_8], %11 {strides = array<i32>} : memref<18x384xbf16, #tpu.memory_space<vmem>>, vector<18x384xbf16>,
    return
  }
}

module attributes {stable_mosaic.version = 11 : i64} {
  func.func @_mm_bias_act_kernel(%arg0: memref<18x3456xbf16, #tpu.memory_space<vmem>>, %arg1: memref<3456x256xbf16, #tpu.memory_space<vmem>>, %arg2: memref<1x256xf32, #tpu.memory_space<vmem>>, %arg3: memref<18x256xbf16, #tpu.memory_space<vmem>>) attributes {dimension_semantics = [], scalar_prefetch = 0 : i64, scratch_operands = 0 : i64, tpu.core_type = #tpu.core_type<tc>} {
    %c0 = arith.constant 0 : index
    %c0_0 = arith.constant 0 : index
    %0 = vector.load %arg0[%c0, %c0_0] : memref<18x3456xbf16, #tpu.memory_space<vmem>>, vector<18x3456xbf16>
    %c0_1 = arith.constant 0 : index
    %c0_2 = arith.constant 0 : index
    %1 = vector.load %arg1[%c0_1, %c0_2] : memref<3456x256xbf16, #tpu.memory_space<vmem>>, vector<3456x256xbf16>
    %cst = arith.constant dense<0.000000e+00> : vector<18x256xf32>
    %2 = tpu.matmul %0, %1, %cst {dimension_numbers = #tpu.dot_dimension_numbers<[1], [0], [0], [1], [0, 0, 1, 1], [], []>} : vector<18x3456xbf16>, vector<3456x256xbf16>, vector<18x256xf32> -> vector<18x256xf32>
    %c0_3 = arith.constant 0 : index
    %c0_4 = arith.constant 0 : index
    %3 = vector.load %arg2[%c0_3, %c0_4] : memref<1x256xf32, #tpu.memory_space<vmem>>, vector<1x256xf32>
    %4 = vector.broadcast %3 : vector<1x256xf32> to vector<18x256xf32>
    %5 = arith.addf %2, %4 : vector<18x256xf32>
    %cst_5 = arith.constant 0.000000e+00 : f32
    %6 = vector.broadcast %cst_5 : f32 to vector<18x256xf32>
    %7 = arith.cmpf oge, %5, %6 : vector<18x256xf32>
    %cst_6 = arith.constant 0.00999999977 : f32
    %8 = vector.broadcast %cst_6 : f32 to vector<18x256xf32>
    %9 = arith.mulf %8, %5 : vector<18x256xf32>
    %10 = arith.select %7, %5, %9 : vector<18x256xi1>, vector<18x256xf32>
    %11 = arith.truncf %10 : vector<18x256xf32> to vector<18x256xbf16>
    %c0_7 = arith.constant 0 : index
    %c0_8 = arith.constant 0 : index
    %12 = vector.load %arg3[%c0_7, %c0_8] : memref<18x256xbf16, #tpu.memory_space<vmem>>, vector<18x256xbf16>
    tpu.vector_store %arg3[%c0_7, %c0_8], %11 {strides = array<i32>} : memref<18x256xbf16, #tpu.memory_space<vmem>>, vector<18x256xbf16>,
    return
  }
}

module attributes {stable_mosaic.version = 11 : i64} {
  func.func @_mm_bias_act_kernel(%arg0: memref<18x2304xbf16, #tpu.memory_space<vmem>>, %arg1: memref<2304x256xbf16, #tpu.memory_space<vmem>>, %arg2: memref<1x256xf32, #tpu.memory_space<vmem>>, %arg3: memref<18x256xbf16, #tpu.memory_space<vmem>>) attributes {dimension_semantics = [], scalar_prefetch = 0 : i64, scratch_operands = 0 : i64, tpu.core_type = #tpu.core_type<tc>} {
    %c0 = arith.constant 0 : index
    %c0_0 = arith.constant 0 : index
    %0 = vector.load %arg0[%c0, %c0_0] : memref<18x2304xbf16, #tpu.memory_space<vmem>>, vector<18x2304xbf16>
    %c0_1 = arith.constant 0 : index
    %c0_2 = arith.constant 0 : index
    %1 = vector.load %arg1[%c0_1, %c0_2] : memref<2304x256xbf16, #tpu.memory_space<vmem>>, vector<2304x256xbf16>
    %cst = arith.constant dense<0.000000e+00> : vector<18x256xf32>
    %2 = tpu.matmul %0, %1, %cst {dimension_numbers = #tpu.dot_dimension_numbers<[1], [0], [0], [1], [0, 0, 1, 1], [], []>} : vector<18x2304xbf16>, vector<2304x256xbf16>, vector<18x256xf32> -> vector<18x256xf32>
    %c0_3 = arith.constant 0 : index
    %c0_4 = arith.constant 0 : index
    %3 = vector.load %arg2[%c0_3, %c0_4] : memref<1x256xf32, #tpu.memory_space<vmem>>, vector<1x256xf32>
    %4 = vector.broadcast %3 : vector<1x256xf32> to vector<18x256xf32>
    %5 = arith.addf %2, %4 : vector<18x256xf32>
    %cst_5 = arith.constant 0.000000e+00 : f32
    %6 = vector.broadcast %cst_5 : f32 to vector<18x256xf32>
    %7 = arith.cmpf oge, %5, %6 : vector<18x256xf32>
    %cst_6 = arith.constant 0.00999999977 : f32
    %8 = vector.broadcast %cst_6 : f32 to vector<18x256xf32>
    %9 = arith.mulf %8, %5 : vector<18x256xf32>
    %10 = arith.select %7, %5, %9 : vector<18x256xi1>, vector<18x256xf32>
    %11 = arith.truncf %10 : vector<18x256xf32> to vector<18x256xbf16>
    %c0_7 = arith.constant 0 : index
    %c0_8 = arith.constant 0 : index
    %12 = vector.load %arg3[%c0_7, %c0_8] : memref<18x256xbf16, #tpu.memory_space<vmem>>, vector<18x256xbf16>
    tpu.vector_store %arg3[%c0_7, %c0_8], %11 {strides = array<i32>} : memref<18x256xbf16, #tpu.memory_space<vmem>>, vector<18x256xbf16>,
    return
  }
}

module attributes {stable_mosaic.version = 11 : i64} {
  func.func @_tail_kernel(%arg0: memref<2x256xf32, #tpu.memory_space<vmem>>, %arg1: memref<2x768xf32, #tpu.memory_space<vmem>>, %arg2: memref<768x256xf32, #tpu.memory_space<vmem>>, %arg3: memref<1x256xf32, #tpu.memory_space<vmem>>, %arg4: memref<1x256xf32, #tpu.memory_space<vmem>>, %arg5: memref<1x256xf32, #tpu.memory_space<vmem>>, %arg6: memref<1x1xf32, #tpu.memory_space<vmem>>, %arg7: memref<2x1xf32, #tpu.memory_space<vmem>>) attributes {dimension_semantics = [], scalar_prefetch = 0 : i64, scratch_operands = 0 : i64, tpu.core_type = #tpu.core_type<tc>} {
    %c0 = arith.constant 0 : index
    %c0_0 = arith.constant 0 : index
    %0 = vector.load %arg1[%c0, %c0_0] : memref<2x768xf32, #tpu.memory_space<vmem>>, vector<2x768xf32>
    %c0_1 = arith.constant 0 : index
    %c0_2 = arith.constant 0 : index
    %1 = vector.load %arg2[%c0_1, %c0_2] : memref<768x256xf32, #tpu.memory_space<vmem>>, vector<768x256xf32>
    %cst = arith.constant dense<0.000000e+00> : vector<2x256xf32>
    %2 = tpu.matmul %0, %1, %cst {dimension_numbers = #tpu.dot_dimension_numbers<[1], [0], [0], [1], [0, 0, 1, 1], [], []>} : vector<2x768xf32>, vector<768x256xf32>, vector<2x256xf32> -> vector<2x256xf32>
    %c0_3 = arith.constant 0 : index
    %c0_4 = arith.constant 0 : index
    %3 = vector.load %arg3[%c0_3, %c0_4] : memref<1x256xf32, #tpu.memory_space<vmem>>, vector<1x256xf32>
    %4 = vector.broadcast %3 : vector<1x256xf32> to vector<2x256xf32>
    %5 = arith.addf %2, %4 : vector<2x256xf32>
    %c0_5 = arith.constant 0 : index
    %c0_6 = arith.constant 0 : index
    %6 = vector.load %arg0[%c0_5, %c0_6] : memref<2x256xf32, #tpu.memory_space<vmem>>, vector<2x256xf32>
    %c0_7 = arith.constant 0 : index
    %c0_8 = arith.constant 0 : index
    %7 = vector.load %arg4[%c0_7, %c0_8] : memref<1x256xf32, #tpu.memory_space<vmem>>, vector<1x256xf32>
    %8 = vector.broadcast %7 : vector<1x256xf32> to vector<2x256xf32>
    %9 = arith.mulf %6, %8 : vector<2x256xf32>
    %cst_9 = arith.constant dense<0.000000e+00> : vector<2xf32>
    %10 = vector.multi_reduction <add>, %9, %cst_9 [1] : vector<2x256xf32> to vector<2xf32>
    %11 = vector.shape_cast %10 : vector<2xf32> to vector<2x1xf32>
    %c0_10 = arith.constant 0 : index
    %c0_11 = arith.constant 0 : index
    %12 = vector.load %arg5[%c0_10, %c0_11] : memref<1x256xf32, #tpu.memory_space<vmem>>, vector<1x256xf32>
    %13 = vector.broadcast %12 : vector<1x256xf32> to vector<2x256xf32>
    %14 = arith.mulf %5, %13 : vector<2x256xf32>
    %cst_12 = arith.constant dense<0.000000e+00> : vector<2xf32>
    %15 = vector.multi_reduction <add>, %14, %cst_12 [1] : vector<2x256xf32> to vector<2xf32>
    %16 = vector.shape_cast %15 : vector<2xf32> to vector<2x1xf32>
    %17 = arith.addf %11, %16 : vector<2x1xf32>
    %c0_13 = arith.constant 0 : index
    %c0_14 = arith.constant 0 : index
    %18 = vector.load %arg6[%c0_13, %c0_14] : memref<1x1xf32, #tpu.memory_space<vmem>>, vector<1x1xf32>
    %19 = vector.broadcast %18 : vector<1x1xf32> to vector<2x1xf32>
    %20 = arith.addf %17, %19 : vector<2x1xf32>
    %c0_15 = arith.constant 0 : index
    %c0_16 = arith.constant 0 : index
    %21 = vector.load %arg7[%c0_15, %c0_16] : memref<2x1xf32, #tpu.memory_space<vmem>>, vector<2x1xf32>
    tpu.vector_store %arg7[%c0_15, %c0_16], %20 {strides = array<i32>} : memref<2x1xf32, #tpu.memory_space<vmem>>, vector<2x1xf32>,
    return
  }
}

</mosaic_0001>

<llo_original>
// kernel: discriminator_forward.6
$region0: #{discriminator_forward.6}
  #allocation0 [shape = 'u32[]', space=smem, size = 0x4, offset = 0x4, fixed_abs, tag = 'smem constant byte address 0x4 - core index']
  #allocation1 [shape = 'u32[144,128]{1,0:T(1,128)}', space=vmem, size = 0x12000, scoped, tag = 'internal scratch']
  %s0 = inlined_call_operand.vmem [shape: bf16[450,384], index: 0, kind: input, shape index: {}]
  %s1 = inlined_call_operand.vmem [shape: bf16[384,64], index: 1, kind: input, shape index: {}]
  %s2 = inlined_call_operand.vmem [shape: f32[1,64], index: 2, kind: input, shape index: {}]
  %s3 = inlined_call_operand.vmem [shape: bf16[450,64], index: 3, kind: output, shape index: {}]
  %s4 = sld [smem:[#allocation0]]
  $region22: #{discriminator_forward.6} parent=0
    _
  %s6 = ssub.s32 1, %s4
  %s7 = scalar_select 0, %s6, %s4
  // Predicated region
  $region2: #{discriminator_forward.6} parent=0 // pred_check
    _
  $region3: #{discriminator_forward.6} parent=0 // pred_check_branch
    %9 = sbr.rel (0) target = $region5
  $region4: #{discriminator_forward.6} parent=0 // pred_region
    _
  $region5: #{discriminator_forward.6} parent=0 // pred_fallthru
    _
  // Predicated region
  $region6: #{discriminator_forward.6} parent=0 // pred_check
    _
  $region7: #{discriminator_forward.6} parent=0 // pred_check_branch
    %11 = sbr.rel (0) target = $region9
  $region8: #{discriminator_forward.6} parent=0 // pred_region
    _
  $region9: #{discriminator_forward.6} parent=0 // pred_fallthru
    _
  // Predicated region
  $region10: #{discriminator_forward.6} parent=0 // pred_check
    _
  $region11: #{discriminator_forward.6} parent=0 // pred_check_branch
    %13 = sbr.rel (0) target = $region13
  $region12: #{discriminator_forward.6} parent=0 // pred_region
    _
  $region13: #{discriminator_forward.6} parent=0 // pred_fallthru
    _
  %v15 = vld [vmem:[%s0] sm:$0xff]
  %v16 = vld [vmem:[%s0 + $0x8] sm:$0xf]
  %v17 = vld [vmem:[%s0 + $0xc] sm:$0xff]
  %v18 = vld [vmem:[%s0 + $0x14] sm:$0xf]
  %v19 = vld [vmem:[%s0 + $0x18] sm:$0xff]
  %v20 = vld [vmem:[%s0 + $0x20] sm:$0xf]
  %v21 = vld [vmem:[%s0 + $0x24] sm:$0xff]
  %v22 = vld [vmem:[%s0 + $0x2c] sm:$0xf]
  %v23 = vld [vmem:[%s0 + $0x30] sm:$0xff]
  %v24 = vld [vmem:[%s0 + $0x38] sm:$0xf]
  %v25 = vld [vmem:[%s0 + $0x3c] sm:$0xff]
  %v26 = vld [vmem:[%s0 + $0x44] sm:$0xf]
  %v27 = vld [vmem:[%s0 + $0x48] sm:$0xff]
  %v28 = vld [vmem:[%s0 + $0x50] sm:$0xf]
  %v29 = vld [vmem:[%s0 + $0x54] sm:$0xff]
  %v30 = vld [vmem:[%s0 + $0x5c] sm:$0xf]
  %v31 = vld [vmem:[%s0 + $0x60] sm:$0xff]
  %v32 = vld [vmem:[%s0 + $0x68] sm:$0xf]
  %v33 = vld [vmem:[%s0 + $0x6c] sm:$0xff]
  %v34 = vld [vmem:[%s0 + $0x74] sm:$0xf]
  %v35 = vld [vmem:[%s0 + $0x78] sm:$0xff]
  %v36 = vld [vmem:[%s0 + $0x80] sm:$0xf]
  %v37 = vld [vmem:[%s0 + $0x84] sm:$0xff]
  %v38 = vld [vmem:[%s0 + $0x8c] sm:$0xf]
  %v39 = vld [vmem:[%s0 + $0x90] sm:$0xff]
  %v40 = vld [vmem:[%s0 + $0x98] sm:$0xf]
  %v41 = vld [vmem:[%s0 + $0x9c] sm:$0xff]
  %v42 = vld [vmem:[%s0 + $0xa4] sm:$0xf]
  %v43 = vld [vmem:[%s0 + $0xa8] sm:$0xff]
  %v44 = vld [vmem:[%s0 + $0xb0] sm:$0xf]
  %v45 = vld [vmem:[%s0 + $0xb4] sm:$0xff]
  %v46 = vld [vmem:[%s0 + $0xbc] sm:$0xf]
  %v47 = vld [vmem:[%s0 + $0xc0] sm:$0xff]
  %v48 = vld [vmem:[%s0 + $0xc8] sm:$0xf]
  %v49 = vld [vmem:[%s0 + $0xcc] sm:$0xff]
  %v50 = vld [vmem:[%s0 + $0xd4] sm:$0xf]
  %v51 = vld [vmem:[%s0 + $0xd8] sm:$0xff]
  %v52 = vld [vmem:[%s0 + $0xe0] sm:$0xf]
  %v53 = vld [vmem:[%s0 + $0xe4] sm:$0xff]
  %v54 = vld [vmem:[%s0 + $0xec] sm:$0xf]
  %v55 = vld [vmem:[%s0 + $0xf0] sm:$0xff]
  %v56 = vld [vmem:[%s0 + $0xf8] sm:$0xf]
  %v57 = vld [vmem:[%s0 + $0xfc] sm:$0xff]
  %v58 = vld [vmem:[%s0 + $0x104] sm:$0xf]
  %v59 = vld [vmem:[%s0 + $0x108] sm:$0xff]
  %v60 = vld [vmem:[%s0 + $0x110] sm:$0xf]
  %v61 = vld [vmem:[%s0 + $0x114] sm:$0xff]
  %v62 = vld [vmem:[%s0 + $0x11c] sm:$0xf]
  %v63 = vld [vmem:[%s0 + $0x120] sm:$0xff]
  %v64 = vld [vmem:[%s0 + $0x128] sm:$0xf]
  %v65 = vld [vmem:[%s0 + $0x12c] sm:$0xff]
  %v66 = vld [vmem:[%s0 + $0x134] sm:$0xf]
  %v67 = vld [vmem:[%s0 + $0x138] sm:$0xff]
  %v68 = vld [vmem:[%s0 + $0x140] sm:$0xf]
  %v69 = vld [vmem:[%s0 + $0x144] sm:$0xff]
  %v70 = vld [vmem:[%s0 + $0x14c] sm:$0xf]
  %v71 = vld [vmem:[%s0 + $0x150] sm:$0xff]
  %v72 = vld [vmem:[%s0 + $0x158] sm:$0xf]
  %v73 = vld [vmem:[%s0 + $0x15c] sm:$0xff]
  %v74 = vld [vmem:[%s0 + $0x164] sm:$0xf]
  %v75 = vld [vmem:[%s0 + $0x168] sm:$0xff]
  %v76 = vld [vmem:[%s0 + $0x170] sm:$0xf]
  %v77 = vld [vmem:[%s0 + $0x174] sm:$0xff]
  %v78 = vld [vmem:[%s0 + $0x17c] sm:$0xf]
  %v79 = vld [vmem:[%s0 + $0x180] sm:$0xff]
  %v80 = vld [vmem:[%s0 + $0x188] sm:$0xf]
  %v81 = vld [vmem:[%s0 + $0x18c] sm:$0xff]
  %v82 = vld [vmem:[%s0 + $0x194] sm:$0xf]
  %v83 = vld [vmem:[%s0 + $0x198] sm:$0xff]
  %v84 = vld [vmem:[%s0 + $0x1a0] sm:$0xf]
  %v85 = vld [vmem:[%s0 + $0x1a4] sm:$0xff]
  %v86 = vld [vmem:[%s0 + $0x1ac] sm:$0xf]
  %v87 = vld [vmem:[%s0 + $0x1b0] sm:$0xff]
  %v88 = vld [vmem:[%s0 + $0x1b8] sm:$0xf]
  %v89 = vld [vmem:[%s0 + $0x1bc] sm:$0xff]
  %v90 = vld [vmem:[%s0 + $0x1c4] sm:$0xf]
  %v91 = vld [vmem:[%s0 + $0x1c8] sm:$0xff]
  %v92 = vld [vmem:[%s0 + $0x1d0] sm:$0xf]
  %v93 = vld [vmem:[%s0 + $0x1d4] sm:$0xff]
  %v94 = vld [vmem:[%s0 + $0x1dc] sm:$0xf]
  %v95 = vld [vmem:[%s0 + $0x1e0] sm:$0xff]
  %v96 = vld [vmem:[%s0 + $0x1e8] sm:$0xf]
  %v97 = vld [vmem:[%s0 + $0x1ec] sm:$0xff]
  %v98 = vld [vmem:[%s0 + $0x1f4] sm:$0xf]
  %v99 = vld [vmem:[%s0 + $0x1f8] sm:$0xff]
  %v100 = vld [vmem:[%s0 + $0x200] sm:$0xf]
  %v101 = vld [vmem:[%s0 + $0x204] sm:$0xff]
  %v102 = vld [vmem:[%s0 + $0x20c] sm:$0xf]
  %v103 = vld [vmem:[%s0 + $0x210] sm:$0xff]
  %v104 = vld [vmem:[%s0 + $0x218] sm:$0xf]
  %v105 = vld [vmem:[%s0 + $0x21c] sm:$0xff]
  %v106 = vld [vmem:[%s0 + $0x224] sm:$0xf]
  %v107 = vld [vmem:[%s0 + $0x228] sm:$0xff]
  %v108 = vld [vmem:[%s0 + $0x230] sm:$0xf]
  %v109 = vld [vmem:[%s0 + $0x234] sm:$0xff]
  %v110 = vld [vmem:[%s0 + $0x23c] sm:$0xf]
  %v111 = vld [vmem:[%s0 + $0x240] sm:$0xff]
  %v112 = vld [vmem:[%s0 + $0x248] sm:$0xf]
  %v113 = vld [vmem:[%s0 + $0x24c] sm:$0xff]
  %v114 = vld [vmem:[%s0 + $0x254] sm:$0xf]
  %v115 = vld [vmem:[%s0 + $0x258] sm:$0xff]
  %v116 = vld [vmem:[%s0 + $0x260] sm:$0xf]
  %v117 = vld [vmem:[%s0 + $0x264] sm:$0xff]
  %v118 = vld [vmem:[%s0 + $0x26c] sm:$0xf]
  %v119 = vld [vmem:[%s0 + $0x270] sm:$0xff]
  %v120 = vld [vmem:[%s0 + $0x278] sm:$0xf]
  %v121 = vld [vmem:[%s0 + $0x27c] sm:$0xff]
  %v122 = vld [vmem:[%s0 + $0x284] sm:$0xf]
  %v123 = vld [vmem:[%s0 + $0x288] sm:$0xff]
  %v124 = vld [vmem:[%s0 + $0x290] sm:$0xf]
  %v125 = vld [vmem:[%s0 + $0x294] sm:$0xff]
  %v126 = vld [vmem:[%s0 + $0x29c] sm:$0xf]
  %v127 = vld [vmem:[%s0 + $0x2a0] sm:$0x11]
  %v128 = vld [vmem:[%s0 + $0x2a8] sm:$0x1]
  %v129 = vld [vmem:[%s1] sm:$0xf]
  %v130 = vld [vmem:[%s1 + $0x4] sm:$0xf]
  %v131 = vld [vmem:[%s1 + $0x8] sm:$0xf]
  %v132 = vld [vmem:[%s1 + $0xc] sm:$0xf]
  %v133 = vld [vmem:[%s1 + $0x10] sm:$0xf]
  %v134 = vld [vmem:[%s1 + $0x14] sm:$0xf]
  %v135 = vld [vmem:[%s1 + $0x18] sm:$0xf]
  %v136 = vld [vmem:[%s1 + $0x1c] sm:$0xf]
  %v137 = vld [vmem:[%s1 + $0x20] sm:$0xf]
  %v138 = vld [vmem:[%s1 + $0x24] sm:$0xf]
  %v139 = vld [vmem:[%s1 + $0x28] sm:$0xf]
  %v140 = vld [vmem:[%s1 + $0x2c] sm:$0xf]
  %v141 = vld [vmem:[%s1 + $0x30] sm:$0xf]
  %v142 = vld [vmem:[%s1 + $0x34] sm:$0xf]
  %v143 = vld [vmem:[%s1 + $0x38] sm:$0xf]
  %v144 = vld [vmem:[%s1 + $0x3c] sm:$0xf]
  %v145 = vld [vmem:[%s1 + $0x40] sm:$0xf]
  %v146 = vld [vmem:[%s1 + $0x44] sm:$0xf]
  %v147 = vld [vmem:[%s1 + $0x48] sm:$0xf]
  %v148 = vld [vmem:[%s1 + $0x4c] sm:$0xf]
  %v149 = vld [vmem:[%s1 + $0x50] sm:$0xf]
  %v150 = vld [vmem:[%s1 + $0x54] sm:$0xf]
  %v151 = vld [vmem:[%s1 + $0x58] sm:$0xf]
  %v152 = vld [vmem:[%s1 + $0x5c] sm:$0xf]
  %v153 = vld [vmem:[%s1 + $0x60] sm:$0xf]
  %v154 = vld [vmem:[%s1 + $0x64] sm:$0xf]
  %v155 = vld [vmem:[%s1 + $0x68] sm:$0xf]
  %v156 = vld [vmem:[%s1 + $0x6c] sm:$0xf]
  %v157 = vld [vmem:[%s1 + $0x70] sm:$0xf]
  %v158 = vld [vmem:[%s1 + $0x74] sm:$0xf]
  %v159 = vld [vmem:[%s1 + $0x78] sm:$0xf]
  %v160 = vld [vmem:[%s1 + $0x7c] sm:$0xf]
  %v161 = vld [vmem:[%s1 + $0x80] sm:$0xf]
  %v162 = vld [vmem:[%s1 + $0x84] sm:$0xf]
  %v163 = vld [vmem:[%s1 + $0x88] sm:$0xf]
  %v164 = vld [vmem:[%s1 + $0x8c] sm:$0xf]
  %v165 = vld [vmem:[%s1 + $0x90] sm:$0xf]
  %v166 = vld [vmem:[%s1 + $0x94] sm:$0xf]
  %v167 = vld [vmem:[%s1 + $0x98] sm:$0xf]
  %v168 = vld [vmem:[%s1 + $0x9c] sm:$0xf]
  %v169 = vld [vmem:[%s1 + $0xa0] sm:$0xf]
  %v170 = vld [vmem:[%s1 + $0xa4] sm:$0xf]
  %v171 = vld [vmem:[%s1 + $0xa8] sm:$0xf]
  %v172 = vld [vmem:[%s1 + $0xac] sm:$0xf]
  %v173 = vld [vmem:[%s1 + $0xb0] sm:$0xf]
  %v174 = vld [vmem:[%s1 + $0xb4] sm:$0xf]
  %v175 = vld [vmem:[%s1 + $0xb8] sm:$0xf]
  %v176 = vld [vmem:[%s1 + $0xbc] sm:$0xf]
  %v177 = vld [vmem:[%s2] sm:$0x1]
  %v179 = vlaneseq
  %v180 = vshrl.u32 %v179, 7
  %v181 = vsub.s32 0, %v180
  %v182 = vrot.slane %v177, %v181
  %v298 = vunpack.c.l.b16 %v15
  %v299 = vunpack.c.h.b16 %v15
  %v300 = vunpack.c.l.b16 %v16
  %v301 = vunpack.c.l.b16 %v17
  %v302 = vunpack.c.h.b16 %v17
  %v303 = vunpack.c.l.b16 %v18
  %v304 = vunpack.c.l.b16 %v19
  %v305 = vunpack.c.h.b16 %v19
  %v306 = vunpack.c.l.b16 %v20
  %v307 = vunpack.c.l.b16 %v21
  %v308 = vunpack.c.h.b16 %v21
  %v309 = vunpack.c.l.b16 %v22
  %v310 = vunpack.c.l.b16 %v23
  %v311 = vunpack.c.h.b16 %v23
  %v312 = vunpack.c.l.b16 %v24
  %v313 = vunpack.c.l.b16 %v25
  %v314 = vunpack.c.h.b16 %v25
  %v315 = vunpack.c.l.b16 %v26
  %v316 = vunpack.c.l.b16 %v27
  %v317 = vunpack.c.h.b16 %v27
  %v318 = vunpack.c.l.b16 %v28
  %v319 = vunpack.c.l.b16 %v29
  %v320 = vunpack.c.h.b16 %v29
  %v321 = vunpack.c.l.b16 %v30
  %v322 = vunpack.c.l.b16 %v31
  %v323 = vunpack.c.h.b16 %v31
  %v324 = vunpack.c.l.b16 %v32
  %v325 = vunpack.c.l.b16 %v33
  %v326 = vunpack.c.h.b16 %v33
  %v327 = vunpack.c.l.b16 %v34
  %v328 = vunpack.c.l.b16 %v35
  %v329 = vunpack.c.h.b16 %v35
  %v330 = vunpack.c.l.b16 %v36
  %v331 = vunpack.c.l.b16 %v37
  %v332 = vunpack.c.h.b16 %v37
  %v333 = vunpack.c.l.b16 %v38
  %v334 = vunpack.c.l.b16 %v39
  %v335 = vunpack.c.h.b16 %v39
  %v336 = vunpack.c.l.b16 %v40
  %v337 = vunpack.c.l.b16 %v41
  %v338 = vunpack.c.h.b16 %v41
  %v339 = vunpack.c.l.b16 %v42
  %v340 = vunpack.c.l.b16 %v43
  %v341 = vunpack.c.h.b16 %v43
  %v342 = vunpack.c.l.b16 %v44
  %v343 = vunpack.c.l.b16 %v45
  %v344 = vunpack.c.h.b16 %v45
  %v345 = vunpack.c.l.b16 %v46
  %v346 = vunpack.c.l.b16 %v47
  %v347 = vunpack.c.h.b16 %v47
  %v348 = vunpack.c.l.b16 %v48
  %v349 = vunpack.c.l.b16 %v49
  %v350 = vunpack.c.h.b16 %v49
  %v351 = vunpack.c.l.b16 %v50
  %v352 = vunpack.c.l.b16 %v51
  %v353 = vunpack.c.h.b16 %v51
  %v354 = vunpack.c.l.b16 %v52
  %v355 = vunpack.c.l.b16 %v53
  %v356 = vunpack.c.h.b16 %v53
  %v357 = vunpack.c.l.b16 %v54
  %v358 = vunpack.c.l.b16 %v55
  %v359 = vunpack.c.h.b16 %v55
  %v360 = vunpack.c.l.b16 %v56
  %v361 = vunpack.c.l.b16 %v57
  %v362 = vunpack.c.h.b16 %v57
  %v363 = vunpack.c.l.b16 %v58
  %v364 = vunpack.c.l.b16 %v59
  %v365 = vunpack.c.h.b16 %v59
  %v366 = vunpack.c.l.b16 %v60
  %v367 = vunpack.c.l.b16 %v61
  %v368 = vunpack.c.h.b16 %v61
  %v369 = vunpack.c.l.b16 %v62
  %v370 = vunpack.c.l.b16 %v63
  %v371 = vunpack.c.h.b16 %v63
  %v372 = vunpack.c.l.b16 %v64
  %v373 = vunpack.c.l.b16 %v65
  %v374 = vunpack.c.h.b16 %v65
  %v375 = vunpack.c.l.b16 %v66
  %v376 = vunpack.c.l.b16 %v67
  %v377 = vunpack.c.h.b16 %v67
  %v378 = vunpack.c.l.b16 %v68
  %v379 = vunpack.c.l.b16 %v69
  %v380 = vunpack.c.h.b16 %v69
  %v381 = vunpack.c.l.b16 %v70
  %v382 = vunpack.c.l.b16 %v71
  %v383 = vunpack.c.h.b16 %v71
  %v384 = vunpack.c.l.b16 %v72
  %v385 = vunpack.c.l.b16 %v73
  %v386 = vunpack.c.h.b16 %v73
  %v387 = vunpack.c.l.b16 %v74
  %v388 = vunpack.c.l.b16 %v75
  %v389 = vunpack.c.h.b16 %v75
  %v390 = vunpack.c.l.b16 %v76
  %v391 = vunpack.c.l.b16 %v77
  %v392 = vunpack.c.h.b16 %v77
  %v393 = vunpack.c.l.b16 %v78
  %v394 = vunpack.c.l.b16 %v79
  %v395 = vunpack.c.h.b16 %v79
  %v396 = vunpack.c.l.b16 %v80
  %v397 = vunpack.c.l.b16 %v81
  %v398 = vunpack.c.h.b16 %v81
  %v399 = vunpack.c.l.b16 %v82
  %v400 = vunpack.c.l.b16 %v83
  %v401 = vunpack.c.h.b16 %v83
  %v402 = vunpack.c.l.b16 %v84
  %v403 = vunpack.c.l.b16 %v85
  %v404 = vunpack.c.h.b16 %v85
  %v405 = vunpack.c.l.b16 %v86
  %v406 = vunpack.c.l.b16 %v87
  %v407 = vunpack.c.h.b16 %v87
  %v408 = vunpack.c.l.b16 %v88
  %v409 = vunpack.c.l.b16 %v89
  %v410 = vunpack.c.h.b16 %v89
  %v411 = vunpack.c.l.b16 %v90
  %v412 = vunpack.c.l.b16 %v91
  %v413 = vunpack.c.h.b16 %v91
  %v414 = vunpack.c.l.b16 %v92
  %v415 = vunpack.c.l.b16 %v93
  %v416 = vunpack.c.h.b16 %v93
  %v417 = vunpack.c.l.b16 %v94
  %v418 = vunpack.c.l.b16 %v95
  %v419 = vunpack.c.h.b16 %v95
  %v420 = vunpack.c.l.b16 %v96
  %v421 = vunpack.c.l.b16 %v97
  %v422 = vunpack.c.h.b16 %v97
  %v423 = vunpack.c.l.b16 %v98
  %v424 = vunpack.c.l.b16 %v99
  %v425 = vunpack.c.h.b16 %v99
  %v426 = vunpack.c.l.b16 %v100
  %v427 = vunpack.c.l.b16 %v101
  %v428 = vunpack.c.h.b16 %v101
  %v429 = vunpack.c.l.b16 %v102
  %v430 = vunpack.c.l.b16 %v103
  %v431 = vunpack.c.h.b16 %v103
  %v432 = vunpack.c.l.b16 %v104
  %v433 = vunpack.c.l.b16 %v105
  %v434 = vunpack.c.h.b16 %v105
  %v435 = vunpack.c.l.b16 %v106
  %v436 = vunpack.c.l.b16 %v107
  %v437 = vunpack.c.h.b16 %v107
  %v438 = vunpack.c.l.b16 %v108
  %v439 = vunpack.c.l.b16 %v109
  %v440 = vunpack.c.h.b16 %v109
  %v441 = vunpack.c.l.b16 %v110
  %v442 = vunpack.c.l.b16 %v111
  %v443 = vunpack.c.h.b16 %v111
  %v444 = vunpack.c.l.b16 %v112
  %v445 = vunpack.c.l.b16 %v113
  %v446 = vunpack.c.h.b16 %v113
  %v447 = vunpack.c.l.b16 %v114
  %v448 = vunpack.c.l.b16 %v115
  %v449 = vunpack.c.h.b16 %v115
  %v450 = vunpack.c.l.b16 %v116
  %v451 = vunpack.c.l.b16 %v117
  %v452 = vunpack.c.h.b16 %v117
  %v453 = vunpack.c.l.b16 %v118
  %v454 = vunpack.c.l.b16 %v119
  %v455 = vunpack.c.h.b16 %v119
  %v456 = vunpack.c.l.b16 %v120
  %v457 = vunpack.c.l.b16 %v121
  %v458 = vunpack.c.h.b16 %v121
  %v459 = vunpack.c.l.b16 %v122
  %v460 = vunpack.c.l.b16 %v123
  %v461 = vunpack.c.h.b16 %v123
  %v462 = vunpack.c.l.b16 %v124
  %v463 = vunpack.c.l.b16 %v125
  %v464 = vunpack.c.h.b16 %v125
  %v465 = vunpack.c.l.b16 %v126
  %v466 = vunpack.c.l.b16 %v127
  %v467 = vunpack.c.h.b16 %v127
  %v468 = vunpack.c.l.b16 %v128
  %v469 = vpack.c.b16 %v301, %v298
  %v470 = vpack.c.b16 %v302, %v299
  %v471 = vpack.c.b16 %v303, %v300
  %v472 = vpack.c.b16 %v307, %v304
  %v473 = vpack.c.b16 %v308, %v305
  %v474 = vpack.c.b16 %v309, %v306
  %v475 = vpack.c.b16 %v313, %v310
  %v476 = vpack.c.b16 %v314, %v311
  %v477 = vpack.c.b16 %v315, %v312
  %v478 = vpack.c.b16 %v319, %v316
  %v479 = vpack.c.b16 %v320, %v317
  %v480 = vpack.c.b16 %v321, %v318
  %v481 = vpack.c.b16 %v325, %v322
  %v482 = vpack.c.b16 %v326, %v323
  %v483 = vpack.c.b16 %v327, %v324
  %v484 = vpack.c.b16 %v331, %v328
  %v485 = vpack.c.b16 %v332, %v329
  %v486 = vpack.c.b16 %v333, %v330
  %v487 = vpack.c.b16 %v337, %v334
  %v488 = vpack.c.b16 %v338, %v335
  %v489 = vpack.c.b16 %v339, %v336
  %v490 = vpack.c.b16 %v343, %v340
  %v491 = vpack.c.b16 %v344, %v341
  %v492 = vpack.c.b16 %v345, %v342
  %v493 = vpack.c.b16 %v349, %v346
  %v494 = vpack.c.b16 %v350, %v347
  %v495 = vpack.c.b16 %v351, %v348
  %v496 = vpack.c.b16 %v355, %v352
  %v497 = vpack.c.b16 %v356, %v353
  %v498 = vpack.c.b16 %v357, %v354
  %v499 = vpack.c.b16 %v361, %v358
  %v500 = vpack.c.b16 %v362, %v359
  %v501 = vpack.c.b16 %v363, %v360
  %v502 = vpack.c.b16 %v367, %v364
  %v503 = vpack.c.b16 %v368, %v365
  %v504 = vpack.c.b16 %v369, %v366
  %v505 = vpack.c.b16 %v373, %v370
  %v506 = vpack.c.b16 %v374, %v371
  %v507 = vpack.c.b16 %v375, %v372
  %v508 = vpack.c.b16 %v379, %v376
  %v509 = vpack.c.b16 %v380, %v377
  %v510 = vpack.c.b16 %v381, %v378
  %v511 = vpack.c.b16 %v385, %v382
  %v512 = vpack.c.b16 %v386, %v383
  %v513 = vpack.c.b16 %v387, %v384
  %v514 = vpack.c.b16 %v391, %v388
  %v515 = vpack.c.b16 %v392, %v389
  %v516 = vpack.c.b16 %v393, %v390
  %v517 = vpack.c.b16 %v397, %v394
  %v518 = vpack.c.b16 %v398, %v395
  %v519 = vpack.c.b16 %v399, %v396
  %v520 = vpack.c.b16 %v403, %v400
  %v521 = vpack.c.b16 %v404, %v401
  %v522 = vpack.c.b16 %v405, %v402
  %v523 = vpack.c.b16 %v409, %v406
  %v524 = vpack.c.b16 %v410, %v407
  %v525 = vpack.c.b16 %v411, %v408
  %v526 = vpack.c.b16 %v415, %v412
  %v527 = vpack.c.b16 %v416, %v413
  %v528 = vpack.c.b16 %v417, %v414
  %v529 = vpack.c.b16 %v421, %v418
  %v530 = vpack.c.b16 %v422, %v419
  %v531 = vpack.c.b16 %v423, %v420
  %v532 = vpack.c.b16 %v427, %v424
  %v533 = vpack.c.b16 %v428, %v425
  %v534 = vpack.c.b16 %v429, %v426
  %v535 = vpack.c.b16 %v433, %v430
  %v536 = vpack.c.b16 %v434, %v431
  %v537 = vpack.c.b16 %v435, %v432
  %v538 = vpack.c.b16 %v439, %v436
  %v539 = vpack.c.b16 %v440, %v437
  %v540 = vpack.c.b16 %v441, %v438
  %v541 = vpack.c.b16 %v445, %v442
  %v542 = vpack.c.b16 %v446, %v443
  %v543 = vpack.c.b16 %v447, %v444
  %v544 = vpack.c.b16 %v451, %v448
  %v545 = vpack.c.b16 %v452, %v449
  %v546 = vpack.c.b16 %v453, %v450
  %v547 = vpack.c.b16 %v457, %v454
  %v548 = vpack.c.b16 %v458, %v455
  %v549 = vpack.c.b16 %v459, %v456
  %v550 = vpack.c.b16 %v463, %v460
  %v551 = vpack.c.b16 %v464, %v461
  %v552 = vpack.c.b16 %v465, %v462
  %v553 = vpack.c.b16 %v466, %v466
  %v554 = vpack.c.b16 %v467, %v467
  %v555 = vpack.c.b16 %v468, %v468
  %v691 = vunpack.c.l.b16 %v129
  %v692 = vunpack.c.l.b16 %v130
  %v693 = vunpack.c.l.b16 %v131
  %v694 = vunpack.c.l.b16 %v132
  %v695 = vunpack.c.l.b16 %v133
  %v696 = vunpack.c.l.b16 %v134
  %v697 = vunpack.c.l.b16 %v135
  %v698 = vunpack.c.l.b16 %v136
  %v699 = vunpack.c.l.b16 %v137
  %v700 = vunpack.c.l.b16 %v138
  %v701 = vunpack.c.l.b16 %v139
  %v702 = vunpack.c.l.b16 %v140
  %v703 = vunpack.c.l.b16 %v141
  %v704 = vunpack.c.l.b16 %v142
  %v705 = vunpack.c.l.b16 %v143
  %v706 = vunpack.c.l.b16 %v144
  %v707 = vunpack.c.l.b16 %v145
  %v708 = vunpack.c.l.b16 %v146
  %v709 = vunpack.c.l.b16 %v147
  %v710 = vunpack.c.l.b16 %v148
  %v711 = vunpack.c.l.b16 %v149
  %v712 = vunpack.c.l.b16 %v150
  %v713 = vunpack.c.l.b16 %v151
  %v714 = vunpack.c.l.b16 %v152
  %v715 = vunpack.c.l.b16 %v153
  %v716 = vunpack.c.l.b16 %v154
  %v717 = vunpack.c.l.b16 %v155
  %v718 = vunpack.c.l.b16 %v156
  %v719 = vunpack.c.l.b16 %v157
  %v720 = vunpack.c.l.b16 %v158
  %v721 = vunpack.c.l.b16 %v159
  %v722 = vunpack.c.l.b16 %v160
  %v723 = vunpack.c.l.b16 %v161
  %v724 = vunpack.c.l.b16 %v162
  %v725 = vunpack.c.l.b16 %v163
  %v726 = vunpack.c.l.b16 %v164
  %v727 = vunpack.c.l.b16 %v165
  %v728 = vunpack.c.l.b16 %v166
  %v729 = vunpack.c.l.b16 %v167
  %v730 = vunpack.c.l.b16 %v168
  %v731 = vunpack.c.l.b16 %v169
  %v732 = vunpack.c.l.b16 %v170
  %v733 = vunpack.c.l.b16 %v171
  %v734 = vunpack.c.l.b16 %v172
  %v735 = vunpack.c.l.b16 %v173
  %v736 = vunpack.c.l.b16 %v174
  %v737 = vunpack.c.l.b16 %v175
  %v738 = vunpack.c.l.b16 %v176
  %v739 = vpack.c.b16 %v692, %v691
  %v740 = vpack.c.b16 %v694, %v693
  %v741 = vpack.c.b16 %v696, %v695
  %v742 = vpack.c.b16 %v698, %v697
  %v743 = vpack.c.b16 %v700, %v699
  %v744 = vpack.c.b16 %v702, %v701
  %v745 = vpack.c.b16 %v704, %v703
  %v746 = vpack.c.b16 %v706, %v705
  %v747 = vpack.c.b16 %v708, %v707
  %v748 = vpack.c.b16 %v710, %v709
  %v749 = vpack.c.b16 %v712, %v711
  %v750 = vpack.c.b16 %v714, %v713
  %v751 = vpack.c.b16 %v716, %v715
  %v752 = vpack.c.b16 %v718, %v717
  %v753 = vpack.c.b16 %v720, %v719
  %v754 = vpack.c.b16 %v722, %v721
  %v755 = vpack.c.b16 %v724, %v723
  %v756 = vpack.c.b16 %v726, %v725
  %v757 = vpack.c.b16 %v728, %v727
  %v758 = vpack.c.b16 %v730, %v729
  %v759 = vpack.c.b16 %v732, %v731
  %v760 = vpack.c.b16 %v734, %v733
  %v761 = vpack.c.b16 %v736, %v735
  %v762 = vpack.c.b16 %v738, %v737
  %787 = vmatprep.subr.bf16.mxu0 0
  %788 = vmatpush1.bf16.msra.mxu0 %v739
  %789 = vmatprep.subr.bf16.mxu0 0
  %790 = vmatpush1.bf16.msra.mxu0 %v740
  %791 = vmatprep.subr.bf16.mxu0 0
  %792 = vmatpush1.bf16.msra.mxu0 %v741
  %793 = vmatprep.subr.bf16.mxu0 0
  %794 = vmatpush1.bf16.msra.mxu0 %v742
  %795 = vmatprep.subr.bf16.mxu0 0
  %796 = vmatpush1.bf16.msra.mxu0 %v743
  %797 = vmatprep.subr.bf16.mxu0 0
  %798 = vmatpush1.bf16.msra.mxu0 %v744
  %799 = vmatprep.subr.bf16.mxu0 0
  %800 = vmatpush1.bf16.msra.mxu0 %v745
  %801 = vmatprep.subr.bf16.mxu0 0
  %802 = vmatpush1.bf16.msra.mxu0 %v746
  %803 = vmatprep.subr.bf16.mxu0 0
  %804 = vmatpush1.bf16.msra.mxu0 %v747
  %805 = vmatprep.subr.bf16.mxu0 0
  %806 = vmatpush1.bf16.msra.mxu0 %v748
  %807 = vmatprep.subr.bf16.mxu0 0
  %808 = vmatpush1.bf16.msra.mxu0 %v749
  %809 = vmatprep.subr.bf16.mxu0 0
  %810 = vmatpush1.bf16.msra.mxu0 %v750
  %811 = vmatprep.subr.bf16.mxu0 0
  %812 = vmatpush1.bf16.msra.mxu0 %v751
  %813 = vmatprep.subr.bf16.mxu0 0
  %814 = vmatpush1.bf16.msra.mxu0 %v752
  %815 = vmatprep.subr.bf16.mxu0 0
  %816 = vmatpush1.bf16.msra.mxu0 %v753
  %817 = vmatprep.subr.bf16.mxu0 0
  %818 = vmatpush1.bf16.msra.mxu0 %v754
  %819 = vmatprep.mubr.bf16.mxu0 %v470
  %820 = vmatmul.mubr.bf16.gmra.mrb[0].mxu0 %v469
  %v821 = vpop.f32.mrb[0].mxu0
  %v822 = vadd.f32 %v182, %v821
  %v823 = vpop.f32.mrb[0].mxu0
  %v824 = vpop.f32.mrb[0].mxu0
  %v825 = vadd.f32 %v182, %v824
  %v826 = vpop.f32.mrb[0].mxu0
  %827 = vmatprep.mubr.bf16.mxu0 %v473
  %828 = vmatmul.mubr.bf16.gmra.mrb[0].mxu0 %v472
  %v829 = vpop.f32.mrb[0].mxu0
  %v830 = vadd.f32 %v182, %v829
  %v831 = vpop.f32.mrb[0].mxu0
  %v832 = vpop.f32.mrb[0].mxu0
  %v833 = vadd.f32 %v182, %v832
  %v834 = vpop.f32.mrb[0].mxu0
  %835 = vmatprep.mubr.bf16.mxu0 %v476
  %836 = vmatmul.mubr.bf16.gmra.mrb[0].mxu0 %v475
  %v837 = vpop.f32.mrb[0].mxu0
  %v838 = vadd.f32 %v182, %v837
  %v839 = vpop.f32.mrb[0].mxu0
  %v840 = vpop.f32.mrb[0].mxu0
  %v841 = vadd.f32 %v182, %v840
  %v842 = vpop.f32.mrb[0].mxu0
  %843 = vmatprep.mubr.bf16.mxu0 %v479
  %844 = vmatmul.mubr.bf16.gmra.mrb[0].mxu0 %v478
  %v845 = vpop.f32.mrb[0].mxu0
  %v846 = vadd.f32 %v182, %v845
  %v847 = vpop.f32.mrb[0].mxu0
  %v848 = vpop.f32.mrb[0].mxu0
  %v849 = vadd.f32 %v182, %v848
  %v850 = vpop.f32.mrb[0].mxu0
  %851 = vmatprep.mubr.bf16.mxu0 %v482
  %852 = vmatmul.mubr.bf16.gmra.mrb[0].mxu0 %v481
  %v853 = vpop.f32.mrb[0].mxu0
  %v854 = vadd.f32 %v182, %v853
  %v855 = vpop.f32.mrb[0].mxu0
  %v856 = vpop.f32.mrb[0].mxu0
  %v857 = vadd.f32 %v182, %v856
  %v858 = vpop.f32.mrb[0].mxu0
  %859 = vmatprep.mubr.bf16.mxu0 %v485
  %860 = vmatmul.mubr.bf16.gmra.mrb[0].mxu0 %v484
  %v861 = vpop.f32.mrb[0].mxu0
  %v862 = vadd.f32 %v182, %v861
  %v863 = vpop.f32.mrb[0].mxu0
  %v864 = vpop.f32.mrb[0].mxu0
  %v865 = vadd.f32 %v182, %v864
  %v866 = vpop.f32.mrb[0].mxu0
  %867 = vmatprep.mubr.bf16.mxu0 %v488
  %868 = vmatmul.mubr.bf16.gmra.mrb[0].mxu0 %v487
  %v869 = vpop.f32.mrb[0].mxu0
  %v870 = vadd.f32 %v182, %v869
  %v871 = vpop.f32.mrb[0].mxu0
  %v872 = vpop.f32.mrb[0].mxu0
  %v873 = vadd.f32 %v182, %v872
  %v874 = vpop.f32.mrb[0].mxu0
  %875 = vmatprep.mubr.bf16.mxu0 %v491
  %876 = vmatmul.mubr.bf16.gmra.mrb[0].mxu0 %v490
  %v877 = vpop.f32.mrb[0].mxu0
  %v878 = vadd.f32 %v182, %v877
  %v879 = vpop.f32.mrb[0].mxu0
  %v880 = vpop.f32.mrb[0].mxu0
  %v881 = vadd.f32 %v182, %v880
  %v882 = vpop.f32.mrb[0].mxu0
  %883 = vmatprep.mubr.bf16.mxu0 %v494
  %884 = vmatmul.mubr.bf16.gmra.mrb[0].mxu0 %v493
  %v885 = vpop.f32.mrb[0].mxu0
  %v886 = vadd.f32 %v182, %v885
  %v887 = vpop.f32.mrb[0].mxu0
  %v888 = vpop.f32.mrb[0].mxu0
  %v889 = vadd.f32 %v182, %v888
  %v890 = vpop.f32.mrb[0].mxu0
  %891 = vmatprep.mubr.bf16.mxu0 %v497
  %892 = vmatmul.mubr.bf16.gmra.mrb[0].mxu0 %v496
  %v893 = vpop.f32.mrb[0].mxu0
  %v894 = vadd.f32 %v182, %v893
  %v895 = vpop.f32.mrb[0].mxu0
  %v896 = vpop.f32.mrb[0].mxu0
  %v897 = vadd.f32 %v182, %v896
  %v898 = vpop.f32.mrb[0].mxu0
  %899 = vmatprep.mubr.bf16.mxu0 %v500
  %900 = vmatmul.mubr.bf16.gmra.mrb[0].mxu0 %v499
  %v901 = vpop.f32.mrb[0].mxu0
  %v902 = vadd.f32 %v182, %v901
  %v903 = vpop.f32.mrb[0].mxu0
  %v904 = vpop.f32.mrb[0].mxu0
  %v905 = vadd.f32 %v182, %v904
  %v906 = vpop.f32.mrb[0].mxu0
  %907 = vmatprep.mubr.bf16.mxu0 %v503
  %908 = vmatmul.mubr.bf16.gmra.mrb[0].mxu0 %v502
  %v909 = vpop.f32.mrb[0].mxu0
  %v910 = vadd.f32 %v182, %v909
  %v911 = vpop.f32.mrb[0].mxu0
  %v912 = vpop.f32.mrb[0].mxu0
  %v913 = vadd.f32 %v182, %v912
  %v914 = vpop.f32.mrb[0].mxu0
  %915 = vmatprep.mubr.bf16.mxu0 %v506
  %916 = vmatmul.mubr.bf16.gmra.mrb[0].mxu0 %v505
  %v917 = vpop.f32.mrb[0].mxu0
  %v918 = vadd.f32 %v182, %v917
  %v919 = vpop.f32.mrb[0].mxu0
  %v920 = vpop.f32.mrb[0].mxu0
  %v921 = vadd.f32 %v182, %v920
  %v922 = vpop.f32.mrb[0].mxu0
  %923 = vmatprep.mubr.bf16.mxu0 %v509
  %924 = vmatmul.mubr.bf16.gmra.mrb[0].mxu0 %v508
  %v925 = vpop.f32.mrb[0].mxu0
  %v926 = vadd.f32 %v182, %v925
  %v927 = vpop.f32.mrb[0].mxu0
  %v928 = vpop.f32.mrb[0].mxu0
  %v929 = vadd.f32 %v182, %v928
  %v930 = vpop.f32.mrb[0].mxu0
  %931 = vmatprep.mubr.bf16.mxu0 %v512
  %932 = vmatmul.mubr.bf16.gmra.mrb[0].mxu0 %v511
  %v933 = vpop.f32.mrb[0].mxu0
  %v934 = vadd.f32 %v182, %v933
  %v935 = vpop.f32.mrb[0].mxu0
  %v936 = vpop.f32.mrb[0].mxu0
  %v937 = vadd.f32 %v182, %v936
  %v938 = vpop.f32.mrb[0].mxu0
  %939 = vmatprep.mubr.bf16.mxu0 %v515
  %940 = vmatmul.mubr.bf16.gmra.mrb[0].mxu0 %v514
  %v941 = vpop.f32.mrb[0].mxu0
  %v942 = vadd.f32 %v182, %v941
  %v943 = vpop.f32.mrb[0].mxu0
  %v944 = vpop.f32.mrb[0].mxu0
  %v945 = vadd.f32 %v182, %v944
  %v946 = vpop.f32.mrb[0].mxu0
  %947 = vmatprep.mubr.bf16.mxu0 %v518
  %948 = vmatmul.mubr.bf16.gmra.mrb[0].mxu0 %v517
  %v949 = vpop.f32.mrb[0].mxu0
  %v950 = vadd.f32 %v182, %v949
  %v951 = vpop.f32.mrb[0].mxu0
  %v952 = vpop.f32.mrb[0].mxu0
  %v953 = vadd.f32 %v182, %v952
  %v954 = vpop.f32.mrb[0].mxu0
  %955 = vmatprep.mubr.bf16.mxu0 %v521
  %956 = vmatmul.mubr.bf16.gmra.mrb[0].mxu0 %v520
  %v957 = vpop.f32.mrb[0].mxu0
  %v958 = vadd.f32 %v182, %v957
  %v959 = vpop.f32.mrb[0].mxu0
  %v960 = vpop.f32.mrb[0].mxu0
  %v961 = vadd.f32 %v182, %v960
  %v962 = vpop.f32.mrb[0].mxu0
  %963 = vmatprep.mubr.bf16.mxu0 %v524
  %964 = vmatmul.mubr.bf16.gmra.mrb[0].mxu0 %v523
  %v965 = vpop.f32.mrb[0].mxu0
  %v966 = vadd.f32 %v182, %v965
  %v967 = vpop.f32.mrb[0].mxu0
  %v968 = vpop.f32.mrb[0].mxu0
  %v969 = vadd.f32 %v182, %v968
  %v970 = vpop.f32.mrb[0].mxu0
  %971 = vmatprep.mubr.bf16.mxu0 %v527
  %972 = vmatmul.mubr.bf16.gmra.mrb[0].mxu0 %v526
  %v973 = vpop.f32.mrb[0].mxu0
  %v974 = vadd.f32 %v182, %v973
  %v975 = vpop.f32.mrb[0].mxu0
  %v976 = vpop.f32.mrb[0].mxu0
  %v977 = vadd.f32 %v182, %v976
  %v978 = vpop.f32.mrb[0].mxu0
  %979 = vmatprep.mubr.bf16.mxu0 %v530
  %980 = vmatmul.mubr.bf16.gmra.mrb[0].mxu0 %v529
  %v981 = vpop.f32.mrb[0].mxu0
  %v982 = vadd.f32 %v182, %v981
  %v983 = vpop.f32.mrb[0].mxu0
  %v984 = vpop.f32.mrb[0].mxu0
  %v985 = vadd.f32 %v182, %v984
  %v986 = vpop.f32.mrb[0].mxu0
  %987 = vmatprep.mubr.bf16.mxu0 %v533
  %988 = vmatmul.mubr.bf16.gmra.mrb[0].mxu0 %v532
  %v989 = vpop.f32.mrb[0].mxu0
  %v990 = vadd.f32 %v182, %v989
  %v991 = vpop.f32.mrb[0].mxu0
  %v992 = vpop.f32.mrb[0].mxu0
  %v993 = vadd.f32 %v182, %v992
  %v994 = vpop.f32.mrb[0].mxu0
  %995 = vmatprep.mubr.bf16.mxu0 %v536
  %996 = vmatmul.mubr.bf16.gmra.mrb[0].mxu0 %v535
  %v997 = vpop.f32.mrb[0].mxu0
  %v998 = vadd.f32 %v182, %v997
  %v999 = vpop.f32.mrb[0].mxu0
  %v1000 = vpop.f32.mrb[0].mxu0
  %v1001 = vadd.f32 %v182, %v1000
  %v1002 = vpop.f32.mrb[0].mxu0
  %1003 = vmatprep.mubr.bf16.mxu0 %v539
  %1004 = vmatmul.mubr.bf16.gmra.mrb[0].mxu0 %v538
  %v1005 = vpop.f32.mrb[0].mxu0
  %v1006 = vadd.f32 %v182, %v1005
  %v1007 = vpop.f32.mrb[0].mxu0
  %v1008 = vpop.f32.mrb[0].mxu0
  %v1009 = vadd.f32 %v182, %v1008
  %v1010 = vpop.f32.mrb[0].mxu0
  %1011 = vmatprep.mubr.bf16.mxu0 %v542
  %1012 = vmatmul.mubr.bf16.gmra.mrb[0].mxu0 %v541
  %v1013 = vpop.f32.mrb[0].mxu0
  %v1014 = vadd.f32 %v182, %v1013
  %v1015 = vpop.f32.mrb[0].mxu0
  %v1016 = vpop.f32.mrb[0].mxu0
  %v1017 = vadd.f32 %v182, %v1016
  %v1018 = vpop.f32.mrb[0].mxu0
  %1019 = vmatprep.mubr.bf16.mxu0 %v545
  %1020 = vmatmul.mubr.bf16.gmra.mrb[0].mxu0 %v544
  %v1021 = vpop.f32.mrb[0].mxu0
  %v1022 = vadd.f32 %v182, %v1021
  %v1023 = vpop.f32.mrb[0].mxu0
  %v1024 = vpop.f32.mrb[0].mxu0
  %v1025 = vadd.f32 %v182, %v1024
  %v1026 = vpop.f32.mrb[0].mxu0
  %1027 = vmatprep.mubr.bf16.mxu0 %v548
  %1028 = vmatmul.mubr.bf16.gmra.mrb[0].mxu0 %v547
  %v1029 = vpop.f32.mrb[0].mxu0
  %v1030 = vadd.f32 %v182, %v1029
  %v1031 = vpop.f32.mrb[0].mxu0
  %v1032 = vpop.f32.mrb[0].mxu0
  %v1033 = vadd.f32 %v182, %v1032
  %v1034 = vpop.f32.mrb[0].mxu0
  %1035 = vmatprep.mubr.bf16.mxu0 %v551
  %1036 = vmatmul.mubr.bf16.gmra.mrb[0].mxu0 %v550
  %v1037 = vpop.f32.mrb[0].mxu0
  %v1038 = vadd.f32 %v182, %v1037
  %v1039 = vpop.f32.mrb[0].mxu0
  %v1040 = vpop.f32.mrb[0].mxu0
  %v1041 = vadd.f32 %v182, %v1040
  %v1042 = vpop.f32.mrb[0].mxu0
  %1043 = vmatprep.mubr.bf16.mxu0 %v554
  %1044 = vmatmul.mubr.bf16.gmra.mrb[0].mxu0 %v553
  %v1045 = vpop.f32.mrb[0].mxu0
  %v1046 = vadd.f32 %v182, %v1045
  %v1047 = vpop.f32.mrb[0].mxu0
  %v1048 = vpop.f32.mrb[0].mxu0
  %v1049 = vpop.f32.mrb[0].mxu0
  %1050 = vdwg.mxu0
  %1051 = vmatprep.subr.bf16.mxu0 0
  %1052 = vmatpush1.bf16.msra.mxu0 %v755
  %1053 = vmatprep.subr.bf16.mxu0 0
  %1054 = vmatpush1.bf16.msra.mxu0 %v756
  %1055 = vmatprep.subr.bf16.mxu0 0
  %1056 = vmatpush1.bf16.msra.mxu0 %v757
  %1057 = vmatprep.subr.bf16.mxu0 0
  %1058 = vmatpush1.bf16.msra.mxu0 %v758
  %1059 = vmatprep.subr.bf16.mxu0 0
  %1060 = vmatpush1.bf16.msra.mxu0 %v759
  %1061 = vmatprep.subr.bf16.mxu0 0
  %1062 = vmatpush1.bf16.msra.mxu0 %v760
  %1063 = vmatprep.subr.bf16.mxu0 0
  %1064 = vmatpush1.bf16.msra.mxu0 %v761
  %1065 = vmatprep.subr.bf16.mxu0 0
  %1066 = vmatpush1.bf16.msra.mxu0 %v762
  %1067 = vmatprep.subr.bf16.mxu0 0
  %1068 = vmatpush1.bf16.msra.mxu0 0
  %1069 = vmatprep.subr.bf16.mxu0 0
  %1070 = vmatpush1.bf16.msra.mxu0 0
  %1071 = vmatprep.subr.bf16.mxu0 0
  %1072 = vmatpush1.bf16.msra.mxu0 0
  %1073 = vmatprep.subr.bf16.mxu0 0
  %1074 = vmatpush1.bf16.msra.mxu0 0
  %1075 = vmatprep.subr.bf16.mxu0 0
  %1076 = vmatpush1.bf16.msra.mxu0 0
  %1077 = vmatprep.subr.bf16.mxu0 0
  %1078 = vmatpush1.bf16.msra.mxu0 0
  %1079 = vmatprep.subr.bf16.mxu0 0
  %1080 = vmatpush1.bf16.msra.mxu0 0
  %1081 = vmatprep.subr.bf16.mxu0 0
  %1082 = vmatpush1.bf16.msra.mxu0 0
  %1083 = vmatprep.mubr.bf16.mxu0 0
  %1084 = vmatmul.mubr.bf16.gmra.mrb[0].mxu0 %v471
  %v1085 = vpop.f32.mrb[0].mxu0
  %v1086 = vadd.f32 %v822, %v1085
  %v1087 = vpop.f32.mrb[0].mxu0
  %v1088 = vpop.f32.mrb[0].mxu0
  %v1089 = vadd.f32 %v825, %v1088
  %v1090 = vpop.f32.mrb[0].mxu0
  %1091 = vmatprep.mubr.bf16.mxu0 0
  %1092 = vmatmul.mubr.bf16.gmra.mrb[0].mxu0 %v474
  %v1093 = vpop.f32.mrb[0].mxu0
  %v1094 = vadd.f32 %v830, %v1093
  %v1095 = vpop.f32.mrb[0].mxu0
  %v1096 = vpop.f32.mrb[0].mxu0
  %v1097 = vadd.f32 %v833, %v1096
  %v1098 = vpop.f32.mrb[0].mxu0
  %1099 = vmatprep.mubr.bf16.mxu0 0
  %1100 = vmatmul.mubr.bf16.gmra.mrb[0].mxu0 %v477
  %v1101 = vpop.f32.mrb[0].mxu0
  %v1102 = vadd.f32 %v838, %v1101
  %v1103 = vpop.f32.mrb[0].mxu0
  %v1104 = vpop.f32.mrb[0].mxu0
  %v1105 = vadd.f32 %v841, %v1104
  %v1106 = vpop.f32.mrb[0].mxu0
  %1107 = vmatprep.mubr.bf16.mxu0 0
  %1108 = vmatmul.mubr.bf16.gmra.mrb[0].mxu0 %v480
  %v1109 = vpop.f32.mrb[0].mxu0
  %v1110 = vadd.f32 %v846, %v1109
  %v1111 = vpop.f32.mrb[0].mxu0
  %v1112 = vpop.f32.mrb[0].mxu0
  %v1113 = vadd.f32 %v849, %v1112
  %v1114 = vpop.f32.mrb[0].mxu0
  %1115 = vmatprep.mubr.bf16.mxu0 0
  %1116 = vmatmul.mubr.bf16.gmra.mrb[0].mxu0 %v483
  %v1117 = vpop.f32.mrb[0].mxu0
  %v1118 = vadd.f32 %v854, %v1117
  %v1119 = vpop.f32.mrb[0].mxu0
  %v1120 = vpop.f32.mrb[0].mxu0
  %v1121 = vadd.f32 %v857, %v1120
  %v1122 = vpop.f32.mrb[0].mxu0
  %1123 = vmatprep.mubr.bf16.mxu0 0
  %1124 = vmatmul.mubr.bf16.gmra.mrb[0].mxu0 %v486
  %v1125 = vpop.f32.mrb[0].mxu0
  %v1126 = vadd.f32 %v862, %v1125
  %v1127 = vpop.f32.mrb[0].mxu0
  %v1128 = vpop.f32.mrb[0].mxu0
  %v1129 = vadd.f32 %v865, %v1128
  %v1130 = vpop.f32.mrb[0].mxu0
  %1131 = vmatprep.mubr.bf16.mxu0 0
  %1132 = vmatmul.mubr.bf16.gmra.mrb[0].mxu0 %v489
  %v1133 = vpop.f32.mrb[0].mxu0
  %v1134 = vadd.f32 %v870, %v1133
  %v1135 = vpop.f32.mrb[0].mxu0
  %v1136 = vpop.f32.mrb[0].mxu0
  %v1137 = vadd.f32 %v873, %v1136
  %v1138 = vpop.f32.mrb[0].mxu0
  %1139 = vmatprep.mubr.bf16.mxu0 0
  %1140 = vmatmul.mubr.bf16.gmra.mrb[0].mxu0 %v492
  %v1141 = vpop.f32.mrb[0].mxu0
  %v1142 = vadd.f32 %v878, %v1141
  %v1143 = vpop.f32.mrb[0].mxu0
  %v1144 = vpop.f32.mrb[0].mxu0
  %v1145 = vadd.f32 %v881, %v1144
  %v1146 = vpop.f32.mrb[0].mxu0
  %1147 = vmatprep.mubr.bf16.mxu0 0
  %1148 = vmatmul.mubr.bf16.gmra.mrb[0].mxu0 %v495
  %v1149 = vpop.f32.mrb[0].mxu0
  %v1150 = vadd.f32 %v886, %v1149
  %v1151 = vpop.f32.mrb[0].mxu0
  %v1152 = vpop.f32.mrb[0].mxu0
  %v1153 = vadd.f32 %v889, %v1152
  %v1154 = vpop.f32.mrb[0].mxu0
  %1155 = vmatprep.mubr.bf16.mxu0 0
  %1156 = vmatmul.mubr.bf16.gmra.mrb[0].mxu0 %v498
  %v1157 = vpop.f32.mrb[0].mxu0
  %v1158 = vadd.f32 %v894, %v1157
  %v1159 = vpop.f32.mrb[0].mxu0
  %v1160 = vpop.f32.mrb[0].mxu0
  %v1161 = vadd.f32 %v897, %v1160
  %v1162 = vpop.f32.mrb[0].mxu0
  %1163 = vmatprep.mubr.bf16.mxu0 0
  %1164 = vmatmul.mubr.bf16.gmra.mrb[0].mxu0 %v501
  %v1165 = vpop.f32.mrb[0].mxu0
  %v1166 = vadd.f32 %v902, %v1165
  %v1167 = vpop.f32.mrb[0].mxu0
  %v1168 = vpop.f32.mrb[0].mxu0
  %v1169 = vadd.f32 %v905, %v1168
  %v1170 = vpop.f32.mrb[0].mxu0
  %1171 = vmatprep.mubr.bf16.mxu0 0
  %1172 = vmatmul.mubr.bf16.gmra.mrb[0].mxu0 %v504
  %v1173 = vpop.f32.mrb[0].mxu0
  %v1174 = vadd.f32 %v910, %v1173
  %v1175 = vpop.f32.mrb[0].mxu0
  %v1176 = vpop.f32.mrb[0].mxu0
  %v1177 = vadd.f32 %v913, %v1176
  %v1178 = vpop.f32.mrb[0].mxu0
  %1179 = vmatprep.mubr.bf16.mxu0 0
  %1180 = vmatmul.mubr.bf16.gmra.mrb[0].mxu0 %v507
  %v1181 = vpop.f32.mrb[0].mxu0
  %v1182 = vadd.f32 %v918, %v1181
  %v1183 = vpop.f32.mrb[0].mxu0
  %v1184 = vpop.f32.mrb[0].mxu0
  %v1185 = vadd.f32 %v921, %v1184
  %v1186 = vpop.f32.mrb[0].mxu0
  %1187 = vmatprep.mubr.bf16.mxu0 0
  %1188 = vmatmul.mubr.bf16.gmra.mrb[0].mxu0 %v510
  %v1189 = vpop.f32.mrb[0].mxu0
  %v1190 = vadd.f32 %v926, %v1189
  %v1191 = vpop.f32.mrb[0].mxu0
  %v1192 = vpop.f32.mrb[0].mxu0
  %v1193 = vadd.f32 %v929, %v1192
  %v1194 = vpop.f32.mrb[0].mxu0
  %1195 = vmatprep.mubr.bf16.mxu0 0
  %1196 = vmatmul.mubr.bf16.gmra.mrb[0].mxu0 %v513
  %v1197 = vpop.f32.mrb[0].mxu0
  %v1198 = vadd.f32 %v934, %v1197
  %v1199 = vpop.f32.mrb[0].mxu0
  %v1200 = vpop.f32.mrb[0].mxu0
  %v1201 = vadd.f32 %v937, %v1200
  %v1202 = vpop.f32.mrb[0].mxu0
  %1203 = vmatprep.mubr.bf16.mxu0 0
  %1204 = vmatmul.mubr.bf16.gmra.mrb[0].mxu0 %v516
  %v1205 = vpop.f32.mrb[0].mxu0
  %v1206 = vadd.f32 %v942, %v1205
  %v1207 = vpop.f32.mrb[0].mxu0
  %v1208 = vpop.f32.mrb[0].mxu0
  %v1209 = vadd.f32 %v945, %v1208
  %v1210 = vpop.f32.mrb[0].mxu0
  %1211 = vmatprep.mubr.bf16.mxu0 0
  %1212 = vmatmul.mubr.bf16.gmra.mrb[0].mxu0 %v519
  %v1213 = vpop.f32.mrb[0].mxu0
  %v1214 = vadd.f32 %v950, %v1213
  %v1215 = vpop.f32.mrb[0].mxu0
  %v1216 = vpop.f32.mrb[0].mxu0
  %v1217 = vadd.f32 %v953, %v1216
  %v1218 = vpop.f32.mrb[0].mxu0
  %1219 = vmatprep.mubr.bf16.mxu0 0
  %1220 = vmatmul.mubr.bf16.gmra.mrb[0].mxu0 %v522
  %v1221 = vpop.f32.mrb[0].mxu0
  %v1222 = vadd.f32 %v958, %v1221
  %v1223 = vpop.f32.mrb[0].mxu0
  %v1224 = vpop.f32.mrb[0].mxu0
  %v1225 = vadd.f32 %v961, %v1224
  %v1226 = vpop.f32.mrb[0].mxu0
  %1227 = vmatprep.mubr.bf16.mxu0 0
  %1228 = vmatmul.mubr.bf16.gmra.mrb[0].mxu0 %v525
  %v1229 = vpop.f32.mrb[0].mxu0
  %v1230 = vadd.f32 %v966, %v1229
  %v1231 = vpop.f32.mrb[0].mxu0
  %v1232 = vpop.f32.mrb[0].mxu0
  %v1233 = vadd.f32 %v969, %v1232
  %v1234 = vpop.f32.mrb[0].mxu0
  %1235 = vmatprep.mubr.bf16.mxu0 0
  %1236 = vmatmul.mubr.bf16.gmra.mrb[0].mxu0 %v528
  %v1237 = vpop.f32.mrb[0].mxu0
  %v1238 = vadd.f32 %v974, %v1237
  %v1239 = vpop.f32.mrb[0].mxu0
  %v1240 = vpop.f32.mrb[0].mxu0
  %v1241 = vadd.f32 %v977, %v1240
  %v1242 = vpop.f32.mrb[0].mxu0
  %1243 = vmatprep.mubr.bf16.mxu0 0
  %1244 = vmatmul.mubr.bf16.gmra.mrb[0].mxu0 %v531
  %v1245 = vpop.f32.mrb[0].mxu0
  %v1246 = vadd.f32 %v982, %v1245
  %v1247 = vpop.f32.mrb[0].mxu0
  %v1248 = vpop.f32.mrb[0].mxu0
  %v1249 = vadd.f32 %v985, %v1248
  %v1250 = vpop.f32.mrb[0].mxu0
  %1251 = vmatprep.mubr.bf16.mxu0 0
  %1252 = vmatmul.mubr.bf16.gmra.mrb[0].mxu0 %v534
  %v1253 = vpop.f32.mrb[0].mxu0
  %v1254 = vadd.f32 %v990, %v1253
  %v1255 = vpop.f32.mrb[0].mxu0
  %v1256 = vpop.f32.mrb[0].mxu0
  %v1257 = vadd.f32 %v993, %v1256
  %v1258 = vpop.f32.mrb[0].mxu0
  %1259 = vmatprep.mubr.bf16.mxu0 0
  %1260 = vmatmul.mubr.bf16.gmra.mrb[0].mxu0 %v537
  %v1261 = vpop.f32.mrb[0].mxu0
  %v1262 = vadd.f32 %v998, %v1261
  %v1263 = vpop.f32.mrb[0].mxu0
  %v1264 = vpop.f32.mrb[0].mxu0
  %v1265 = vadd.f32 %v1001, %v1264
  %v1266 = vpop.f32.mrb[0].mxu0
  %1267 = vmatprep.mubr.bf16.mxu0 0
  %1268 = vmatmul.mubr.bf16.gmra.mrb[0].mxu0 %v540
  %v1269 = vpop.f32.mrb[0].mxu0
  %v1270 = vadd.f32 %v1006, %v1269
  %v1271 = vpop.f32.mrb[0].mxu0
  %v1272 = vpop.f32.mrb[0].mxu0
  %v1273 = vadd.f32 %v1009, %v1272
  %v1274 = vpop.f32.mrb[0].mxu0
  %1275 = vmatprep.mubr.bf16.mxu0 0
  %1276 = vmatmul.mubr.bf16.gmra.mrb[0].mxu0 %v543
  %v1277 = vpop.f32.mrb[0].mxu0
  %v1278 = vadd.f32 %v1014, %v1277
  %v1279 = vpop.f32.mrb[0].mxu0
  %v1280 = vpop.f32.mrb[0].mxu0
  %v1281 = vadd.f32 %v1017, %v1280
  %v1282 = vpop.f32.mrb[0].mxu0
  %1283 = vmatprep.mubr.bf16.mxu0 0
  %1284 = vmatmul.mubr.bf16.gmra.mrb[0].mxu0 %v546
  %v1285 = vpop.f32.mrb[0].mxu0
  %v1286 = vadd.f32 %v1022, %v1285
  %v1287 = vpop.f32.mrb[0].mxu0
  %v1288 = vpop.f32.mrb[0].mxu0
  %v1289 = vadd.f32 %v1025, %v1288
  %v1290 = vpop.f32.mrb[0].mxu0
  %1291 = vmatprep.mubr.bf16.mxu0 0
  %1292 = vmatmul.mubr.bf16.gmra.mrb[0].mxu0 %v549
  %v1293 = vpop.f32.mrb[0].mxu0
  %v1294 = vadd.f32 %v1030, %v1293
  %v1295 = vpop.f32.mrb[0].mxu0
  %v1296 = vpop.f32.mrb[0].mxu0
  %v1297 = vadd.f32 %v1033, %v1296
  %v1298 = vpop.f32.mrb[0].mxu0
  %1299 = vmatprep.mubr.bf16.mxu0 0
  %1300 = vmatmul.mubr.bf16.gmra.mrb[0].mxu0 %v552
  %v1301 = vpop.f32.mrb[0].mxu0
  %v1302 = vadd.f32 %v1038, %v1301
  %v1303 = vpop.f32.mrb[0].mxu0
  %v1304 = vpop.f32.mrb[0].mxu0
  %v1305 = vadd.f32 %v1041, %v1304
  %v1306 = vpop.f32.mrb[0].mxu0
  %1307 = vmatprep.mubr.bf16.mxu0 0
  %1308 = vmatmul.mubr.bf16.gmra.mrb[0].mxu0 %v555
  %v1309 = vpop.f32.mrb[0].mxu0
  %v1310 = vadd.f32 %v1046, %v1309
  %v1311 = vpop.f32.mrb[0].mxu0
  %v1312 = vpop.f32.mrb[0].mxu0
  %v1313 = vpop.f32.mrb[0].mxu0
  %1314 = vdwg.mxu0
  %vm1315 = vcmp.ge.f32.partialorder %v1086, 0.0
  %vm1316 = vcmp.ge.f32.partialorder %v1089, 0.0
  %vm1317 = vcmp.ge.f32.partialorder %v1094, 0.0
  %vm1318 = vcmp.ge.f32.partialorder %v1097, 0.0
  %vm1319 = vcmp.ge.f32.partialorder %v1102, 0.0
  %vm1320 = vcmp.ge.f32.partialorder %v1105, 0.0
  %vm1321 = vcmp.ge.f32.partialorder %v1110, 0.0
  %vm1322 = vcmp.ge.f32.partialorder %v1113, 0.0
  %vm1323 = vcmp.ge.f32.partialorder %v1118, 0.0
  %vm1324 = vcmp.ge.f32.partialorder %v1121, 0.0
  %vm1325 = vcmp.ge.f32.partialorder %v1126, 0.0
  %vm1326 = vcmp.ge.f32.partialorder %v1129, 0.0
  %vm1327 = vcmp.ge.f32.partialorder %v1134, 0.0
  %vm1328 = vcmp.ge.f32.partialorder %v1137, 0.0
  %vm1329 = vcmp.ge.f32.partialorder %v1142, 0.0
  %vm1330 = vcmp.ge.f32.partialorder %v1145, 0.0
  %vm1331 = vcmp.ge.f32.partialorder %v1150, 0.0
  %vm1332 = vcmp.ge.f32.partialorder %v1153, 0.0
  %vm1333 = vcmp.ge.f32.partialorder %v1158, 0.0
  %vm1334 = vcmp.ge.f32.partialorder %v1161, 0.0
  %vm1335 = vcmp.ge.f32.partialorder %v1166, 0.0
  %vm1336 = vcmp.ge.f32.partialorder %v1169, 0.0
  %vm1337 = vcmp.ge.f32.partialorder %v1174, 0.0
  %vm1338 = vcmp.ge.f32.partialorder %v1177, 0.0
  %vm1339 = vcmp.ge.f32.partialorder %v1182, 0.0
  %vm1340 = vcmp.ge.f32.partialorder %v1185, 0.0
  %vm1341 = vcmp.ge.f32.partialorder %v1190, 0.0
  %vm1342 = vcmp.ge.f32.partialorder %v1193, 0.0
  %vm1343 = vcmp.ge.f32.partialorder %v1198, 0.0
  %vm1344 = vcmp.ge.f32.partialorder %v1201, 0.0
  %vm1345 = vcmp.ge.f32.partialorder %v1206, 0.0
  %vm1346 = vcmp.ge.f32.partialorder %v1209, 0.0
  %vm1347 = vcmp.ge.f32.partialorder %v1214, 0.0
  %vm1348 = vcmp.ge.f32.partialorder %v1217, 0.0
  %vm1349 = vcmp.ge.f32.partialorder %v1222, 0.0
  %vm1350 = vcmp.ge.f32.partialorder %v1225, 0.0
  %vm1351 = vcmp.ge.f32.partialorder %v1230, 0.0
  %vm1352 = vcmp.ge.f32.partialorder %v1233, 0.0
  %vm1353 = vcmp.ge.f32.partialorder %v1238, 0.0
  %vm1354 = vcmp.ge.f32.partialorder %v1241, 0.0
  %vm1355 = vcmp.ge.f32.partialorder %v1246, 0.0
  %vm1356 = vcmp.ge.f32.partialorder %v1249, 0.0
  %vm1357 = vcmp.ge.f32.partialorder %v1254, 0.0
  %vm1358 = vcmp.ge.f32.partialorder %v1257, 0.0
  %vm1359 = vcmp.ge.f32.partialorder %v1262, 0.0
  %vm1360 = vcmp.ge.f32.partialorder %v1265, 0.0
  %vm1361 = vcmp.ge.f32.partialorder %v1270, 0.0
  %vm1362 = vcmp.ge.f32.partialorder %v1273, 0.0
  %vm1363 = vcmp.ge.f32.partialorder %v1278, 0.0
  %vm1364 = vcmp.ge.f32.partialorder %v1281, 0.0
  %vm1365 = vcmp.ge.f32.partialorder %v1286, 0.0
  %vm1366 = vcmp.ge.f32.partialorder %v1289, 0.0
  %vm1367 = vcmp.ge.f32.partialorder %v1294, 0.0
  %vm1368 = vcmp.ge.f32.partialorder %v1297, 0.0
  %vm1369 = vcmp.ge.f32.partialorder %v1302, 0.0
  %vm1370 = vcmp.ge.f32.partialorder %v1305, 0.0
  %vm1371 = vcmp.ge.f32.partialorder %v1310, 0.0
  %v1372 = vmul.f32 %v1086, 0.01
  %v1373 = vmul.f32 %v1089, 0.01
  %v1374 = vmul.f32 %v1094, 0.01
  %v1375 = vmul.f32 %v1097, 0.01
  %v1376 = vmul.f32 %v1102, 0.01
  %v1377 = vmul.f32 %v1105, 0.01
  %v1378 = vmul.f32 %v1110, 0.01
  %v1379 = vmul.f32 %v1113, 0.01
  %v1380 = vmul.f32 %v1118, 0.01
  %v1381 = vmul.f32 %v1121, 0.01
  %v1382 = vmul.f32 %v1126, 0.01
  %v1383 = vmul.f32 %v1129, 0.01
  %v1384 = vmul.f32 %v1134, 0.01
  %v1385 = vmul.f32 %v1137, 0.01
  %v1386 = vmul.f32 %v1142, 0.01
  %v1387 = vmul.f32 %v1145, 0.01
  %v1388 = vmul.f32 %v1150, 0.01
  %v1389 = vmul.f32 %v1153, 0.01
  %v1390 = vmul.f32 %v1158, 0.01
  %v1391 = vmul.f32 %v1161, 0.01
  %v1392 = vmul.f32 %v1166, 0.01
  %v1393 = vmul.f32 %v1169, 0.01
  %v1394 = vmul.f32 %v1174, 0.01
  %v1395 = vmul.f32 %v1177, 0.01
  %v1396 = vmul.f32 %v1182, 0.01
  %v1397 = vmul.f32 %v1185, 0.01
  %v1398 = vmul.f32 %v1190, 0.01
  %v1399 = vmul.f32 %v1193, 0.01
  %v1400 = vmul.f32 %v1198, 0.01
  %v1401 = vmul.f32 %v1201, 0.01
  %v1402 = vmul.f32 %v1206, 0.01
  %v1403 = vmul.f32 %v1209, 0.01
  %v1404 = vmul.f32 %v1214, 0.01
  %v1405 = vmul.f32 %v1217, 0.01
  %v1406 = vmul.f32 %v1222, 0.01
  %v1407 = vmul.f32 %v1225, 0.01
  %v1408 = vmul.f32 %v1230, 0.01
  %v1409 = vmul.f32 %v1233, 0.01
  %v1410 = vmul.f32 %v1238, 0.01
  %v1411 = vmul.f32 %v1241, 0.01
  %v1412 = vmul.f32 %v1246, 0.01
  %v1413 = vmul.f32 %v1249, 0.01
  %v1414 = vmul.f32 %v1254, 0.01
  %v1415 = vmul.f32 %v1257, 0.01
  %v1416 = vmul.f32 %v1262, 0.01
  %v1417 = vmul.f32 %v1265, 0.01
  %v1418 = vmul.f32 %v1270, 0.01
  %v1419 = vmul.f32 %v1273, 0.01
  %v1420 = vmul.f32 %v1278, 0.01
  %v1421 = vmul.f32 %v1281, 0.01
  %v1422 = vmul.f32 %v1286, 0.01
  %v1423 = vmul.f32 %v1289, 0.01
  %v1424 = vmul.f32 %v1294, 0.01
  %v1425 = vmul.f32 %v1297, 0.01
  %v1426 = vmul.f32 %v1302, 0.01
  %v1427 = vmul.f32 %v1305, 0.01
  %v1428 = vmul.f32 %v1310, 0.01
  %v1429 = vsel %vm1315, %v1086, %v1372
  %v1430 = vsel %vm1316, %v1089, %v1373
  %v1431 = vsel %vm1317, %v1094, %v1374
  %v1432 = vsel %vm1318, %v1097, %v1375
  %v1433 = vsel %vm1319, %v1102, %v1376
  %v1434 = vsel %vm1320, %v1105, %v1377
  %v1435 = vsel %vm1321, %v1110, %v1378
  %v1436 = vsel %vm1322, %v1113, %v1379
  %v1437 = vsel %vm1323, %v1118, %v1380
  %v1438 = vsel %vm1324, %v1121, %v1381
  %v1439 = vsel %vm1325, %v1126, %v1382
  %v1440 = vsel %vm1326, %v1129, %v1383
  %v1441 = vsel %vm1327, %v1134, %v1384
  %v1442 = vsel %vm1328, %v1137, %v1385
  %v1443 = vsel %vm1329, %v1142, %v1386
  %v1444 = vsel %vm1330, %v1145, %v1387
  %v1445 = vsel %vm1331, %v1150, %v1388
  %v1446 = vsel %vm1332, %v1153, %v1389
  %v1447 = vsel %vm1333, %v1158, %v1390
  %v1448 = vsel %vm1334, %v1161, %v1391
  %v1449 = vsel %vm1335, %v1166, %v1392
  %v1450 = vsel %vm1336, %v1169, %v1393
  %v1451 = vsel %vm1337, %v1174, %v1394
  %v1452 = vsel %vm1338, %v1177, %v1395
  %v1453 = vsel %vm1339, %v1182, %v1396
  %v1454 = vsel %vm1340, %v1185, %v1397
  %v1455 = vsel %vm1341, %v1190, %v1398
  %v1456 = vsel %vm1342, %v1193, %v1399
  %v1457 = vsel %vm1343, %v1198, %v1400
  %v1458 = vsel %vm1344, %v1201, %v1401
  %v1459 = vsel %vm1345, %v1206, %v1402
  %v1460 = vsel %vm1346, %v1209, %v1403
  %v1461 = vsel %vm1347, %v1214, %v1404
  %v1462 = vsel %vm1348, %v1217, %v1405
  %v1463 = vsel %vm1349, %v1222, %v1406
  %v1464 = vsel %vm1350, %v1225, %v1407
  %v1465 = vsel %vm1351, %v1230, %v1408
  %v1466 = vsel %vm1352, %v1233, %v1409
  %v1467 = vsel %vm1353, %v1238, %v1410
  %v1468 = vsel %vm1354, %v1241, %v1411
  %v1469 = vsel %vm1355, %v1246, %v1412
  %v1470 = vsel %vm1356, %v1249, %v1413
  %v1471 = vsel %vm1357, %v1254, %v1414
  %v1472 = vsel %vm1358, %v1257, %v1415
  %v1473 = vsel %vm1359, %v1262, %v1416
  %v1474 = vsel %vm1360, %v1265, %v1417
  %v1475 = vsel %vm1361, %v1270, %v1418
  %v1476 = vsel %vm1362, %v1273, %v1419
  %v1477 = vsel %vm1363, %v1278, %v1420
  %v1478 = vsel %vm1364, %v1281, %v1421
  %v1479 = vsel %vm1365, %v1286, %v1422
  %v1480 = vsel %vm1366, %v1289, %v1423
  %v1481 = vsel %vm1367, %v1294, %v1424
  %v1482 = vsel %vm1368, %v1297, %v1425
  %v1483 = vsel %vm1369, %v1302, %v1426
  %v1484 = vsel %vm1370, %v1305, %v1427
  %v1485 = vsel %vm1371, %v1310, %v1428
  %v1486 = vpack.c.bf16 %v1430, %v1429
  %v1487 = vpack.c.bf16 %v1432, %v1431
  %v1488 = vpack.c.bf16 %v1434, %v1433
  %v1489 = vpack.c.bf16 %v1436, %v1435
  %v1490 = vpack.c.bf16 %v1438, %v1437
  %v1491 = vpack.c.bf16 %v1440, %v1439
  %v1492 = vpack.c.bf16 %v1442, %v1441
  %v1493 = vpack.c.bf16 %v1444, %v1443
  %v1494 = vpack.c.bf16 %v1446, %v1445
  %v1495 = vpack.c.bf16 %v1448, %v1447
  %v1496 = vpack.c.bf16 %v1450, %v1449
  %v1497 = vpack.c.bf16 %v1452, %v1451
  %v1498 = vpack.c.bf16 %v1454, %v1453
  %v1499 = vpack.c.bf16 %v1456, %v1455
  %v1500 = vpack.c.bf16 %v1458, %v1457
  %v1501 = vpack.c.bf16 %v1460, %v1459
  %v1502 = vpack.c.bf16 %v1462, %v1461
  %v1503 = vpack.c.bf16 %v1464, %v1463
  %v1504 = vpack.c.bf16 %v1466, %v1465
  %v1505 = vpack.c.bf16 %v1468, %v1467
  %v1506 = vpack.c.bf16 %v1470, %v1469
  %v1507 = vpack.c.bf16 %v1472, %v1471
  %v1508 = vpack.c.bf16 %v1474, %v1473
  %v1509 = vpack.c.bf16 %v1476, %v1475
  %v1510 = vpack.c.bf16 %v1478, %v1477
  %v1511 = vpack.c.bf16 %v1480, %v1479
  %v1512 = vpack.c.bf16 %v1482, %v1481
  %v1513 = vpack.c.bf16 %v1484, %v1483
  %v1514 = vpack.c.bf16 %v1485, %v1485
  %v1544 = vunpack.c.l.b16 %v1486
  %v1545 = vunpack.c.h.b16 %v1486
  %v1546 = vunpack.c.l.b16 %v1487
  %v1547 = vunpack.c.h.b16 %v1487
  %v1548 = vunpack.c.l.b16 %v1488
  %v1549 = vunpack.c.h.b16 %v1488
  %v1550 = vunpack.c.l.b16 %v1489
  %v1551 = vunpack.c.h.b16 %v1489
  %v1552 = vunpack.c.l.b16 %v1490
  %v1553 = vunpack.c.h.b16 %v1490
  %v1554 = vunpack.c.l.b16 %v1491
  %v1555 = vunpack.c.h.b16 %v1491
  %v1556 = vunpack.c.l.b16 %v1492
  %v1557 = vunpack.c.h.b16 %v1492
  %v1558 = vunpack.c.l.b16 %v1493
  %v1559 = vunpack.c.h.b16 %v1493
  %v1560 = vunpack.c.l.b16 %v1494
  %v1561 = vunpack.c.h.b16 %v1494
  %v1562 = vunpack.c.l.b16 %v1495
  %v1563 = vunpack.c.h.b16 %v1495
  %v1564 = vunpack.c.l.b16 %v1496
  %v1565 = vunpack.c.h.b16 %v1496
  %v1566 = vunpack.c.l.b16 %v1497
  %v1567 = vunpack.c.h.b16 %v1497
  %v1568 = vunpack.c.l.b16 %v1498
  %v1569 = vunpack.c.h.b16 %v1498
  %v1570 = vunpack.c.l.b16 %v1499
  %v1571 = vunpack.c.h.b16 %v1499
  %v1572 = vunpack.c.l.b16 %v1500
  %v1573 = vunpack.c.h.b16 %v1500
  %v1574 = vunpack.c.l.b16 %v1501
  %v1575 = vunpack.c.h.b16 %v1501
  %v1576 = vunpack.c.l.b16 %v1502
  %v1577 = vunpack.c.h.b16 %v1502
  %v1578 = vunpack.c.l.b16 %v1503
  %v1579 = vunpack.c.h.b16 %v1503
  %v1580 = vunpack.c.l.b16 %v1504
  %v1581 = vunpack.c.h.b16 %v1504
  %v1582 = vunpack.c.l.b16 %v1505
  %v1583 = vunpack.c.h.b16 %v1505
  %v1584 = vunpack.c.l.b16 %v1506
  %v1585 = vunpack.c.h.b16 %v1506
  %v1586 = vunpack.c.l.b16 %v1507
  %v1587 = vunpack.c.h.b16 %v1507
  %v1588 = vunpack.c.l.b16 %v1508
  %v1589 = vunpack.c.h.b16 %v1508
  %v1590 = vunpack.c.l.b16 %v1509
  %v1591 = vunpack.c.h.b16 %v1509
  %v1592 = vunpack.c.l.b16 %v1510
  %v1593 = vunpack.c.h.b16 %v1510
  %v1594 = vunpack.c.l.b16 %v1511
  %v1595 = vunpack.c.h.b16 %v1511
  %v1596 = vunpack.c.l.b16 %v1512
  %v1597 = vunpack.c.h.b16 %v1512
  %v1598 = vunpack.c.l.b16 %v1513
  %v1599 = vunpack.c.h.b16 %v1513
  %v1600 = vunpack.c.l.b16 %v1514
  %v1601 = vpack.c.b16 %v1544, %v1544
  %v1602 = vpack.c.b16 %v1545, %v1545
  %v1603 = vpack.c.b16 %v1546, %v1546
  %v1604 = vpack.c.b16 %v1547, %v1547
  %v1605 = vpack.c.b16 %v1548, %v1548
  %v1606 = vpack.c.b16 %v1549, %v1549
  %v1607 = vpack.c.b16 %v1550, %v1550
  %v1608 = vpack.c.b16 %v1551, %v1551
  %v1609 = vpack.c.b16 %v1552, %v1552
  %v1610 = vpack.c.b16 %v1553, %v1553
  %v1611 = vpack.c.b16 %v1554, %v1554
  %v1612 = vpack.c.b16 %v1555, %v1555
  %v1613 = vpack.c.b16 %v1556, %v1556
  %v1614 = vpack.c.b16 %v1557, %v1557
  %v1615 = vpack.c.b16 %v1558, %v1558
  %v1616 = vpack.c.b16 %v1559, %v1559
  %v1617 = vpack.c.b16 %v1560, %v1560
  %v1618 = vpack.c.b16 %v1561, %v1561
  %v1619 = vpack.c.b16 %v1562, %v1562
  %v1620 = vpack.c.b16 %v1563, %v1563
  %v1621 = vpack.c.b16 %v1564, %v1564
  %v1622 = vpack.c.b16 %v1565, %v1565
  %v1623 = vpack.c.b16 %v1566, %v1566
  %v1624 = vpack.c.b16 %v1567, %v1567
  %v1625 = vpack.c.b16 %v1568, %v1568
  %v1626 = vpack.c.b16 %v1569, %v1569
  %v1627 = vpack.c.b16 %v1570, %v1570
  %v1628 = vpack.c.b16 %v1571, %v1571
  %v1629 = vpack.c.b16 %v1572, %v1572
  %v1630 = vpack.c.b16 %v1573, %v1573
  %v1631 = vpack.c.b16 %v1574, %v1574
  %v1632 = vpack.c.b16 %v1575, %v1575
  %v1633 = vpack.c.b16 %v1576, %v1576
  %v1634 = vpack.c.b16 %v1577, %v1577
  %v1635 = vpack.c.b16 %v1578, %v1578
  %v1636 = vpack.c.b16 %v1579, %v1579
  %v1637 = vpack.c.b16 %v1580, %v1580
  %v1638 = vpack.c.b16 %v1581, %v1581
  %v1639 = vpack.c.b16 %v1582, %v1582
  %v1640 = vpack.c.b16 %v1583, %v1583
  %v1641 = vpack.c.b16 %v1584, %v1584
  %v1642 = vpack.c.b16 %v1585, %v1585
  %v1643 = vpack.c.b16 %v1586, %v1586
  %v1644 = vpack.c.b16 %v1587, %v1587
  %v1645 = vpack.c.b16 %v1588, %v1588
  %v1646 = vpack.c.b16 %v1589, %v1589
  %v1647 = vpack.c.b16 %v1590, %v1590
  %v1648 = vpack.c.b16 %v1591, %v1591
  %v1649 = vpack.c.b16 %v1592, %v1592
  %v1650 = vpack.c.b16 %v1593, %v1593
  %v1651 = vpack.c.b16 %v1594, %v1594
  %v1652 = vpack.c.b16 %v1595, %v1595
  %v1653 = vpack.c.b16 %v1596, %v1596
  %v1654 = vpack.c.b16 %v1597, %v1597
  %v1655 = vpack.c.b16 %v1598, %v1598
  %v1656 = vpack.c.b16 %v1599, %v1599
  %v1657 = vpack.c.b16 %v1600, %v1600
  %vm1715 = vcmask 519168
  %1716 = vst.msk [vmem:[%s3] sm:$0xf] %vm1715, %v1601
  %1717 = vst.msk [vmem:[%s3 + $0x4] sm:$0xf] %vm1715, %v1602
  %1718 = vst.msk [vmem:[%s3 + $0x8] sm:$0xf] %vm1715, %v1603
  %1719 = vst.msk [vmem:[%s3 + $0xc] sm:$0xf] %vm1715, %v1604
  %1720 = vst.msk [vmem:[%s3 + $0x10] sm:$0xf] %vm1715, %v1605
  %1721 = vst.msk [vmem:[%s3 + $0x14] sm:$0xf] %vm1715, %v1606
  %1722 = vst.msk [vmem:[%s3 + $0x18] sm:$0xf] %vm1715, %v1607
  %1723 = vst.msk [vmem:[%s3 + $0x1c] sm:$0xf] %vm1715, %v1608
  %1724 = vst.msk [vmem:[%s3 + $0x20] sm:$0xf] %vm1715, %v1609
  %1725 = vst.msk [vmem:[%s3 + $0x24] sm:$0xf] %vm1715, %v1610
  %1726 = vst.msk [vmem:[%s3 + $0x28] sm:$0xf] %vm1715, %v1611
  %1727 = vst.msk [vmem:[%s3 + $0x2c] sm:$0xf] %vm1715, %v1612
  %1728 = vst.msk [vmem:[%s3 + $0x30] sm:$0xf] %vm1715, %v1613
  %1729 = vst.msk [vmem:[%s3 + $0x34] sm:$0xf] %vm1715, %v1614
  %1730 = vst.msk [vmem:[%s3 + $0x38] sm:$0xf] %vm1715, %v1615
  %1731 = vst.msk [vmem:[%s3 + $0x3c] sm:$0xf] %vm1715, %v1616
  %1732 = vst.msk [vmem:[%s3 + $0x40] sm:$0xf] %vm1715, %v1617
  %1733 = vst.msk [vmem:[%s3 + $0x44] sm:$0xf] %vm1715, %v1618
  %1734 = vst.msk [vmem:[%s3 + $0x48] sm:$0xf] %vm1715, %v1619
  %1735 = vst.msk [vmem:[%s3 + $0x4c] sm:$0xf] %vm1715, %v1620
  %1736 = vst.msk [vmem:[%s3 + $0x50] sm:$0xf] %vm1715, %v1621
  %1737 = vst.msk [vmem:[%s3 + $0x54] sm:$0xf] %vm1715, %v1622
  %1738 = vst.msk [vmem:[%s3 + $0x58] sm:$0xf] %vm1715, %v1623
  %1739 = vst.msk [vmem:[%s3 + $0x5c] sm:$0xf] %vm1715, %v1624
  %1740 = vst.msk [vmem:[%s3 + $0x60] sm:$0xf] %vm1715, %v1625
  %1741 = vst.msk [vmem:[%s3 + $0x64] sm:$0xf] %vm1715, %v1626
  %1742 = vst.msk [vmem:[%s3 + $0x68] sm:$0xf] %vm1715, %v1627
  %1743 = vst.msk [vmem:[%s3 + $0x6c] sm:$0xf] %vm1715, %v1628
  %1744 = vst.msk [vmem:[%s3 + $0x70] sm:$0xf] %vm1715, %v1629
  %1745 = vst.msk [vmem:[%s3 + $0x74] sm:$0xf] %vm1715, %v1630
  %1746 = vst.msk [vmem:[%s3 + $0x78] sm:$0xf] %vm1715, %v1631
  %1747 = vst.msk [vmem:[%s3 + $0x7c] sm:$0xf] %vm1715, %v1632
  %1748 = vst.msk [vmem:[%s3 + $0x80] sm:$0xf] %vm1715, %v1633
  %1749 = vst.msk [vmem:[%s3 + $0x84] sm:$0xf] %vm1715, %v1634
  %1750 = vst.msk [vmem:[%s3 + $0x88] sm:$0xf] %vm1715, %v1635
  %1751 = vst.msk [vmem:[%s3 + $0x8c] sm:$0xf] %vm1715, %v1636
  %1752 = vst.msk [vmem:[%s3 + $0x90] sm:$0xf] %vm1715, %v1637
  %1753 = vst.msk [vmem:[%s3 + $0x94] sm:$0xf] %vm1715, %v1638
  %1754 = vst.msk [vmem:[%s3 + $0x98] sm:$0xf] %vm1715, %v1639
  %1755 = vst.msk [vmem:[%s3 + $0x9c] sm:$0xf] %vm1715, %v1640
  %1756 = vst.msk [vmem:[%s3 + $0xa0] sm:$0xf] %vm1715, %v1641
  %1757 = vst.msk [vmem:[%s3 + $0xa4] sm:$0xf] %vm1715, %v1642
  %1758 = vst.msk [vmem:[%s3 + $0xa8] sm:$0xf] %vm1715, %v1643
  %1759 = vst.msk [vmem:[%s3 + $0xac] sm:$0xf] %vm1715, %v1644
  %1760 = vst.msk [vmem:[%s3 + $0xb0] sm:$0xf] %vm1715, %v1645
  %1761 = vst.msk [vmem:[%s3 + $0xb4] sm:$0xf] %vm1715, %v1646
  %1762 = vst.msk [vmem:[%s3 + $0xb8] sm:$0xf] %vm1715, %v1647
  %1763 = vst.msk [vmem:[%s3 + $0xbc] sm:$0xf] %vm1715, %v1648
  %1764 = vst.msk [vmem:[%s3 + $0xc0] sm:$0xf] %vm1715, %v1649
  %1765 = vst.msk [vmem:[%s3 + $0xc4] sm:$0xf] %vm1715, %v1650
  %1766 = vst.msk [vmem:[%s3 + $0xc8] sm:$0xf] %vm1715, %v1651
  %1767 = vst.msk [vmem:[%s3 + $0xcc] sm:$0xf] %vm1715, %v1652
  %1768 = vst.msk [vmem:[%s3 + $0xd0] sm:$0xf] %vm1715, %v1653
  %1769 = vst.msk [vmem:[%s3 + $0xd4] sm:$0xf] %vm1715, %v1654
  %1770 = vst.msk [vmem:[%s3 + $0xd8] sm:$0xf] %vm1715, %v1655
  %1771 = vst.msk [vmem:[%s3 + $0xdc] sm:$0xf] %vm1715, %v1656
  %vm1772 = vcmask 516096
  %1773 = vst.msk [vmem:[%s3 + $0xe0] sm:$0x1] %vm1772, %v1657
  // Predicated region
  $region14: #{discriminator_forward.6} parent=0 // pred_check
    _
  $region15: #{discriminator_forward.6} parent=0 // pred_check_branch
    %1775 = sbr.rel (0) target = $region17
  $region16: #{discriminator_forward.6} parent=0 // pred_region
    _
  $region17: #{discriminator_forward.6} parent=0 // pred_fallthru
    _
  // Predicated region
  $region18: #{discriminator_forward.6} parent=0 // pred_check
    _
  $region19: #{discriminator_forward.6} parent=0 // pred_check_branch
    %1777 = sbr.rel (0) target = $region21
  $region20: #{discriminator_forward.6} parent=0 // pred_region
    _
  $region21: #{discriminator_forward.6} parent=0 // pred_fallthru
    _

// kernel: discriminator_forward.7
$region0: #{discriminator_forward.7}
  #allocation0 [shape = 'u32[]', space=smem, size = 0x4, offset = 0x4, fixed_abs, tag = 'smem constant byte address 0x4 - core index']
  #allocation1 [shape = 'u32[144,128]{1,0:T(1,128)}', space=vmem, size = 0x12000, scoped, tag = 'internal scratch']
  %s0 = inlined_call_operand.vmem [shape: bf16[98,1664], index: 0, kind: input, shape index: {}]
  %s1 = inlined_call_operand.vmem [shape: bf16[1664,192], index: 1, kind: input, shape index: {}]
  %s2 = inlined_call_operand.vmem [shape: f32[1,192], index: 2, kind: input, shape index: {}]
  %s3 = inlined_call_operand.vmem [shape: bf16[98,192], index: 3, kind: output, shape index: {}]
  %s4 = sld [smem:[#allocation0]]
  $region22: #{discriminator_forward.7} parent=0
    _
  %s6 = ssub.s32 1, %s4
  %s7 = scalar_select 0, %s6, %s4
  // Predicated region
  $region2: #{discriminator_forward.7} parent=0 // pred_check
    _
  $region3: #{discriminator_forward.7} parent=0 // pred_check_branch
    %9 = sbr.rel (0) target = $region5
  $region4: #{discriminator_forward.7} parent=0 // pred_region
    _
  $region5: #{discriminator_forward.7} parent=0 // pred_fallthru
    _
  // Predicated region
  $region6: #{discriminator_forward.7} parent=0 // pred_check
    _
  $region7: #{discriminator_forward.7} parent=0 // pred_check_branch
    %11 = sbr.rel (0) target = $region9
  $region8: #{discriminator_forward.7} parent=0 // pred_region
    _
  $region9: #{discriminator_forward.7} parent=0 // pred_fallthru
    _
  // Predicated region
  $region10: #{discriminator_forward.7} parent=0 // pred_check
    _
  $region11: #{discriminator_forward.7} parent=0 // pred_check_branch
    %13 = sbr.rel (0) target = $region13
  $region12: #{discriminator_forward.7} parent=0 // pred_region
    _
  $region13: #{discriminator_forward.7} parent=0 // pred_fallthru
    _
  %v15 = vld [vmem:[%s0] sm:$0xff]
  %v16 = vld [vmem:[%s0 + $0x8] sm:$0xff]
  %v17 = vld [vmem:[%s0 + $0x10] sm:$0xff]
  %v18 = vld [vmem:[%s0 + $0x18] sm:$0xff]
  %v19 = vld [vmem:[%s0 + $0x20] sm:$0xff]
  %v20 = vld [vmem:[%s0 + $0x28] sm:$0xff]
  %v21 = vld [vmem:[%s0 + $0x30] sm:$0xf]
  %v22 = vld [vmem:[%s0 + $0x34] sm:$0xff]
  %v23 = vld [vmem:[%s0 + $0x3c] sm:$0xff]
  %v24 = vld [vmem:[%s0 + $0x44] sm:$0xff]
  %v25 = vld [vmem:[%s0 + $0x4c] sm:$0xff]
  %v26 = vld [vmem:[%s0 + $0x54] sm:$0xff]
  %v27 = vld [vmem:[%s0 + $0x5c] sm:$0xff]
  %v28 = vld [vmem:[%s0 + $0x64] sm:$0xf]
  %v29 = vld [vmem:[%s0 + $0x68] sm:$0xff]
  %v30 = vld [vmem:[%s0 + $0x70] sm:$0xff]
  %v31 = vld [vmem:[%s0 + $0x78] sm:$0xff]
  %v32 = vld [vmem:[%s0 + $0x80] sm:$0xff]
  %v33 = vld [vmem:[%s0 + $0x88] sm:$0xff]
  %v34 = vld [vmem:[%s0 + $0x90] sm:$0xff]
  %v35 = vld [vmem:[%s0 + $0x98] sm:$0xf]
  %v36 = vld [vmem:[%s0 + $0x9c] sm:$0xff]
  %v37 = vld [vmem:[%s0 + $0xa4] sm:$0xff]
  %v38 = vld [vmem:[%s0 + $0xac] sm:$0xff]
  %v39 = vld [vmem:[%s0 + $0xb4] sm:$0xff]
  %v40 = vld [vmem:[%s0 + $0xbc] sm:$0xff]
  %v41 = vld [vmem:[%s0 + $0xc4] sm:$0xff]
  %v42 = vld [vmem:[%s0 + $0xcc] sm:$0xf]
  %v43 = vld [vmem:[%s0 + $0xd0] sm:$0xff]
  %v44 = vld [vmem:[%s0 + $0xd8] sm:$0xff]
  %v45 = vld [vmem:[%s0 + $0xe0] sm:$0xff]
  %v46 = vld [vmem:[%s0 + $0xe8] sm:$0xff]
  %v47 = vld [vmem:[%s0 + $0xf0] sm:$0xff]
  %v48 = vld [vmem:[%s0 + $0xf8] sm:$0xff]
  %v49 = vld [vmem:[%s0 + $0x100] sm:$0xf]
  %v50 = vld [vmem:[%s0 + $0x104] sm:$0xff]
  %v51 = vld [vmem:[%s0 + $0x10c] sm:$0xff]
  %v52 = vld [vmem:[%s0 + $0x114] sm:$0xff]
  %v53 = vld [vmem:[%s0 + $0x11c] sm:$0xff]
  %v54 = vld [vmem:[%s0 + $0x124] sm:$0xff]
  %v55 = vld [vmem:[%s0 + $0x12c] sm:$0xff]
  %v56 = vld [vmem:[%s0 + $0x134] sm:$0xf]
  %v57 = vld [vmem:[%s0 + $0x138] sm:$0xff]
  %v58 = vld [vmem:[%s0 + $0x140] sm:$0xff]
  %v59 = vld [vmem:[%s0 + $0x148] sm:$0xff]
  %v60 = vld [vmem:[%s0 + $0x150] sm:$0xff]
  %v61 = vld [vmem:[%s0 + $0x158] sm:$0xff]
  %v62 = vld [vmem:[%s0 + $0x160] sm:$0xff]
  %v63 = vld [vmem:[%s0 + $0x168] sm:$0xf]
  %v64 = vld [vmem:[%s0 + $0x16c] sm:$0xff]
  %v65 = vld [vmem:[%s0 + $0x174] sm:$0xff]
  %v66 = vld [vmem:[%s0 + $0x17c] sm:$0xff]
  %v67 = vld [vmem:[%s0 + $0x184] sm:$0xff]
  %v68 = vld [vmem:[%s0 + $0x18c] sm:$0xff]
  %v69 = vld [vmem:[%s0 + $0x194] sm:$0xff]
  %v70 = vld [vmem:[%s0 + $0x19c] sm:$0xf]
  %v71 = vld [vmem:[%s0 + $0x1a0] sm:$0xff]
  %v72 = vld [vmem:[%s0 + $0x1a8] sm:$0xff]
  %v73 = vld [vmem:[%s0 + $0x1b0] sm:$0xff]
  %v74 = vld [vmem:[%s0 + $0x1b8] sm:$0xff]
  %v75 = vld [vmem:[%s0 + $0x1c0] sm:$0xff]
  %v76 = vld [vmem:[%s0 + $0x1c8] sm:$0xff]
  %v77 = vld [vmem:[%s0 + $0x1d0] sm:$0xf]
  %v78 = vld [vmem:[%s0 + $0x1d4] sm:$0xff]
  %v79 = vld [vmem:[%s0 + $0x1dc] sm:$0xff]
  %v80 = vld [vmem:[%s0 + $0x1e4] sm:$0xff]
  %v81 = vld [vmem:[%s0 + $0x1ec] sm:$0xff]
  %v82 = vld [vmem:[%s0 + $0x1f4] sm:$0xff]
  %v83 = vld [vmem:[%s0 + $0x1fc] sm:$0xff]
  %v84 = vld [vmem:[%s0 + $0x204] sm:$0xf]
  %v85 = vld [vmem:[%s0 + $0x208] sm:$0xff]
  %v86 = vld [vmem:[%s0 + $0x210] sm:$0xff]
  %v87 = vld [vmem:[%s0 + $0x218] sm:$0xff]
  %v88 = vld [vmem:[%s0 + $0x220] sm:$0xff]
  %v89 = vld [vmem:[%s0 + $0x228] sm:$0xff]
  %v90 = vld [vmem:[%s0 + $0x230] sm:$0xff]
  %v91 = vld [vmem:[%s0 + $0x238] sm:$0xf]
  %v92 = vld [vmem:[%s0 + $0x23c] sm:$0xff]
  %v93 = vld [vmem:[%s0 + $0x244] sm:$0xff]
  %v94 = vld [vmem:[%s0 + $0x24c] sm:$0xff]
  %v95 = vld [vmem:[%s0 + $0x254] sm:$0xff]
  %v96 = vld [vmem:[%s0 + $0x25c] sm:$0xff]
  %v97 = vld [vmem:[%s0 + $0x264] sm:$0xff]
  %v98 = vld [vmem:[%s0 + $0x26c] sm:$0xf]
  %v99 = vld [vmem:[%s0 + $0x270] sm:$0x11]
  %v100 = vld [vmem:[%s0 + $0x278] sm:$0x11]
  %v101 = vld [vmem:[%s0 + $0x280] sm:$0x11]
  %v102 = vld [vmem:[%s0 + $0x288] sm:$0x11]
  %v103 = vld [vmem:[%s0 + $0x290] sm:$0x11]
  %v104 = vld [vmem:[%s0 + $0x298] sm:$0x11]
  %v105 = vld [vmem:[%s0 + $0x2a0] sm:$0x1]
  %v106 = vld [vmem:[%s1] sm:$0xff]
  %v107 = vld [vmem:[%s1 + $0x8] sm:$0xff]
  %v108 = vld [vmem:[%s1 + $0x10] sm:$0xff]
  %v109 = vld [vmem:[%s1 + $0x18] sm:$0xff]
  %v110 = vld [vmem:[%s1 + $0x20] sm:$0xff]
  %v111 = vld [vmem:[%s1 + $0x28] sm:$0xff]
  %v112 = vld [vmem:[%s1 + $0x30] sm:$0xff]
  %v113 = vld [vmem:[%s1 + $0x38] sm:$0xff]
  %v114 = vld [vmem:[%s1 + $0x40] sm:$0xff]
  %v115 = vld [vmem:[%s1 + $0x48] sm:$0xff]
  %v116 = vld [vmem:[%s1 + $0x50] sm:$0xff]
  %v117 = vld [vmem:[%s1 + $0x58] sm:$0xff]
  %v118 = vld [vmem:[%s1 + $0x60] sm:$0xff]
  %v119 = vld [vmem:[%s1 + $0x68] sm:$0xff]
  %v120 = vld [vmem:[%s1 + $0x70] sm:$0xff]
  %v121 = vld [vmem:[%s1 + $0x78] sm:$0xff]
  %v122 = vld [vmem:[%s1 + $0x80] sm:$0xff]
  %v123 = vld [vmem:[%s1 + $0x88] sm:$0xff]
  %v124 = vld [vmem:[%s1 + $0x90] sm:$0xff]
  %v125 = vld [vmem:[%s1 + $0x98] sm:$0xff]
  %v126 = vld [vmem:[%s1 + $0xa0] sm:$0xff]
  %v127 = vld [vmem:[%s1 + $0xa8] sm:$0xff]
  %v128 = vld [vmem:[%s1 + $0xb0] sm:$0xff]
  %v129 = vld [vmem:[%s1 + $0xb8] sm:$0xff]
  %v130 = vld [vmem:[%s1 + $0xc0] sm:$0xff]
  %v131 = vld [vmem:[%s1 + $0xc8] sm:$0xff]
  %v132 = vld [vmem:[%s1 + $0xd0] sm:$0xff]
  %v133 = vld [vmem:[%s1 + $0xd8] sm:$0xff]
  %v134 = vld [vmem:[%s1 + $0xe0] sm:$0xff]
  %v135 = vld [vmem:[%s1 + $0xe8] sm:$0xff]
  %v136 = vld [vmem:[%s1 + $0xf0] sm:$0xff]
  %v137 = vld [vmem:[%s1 + $0xf8] sm:$0xff]
  %v138 = vld [vmem:[%s1 + $0x100] sm:$0xff]
  %v139 = vld [vmem:[%s1 + $0x108] sm:$0xff]
  %v140 = vld [vmem:[%s1 + $0x110] sm:$0xff]
  %v141 = vld [vmem:[%s1 + $0x118] sm:$0xff]
  %v142 = vld [vmem:[%s1 + $0x120] sm:$0xff]
  %v143 = vld [vmem:[%s1 + $0x128] sm:$0xff]
  %v144 = vld [vmem:[%s1 + $0x130] sm:$0xff]
  %v145 = vld [vmem:[%s1 + $0x138] sm:$0xff]
  %v146 = vld [vmem:[%s1 + $0x140] sm:$0xff]
  %v147 = vld [vmem:[%s1 + $0x148] sm:$0xff]
  %v148 = vld [vmem:[%s1 + $0x150] sm:$0xff]
  %v149 = vld [vmem:[%s1 + $0x158] sm:$0xff]
  %v150 = vld [vmem:[%s1 + $0x160] sm:$0xff]
  %v151 = vld [vmem:[%s1 + $0x168] sm:$0xff]
  %v152 = vld [vmem:[%s1 + $0x170] sm:$0xff]
  %v153 = vld [vmem:[%s1 + $0x178] sm:$0xff]
  %v154 = vld [vmem:[%s1 + $0x180] sm:$0xff]
  %v155 = vld [vmem:[%s1 + $0x188] sm:$0xff]
  %v156 = vld [vmem:[%s1 + $0x190] sm:$0xff]
  %v157 = vld [vmem:[%s1 + $0x198] sm:$0xff]
  %v158 = vld [vmem:[%s1 + $0x1a0] sm:$0xff]
  %v159 = vld [vmem:[%s1 + $0x1a8] sm:$0xff]
  %v160 = vld [vmem:[%s1 + $0x1b0] sm:$0xff]
  %v161 = vld [vmem:[%s1 + $0x1b8] sm:$0xff]
  %v162 = vld [vmem:[%s1 + $0x1c0] sm:$0xff]
  %v163 = vld [vmem:[%s1 + $0x1c8] sm:$0xff]
  %v164 = vld [vmem:[%s1 + $0x1d0] sm:$0xff]
  %v165 = vld [vmem:[%s1 + $0x1d8] sm:$0xff]
  %v166 = vld [vmem:[%s1 + $0x1e0] sm:$0xff]
  %v167 = vld [vmem:[%s1 + $0x1e8] sm:$0xff]
  %v168 = vld [vmem:[%s1 + $0x1f0] sm:$0xff]
  %v169 = vld [vmem:[%s1 + $0x1f8] sm:$0xff]
  %v170 = vld [vmem:[%s1 + $0x200] sm:$0xff]
  %v171 = vld [vmem:[%s1 + $0x208] sm:$0xff]
  %v172 = vld [vmem:[%s1 + $0x210] sm:$0xff]
  %v173 = vld [vmem:[%s1 + $0x218] sm:$0xff]
  %v174 = vld [vmem:[%s1 + $0x220] sm:$0xff]
  %v175 = vld [vmem:[%s1 + $0x228] sm:$0xff]
  %v176 = vld [vmem:[%s1 + $0x230] sm:$0xff]
  %v177 = vld [vmem:[%s1 + $0x238] sm:$0xff]
  %v178 = vld [vmem:[%s1 + $0x240] sm:$0xff]
  %v179 = vld [vmem:[%s1 + $0x248] sm:$0xff]
  %v180 = vld [vmem:[%s1 + $0x250] sm:$0xff]
  %v181 = vld [vmem:[%s1 + $0x258] sm:$0xff]
  %v182 = vld [vmem:[%s1 + $0x260] sm:$0xff]
  %v183 = vld [vmem:[%s1 + $0x268] sm:$0xff]
  %v184 = vld [vmem:[%s1 + $0x270] sm:$0xff]
  %v185 = vld [vmem:[%s1 + $0x278] sm:$0xff]
  %v186 = vld [vmem:[%s1 + $0x280] sm:$0xff]
  %v187 = vld [vmem:[%s1 + $0x288] sm:$0xff]
  %v188 = vld [vmem:[%s1 + $0x290] sm:$0xff]
  %v189 = vld [vmem:[%s1 + $0x298] sm:$0xff]
  %v190 = vld [vmem:[%s1 + $0x2a0] sm:$0xff]
  %v191 = vld [vmem:[%s1 + $0x2a8] sm:$0xff]
  %v192 = vld [vmem:[%s1 + $0x2b0] sm:$0xff]
  %v193 = vld [vmem:[%s1 + $0x2b8] sm:$0xff]
  %v194 = vld [vmem:[%s1 + $0x2c0] sm:$0xff]
  %v195 = vld [vmem:[%s1 + $0x2c8] sm:$0xff]
  %v196 = vld [vmem:[%s1 + $0x2d0] sm:$0xff]
  %v197 = vld [vmem:[%s1 + $0x2d8] sm:$0xff]
  %v198 = vld [vmem:[%s1 + $0x2e0] sm:$0xff]
  %v199 = vld [vmem:[%s1 + $0x2e8] sm:$0xff]
  %v200 = vld [vmem:[%s1 + $0x2f0] sm:$0xff]
  %v201 = vld [vmem:[%s1 + $0x2f8] sm:$0xff]
  %v202 = vld [vmem:[%s1 + $0x300] sm:$0xff]
  %v203 = vld [vmem:[%s1 + $0x308] sm:$0xff]
  %v204 = vld [vmem:[%s1 + $0x310] sm:$0xff]
  %v205 = vld [vmem:[%s1 + $0x318] sm:$0xff]
  %v206 = vld [vmem:[%s1 + $0x320] sm:$0xff]
  %v207 = vld [vmem:[%s1 + $0x328] sm:$0xff]
  %v208 = vld [vmem:[%s1 + $0x330] sm:$0xff]
  %v209 = vld [vmem:[%s1 + $0x338] sm:$0xff]
  %v210 = vld [vmem:[%s1 + $0x340] sm:$0xff]
  %v211 = vld [vmem:[%s1 + $0x348] sm:$0xff]
  %v212 = vld [vmem:[%s1 + $0x350] sm:$0xff]
  %v213 = vld [vmem:[%s1 + $0x358] sm:$0xff]
  %v214 = vld [vmem:[%s1 + $0x360] sm:$0xff]
  %v215 = vld [vmem:[%s1 + $0x368] sm:$0xff]
  %v216 = vld [vmem:[%s1 + $0x370] sm:$0xff]
  %v217 = vld [vmem:[%s1 + $0x378] sm:$0xff]
  %v218 = vld [vmem:[%s1 + $0x380] sm:$0xff]
  %v219 = vld [vmem:[%s1 + $0x388] sm:$0xff]
  %v220 = vld [vmem:[%s1 + $0x390] sm:$0xff]
  %v221 = vld [vmem:[%s1 + $0x398] sm:$0xff]
  %v222 = vld [vmem:[%s1 + $0x3a0] sm:$0xff]
  %v223 = vld [vmem:[%s1 + $0x3a8] sm:$0xff]
  %v224 = vld [vmem:[%s1 + $0x3b0] sm:$0xff]
  %v225 = vld [vmem:[%s1 + $0x3b8] sm:$0xff]
  %v226 = vld [vmem:[%s1 + $0x3c0] sm:$0xff]
  %v227 = vld [vmem:[%s1 + $0x3c8] sm:$0xff]
  %v228 = vld [vmem:[%s1 + $0x3d0] sm:$0xff]
  %v229 = vld [vmem:[%s1 + $0x3d8] sm:$0xff]
  %v230 = vld [vmem:[%s1 + $0x3e0] sm:$0xff]
  %v231 = vld [vmem:[%s1 + $0x3e8] sm:$0xff]
  %v232 = vld [vmem:[%s1 + $0x3f0] sm:$0xff]
  %v233 = vld [vmem:[%s1 + $0x3f8] sm:$0xff]
  %v234 = vld [vmem:[%s1 + $0x400] sm:$0xff]
  %v235 = vld [vmem:[%s1 + $0x408] sm:$0xff]
  %v236 = vld [vmem:[%s1 + $0x410] sm:$0xff]
  %v237 = vld [vmem:[%s1 + $0x418] sm:$0xff]
  %v238 = vld [vmem:[%s1 + $0x420] sm:$0xff]
  %v239 = vld [vmem:[%s1 + $0x428] sm:$0xff]
  %v240 = vld [vmem:[%s1 + $0x430] sm:$0xff]
  %v241 = vld [vmem:[%s1 + $0x438] sm:$0xff]
  %v242 = vld [vmem:[%s1 + $0x440] sm:$0xff]
  %v243 = vld [vmem:[%s1 + $0x448] sm:$0xff]
  %v244 = vld [vmem:[%s1 + $0x450] sm:$0xff]
  %v245 = vld [vmem:[%s1 + $0x458] sm:$0xff]
  %v246 = vld [vmem:[%s1 + $0x460] sm:$0xff]
  %v247 = vld [vmem:[%s1 + $0x468] sm:$0xff]
  %v248 = vld [vmem:[%s1 + $0x470] sm:$0xff]
  %v249 = vld [vmem:[%s1 + $0x478] sm:$0xff]
  %v250 = vld [vmem:[%s1 + $0x480] sm:$0xff]
  %v251 = vld [vmem:[%s1 + $0x488] sm:$0xff]
  %v252 = vld [vmem:[%s1 + $0x490] sm:$0xff]
  %v253 = vld [vmem:[%s1 + $0x498] sm:$0xff]
  %v254 = vld [vmem:[%s1 + $0x4a0] sm:$0xff]
  %v255 = vld [vmem:[%s1 + $0x4a8] sm:$0xff]
  %v256 = vld [vmem:[%s1 + $0x4b0] sm:$0xff]
  %v257 = vld [vmem:[%s1 + $0x4b8] sm:$0xff]
  %v258 = vld [vmem:[%s1 + $0x4c0] sm:$0xff]
  %v259 = vld [vmem:[%s1 + $0x4c8] sm:$0xff]
  %v260 = vld [vmem:[%s1 + $0x4d0] sm:$0xff]
  %v261 = vld [vmem:[%s1 + $0x4d8] sm:$0xff]
  %v262 = vld [vmem:[%s1 + $0x4e0] sm:$0xff]
  %v263 = vld [vmem:[%s1 + $0x4e8] sm:$0xff]
  %v264 = vld [vmem:[%s1 + $0x4f0] sm:$0xff]
  %v265 = vld [vmem:[%s1 + $0x4f8] sm:$0xff]
  %v266 = vld [vmem:[%s1 + $0x500] sm:$0xff]
  %v267 = vld [vmem:[%s1 + $0x508] sm:$0xff]
  %v268 = vld [vmem:[%s1 + $0x510] sm:$0xff]
  %v269 = vld [vmem:[%s1 + $0x518] sm:$0xff]
  %v270 = vld [vmem:[%s1 + $0x520] sm:$0xff]
  %v271 = vld [vmem:[%s1 + $0x528] sm:$0xff]
  %v272 = vld [vmem:[%s1 + $0x530] sm:$0xff]
  %v273 = vld [vmem:[%s1 + $0x538] sm:$0xff]
  %v274 = vld [vmem:[%s1 + $0x540] sm:$0xff]
  %v275 = vld [vmem:[%s1 + $0x548] sm:$0xff]
  %v276 = vld [vmem:[%s1 + $0x550] sm:$0xff]
  %v277 = vld [vmem:[%s1 + $0x558] sm:$0xff]
  %v278 = vld [vmem:[%s1 + $0x560] sm:$0xff]
  %v279 = vld [vmem:[%s1 + $0x568] sm:$0xff]
  %v280 = vld [vmem:[%s1 + $0x570] sm:$0xff]
  %v281 = vld [vmem:[%s1 + $0x578] sm:$0xff]
  %v282 = vld [vmem:[%s1 + $0x580] sm:$0xff]
  %v283 = vld [vmem:[%s1 + $0x588] sm:$0xff]
  %v284 = vld [vmem:[%s1 + $0x590] sm:$0xff]
  %v285 = vld [vmem:[%s1 + $0x598] sm:$0xff]
  %v286 = vld [vmem:[%s1 + $0x5a0] sm:$0xff]
  %v287 = vld [vmem:[%s1 + $0x5a8] sm:$0xff]
  %v288 = vld [vmem:[%s1 + $0x5b0] sm:$0xff]
  %v289 = vld [vmem:[%s1 + $0x5b8] sm:$0xff]
  %v290 = vld [vmem:[%s1 + $0x5c0] sm:$0xff]
  %v291 = vld [vmem:[%s1 + $0x5c8] sm:$0xff]
  %v292 = vld [vmem:[%s1 + $0x5d0] sm:$0xff]
  %v293 = vld [vmem:[%s1 + $0x5d8] sm:$0xff]
  %v294 = vld [vmem:[%s1 + $0x5e0] sm:$0xff]
  %v295 = vld [vmem:[%s1 + $0x5e8] sm:$0xff]
  %v296 = vld [vmem:[%s1 + $0x5f0] sm:$0xff]
  %v297 = vld [vmem:[%s1 + $0x5f8] sm:$0xff]
  %v298 = vld [vmem:[%s1 + $0x600] sm:$0xff]
  %v299 = vld [vmem:[%s1 + $0x608] sm:$0xff]
  %v300 = vld [vmem:[%s1 + $0x610] sm:$0xff]
  %v301 = vld [vmem:[%s1 + $0x618] sm:$0xff]
  %v302 = vld [vmem:[%s1 + $0x620] sm:$0xff]
  %v303 = vld [vmem:[%s1 + $0x628] sm:$0xff]
  %v304 = vld [vmem:[%s1 + $0x630] sm:$0xff]
  %v305 = vld [vmem:[%s1 + $0x638] sm:$0xff]
  %v306 = vld [vmem:[%s1 + $0x640] sm:$0xff]
  %v307 = vld [vmem:[%s1 + $0x648] sm:$0xff]
  %v308 = vld [vmem:[%s1 + $0x650] sm:$0xff]
  %v309 = vld [vmem:[%s1 + $0x658] sm:$0xff]
  %v310 = vld [vmem:[%s1 + $0x660] sm:$0xff]
  %v311 = vld [vmem:[%s1 + $0x668] sm:$0xff]
  %v312 = vld [vmem:[%s1 + $0x670] sm:$0xff]
  %v313 = vld [vmem:[%s1 + $0x678] sm:$0xff]
  %v314 = vld [vmem:[%s2] sm:$0x3]
  %v316 = vlaneseq
  %v317 = vshrl.u32 %v316, 7
  %v318 = vsub.s32 0, %v317
  %v319 = vrot.slane %v314, %v318
  %v320 = vlaneseq
  %v321 = vshrl.u32 %v320, 7
  %v322 = vsub.s32 1, %v321
  %v323 = vrot.slane %v314, %v322
  %v417 = vunpack.c.l.b16 %v15
  %v418 = vunpack.c.h.b16 %v15
  %v419 = vunpack.c.l.b16 %v16
  %v420 = vunpack.c.h.b16 %v16
  %v421 = vunpack.c.l.b16 %v17
  %v422 = vunpack.c.h.b16 %v17
  %v423 = vunpack.c.l.b16 %v18
  %v424 = vunpack.c.h.b16 %v18
  %v425 = vunpack.c.l.b16 %v19
  %v426 = vunpack.c.h.b16 %v19
  %v427 = vunpack.c.l.b16 %v20
  %v428 = vunpack.c.h.b16 %v20
  %v429 = vunpack.c.l.b16 %v21
  %v430 = vunpack.c.l.b16 %v22
  %v431 = vunpack.c.h.b16 %v22
  %v432 = vunpack.c.l.b16 %v23
  %v433 = vunpack.c.h.b16 %v23
  %v434 = vunpack.c.l.b16 %v24
  %v435 = vunpack.c.h.b16 %v24
  %v436 = vunpack.c.l.b16 %v25
  %v437 = vunpack.c.h.b16 %v25
  %v438 = vunpack.c.l.b16 %v26
  %v439 = vunpack.c.h.b16 %v26
  %v440 = vunpack.c.l.b16 %v27
  %v441 = vunpack.c.h.b16 %v27
  %v442 = vunpack.c.l.b16 %v28
  %v443 = vunpack.c.l.b16 %v29
  %v444 = vunpack.c.h.b16 %v29
  %v445 = vunpack.c.l.b16 %v30
  %v446 = vunpack.c.h.b16 %v30
  %v447 = vunpack.c.l.b16 %v31
  %v448 = vunpack.c.h.b16 %v31
  %v449 = vunpack.c.l.b16 %v32
  %v450 = vunpack.c.h.b16 %v32
  %v451 = vunpack.c.l.b16 %v33
  %v452 = vunpack.c.h.b16 %v33
  %v453 = vunpack.c.l.b16 %v34
  %v454 = vunpack.c.h.b16 %v34
  %v455 = vunpack.c.l.b16 %v35
  %v456 = vunpack.c.l.b16 %v36
  %v457 = vunpack.c.h.b16 %v36
  %v458 = vunpack.c.l.b16 %v37
  %v459 = vunpack.c.h.b16 %v37
  %v460 = vunpack.c.l.b16 %v38
  %v461 = vunpack.c.h.b16 %v38
  %v462 = vunpack.c.l.b16 %v39
  %v463 = vunpack.c.h.b16 %v39
  %v464 = vunpack.c.l.b16 %v40
  %v465 = vunpack.c.h.b16 %v40
  %v466 = vunpack.c.l.b16 %v41
  %v467 = vunpack.c.h.b16 %v41
  %v468 = vunpack.c.l.b16 %v42
  %v469 = vunpack.c.l.b16 %v43
  %v470 = vunpack.c.h.b16 %v43
  %v471 = vunpack.c.l.b16 %v44
  %v472 = vunpack.c.h.b16 %v44
  %v473 = vunpack.c.l.b16 %v45
  %v474 = vunpack.c.h.b16 %v45
  %v475 = vunpack.c.l.b16 %v46
  %v476 = vunpack.c.h.b16 %v46
  %v477 = vunpack.c.l.b16 %v47
  %v478 = vunpack.c.h.b16 %v47
  %v479 = vunpack.c.l.b16 %v48
  %v480 = vunpack.c.h.b16 %v48
  %v481 = vunpack.c.l.b16 %v49
  %v482 = vunpack.c.l.b16 %v50
  %v483 = vunpack.c.h.b16 %v50
  %v484 = vunpack.c.l.b16 %v51
  %v485 = vunpack.c.h.b16 %v51
  %v486 = vunpack.c.l.b16 %v52
  %v487 = vunpack.c.h.b16 %v52
  %v488 = vunpack.c.l.b16 %v53
  %v489 = vunpack.c.h.b16 %v53
  %v490 = vunpack.c.l.b16 %v54
  %v491 = vunpack.c.h.b16 %v54
  %v492 = vunpack.c.l.b16 %v55
  %v493 = vunpack.c.h.b16 %v55
  %v494 = vunpack.c.l.b16 %v56
  %v495 = vunpack.c.l.b16 %v57
  %v496 = vunpack.c.h.b16 %v57
  %v497 = vunpack.c.l.b16 %v58
  %v498 = vunpack.c.h.b16 %v58
  %v499 = vunpack.c.l.b16 %v59
  %v500 = vunpack.c.h.b16 %v59
  %v501 = vunpack.c.l.b16 %v60
  %v502 = vunpack.c.h.b16 %v60
  %v503 = vunpack.c.l.b16 %v61
  %v504 = vunpack.c.h.b16 %v61
  %v505 = vunpack.c.l.b16 %v62
  %v506 = vunpack.c.h.b16 %v62
  %v507 = vunpack.c.l.b16 %v63
  %v508 = vunpack.c.l.b16 %v64
  %v509 = vunpack.c.h.b16 %v64
  %v510 = vunpack.c.l.b16 %v65
  %v511 = vunpack.c.h.b16 %v65
  %v512 = vunpack.c.l.b16 %v66
  %v513 = vunpack.c.h.b16 %v66
  %v514 = vunpack.c.l.b16 %v67
  %v515 = vunpack.c.h.b16 %v67
  %v516 = vunpack.c.l.b16 %v68
  %v517 = vunpack.c.h.b16 %v68
  %v518 = vunpack.c.l.b16 %v69
  %v519 = vunpack.c.h.b16 %v69
  %v520 = vunpack.c.l.b16 %v70
  %v521 = vunpack.c.l.b16 %v71
  %v522 = vunpack.c.h.b16 %v71
  %v523 = vunpack.c.l.b16 %v72
  %v524 = vunpack.c.h.b16 %v72
  %v525 = vunpack.c.l.b16 %v73
  %v526 = vunpack.c.h.b16 %v73
  %v527 = vunpack.c.l.b16 %v74
  %v528 = vunpack.c.h.b16 %v74
  %v529 = vunpack.c.l.b16 %v75
  %v530 = vunpack.c.h.b16 %v75
  %v531 = vunpack.c.l.b16 %v76
  %v532 = vunpack.c.h.b16 %v76
  %v533 = vunpack.c.l.b16 %v77
  %v534 = vunpack.c.l.b16 %v78
  %v535 = vunpack.c.h.b16 %v78
  %v536 = vunpack.c.l.b16 %v79
  %v537 = vunpack.c.h.b16 %v79
  %v538 = vunpack.c.l.b16 %v80
  %v539 = vunpack.c.h.b16 %v80
  %v540 = vunpack.c.l.b16 %v81
  %v541 = vunpack.c.h.b16 %v81
  %v542 = vunpack.c.l.b16 %v82
  %v543 = vunpack.c.h.b16 %v82
  %v544 = vunpack.c.l.b16 %v83
  %v545 = vunpack.c.h.b16 %v83
  %v546 = vunpack.c.l.b16 %v84
  %v547 = vunpack.c.l.b16 %v85
  %v548 = vunpack.c.h.b16 %v85
  %v549 = vunpack.c.l.b16 %v86
  %v550 = vunpack.c.h.b16 %v86
  %v551 = vunpack.c.l.b16 %v87
  %v552 = vunpack.c.h.b16 %v87
  %v553 = vunpack.c.l.b16 %v88
  %v554 = vunpack.c.h.b16 %v88
  %v555 = vunpack.c.l.b16 %v89
  %v556 = vunpack.c.h.b16 %v89
  %v557 = vunpack.c.l.b16 %v90
  %v558 = vunpack.c.h.b16 %v90
  %v559 = vunpack.c.l.b16 %v91
  %v560 = vunpack.c.l.b16 %v92
  %v561 = vunpack.c.h.b16 %v92
  %v562 = vunpack.c.l.b16 %v93
  %v563 = vunpack.c.h.b16 %v93
  %v564 = vunpack.c.l.b16 %v94
  %v565 = vunpack.c.h.b16 %v94
  %v566 = vunpack.c.l.b16 %v95
  %v567 = vunpack.c.h.b16 %v95
  %v568 = vunpack.c.l.b16 %v96
  %v569 = vunpack.c.h.b16 %v96
  %v570 = vunpack.c.l.b16 %v97
  %v571 = vunpack.c.h.b16 %v97
  %v572 = vunpack.c.l.b16 %v98
  %v573 = vunpack.c.l.b16 %v99
  %v574 = vunpack.c.h.b16 %v99
  %v575 = vunpack.c.l.b16 %v100
  %v576 = vunpack.c.h.b16 %v100
  %v577 = vunpack.c.l.b16 %v101
  %v578 = vunpack.c.h.b16 %v101
  %v579 = vunpack.c.l.b16 %v102
  %v580 = vunpack.c.h.b16 %v102
  %v581 = vunpack.c.l.b16 %v103
  %v582 = vunpack.c.h.b16 %v103
  %v583 = vunpack.c.l.b16 %v104
  %v584 = vunpack.c.h.b16 %v104
  %v585 = vunpack.c.l.b16 %v105
  %v586 = vpack.c.b16 %v430, %v417
  %v587 = vpack.c.b16 %v431, %v418
  %v588 = vpack.c.b16 %v432, %v419
  %v589 = vpack.c.b16 %v433, %v420
  %v590 = vpack.c.b16 %v434, %v421
  %v591 = vpack.c.b16 %v435, %v422
  %v592 = vpack.c.b16 %v436, %v423
  %v593 = vpack.c.b16 %v437, %v424
  %v594 = vpack.c.b16 %v438, %v425
  %v595 = vpack.c.b16 %v439, %v426
  %v596 = vpack.c.b16 %v440, %v427
  %v597 = vpack.c.b16 %v441, %v428
  %v598 = vpack.c.b16 %v442, %v429
  %v599 = vpack.c.b16 %v456, %v443
  %v600 = vpack.c.b16 %v457, %v444
  %v601 = vpack.c.b16 %v458, %v445
  %v602 = vpack.c.b16 %v459, %v446
  %v603 = vpack.c.b16 %v460, %v447
  %v604 = vpack.c.b16 %v461, %v448
  %v605 = vpack.c.b16 %v462, %v449
  %v606 = vpack.c.b16 %v463, %v450
  %v607 = vpack.c.b16 %v464, %v451
  %v608 = vpack.c.b16 %v465, %v452
  %v609 = vpack.c.b16 %v466, %v453
  %v610 = vpack.c.b16 %v467, %v454
  %v611 = vpack.c.b16 %v468, %v455
  %v612 = vpack.c.b16 %v482, %v469
  %v613 = vpack.c.b16 %v483, %v470
  %v614 = vpack.c.b16 %v484, %v471
  %v615 = vpack.c.b16 %v485, %v472
  %v616 = vpack.c.b16 %v486, %v473
  %v617 = vpack.c.b16 %v487, %v474
  %v618 = vpack.c.b16 %v488, %v475
  %v619 = vpack.c.b16 %v489, %v476
  %v620 = vpack.c.b16 %v490, %v477
  %v621 = vpack.c.b16 %v491, %v478
  %v622 = vpack.c.b16 %v492, %v479
  %v623 = vpack.c.b16 %v493, %v480
  %v624 = vpack.c.b16 %v494, %v481
  %v625 = vpack.c.b16 %v508, %v495
  %v626 = vpack.c.b16 %v509, %v496
  %v627 = vpack.c.b16 %v510, %v497
  %v628 = vpack.c.b16 %v511, %v498
  %v629 = vpack.c.b16 %v512, %v499
  %v630 = vpack.c.b16 %v513, %v500
  %v631 = vpack.c.b16 %v514, %v501
  %v632 = vpack.c.b16 %v515, %v502
  %v633 = vpack.c.b16 %v516, %v503
  %v634 = vpack.c.b16 %v517, %v504
  %v635 = vpack.c.b16 %v518, %v505
  %v636 = vpack.c.b16 %v519, %v506
  %v637 = vpack.c.b16 %v520, %v507
  %v638 = vpack.c.b16 %v534, %v521
  %v639 = vpack.c.b16 %v535, %v522
  %v640 = vpack.c.b16 %v536, %v523
  %v641 = vpack.c.b16 %v537, %v524
  %v642 = vpack.c.b16 %v538, %v525
  %v643 = vpack.c.b16 %v539, %v526
  %v644 = vpack.c.b16 %v540, %v527
  %v645 = vpack.c.b16 %v541, %v528
  %v646 = vpack.c.b16 %v542, %v529
  %v647 = vpack.c.b16 %v543, %v530
  %v648 = vpack.c.b16 %v544, %v531
  %v649 = vpack.c.b16 %v545, %v532
  %v650 = vpack.c.b16 %v546, %v533
  %v651 = vpack.c.b16 %v560, %v547
  %v652 = vpack.c.b16 %v561, %v548
  %v653 = vpack.c.b16 %v562, %v549
  %v654 = vpack.c.b16 %v563, %v550
  %v655 = vpack.c.b16 %v564, %v551
  %v656 = vpack.c.b16 %v565, %v552
  %v657 = vpack.c.b16 %v566, %v553
  %v658 = vpack.c.b16 %v567, %v554
  %v659 = vpack.c.b16 %v568, %v555
  %v660 = vpack.c.b16 %v569, %v556
  %v661 = vpack.c.b16 %v570, %v557
  %v662 = vpack.c.b16 %v571, %v558
  %v663 = vpack.c.b16 %v572, %v559
  %v664 = vpack.c.b16 %v573, %v573
  %v665 = vpack.c.b16 %v574, %v574
  %v666 = vpack.c.b16 %v575, %v575
  %v667 = vpack.c.b16 %v576, %v576
  %v668 = vpack.c.b16 %v577, %v577
  %v669 = vpack.c.b16 %v578, %v578
  %v670 = vpack.c.b16 %v579, %v579
  %v671 = vpack.c.b16 %v580, %v580
  %v672 = vpack.c.b16 %v581, %v581
  %v673 = vpack.c.b16 %v582, %v582
  %v674 = vpack.c.b16 %v583, %v583
  %v675 = vpack.c.b16 %v584, %v584
  %v676 = vpack.c.b16 %v585, %v585
  %v976 = vunpack.c.l.b16 %v106
  %v977 = vunpack.c.h.b16 %v106
  %v978 = vunpack.c.l.b16 %v107
  %v979 = vunpack.c.h.b16 %v107
  %v980 = vunpack.c.l.b16 %v108
  %v981 = vunpack.c.h.b16 %v108
  %v982 = vunpack.c.l.b16 %v109
  %v983 = vunpack.c.h.b16 %v109
  %v984 = vunpack.c.l.b16 %v110
  %v985 = vunpack.c.h.b16 %v110
  %v986 = vunpack.c.l.b16 %v111
  %v987 = vunpack.c.h.b16 %v111
  %v988 = vunpack.c.l.b16 %v112
  %v989 = vunpack.c.h.b16 %v112
  %v990 = vunpack.c.l.b16 %v113
  %v991 = vunpack.c.h.b16 %v113
  %v992 = vunpack.c.l.b16 %v114
  %v993 = vunpack.c.h.b16 %v114
  %v994 = vunpack.c.l.b16 %v115
  %v995 = vunpack.c.h.b16 %v115
  %v996 = vunpack.c.l.b16 %v116
  %v997 = vunpack.c.h.b16 %v116
  %v998 = vunpack.c.l.b16 %v117
  %v999 = vunpack.c.h.b16 %v117
  %v1000 = vunpack.c.l.b16 %v118
  %v1001 = vunpack.c.h.b16 %v118
  %v1002 = vunpack.c.l.b16 %v119
  %v1003 = vunpack.c.h.b16 %v119
  %v1004 = vunpack.c.l.b16 %v120
  %v1005 = vunpack.c.h.b16 %v120
  %v1006 = vunpack.c.l.b16 %v121
  %v1007 = vunpack.c.h.b16 %v121
  %v1008 = vunpack.c.l.b16 %v122
  %v1009 = vunpack.c.h.b16 %v122
  %v1010 = vunpack.c.l.b16 %v123
  %v1011 = vunpack.c.h.b16 %v123
  %v1012 = vunpack.c.l.b16 %v124
  %v1013 = vunpack.c.h.b16 %v124
  %v1014 = vunpack.c.l.b16 %v125
  %v1015 = vunpack.c.h.b16 %v125
  %v1016 = vunpack.c.l.b16 %v126
  %v1017 = vunpack.c.h.b16 %v126
  %v1018 = vunpack.c.l.b16 %v127
  %v1019 = vunpack.c.h.b16 %v127
  %v1020 = vunpack.c.l.b16 %v128
  %v1021 = vunpack.c.h.b16 %v128
  %v1022 = vunpack.c.l.b16 %v129
  %v1023 = vunpack.c.h.b16 %v129
  %v1024 = vunpack.c.l.b16 %v130
  %v1025 = vunpack.c.h.b16 %v130
  %v1026 = vunpack.c.l.b16 %v131
  %v1027 = vunpack.c.h.b16 %v131
  %v1028 = vunpack.c.l.b16 %v132
  %v1029 = vunpack.c.h.b16 %v132
  %v1030 = vunpack.c.l.b16 %v133
  %v1031 = vunpack.c.h.b16 %v133
  %v1032 = vunpack.c.l.b16 %v134
  %v1033 = vunpack.c.h.b16 %v134
  %v1034 = vunpack.c.l.b16 %v135
  %v1035 = vunpack.c.h.b16 %v135
  %v1036 = vunpack.c.l.b16 %v136
  %v1037 = vunpack.c.h.b16 %v136
  %v1038 = vunpack.c.l.b16 %v137
  %v1039 = vunpack.c.h.b16 %v137
  %v1040 = vunpack.c.l.b16 %v138
  %v1041 = vunpack.c.h.b16 %v138
  %v1042 = vunpack.c.l.b16 %v139
  %v1043 = vunpack.c.h.b16 %v139
  %v1044 = vunpack.c.l.b16 %v140
  %v1045 = vunpack.c.h.b16 %v140
  %v1046 = vunpack.c.l.b16 %v141
  %v1047 = vunpack.c.h.b16 %v141
  %v1048 = vunpack.c.l.b16 %v142
  %v1049 = vunpack.c.h.b16 %v142
  %v1050 = vunpack.c.l.b16 %v143
  %v1051 = vunpack.c.h.b16 %v143
  %v1052 = vunpack.c.l.b16 %v144
  %v1053 = vunpack.c.h.b16 %v144
  %v1054 = vunpack.c.l.b16 %v145
  %v1055 = vunpack.c.h.b16 %v145
  %v1056 = vunpack.c.l.b16 %v146
  %v1057 = vunpack.c.h.b16 %v146
  %v1058 = vunpack.c.l.b16 %v147
  %v1059 = vunpack.c.h.b16 %v147
  %v1060 = vunpack.c.l.b16 %v148
  %v1061 = vunpack.c.h.b16 %v148
  %v1062 = vunpack.c.l.b16 %v149
  %v1063 = vunpack.c.h.b16 %v149
  %v1064 = vunpack.c.l.b16 %v150
  %v1065 = vunpack.c.h.b16 %v150
  %v1066 = vunpack.c.l.b16 %v151
  %v1067 = vunpack.c.h.b16 %v151
  %v1068 = vunpack.c.l.b16 %v152
  %v1069 = vunpack.c.h.b16 %v152
  %v1070 = vunpack.c.l.b16 %v153
  %v1071 = vunpack.c.h.b16 %v153
  %v1072 = vunpack.c.l.b16 %v154
  %v1073 = vunpack.c.h.b16 %v154
  %v1074 = vunpack.c.l.b16 %v155
  %v1075 = vunpack.c.h.b16 %v155
  %v1076 = vunpack.c.l.b16 %v156
  %v1077 = vunpack.c.h.b16 %v156
  %v1078 = vunpack.c.l.b16 %v157
  %v1079 = vunpack.c.h.b16 %v157
  %v1080 = vunpack.c.l.b16 %v158
  %v1081 = vunpack.c.h.b16 %v158
  %v1082 = vunpack.c.l.b16 %v159
  %v1083 = vunpack.c.h.b16 %v159
  %v1084 = vunpack.c.l.b16 %v160
  %v1085 = vunpack.c.h.b16 %v160
  %v1086 = vunpack.c.l.b16 %v161
  %v1087 = vunpack.c.h.b16 %v161
  %v1088 = vunpack.c.l.b16 %v162
  %v1089 = vunpack.c.h.b16 %v162
  %v1090 = vunpack.c.l.b16 %v163
  %v1091 = vunpack.c.h.b16 %v163
  %v1092 = vunpack.c.l.b16 %v164
  %v1093 = vunpack.c.h.b16 %v164
  %v1094 = vunpack.c.l.b16 %v165
  %v1095 = vunpack.c.h.b16 %v165
  %v1096 = vunpack.c.l.b16 %v166
  %v1097 = vunpack.c.h.b16 %v166
  %v1098 = vunpack.c.l.b16 %v167
  %v1099 = vunpack.c.h.b16 %v167
  %v1100 = vunpack.c.l.b16 %v168
  %v1101 = vunpack.c.h.b16 %v168
  %v1102 = vunpack.c.l.b16 %v169
  %v1103 = vunpack.c.h.b16 %v169
  %v1104 = vunpack.c.l.b16 %v170
  %v1105 = vunpack.c.h.b16 %v170
  %v1106 = vunpack.c.l.b16 %v171
  %v1107 = vunpack.c.h.b16 %v171
  %v1108 = vunpack.c.l.b16 %v172
  %v1109 = vunpack.c.h.b16 %v172
  %v1110 = vunpack.c.l.b16 %v173
  %v1111 = vunpack.c.h.b16 %v173
  %v1112 = vunpack.c.l.b16 %v174
  %v1113 = vunpack.c.h.b16 %v174
  %v1114 = vunpack.c.l.b16 %v175
  %v1115 = vunpack.c.h.b16 %v175
  %v1116 = vunpack.c.l.b16 %v176
  %v1117 = vunpack.c.h.b16 %v176
  %v1118 = vunpack.c.l.b16 %v177
  %v1119 = vunpack.c.h.b16 %v177
  %v1120 = vunpack.c.l.b16 %v178
  %v1121 = vunpack.c.h.b16 %v178
  %v1122 = vunpack.c.l.b16 %v179
  %v1123 = vunpack.c.h.b16 %v179
  %v1124 = vunpack.c.l.b16 %v180
  %v1125 = vunpack.c.h.b16 %v180
  %v1126 = vunpack.c.l.b16 %v181
  %v1127 = vunpack.c.h.b16 %v181
  %v1128 = vunpack.c.l.b16 %v182
  %v1129 = vunpack.c.h.b16 %v182
  %v1130 = vunpack.c.l.b16 %v183
  %v1131 = vunpack.c.h.b16 %v183
  %v1132 = vunpack.c.l.b16 %v184
  %v1133 = vunpack.c.h.b16 %v184
  %v1134 = vunpack.c.l.b16 %v185
  %v1135 = vunpack.c.h.b16 %v185
  %v1136 = vunpack.c.l.b16 %v186
  %v1137 = vunpack.c.h.b16 %v186
  %v1138 = vunpack.c.l.b16 %v187
  %v1139 = vunpack.c.h.b16 %v187
  %v1140 = vunpack.c.l.b16 %v188
  %v1141 = vunpack.c.h.b16 %v188
  %v1142 = vunpack.c.l.b16 %v189
  %v1143 = vunpack.c.h.b16 %v189
  %v1144 = vunpack.c.l.b16 %v190
  %v1145 = vunpack.c.h.b16 %v190
  %v1146 = vunpack.c.l.b16 %v191
  %v1147 = vunpack.c.h.b16 %v191
  %v1148 = vunpack.c.l.b16 %v192
  %v1149 = vunpack.c.h.b16 %v192
  %v1150 = vunpack.c.l.b16 %v193
  %v1151 = vunpack.c.h.b16 %v193
  %v1152 = vunpack.c.l.b16 %v194
  %v1153 = vunpack.c.h.b16 %v194
  %v1154 = vunpack.c.l.b16 %v195
  %v1155 = vunpack.c.h.b16 %v195
  %v1156 = vunpack.c.l.b16 %v196
  %v1157 = vunpack.c.h.b16 %v196
  %v1158 = vunpack.c.l.b16 %v197
  %v1159 = vunpack.c.h.b16 %v197
  %v1160 = vunpack.c.l.b16 %v198
  %v1161 = vunpack.c.h.b16 %v198
  %v1162 = vunpack.c.l.b16 %v199
  %v1163 = vunpack.c.h.b16 %v199
  %v1164 = vunpack.c.l.b16 %v200
  %v1165 = vunpack.c.h.b16 %v200
  %v1166 = vunpack.c.l.b16 %v201
  %v1167 = vunpack.c.h.b16 %v201
  %v1168 = vunpack.c.l.b16 %v202
  %v1169 = vunpack.c.h.b16 %v202
  %v1170 = vunpack.c.l.b16 %v203
  %v1171 = vunpack.c.h.b16 %v203
  %v1172 = vunpack.c.l.b16 %v204
  %v1173 = vunpack.c.h.b16 %v204
  %v1174 = vunpack.c.l.b16 %v205
  %v1175 = vunpack.c.h.b16 %v205
  %v1176 = vunpack.c.l.b16 %v206
  %v1177 = vunpack.c.h.b16 %v206
  %v1178 = vunpack.c.l.b16 %v207
  %v1179 = vunpack.c.h.b16 %v207
  %v1180 = vunpack.c.l.b16 %v208
  %v1181 = vunpack.c.h.b16 %v208
  %v1182 = vunpack.c.l.b16 %v209
  %v1183 = vunpack.c.h.b16 %v209
  %v1184 = vunpack.c.l.b16 %v210
  %v1185 = vunpack.c.h.b16 %v210
  %v1186 = vunpack.c.l.b16 %v211
  %v1187 = vunpack.c.h.b16 %v211
  %v1188 = vunpack.c.l.b16 %v212
  %v1189 = vunpack.c.h.b16 %v212
  %v1190 = vunpack.c.l.b16 %v213
  %v1191 = vunpack.c.h.b16 %v213
  %v1192 = vunpack.c.l.b16 %v214
  %v1193 = vunpack.c.h.b16 %v214
  %v1194 = vunpack.c.l.b16 %v215
  %v1195 = vunpack.c.h.b16 %v215
  %v1196 = vunpack.c.l.b16 %v216
  %v1197 = vunpack.c.h.b16 %v216
  %v1198 = vunpack.c.l.b16 %v217
  %v1199 = vunpack.c.h.b16 %v217
  %v1200 = vunpack.c.l.b16 %v218
  %v1201 = vunpack.c.h.b16 %v218
  %v1202 = vunpack.c.l.b16 %v219
  %v1203 = vunpack.c.h.b16 %v219
  %v1204 = vunpack.c.l.b16 %v220
  %v1205 = vunpack.c.h.b16 %v220
  %v1206 = vunpack.c.l.b16 %v221
  %v1207 = vunpack.c.h.b16 %v221
  %v1208 = vunpack.c.l.b16 %v222
  %v1209 = vunpack.c.h.b16 %v222
  %v1210 = vunpack.c.l.b16 %v223
  %v1211 = vunpack.c.h.b16 %v223
  %v1212 = vunpack.c.l.b16 %v224
  %v1213 = vunpack.c.h.b16 %v224
  %v1214 = vunpack.c.l.b16 %v225
  %v1215 = vunpack.c.h.b16 %v225
  %v1216 = vunpack.c.l.b16 %v226
  %v1217 = vunpack.c.h.b16 %v226
  %v1218 = vunpack.c.l.b16 %v227
  %v1219 = vunpack.c.h.b16 %v227
  %v1220 = vunpack.c.l.b16 %v228
  %v1221 = vunpack.c.h.b16 %v228
  %v1222 = vunpack.c.l.b16 %v229
  %v1223 = vunpack.c.h.b16 %v229
  %v1224 = vunpack.c.l.b16 %v230
  %v1225 = vunpack.c.h.b16 %v230
  %v1226 = vunpack.c.l.b16 %v231
  %v1227 = vunpack.c.h.b16 %v231
  %v1228 = vunpack.c.l.b16 %v232
  %v1229 = vunpack.c.h.b16 %v232
  %v1230 = vunpack.c.l.b16 %v233
  %v1231 = vunpack.c.h.b16 %v233
  %v1232 = vunpack.c.l.b16 %v234
  %v1233 = vunpack.c.h.b16 %v234
  %v1234 = vunpack.c.l.b16 %v235
  %v1235 = vunpack.c.h.b16 %v235
  %v1236 = vunpack.c.l.b16 %v236
  %v1237 = vunpack.c.h.b16 %v236
  %v1238 = vunpack.c.l.b16 %v237
  %v1239 = vunpack.c.h.b16 %v237
  %v1240 = vunpack.c.l.b16 %v238
  %v1241 = vunpack.c.h.b16 %v238
  %v1242 = vunpack.c.l.b16 %v239
  %v1243 = vunpack.c.h.b16 %v239
  %v1244 = vunpack.c.l.b16 %v240
  %v1245 = vunpack.c.h.b16 %v240
  %v1246 = vunpack.c.l.b16 %v241
  %v1247 = vunpack.c.h.b16 %v241
  %v1248 = vunpack.c.l.b16 %v242
  %v1249 = vunpack.c.h.b16 %v242
  %v1250 = vunpack.c.l.b16 %v243
  %v1251 = vunpack.c.h.b16 %v243
  %v1252 = vunpack.c.l.b16 %v244
  %v1253 = vunpack.c.h.b16 %v244
  %v1254 = vunpack.c.l.b16 %v245
  %v1255 = vunpack.c.h.b16 %v245
  %v1256 = vunpack.c.l.b16 %v246
  %v1257 = vunpack.c.h.b16 %v246
  %v1258 = vunpack.c.l.b16 %v247
  %v1259 = vunpack.c.h.b16 %v247
  %v1260 = vunpack.c.l.b16 %v248
  %v1261 = vunpack.c.h.b16 %v248
  %v1262 = vunpack.c.l.b16 %v249
  %v1263 = vunpack.c.h.b16 %v249
  %v1264 = vunpack.c.l.b16 %v250
  %v1265 = vunpack.c.h.b16 %v250
  %v1266 = vunpack.c.l.b16 %v251
  %v1267 = vunpack.c.h.b16 %v251
  %v1268 = vunpack.c.l.b16 %v252
  %v1269 = vunpack.c.h.b16 %v252
  %v1270 = vunpack.c.l.b16 %v253
  %v1271 = vunpack.c.h.b16 %v253
  %v1272 = vunpack.c.l.b16 %v254
  %v1273 = vunpack.c.h.b16 %v254
  %v1274 = vunpack.c.l.b16 %v255
  %v1275 = vunpack.c.h.b16 %v255
  %v1276 = vunpack.c.l.b16 %v256
  %v1277 = vunpack.c.h.b16 %v256
  %v1278 = vunpack.c.l.b16 %v257
  %v1279 = vunpack.c.h.b16 %v257
  %v1280 = vunpack.c.l.b16 %v258
  %v1281 = vunpack.c.h.b16 %v258
  %v1282 = vunpack.c.l.b16 %v259
  %v1283 = vunpack.c.h.b16 %v259
  %v1284 = vunpack.c.l.b16 %v260
  %v1285 = vunpack.c.h.b16 %v260
  %v1286 = vunpack.c.l.b16 %v261
  %v1287 = vunpack.c.h.b16 %v261
  %v1288 = vunpack.c.l.b16 %v262
  %v1289 = vunpack.c.h.b16 %v262
  %v1290 = vunpack.c.l.b16 %v263
  %v1291 = vunpack.c.h.b16 %v263
  %v1292 = vunpack.c.l.b16 %v264
  %v1293 = vunpack.c.h.b16 %v264
  %v1294 = vunpack.c.l.b16 %v265
  %v1295 = vunpack.c.h.b16 %v265
  %v1296 = vunpack.c.l.b16 %v266
  %v1297 = vunpack.c.h.b16 %v266
  %v1298 = vunpack.c.l.b16 %v267
  %v1299 = vunpack.c.h.b16 %v267
  %v1300 = vunpack.c.l.b16 %v268
  %v1301 = vunpack.c.h.b16 %v268
  %v1302 = vunpack.c.l.b16 %v269
  %v1303 = vunpack.c.h.b16 %v269
  %v1304 = vunpack.c.l.b16 %v270
  %v1305 = vunpack.c.h.b16 %v270
  %v1306 = vunpack.c.l.b16 %v271
  %v1307 = vunpack.c.h.b16 %v271
  %v1308 = vunpack.c.l.b16 %v272
  %v1309 = vunpack.c.h.b16 %v272
  %v1310 = vunpack.c.l.b16 %v273
  %v1311 = vunpack.c.h.b16 %v273
  %v1312 = vunpack.c.l.b16 %v274
  %v1313 = vunpack.c.h.b16 %v274
  %v1314 = vunpack.c.l.b16 %v275
  %v1315 = vunpack.c.h.b16 %v275
  %v1316 = vunpack.c.l.b16 %v276
  %v1317 = vunpack.c.h.b16 %v276
  %v1318 = vunpack.c.l.b16 %v277
  %v1319 = vunpack.c.h.b16 %v277
  %v1320 = vunpack.c.l.b16 %v278
  %v1321 = vunpack.c.h.b16 %v278
  %v1322 = vunpack.c.l.b16 %v279
  %v1323 = vunpack.c.h.b16 %v279
  %v1324 = vunpack.c.l.b16 %v280
  %v1325 = vunpack.c.h.b16 %v280
  %v1326 = vunpack.c.l.b16 %v281
  %v1327 = vunpack.c.h.b16 %v281
  %v1328 = vunpack.c.l.b16 %v282
  %v1329 = vunpack.c.h.b16 %v282
  %v1330 = vunpack.c.l.b16 %v283
  %v1331 = vunpack.c.h.b16 %v283
  %v1332 = vunpack.c.l.b16 %v284
  %v1333 = vunpack.c.h.b16 %v284
  %v1334 = vunpack.c.l.b16 %v285
  %v1335 = vunpack.c.h.b16 %v285
  %v1336 = vunpack.c.l.b16 %v286
  %v1337 = vunpack.c.h.b16 %v286
  %v1338 = vunpack.c.l.b16 %v287
  %v1339 = vunpack.c.h.b16 %v287
  %v1340 = vunpack.c.l.b16 %v288
  %v1341 = vunpack.c.h.b16 %v288
  %v1342 = vunpack.c.l.b16 %v289
  %v1343 = vunpack.c.h.b16 %v289
  %v1344 = vunpack.c.l.b16 %v290
  %v1345 = vunpack.c.h.b16 %v290
  %v1346 = vunpack.c.l.b16 %v291
  %v1347 = vunpack.c.h.b16 %v291
  %v1348 = vunpack.c.l.b16 %v292
  %v1349 = vunpack.c.h.b16 %v292
  %v1350 = vunpack.c.l.b16 %v293
  %v1351 = vunpack.c.h.b16 %v293
  %v1352 = vunpack.c.l.b16 %v294
  %v1353 = vunpack.c.h.b16 %v294
  %v1354 = vunpack.c.l.b16 %v295
  %v1355 = vunpack.c.h.b16 %v295
  %v1356 = vunpack.c.l.b16 %v296
  %v1357 = vunpack.c.h.b16 %v296
  %v1358 = vunpack.c.l.b16 %v297
  %v1359 = vunpack.c.h.b16 %v297
  %v1360 = vunpack.c.l.b16 %v298
  %v1361 = vunpack.c.h.b16 %v298
  %v1362 = vunpack.c.l.b16 %v299
  %v1363 = vunpack.c.h.b16 %v299
  %v1364 = vunpack.c.l.b16 %v300
  %v1365 = vunpack.c.h.b16 %v300
  %v1366 = vunpack.c.l.b16 %v301
  %v1367 = vunpack.c.h.b16 %v301
  %v1368 = vunpack.c.l.b16 %v302
  %v1369 = vunpack.c.h.b16 %v302
  %v1370 = vunpack.c.l.b16 %v303
  %v1371 = vunpack.c.h.b16 %v303
  %v1372 = vunpack.c.l.b16 %v304
  %v1373 = vunpack.c.h.b16 %v304
  %v1374 = vunpack.c.l.b16 %v305
  %v1375 = vunpack.c.h.b16 %v305
  %v1376 = vunpack.c.l.b16 %v306
  %v1377 = vunpack.c.h.b16 %v306
  %v1378 = vunpack.c.l.b16 %v307
  %v1379 = vunpack.c.h.b16 %v307
  %v1380 = vunpack.c.l.b16 %v308
  %v1381 = vunpack.c.h.b16 %v308
  %v1382 = vunpack.c.l.b16 %v309
  %v1383 = vunpack.c.h.b16 %v309
  %v1384 = vunpack.c.l.b16 %v310
  %v1385 = vunpack.c.h.b16 %v310
  %v1386 = vunpack.c.l.b16 %v311
  %v1387 = vunpack.c.h.b16 %v311
  %v1388 = vunpack.c.l.b16 %v312
  %v1389 = vunpack.c.h.b16 %v312
  %v1390 = vunpack.c.l.b16 %v313
  %v1391 = vunpack.c.h.b16 %v313
  %v1392 = vpack.c.b16 %v978, %v976
  %v1393 = vpack.c.b16 %v979, %v977
  %v1394 = vpack.c.b16 %v982, %v980
  %v1395 = vpack.c.b16 %v983, %v981
  %v1396 = vpack.c.b16 %v986, %v984
  %v1397 = vpack.c.b16 %v987, %v985
  %v1398 = vpack.c.b16 %v990, %v988
  %v1399 = vpack.c.b16 %v991, %v989
  %v1400 = vpack.c.b16 %v994, %v992
  %v1401 = vpack.c.b16 %v995, %v993
  %v1402 = vpack.c.b16 %v998, %v996
  %v1403 = vpack.c.b16 %v999, %v997
  %v1404 = vpack.c.b16 %v1002, %v1000
  %v1405 = vpack.c.b16 %v1003, %v1001
  %v1406 = vpack.c.b16 %v1006, %v1004
  %v1407 = vpack.c.b16 %v1007, %v1005
  %v1408 = vpack.c.b16 %v1010, %v1008
  %v1409 = vpack.c.b16 %v1011, %v1009
  %v1410 = vpack.c.b16 %v1014, %v1012
  %v1411 = vpack.c.b16 %v1015, %v1013
  %v1412 = vpack.c.b16 %v1018, %v1016
  %v1413 = vpack.c.b16 %v1019, %v1017
  %v1414 = vpack.c.b16 %v1022, %v1020
  %v1415 = vpack.c.b16 %v1023, %v1021
  %v1416 = vpack.c.b16 %v1026, %v1024
  %v1417 = vpack.c.b16 %v1027, %v1025
  %v1418 = vpack.c.b16 %v1030, %v1028
  %v1419 = vpack.c.b16 %v1031, %v1029
  %v1420 = vpack.c.b16 %v1034, %v1032
  %v1421 = vpack.c.b16 %v1035, %v1033
  %v1422 = vpack.c.b16 %v1038, %v1036
  %v1423 = vpack.c.b16 %v1039, %v1037
  %v1424 = vpack.c.b16 %v1042, %v1040
  %v1425 = vpack.c.b16 %v1043, %v1041
  %v1426 = vpack.c.b16 %v1046, %v1044
  %v1427 = vpack.c.b16 %v1047, %v1045
  %v1428 = vpack.c.b16 %v1050, %v1048
  %v1429 = vpack.c.b16 %v1051, %v1049
  %v1430 = vpack.c.b16 %v1054, %v1052
  %v1431 = vpack.c.b16 %v1055, %v1053
  %v1432 = vpack.c.b16 %v1058, %v1056
  %v1433 = vpack.c.b16 %v1059, %v1057
  %v1434 = vpack.c.b16 %v1062, %v1060
  %v1435 = vpack.c.b16 %v1063, %v1061
  %v1436 = vpack.c.b16 %v1066, %v1064
  %v1437 = vpack.c.b16 %v1067, %v1065
  %v1438 = vpack.c.b16 %v1070, %v1068
  %v1439 = vpack.c.b16 %v1071, %v1069
  %v1440 = vpack.c.b16 %v1074, %v1072
  %v1441 = vpack.c.b16 %v1075, %v1073
  %v1442 = vpack.c.b16 %v1078, %v1076
  %v1443 = vpack.c.b16 %v1079, %v1077
  %v1444 = vpack.c.b16 %v1082, %v1080
  %v1445 = vpack.c.b16 %v1083, %v1081
  %v1446 = vpack.c.b16 %v1086, %v1084
  %v1447 = vpack.c.b16 %v1087, %v1085
  %v1448 = vpack.c.b16 %v1090, %v1088
  %v1449 = vpack.c.b16 %v1091, %v1089
  %v1450 = vpack.c.b16 %v1094, %v1092
  %v1451 = vpack.c.b16 %v1095, %v1093
  %v1452 = vpack.c.b16 %v1098, %v1096
  %v1453 = vpack.c.b16 %v1099, %v1097
  %v1454 = vpack.c.b16 %v1102, %v1100
  %v1455 = vpack.c.b16 %v1103, %v1101
  %v1456 = vpack.c.b16 %v1106, %v1104
  %v1457 = vpack.c.b16 %v1107, %v1105
  %v1458 = vpack.c.b16 %v1110, %v1108
  %v1459 = vpack.c.b16 %v1111, %v1109
  %v1460 = vpack.c.b16 %v1114, %v1112
  %v1461 = vpack.c.b16 %v1115, %v1113
  %v1462 = vpack.c.b16 %v1118, %v1116
  %v1463 = vpack.c.b16 %v1119, %v1117
  %v1464 = vpack.c.b16 %v1122, %v1120
  %v1465 = vpack.c.b16 %v1123, %v1121
  %v1466 = vpack.c.b16 %v1126, %v1124
  %v1467 = vpack.c.b16 %v1127, %v1125
  %v1468 = vpack.c.b16 %v1130, %v1128
  %v1469 = vpack.c.b16 %v1131, %v1129
  %v1470 = vpack.c.b16 %v1134, %v1132
  %v1471 = vpack.c.b16 %v1135, %v1133
  %v1472 = vpack.c.b16 %v1138, %v1136
  %v1473 = vpack.c.b16 %v1139, %v1137
  %v1474 = vpack.c.b16 %v1142, %v1140
  %v1475 = vpack.c.b16 %v1143, %v1141
  %v1476 = vpack.c.b16 %v1146, %v1144
  %v1477 = vpack.c.b16 %v1147, %v1145
  %v1478 = vpack.c.b16 %v1150, %v1148
  %v1479 = vpack.c.b16 %v1151, %v1149
  %v1480 = vpack.c.b16 %v1154, %v1152
  %v1481 = vpack.c.b16 %v1155, %v1153
  %v1482 = vpack.c.b16 %v1158, %v1156
  %v1483 = vpack.c.b16 %v1159, %v1157
  %v1484 = vpack.c.b16 %v1162, %v1160
  %v1485 = vpack.c.b16 %v1163, %v1161
  %v1486 = vpack.c.b16 %v1166, %v1164
  %v1487 = vpack.c.b16 %v1167, %v1165
  %v1488 = vpack.c.b16 %v1170, %v1168
  %v1489 = vpack.c.b16 %v1171, %v1169
  %v1490 = vpack.c.b16 %v1174, %v1172
  %v1491 = vpack.c.b16 %v1175, %v1173
  %v1492 = vpack.c.b16 %v1178, %v1176
  %v1493 = vpack.c.b16 %v1179, %v1177
  %v1494 = vpack.c.b16 %v1182, %v1180
  %v1495 = vpack.c.b16 %v1183, %v1181
  %v1496 = vpack.c.b16 %v1186, %v1184
  %v1497 = vpack.c.b16 %v1187, %v1185
  %v1498 = vpack.c.b16 %v1190, %v1188
  %v1499 = vpack.c.b16 %v1191, %v1189
  %v1500 = vpack.c.b16 %v1194, %v1192
  %v1501 = vpack.c.b16 %v1195, %v1193
  %v1502 = vpack.c.b16 %v1198, %v1196
  %v1503 = vpack.c.b16 %v1199, %v1197
  %v1504 = vpack.c.b16 %v1202, %v1200
  %v1505 = vpack.c.b16 %v1203, %v1201
  %v1506 = vpack.c.b16 %v1206, %v1204
  %v1507 = vpack.c.b16 %v1207, %v1205
  %v1508 = vpack.c.b16 %v1210, %v1208
  %v1509 = vpack.c.b16 %v1211, %v1209
  %v1510 = vpack.c.b16 %v1214, %v1212
  %v1511 = vpack.c.b16 %v1215, %v1213
  %v1512 = vpack.c.b16 %v1218, %v1216
  %v1513 = vpack.c.b16 %v1219, %v1217
  %v1514 = vpack.c.b16 %v1222, %v1220
  %v1515 = vpack.c.b16 %v1223, %v1221
  %v1516 = vpack.c.b16 %v1226, %v1224
  %v1517 = vpack.c.b16 %v1227, %v1225
  %v1518 = vpack.c.b16 %v1230, %v1228
  %v1519 = vpack.c.b16 %v1231, %v1229
  %v1520 = vpack.c.b16 %v1234, %v1232
  %v1521 = vpack.c.b16 %v1235, %v1233
  %v1522 = vpack.c.b16 %v1238, %v1236
  %v1523 = vpack.c.b16 %v1239, %v1237
  %v1524 = vpack.c.b16 %v1242, %v1240
  %v1525 = vpack.c.b16 %v1243, %v1241
  %v1526 = vpack.c.b16 %v1246, %v1244
  %v1527 = vpack.c.b16 %v1247, %v1245
  %v1528 = vpack.c.b16 %v1250, %v1248
  %v1529 = vpack.c.b16 %v1251, %v1249
  %v1530 = vpack.c.b16 %v1254, %v1252
  %v1531 = vpack.c.b16 %v1255, %v1253
  %v1532 = vpack.c.b16 %v1258, %v1256
  %v1533 = vpack.c.b16 %v1259, %v1257
  %v1534 = vpack.c.b16 %v1262, %v1260
  %v1535 = vpack.c.b16 %v1263, %v1261
  %v1536 = vpack.c.b16 %v1266, %v1264
  %v1537 = vpack.c.b16 %v1267, %v1265
  %v1538 = vpack.c.b16 %v1270, %v1268
  %v1539 = vpack.c.b16 %v1271, %v1269
  %v1540 = vpack.c.b16 %v1274, %v1272
  %v1541 = vpack.c.b16 %v1275, %v1273
  %v1542 = vpack.c.b16 %v1278, %v1276
  %v1543 = vpack.c.b16 %v1279, %v1277
  %v1544 = vpack.c.b16 %v1282, %v1280
  %v1545 = vpack.c.b16 %v1283, %v1281
  %v1546 = vpack.c.b16 %v1286, %v1284
  %v1547 = vpack.c.b16 %v1287, %v1285
  %v1548 = vpack.c.b16 %v1290, %v1288
  %v1549 = vpack.c.b16 %v1291, %v1289
  %v1550 = vpack.c.b16 %v1294, %v1292
  %v1551 = vpack.c.b16 %v1295, %v1293
  %v1552 = vpack.c.b16 %v1298, %v1296
  %v1553 = vpack.c.b16 %v1299, %v1297
  %v1554 = vpack.c.b16 %v1302, %v1300
  %v1555 = vpack.c.b16 %v1303, %v1301
  %v1556 = vpack.c.b16 %v1306, %v1304
  %v1557 = vpack.c.b16 %v1307, %v1305
  %v1558 = vpack.c.b16 %v1310, %v1308
  %v1559 = vpack.c.b16 %v1311, %v1309
  %v1560 = vpack.c.b16 %v1314, %v1312
  %v1561 = vpack.c.b16 %v1315, %v1313
  %v1562 = vpack.c.b16 %v1318, %v1316
  %v1563 = vpack.c.b16 %v1319, %v1317
  %v1564 = vpack.c.b16 %v1322, %v1320
  %v1565 = vpack.c.b16 %v1323, %v1321
  %v1566 = vpack.c.b16 %v1326, %v1324
  %v1567 = vpack.c.b16 %v1327, %v1325
  %v1568 = vpack.c.b16 %v1330, %v1328
  %v1569 = vpack.c.b16 %v1331, %v1329
  %v1570 = vpack.c.b16 %v1334, %v1332
  %v1571 = vpack.c.b16 %v1335, %v1333
  %v1572 = vpack.c.b16 %v1338, %v1336
  %v1573 = vpack.c.b16 %v1339, %v1337
  %v1574 = vpack.c.b16 %v1342, %v1340
  %v1575 = vpack.c.b16 %v1343, %v1341
  %v1576 = vpack.c.b16 %v1346, %v1344
  %v1577 = vpack.c.b16 %v1347, %v1345
  %v1578 = vpack.c.b16 %v1350, %v1348
  %v1579 = vpack.c.b16 %v1351, %v1349
  %v1580 = vpack.c.b16 %v1354, %v1352
  %v1581 = vpack.c.b16 %v1355, %v1353
  %v1582 = vpack.c.b16 %v1358, %v1356
  %v1583 = vpack.c.b16 %v1359, %v1357
  %v1584 = vpack.c.b16 %v1362, %v1360
  %v1585 = vpack.c.b16 %v1363, %v1361
  %v1586 = vpack.c.b16 %v1366, %v1364
  %v1587 = vpack.c.b16 %v1367, %v1365
  %v1588 = vpack.c.b16 %v1370, %v1368
  %v1589 = vpack.c.b16 %v1371, %v1369
  %v1590 = vpack.c.b16 %v1374, %v1372
  %v1591 = vpack.c.b16 %v1375, %v1373
  %v1592 = vpack.c.b16 %v1378, %v1376
  %v1593 = vpack.c.b16 %v1379, %v1377
  %v1594 = vpack.c.b16 %v1382, %v1380
  %v1595 = vpack.c.b16 %v1383, %v1381
  %v1596 = vpack.c.b16 %v1386, %v1384
  %v1597 = vpack.c.b16 %v1387, %v1385
  %v1598 = vpack.c.b16 %v1390, %v1388
  %v1599 = vpack.c.b16 %v1391, %v1389
  %1808 = vmatprep.subr.bf16.mxu0 %v1393
  %1809 = vmatpush1.bf16.msra.mxu0 %v1392
  %1810 = vmatprep.subr.bf16.mxu0 %v1395
  %1811 = vmatpush1.bf16.msra.mxu0 %v1394
  %1812 = vmatprep.subr.bf16.mxu0 %v1397
  %1813 = vmatpush1.bf16.msra.mxu0 %v1396
  %1814 = vmatprep.subr.bf16.mxu0 %v1399
  %1815 = vmatpush1.bf16.msra.mxu0 %v1398
  %1816 = vmatprep.subr.bf16.mxu0 %v1401
  %1817 = vmatpush1.bf16.msra.mxu0 %v1400
  %1818 = vmatprep.subr.bf16.mxu0 %v1403
  %1819 = vmatpush1.bf16.msra.mxu0 %v1402
  %1820 = vmatprep.subr.bf16.mxu0 %v1405
  %1821 = vmatpush1.bf16.msra.mxu0 %v1404
  %1822 = vmatprep.subr.bf16.mxu0 %v1407
  %1823 = vmatpush1.bf16.msra.mxu0 %v1406
  %1824 = vmatprep.subr.bf16.mxu0 %v1409
  %1825 = vmatpush1.bf16.msra.mxu0 %v1408
  %1826 = vmatprep.subr.bf16.mxu0 %v1411
  %1827 = vmatpush1.bf16.msra.mxu0 %v1410
  %1828 = vmatprep.subr.bf16.mxu0 %v1413
  %1829 = vmatpush1.bf16.msra.mxu0 %v1412
  %1830 = vmatprep.subr.bf16.mxu0 %v1415
  %1831 = vmatpush1.bf16.msra.mxu0 %v1414
  %1832 = vmatprep.subr.bf16.mxu0 %v1417
  %1833 = vmatpush1.bf16.msra.mxu0 %v1416
  %1834 = vmatprep.subr.bf16.mxu0 %v1419
  %1835 = vmatpush1.bf16.msra.mxu0 %v1418
  %1836 = vmatprep.subr.bf16.mxu0 %v1421
  %1837 = vmatpush1.bf16.msra.mxu0 %v1420
  %1838 = vmatprep.subr.bf16.mxu0 %v1423
  %1839 = vmatpush1.bf16.msra.mxu0 %v1422
  %1840 = vmatprep.mubr.bf16.mxu0 %v587
  %1841 = vmatmul.mubr.bf16.gmra.mrb[0].mxu0 %v586
  %v1842 = vpop.f32.mrb[0].mxu0
  %v1843 = vadd.f32 %v319, %v1842
  %v1844 = vpop.f32.mrb[0].mxu0
  %v1845 = vadd.f32 %v323, %v1844
  %v1846 = vpop.f32.mrb[0].mxu0
  %v1847 = vadd.f32 %v319, %v1846
  %v1848 = vpop.f32.mrb[0].mxu0
  %v1849 = vadd.f32 %v323, %v1848
  %1850 = vmatprep.mubr.bf16.mxu0 %v600
  %1851 = vmatmul.mubr.bf16.gmra.mrb[0].mxu0 %v599
  %v1852 = vpop.f32.mrb[0].mxu0
  %v1853 = vadd.f32 %v319, %v1852
  %v1854 = vpop.f32.mrb[0].mxu0
  %v1855 = vadd.f32 %v323, %v1854
  %v1856 = vpop.f32.mrb[0].mxu0
  %v1857 = vadd.f32 %v319, %v1856
  %v1858 = vpop.f32.mrb[0].mxu0
  %v1859 = vadd.f32 %v323, %v1858
  %1860 = vmatprep.mubr.bf16.mxu0 %v613
  %1861 = vmatmul.mubr.bf16.gmra.mrb[0].mxu0 %v612
  %v1862 = vpop.f32.mrb[0].mxu0
  %v1863 = vadd.f32 %v319, %v1862
  %v1864 = vpop.f32.mrb[0].mxu0
  %v1865 = vadd.f32 %v323, %v1864
  %v1866 = vpop.f32.mrb[0].mxu0
  %v1867 = vadd.f32 %v319, %v1866
  %v1868 = vpop.f32.mrb[0].mxu0
  %v1869 = vadd.f32 %v323, %v1868
  %1870 = vmatprep.mubr.bf16.mxu0 %v626
  %1871 = vmatmul.mubr.bf16.gmra.mrb[0].mxu0 %v625
  %v1872 = vpop.f32.mrb[0].mxu0
  %v1873 = vadd.f32 %v319, %v1872
  %v1874 = vpop.f32.mrb[0].mxu0
  %v1875 = vadd.f32 %v323, %v1874
  %v1876 = vpop.f32.mrb[0].mxu0
  %v1877 = vadd.f32 %v319, %v1876
  %v1878 = vpop.f32.mrb[0].mxu0
  %v1879 = vadd.f32 %v323, %v1878
  %1880 = vmatprep.mubr.bf16.mxu0 %v639
  %1881 = vmatmul.mubr.bf16.gmra.mrb[0].mxu0 %v638
  %v1882 = vpop.f32.mrb[0].mxu0
  %v1883 = vadd.f32 %v319, %v1882
  %v1884 = vpop.f32.mrb[0].mxu0
  %v1885 = vadd.f32 %v323, %v1884
  %v1886 = vpop.f32.mrb[0].mxu0
  %v1887 = vadd.f32 %v319, %v1886
  %v1888 = vpop.f32.mrb[0].mxu0
  %v1889 = vadd.f32 %v323, %v1888
  %1890 = vmatprep.mubr.bf16.mxu0 %v652
  %1891 = vmatmul.mubr.bf16.gmra.mrb[0].mxu0 %v651
  %v1892 = vpop.f32.mrb[0].mxu0
  %v1893 = vadd.f32 %v319, %v1892
  %v1894 = vpop.f32.mrb[0].mxu0
  %v1895 = vadd.f32 %v323, %v1894
  %v1896 = vpop.f32.mrb[0].mxu0
  %v1897 = vadd.f32 %v319, %v1896
  %v1898 = vpop.f32.mrb[0].mxu0
  %v1899 = vadd.f32 %v323, %v1898
  %1900 = vmatprep.mubr.bf16.mxu0 %v665
  %1901 = vmatmul.mubr.bf16.gmra.mrb[0].mxu0 %v664
  %v1902 = vpop.f32.mrb[0].mxu0
  %v1903 = vadd.f32 %v319, %v1902
  %v1904 = vpop.f32.mrb[0].mxu0
  %v1905 = vadd.f32 %v323, %v1904
  %v1906 = vpop.f32.mrb[0].mxu0
  %v1907 = vpop.f32.mrb[0].mxu0
  %1908 = vdwg.mxu0
  %1909 = vmatprep.subr.bf16.mxu0 %v1425
  %1910 = vmatpush1.bf16.msra.mxu0 %v1424
  %1911 = vmatprep.subr.bf16.mxu0 %v1427
  %1912 = vmatpush1.bf16.msra.mxu0 %v1426
  %1913 = vmatprep.subr.bf16.mxu0 %v1429
  %1914 = vmatpush1.bf16.msra.mxu0 %v1428
  %1915 = vmatprep.subr.bf16.mxu0 %v1431
  %1916 = vmatpush1.bf16.msra.mxu0 %v1430
  %1917 = vmatprep.subr.bf16.mxu0 %v1433
  %1918 = vmatpush1.bf16.msra.mxu0 %v1432
  %1919 = vmatprep.subr.bf16.mxu0 %v1435
  %1920 = vmatpush1.bf16.msra.mxu0 %v1434
  %1921 = vmatprep.subr.bf16.mxu0 %v1437
  %1922 = vmatpush1.bf16.msra.mxu0 %v1436
  %1923 = vmatprep.subr.bf16.mxu0 %v1439
  %1924 = vmatpush1.bf16.msra.mxu0 %v1438
  %1925 = vmatprep.subr.bf16.mxu0 %v1441
  %1926 = vmatpush1.bf16.msra.mxu0 %v1440
  %1927 = vmatprep.subr.bf16.mxu0 %v1443
  %1928 = vmatpush1.bf16.msra.mxu0 %v1442
  %1929 = vmatprep.subr.bf16.mxu0 %v1445
  %1930 = vmatpush1.bf16.msra.mxu0 %v1444
  %1931 = vmatprep.subr.bf16.mxu0 %v1447
  %1932 = vmatpush1.bf16.msra.mxu0 %v1446
  %1933 = vmatprep.subr.bf16.mxu0 %v1449
  %1934 = vmatpush1.bf16.msra.mxu0 %v1448
  %1935 = vmatprep.subr.bf16.mxu0 %v1451
  %1936 = vmatpush1.bf16.msra.mxu0 %v1450
  %1937 = vmatprep.subr.bf16.mxu0 %v1453
  %1938 = vmatpush1.bf16.msra.mxu0 %v1452
  %1939 = vmatprep.subr.bf16.mxu0 %v1455
  %1940 = vmatpush1.bf16.msra.mxu0 %v1454
  %1941 = vmatprep.mubr.bf16.mxu0 %v589
  %1942 = vmatmul.mubr.bf16.gmra.mrb[0].mxu0 %v588
  %v1943 = vpop.f32.mrb[0].mxu0
  %v1944 = vadd.f32 %v1843, %v1943
  %v1945 = vpop.f32.mrb[0].mxu0
  %v1946 = vadd.f32 %v1845, %v1945
  %v1947 = vpop.f32.mrb[0].mxu0
  %v1948 = vadd.f32 %v1847, %v1947
  %v1949 = vpop.f32.mrb[0].mxu0
  %v1950 = vadd.f32 %v1849, %v1949
  %1951 = vmatprep.mubr.bf16.mxu0 %v602
  %1952 = vmatmul.mubr.bf16.gmra.mrb[0].mxu0 %v601
  %v1953 = vpop.f32.mrb[0].mxu0
  %v1954 = vadd.f32 %v1853, %v1953
  %v1955 = vpop.f32.mrb[0].mxu0
  %v1956 = vadd.f32 %v1855, %v1955
  %v1957 = vpop.f32.mrb[0].mxu0
  %v1958 = vadd.f32 %v1857, %v1957
  %v1959 = vpop.f32.mrb[0].mxu0
  %v1960 = vadd.f32 %v1859, %v1959
  %1961 = vmatprep.mubr.bf16.mxu0 %v615
  %1962 = vmatmul.mubr.bf16.gmra.mrb[0].mxu0 %v614
  %v1963 = vpop.f32.mrb[0].mxu0
  %v1964 = vadd.f32 %v1863, %v1963
  %v1965 = vpop.f32.mrb[0].mxu0
  %v1966 = vadd.f32 %v1865, %v1965
  %v1967 = vpop.f32.mrb[0].mxu0
  %v1968 = vadd.f32 %v1867, %v1967
  %v1969 = vpop.f32.mrb[0].mxu0
  %v1970 = vadd.f32 %v1869, %v1969
  %1971 = vmatprep.mubr.bf16.mxu0 %v628
  %1972 = vmatmul.mubr.bf16.gmra.mrb[0].mxu0 %v627
  %v1973 = vpop.f32.mrb[0].mxu0
  %v1974 = vadd.f32 %v1873, %v1973
  %v1975 = vpop.f32.mrb[0].mxu0
  %v1976 = vadd.f32 %v1875, %v1975
  %v1977 = vpop.f32.mrb[0].mxu0
  %v1978 = vadd.f32 %v1877, %v1977
  %v1979 = vpop.f32.mrb[0].mxu0
  %v1980 = vadd.f32 %v1879, %v1979
  %1981 = vmatprep.mubr.bf16.mxu0 %v641
  %1982 = vmatmul.mubr.bf16.gmra.mrb[0].mxu0 %v640
  %v1983 = vpop.f32.mrb[0].mxu0
  %v1984 = vadd.f32 %v1883, %v1983
  %v1985 = vpop.f32.mrb[0].mxu0
  %v1986 = vadd.f32 %v1885, %v1985
  %v1987 = vpop.f32.mrb[0].mxu0
  %v1988 = vadd.f32 %v1887, %v1987
  %v1989 = vpop.f32.mrb[0].mxu0
  %v1990 = vadd.f32 %v1889, %v1989
  %1991 = vmatprep.mubr.bf16.mxu0 %v654
  %1992 = vmatmul.mubr.bf16.gmra.mrb[0].mxu0 %v653
  %v1993 = vpop.f32.mrb[0].mxu0
  %v1994 = vadd.f32 %v1893, %v1993
  %v1995 = vpop.f32.mrb[0].mxu0
  %v1996 = vadd.f32 %v1895, %v1995
  %v1997 = vpop.f32.mrb[0].mxu0
  %v1998 = vadd.f32 %v1897, %v1997
  %v1999 = vpop.f32.mrb[0].mxu0
  %v2000 = vadd.f32 %v1899, %v1999
  %2001 = vmatprep.mubr.bf16.mxu0 %v667
  %2002 = vmatmul.mubr.bf16.gmra.mrb[0].mxu0 %v666
  %v2003 = vpop.f32.mrb[0].mxu0
  %v2004 = vadd.f32 %v1903, %v2003
  %v2005 = vpop.f32.mrb[0].mxu0
  %v2006 = vadd.f32 %v1905, %v2005
  %v2007 = vpop.f32.mrb[0].mxu0
  %v2008 = vpop.f32.mrb[0].mxu0
  %2009 = vdwg.mxu0
  %2010 = vmatprep.subr.bf16.mxu0 %v1457
  %2011 = vmatpush1.bf16.msra.mxu0 %v1456
  %2012 = vmatprep.subr.bf16.mxu0 %v1459
  %2013 = vmatpush1.bf16.msra.mxu0 %v1458
  %2014 = vmatprep.subr.bf16.mxu0 %v1461
  %2015 = vmatpush1.bf16.msra.mxu0 %v1460
  %2016 = vmatprep.subr.bf16.mxu0 %v1463
  %2017 = vmatpush1.bf16.msra.mxu0 %v1462
  %2018 = vmatprep.subr.bf16.mxu0 %v1465
  %2019 = vmatpush1.bf16.msra.mxu0 %v1464
  %2020 = vmatprep.subr.bf16.mxu0 %v1467
  %2021 = vmatpush1.bf16.msra.mxu0 %v1466
  %2022 = vmatprep.subr.bf16.mxu0 %v1469
  %2023 = vmatpush1.bf16.msra.mxu0 %v1468
  %2024 = vmatprep.subr.bf16.mxu0 %v1471
  %2025 = vmatpush1.bf16.msra.mxu0 %v1470
  %2026 = vmatprep.subr.bf16.mxu0 %v1473
  %2027 = vmatpush1.bf16.msra.mxu0 %v1472
  %2028 = vmatprep.subr.bf16.mxu0 %v1475
  %2029 = vmatpush1.bf16.msra.mxu0 %v1474
  %2030 = vmatprep.subr.bf16.mxu0 %v1477
  %2031 = vmatpush1.bf16.msra.mxu0 %v1476
  %2032 = vmatprep.subr.bf16.mxu0 %v1479
  %2033 = vmatpush1.bf16.msra.mxu0 %v1478
  %2034 = vmatprep.subr.bf16.mxu0 %v1481
  %2035 = vmatpush1.bf16.msra.mxu0 %v1480
  %2036 = vmatprep.subr.bf16.mxu0 %v1483
  %2037 = vmatpush1.bf16.msra.mxu0 %v1482
  %2038 = vmatprep.subr.bf16.mxu0 %v1485
  %2039 = vmatpush1.bf16.msra.mxu0 %v1484
  %2040 = vmatprep.subr.bf16.mxu0 %v1487
  %2041 = vmatpush1.bf16.msra.mxu0 %v1486
  %2042 = vmatprep.mubr.bf16.mxu0 %v591
  %2043 = vmatmul.mubr.bf16.gmra.mrb[0].mxu0 %v590
  %v2044 = vpop.f32.mrb[0].mxu0
  %v2045 = vadd.f32 %v1944, %v2044
  %v2046 = vpop.f32.mrb[0].mxu0
  %v2047 = vadd.f32 %v1946, %v2046
  %v2048 = vpop.f32.mrb[0].mxu0
  %v2049 = vadd.f32 %v1948, %v2048
  %v2050 = vpop.f32.mrb[0].mxu0
  %v2051 = vadd.f32 %v1950, %v2050
  %2052 = vmatprep.mubr.bf16.mxu0 %v604
  %2053 = vmatmul.mubr.bf16.gmra.mrb[0].mxu0 %v603
  %v2054 = vpop.f32.mrb[0].mxu0
  %v2055 = vadd.f32 %v1954, %v2054
  %v2056 = vpop.f32.mrb[0].mxu0
  %v2057 = vadd.f32 %v1956, %v2056
  %v2058 = vpop.f32.mrb[0].mxu0
  %v2059 = vadd.f32 %v1958, %v2058
  %v2060 = vpop.f32.mrb[0].mxu0
  %v2061 = vadd.f32 %v1960, %v2060
  %2062 = vmatprep.mubr.bf16.mxu0 %v617
  %2063 = vmatmul.mubr.bf16.gmra.mrb[0].mxu0 %v616
  %v2064 = vpop.f32.mrb[0].mxu0
  %v2065 = vadd.f32 %v1964, %v2064
  %v2066 = vpop.f32.mrb[0].mxu0
  %v2067 = vadd.f32 %v1966, %v2066
  %v2068 = vpop.f32.mrb[0].mxu0
  %v2069 = vadd.f32 %v1968, %v2068
  %v2070 = vpop.f32.mrb[0].mxu0
  %v2071 = vadd.f32 %v1970, %v2070
  %2072 = vmatprep.mubr.bf16.mxu0 %v630
  %2073 = vmatmul.mubr.bf16.gmra.mrb[0].mxu0 %v629
  %v2074 = vpop.f32.mrb[0].mxu0
  %v2075 = vadd.f32 %v1974, %v2074
  %v2076 = vpop.f32.mrb[0].mxu0
  %v2077 = vadd.f32 %v1976, %v2076
  %v2078 = vpop.f32.mrb[0].mxu0
  %v2079 = vadd.f32 %v1978, %v2078
  %v2080 = vpop.f32.mrb[0].mxu0
  %v2081 = vadd.f32 %v1980, %v2080
  %2082 = vmatprep.mubr.bf16.mxu0 %v643
  %2083 = vmatmul.mubr.bf16.gmra.mrb[0].mxu0 %v642
  %v2084 = vpop.f32.mrb[0].mxu0
  %v2085 = vadd.f32 %v1984, %v2084
  %v2086 = vpop.f32.mrb[0].mxu0
  %v2087 = vadd.f32 %v1986, %v2086
  %v2088 = vpop.f32.mrb[0].mxu0
  %v2089 = vadd.f32 %v1988, %v2088
  %v2090 = vpop.f32.mrb[0].mxu0
  %v2091 = vadd.f32 %v1990, %v2090
  %2092 = vmatprep.mubr.bf16.mxu0 %v656
  %2093 = vmatmul.mubr.bf16.gmra.mrb[0].mxu0 %v655
  %v2094 = vpop.f32.mrb[0].mxu0
  %v2095 = vadd.f32 %v1994, %v2094
  %v2096 = vpop.f32.mrb[0].mxu0
  %v2097 = vadd.f32 %v1996, %v2096
  %v2098 = vpop.f32.mrb[0].mxu0
  %v2099 = vadd.f32 %v1998, %v2098
  %v2100 = vpop.f32.mrb[0].mxu0
  %v2101 = vadd.f32 %v2000, %v2100
  %2102 = vmatprep.mubr.bf16.mxu0 %v669
  %2103 = vmatmul.mubr.bf16.gmra.mrb[0].mxu0 %v668
  %v2104 = vpop.f32.mrb[0].mxu0
  %v2105 = vadd.f32 %v2004, %v2104
  %v2106 = vpop.f32.mrb[0].mxu0
  %v2107 = vadd.f32 %v2006, %v2106
  %v2108 = vpop.f32.mrb[0].mxu0
  %v2109 = vpop.f32.mrb[0].mxu0
  %2110 = vdwg.mxu0
  %2111 = vmatprep.subr.bf16.mxu0 %v1489
  %2112 = vmatpush1.bf16.msra.mxu0 %v1488
  %2113 = vmatprep.subr.bf16.mxu0 %v1491
  %2114 = vmatpush1.bf16.msra.mxu0 %v1490
  %2115 = vmatprep.subr.bf16.mxu0 %v1493
  %2116 = vmatpush1.bf16.msra.mxu0 %v1492
  %2117 = vmatprep.subr.bf16.mxu0 %v1495
  %2118 = vmatpush1.bf16.msra.mxu0 %v1494
  %2119 = vmatprep.subr.bf16.mxu0 %v1497
  %2120 = vmatpush1.bf16.msra.mxu0 %v1496
  %2121 = vmatprep.subr.bf16.mxu0 %v1499
  %2122 = vmatpush1.bf16.msra.mxu0 %v1498
  %2123 = vmatprep.subr.bf16.mxu0 %v1501
  %2124 = vmatpush1.bf16.msra.mxu0 %v1500
  %2125 = vmatprep.subr.bf16.mxu0 %v1503
  %2126 = vmatpush1.bf16.msra.mxu0 %v1502
  %2127 = vmatprep.subr.bf16.mxu0 %v1505
  %2128 = vmatpush1.bf16.msra.mxu0 %v1504
  %2129 = vmatprep.subr.bf16.mxu0 %v1507
  %2130 = vmatpush1.bf16.msra.mxu0 %v1506
  %2131 = vmatprep.subr.bf16.mxu0 %v1509
  %2132 = vmatpush1.bf16.msra.mxu0 %v1508
  %2133 = vmatprep.subr.bf16.mxu0 %v1511
  %2134 = vmatpush1.bf16.msra.mxu0 %v1510
  %2135 = vmatprep.subr.bf16.mxu0 %v1513
  %2136 = vmatpush1.bf16.msra.mxu0 %v1512
  %2137 = vmatprep.subr.bf16.mxu0 %v1515
  %2138 = vmatpush1.bf16.msra.mxu0 %v1514
  %2139 = vmatprep.subr.bf16.mxu0 %v1517
  %2140 = vmatpush1.bf16.msra.mxu0 %v1516
  %2141 = vmatprep.subr.bf16.mxu0 %v1519
  %2142 = vmatpush1.bf16.msra.mxu0 %v1518
  %2143 = vmatprep.mubr.bf16.mxu0 %v593
  %2144 = vmatmul.mubr.bf16.gmra.mrb[0].mxu0 %v592
  %v2145 = vpop.f32.mrb[0].mxu0
  %v2146 = vadd.f32 %v2045, %v2145
  %v2147 = vpop.f32.mrb[0].mxu0
  %v2148 = vadd.f32 %v2047, %v2147
  %v2149 = vpop.f32.mrb[0].mxu0
  %v2150 = vadd.f32 %v2049, %v2149
  %v2151 = vpop.f32.mrb[0].mxu0
  %v2152 = vadd.f32 %v2051, %v2151
  %2153 = vmatprep.mubr.bf16.mxu0 %v606
  %2154 = vmatmul.mubr.bf16.gmra.mrb[0].mxu0 %v605
  %v2155 = vpop.f32.mrb[0].mxu0
  %v2156 = vadd.f32 %v2055, %v2155
  %v2157 = vpop.f32.mrb[0].mxu0
  %v2158 = vadd.f32 %v2057, %v2157
  %v2159 = vpop.f32.mrb[0].mxu0
  %v2160 = vadd.f32 %v2059, %v2159
  %v2161 = vpop.f32.mrb[0].mxu0
  %v2162 = vadd.f32 %v2061, %v2161
  %2163 = vmatprep.mubr.bf16.mxu0 %v619
  %2164 = vmatmul.mubr.bf16.gmra.mrb[0].mxu0 %v618
  %v2165 = vpop.f32.mrb[0].mxu0
  %v2166 = vadd.f32 %v2065, %v2165
  %v2167 = vpop.f32.mrb[0].mxu0
  %v2168 = vadd.f32 %v2067, %v2167
  %v2169 = vpop.f32.mrb[0].mxu0
  %v2170 = vadd.f32 %v2069, %v2169
  %v2171 = vpop.f32.mrb[0].mxu0
  %v2172 = vadd.f32 %v2071, %v2171
  %2173 = vmatprep.mubr.bf16.mxu0 %v632
  %2174 = vmatmul.mubr.bf16.gmra.mrb[0].mxu0 %v631
  %v2175 = vpop.f32.mrb[0].mxu0
  %v2176 = vadd.f32 %v2075, %v2175
  %v2177 = vpop.f32.mrb[0].mxu0
  %v2178 = vadd.f32 %v2077, %v2177
  %v2179 = vpop.f32.mrb[0].mxu0
  %v2180 = vadd.f32 %v2079, %v2179
  %v2181 = vpop.f32.mrb[0].mxu0
  %v2182 = vadd.f32 %v2081, %v2181
  %2183 = vmatprep.mubr.bf16.mxu0 %v645
  %2184 = vmatmul.mubr.bf16.gmra.mrb[0].mxu0 %v644
  %v2185 = vpop.f32.mrb[0].mxu0
  %v2186 = vadd.f32 %v2085, %v2185
  %v2187 = vpop.f32.mrb[0].mxu0
  %v2188 = vadd.f32 %v2087, %v2187
  %v2189 = vpop.f32.mrb[0].mxu0
  %v2190 = vadd.f32 %v2089, %v2189
  %v2191 = vpop.f32.mrb[0].mxu0
  %v2192 = vadd.f32 %v2091, %v2191
  %2193 = vmatprep.mubr.bf16.mxu0 %v658
  %2194 = vmatmul.mubr.bf16.gmra.mrb[0].mxu0 %v657
  %v2195 = vpop.f32.mrb[0].mxu0
  %v2196 = vadd.f32 %v2095, %v2195
  %v2197 = vpop.f32.mrb[0].mxu0
  %v2198 = vadd.f32 %v2097, %v2197
  %v2199 = vpop.f32.mrb[0].mxu0
  %v2200 = vadd.f32 %v2099, %v2199
  %v2201 = vpop.f32.mrb[0].mxu0
  %v2202 = vadd.f32 %v2101, %v2201
  %2203 = vmatprep.mubr.bf16.mxu0 %v671
  %2204 = vmatmul.mubr.bf16.gmra.mrb[0].mxu0 %v670
  %v2205 = vpop.f32.mrb[0].mxu0
  %v2206 = vadd.f32 %v2105, %v2205
  %v2207 = vpop.f32.mrb[0].mxu0
  %v2208 = vadd.f32 %v2107, %v2207
  %v2209 = vpop.f32.mrb[0].mxu0
  %v2210 = vpop.f32.mrb[0].mxu0
  %2211 = vdwg.mxu0
  %2212 = vmatprep.subr.bf16.mxu0 %v1521
  %2213 = vmatpush1.bf16.msra.mxu0 %v1520
  %2214 = vmatprep.subr.bf16.mxu0 %v1523
  %2215 = vmatpush1.bf16.msra.mxu0 %v1522
  %2216 = vmatprep.subr.bf16.mxu0 %v1525
  %2217 = vmatpush1.bf16.msra.mxu0 %v1524
  %2218 = vmatprep.subr.bf16.mxu0 %v1527
  %2219 = vmatpush1.bf16.msra.mxu0 %v1526
  %2220 = vmatprep.subr.bf16.mxu0 %v1529
  %2221 = vmatpush1.bf16.msra.mxu0 %v1528
  %2222 = vmatprep.subr.bf16.mxu0 %v1531
  %2223 = vmatpush1.bf16.msra.mxu0 %v1530
  %2224 = vmatprep.subr.bf16.mxu0 %v1533
  %2225 = vmatpush1.bf16.msra.mxu0 %v1532
  %2226 = vmatprep.subr.bf16.mxu0 %v1535
  %2227 = vmatpush1.bf16.msra.mxu0 %v1534
  %2228 = vmatprep.subr.bf16.mxu0 %v1537
  %2229 = vmatpush1.bf16.msra.mxu0 %v1536
  %2230 = vmatprep.subr.bf16.mxu0 %v1539
  %2231 = vmatpush1.bf16.msra.mxu0 %v1538
  %2232 = vmatprep.subr.bf16.mxu0 %v1541
  %2233 = vmatpush1.bf16.msra.mxu0 %v1540
  %2234 = vmatprep.subr.bf16.mxu0 %v1543
  %2235 = vmatpush1.bf16.msra.mxu0 %v1542
  %2236 = vmatprep.subr.bf16.mxu0 %v1545
  %2237 = vmatpush1.bf16.msra.mxu0 %v1544
  %2238 = vmatprep.subr.bf16.mxu0 %v1547
  %2239 = vmatpush1.bf16.msra.mxu0 %v1546
  %2240 = vmatprep.subr.bf16.mxu0 %v1549
  %2241 = vmatpush1.bf16.msra.mxu0 %v1548
  %2242 = vmatprep.subr.bf16.mxu0 %v1551
  %2243 = vmatpush1.bf16.msra.mxu0 %v1550
  %2244 = vmatprep.mubr.bf16.mxu0 %v595
  %2245 = vmatmul.mubr.bf16.gmra.mrb[0].mxu0 %v594
  %v2246 = vpop.f32.mrb[0].mxu0
  %v2247 = vadd.f32 %v2146, %v2246
  %v2248 = vpop.f32.mrb[0].mxu0
  %v2249 = vadd.f32 %v2148, %v2248
  %v2250 = vpop.f32.mrb[0].mxu0
  %v2251 = vadd.f32 %v2150, %v2250
  %v2252 = vpop.f32.mrb[0].mxu0
  %v2253 = vadd.f32 %v2152, %v2252
  %2254 = vmatprep.mubr.bf16.mxu0 %v608
  %2255 = vmatmul.mubr.bf16.gmra.mrb[0].mxu0 %v607
  %v2256 = vpop.f32.mrb[0].mxu0
  %v2257 = vadd.f32 %v2156, %v2256
  %v2258 = vpop.f32.mrb[0].mxu0
  %v2259 = vadd.f32 %v2158, %v2258
  %v2260 = vpop.f32.mrb[0].mxu0
  %v2261 = vadd.f32 %v2160, %v2260
  %v2262 = vpop.f32.mrb[0].mxu0
  %v2263 = vadd.f32 %v2162, %v2262
  %2264 = vmatprep.mubr.bf16.mxu0 %v621
  %2265 = vmatmul.mubr.bf16.gmra.mrb[0].mxu0 %v620
  %v2266 = vpop.f32.mrb[0].mxu0
  %v2267 = vadd.f32 %v2166, %v2266
  %v2268 = vpop.f32.mrb[0].mxu0
  %v2269 = vadd.f32 %v2168, %v2268
  %v2270 = vpop.f32.mrb[0].mxu0
  %v2271 = vadd.f32 %v2170, %v2270
  %v2272 = vpop.f32.mrb[0].mxu0
  %v2273 = vadd.f32 %v2172, %v2272
  %2274 = vmatprep.mubr.bf16.mxu0 %v634
  %2275 = vmatmul.mubr.bf16.gmra.mrb[0].mxu0 %v633
  %v2276 = vpop.f32.mrb[0].mxu0
  %v2277 = vadd.f32 %v2176, %v2276
  %v2278 = vpop.f32.mrb[0].mxu0
  %v2279 = vadd.f32 %v2178, %v2278
  %v2280 = vpop.f32.mrb[0].mxu0
  %v2281 = vadd.f32 %v2180, %v2280
  %v2282 = vpop.f32.mrb[0].mxu0
  %v2283 = vadd.f32 %v2182, %v2282
  %2284 = vmatprep.mubr.bf16.mxu0 %v647
  %2285 = vmatmul.mubr.bf16.gmra.mrb[0].mxu0 %v646
  %v2286 = vpop.f32.mrb[0].mxu0
  %v2287 = vadd.f32 %v2186, %v2286
  %v2288 = vpop.f32.mrb[0].mxu0
  %v2289 = vadd.f32 %v2188, %v2288
  %v2290 = vpop.f32.mrb[0].mxu0
  %v2291 = vadd.f32 %v2190, %v2290
  %v2292 = vpop.f32.mrb[0].mxu0
  %v2293 = vadd.f32 %v2192, %v2292
  %2294 = vmatprep.mubr.bf16.mxu0 %v660
  %2295 = vmatmul.mubr.bf16.gmra.mrb[0].mxu0 %v659
  %v2296 = vpop.f32.mrb[0].mxu0
  %v2297 = vadd.f32 %v2196, %v2296
  %v2298 = vpop.f32.mrb[0].mxu0
  %v2299 = vadd.f32 %v2198, %v2298
  %v2300 = vpop.f32.mrb[0].mxu0
  %v2301 = vadd.f32 %v2200, %v2300
  %v2302 = vpop.f32.mrb[0].mxu0
  %v2303 = vadd.f32 %v2202, %v2302
  %2304 = vmatprep.mubr.bf16.mxu0 %v673
  %2305 = vmatmul.mubr.bf16.gmra.mrb[0].mxu0 %v672
  %v2306 = vpop.f32.mrb[0].mxu0
  %v2307 = vadd.f32 %v2206, %v2306
  %v2308 = vpop.f32.mrb[0].mxu0
  %v2309 = vadd.f32 %v2208, %v2308
  %v2310 = vpop.f32.mrb[0].mxu0
  %v2311 = vpop.f32.mrb[0].mxu0
  %2312 = vdwg.mxu0
  %2313 = vmatprep.subr.bf16.mxu0 %v1553
  %2314 = vmatpush1.bf16.msra.mxu0 %v1552
  %2315 = vmatprep.subr.bf16.mxu0 %v1555
  %2316 = vmatpush1.bf16.msra.mxu0 %v1554
  %2317 = vmatprep.subr.bf16.mxu0 %v1557
  %2318 = vmatpush1.bf16.msra.mxu0 %v1556
  %2319 = vmatprep.subr.bf16.mxu0 %v1559
  %2320 = vmatpush1.bf16.msra.mxu0 %v1558
  %2321 = vmatprep.subr.bf16.mxu0 %v1561
  %2322 = vmatpush1.bf16.msra.mxu0 %v1560
  %2323 = vmatprep.subr.bf16.mxu0 %v1563
  %2324 = vmatpush1.bf16.msra.mxu0 %v1562
  %2325 = vmatprep.subr.bf16.mxu0 %v1565
  %2326 = vmatpush1.bf16.msra.mxu0 %v1564
  %2327 = vmatprep.subr.bf16.mxu0 %v1567
  %2328 = vmatpush1.bf16.msra.mxu0 %v1566
  %2329 = vmatprep.subr.bf16.mxu0 %v1569
  %2330 = vmatpush1.bf16.msra.mxu0 %v1568
  %2331 = vmatprep.subr.bf16.mxu0 %v1571
  %2332 = vmatpush1.bf16.msra.mxu0 %v1570
  %2333 = vmatprep.subr.bf16.mxu0 %v1573
  %2334 = vmatpush1.bf16.msra.mxu0 %v1572
  %2335 = vmatprep.subr.bf16.mxu0 %v1575
  %2336 = vmatpush1.bf16.msra.mxu0 %v1574
  %2337 = vmatprep.subr.bf16.mxu0 %v1577
  %2338 = vmatpush1.bf16.msra.mxu0 %v1576
  %2339 = vmatprep.subr.bf16.mxu0 %v1579
  %2340 = vmatpush1.bf16.msra.mxu0 %v1578
  %2341 = vmatprep.subr.bf16.mxu0 %v1581
  %2342 = vmatpush1.bf16.msra.mxu0 %v1580
  %2343 = vmatprep.subr.bf16.mxu0 %v1583
  %2344 = vmatpush1.bf16.msra.mxu0 %v1582
  %2345 = vmatprep.mubr.bf16.mxu0 %v597
  %2346 = vmatmul.mubr.bf16.gmra.mrb[0].mxu0 %v596
  %v2347 = vpop.f32.mrb[0].mxu0
  %v2348 = vadd.f32 %v2247, %v2347
  %v2349 = vpop.f32.mrb[0].mxu0
  %v2350 = vadd.f32 %v2249, %v2349
  %v2351 = vpop.f32.mrb[0].mxu0
  %v2352 = vadd.f32 %v2251, %v2351
  %v2353 = vpop.f32.mrb[0].mxu0
  %v2354 = vadd.f32 %v2253, %v2353
  %2355 = vmatprep.mubr.bf16.mxu0 %v610
  %2356 = vmatmul.mubr.bf16.gmra.mrb[0].mxu0 %v609
  %v2357 = vpop.f32.mrb[0].mxu0
  %v2358 = vadd.f32 %v2257, %v2357
  %v2359 = vpop.f32.mrb[0].mxu0
  %v2360 = vadd.f32 %v2259, %v2359
  %v2361 = vpop.f32.mrb[0].mxu0
  %v2362 = vadd.f32 %v2261, %v2361
  %v2363 = vpop.f32.mrb[0].mxu0
  %v2364 = vadd.f32 %v2263, %v2363
  %2365 = vmatprep.mubr.bf16.mxu0 %v623
  %2366 = vmatmul.mubr.bf16.gmra.mrb[0].mxu0 %v622
  %v2367 = vpop.f32.mrb[0].mxu0
  %v2368 = vadd.f32 %v2267, %v2367
  %v2369 = vpop.f32.mrb[0].mxu0
  %v2370 = vadd.f32 %v2269, %v2369
  %v2371 = vpop.f32.mrb[0].mxu0
  %v2372 = vadd.f32 %v2271, %v2371
  %v2373 = vpop.f32.mrb[0].mxu0
  %v2374 = vadd.f32 %v2273, %v2373
  %2375 = vmatprep.mubr.bf16.mxu0 %v636
  %2376 = vmatmul.mubr.bf16.gmra.mrb[0].mxu0 %v635
  %v2377 = vpop.f32.mrb[0].mxu0
  %v2378 = vadd.f32 %v2277, %v2377
  %v2379 = vpop.f32.mrb[0].mxu0
  %v2380 = vadd.f32 %v2279, %v2379
  %v2381 = vpop.f32.mrb[0].mxu0
  %v2382 = vadd.f32 %v2281, %v2381
  %v2383 = vpop.f32.mrb[0].mxu0
  %v2384 = vadd.f32 %v2283, %v2383
  %2385 = vmatprep.mubr.bf16.mxu0 %v649
  %2386 = vmatmul.mubr.bf16.gmra.mrb[0].mxu0 %v648
  %v2387 = vpop.f32.mrb[0].mxu0
  %v2388 = vadd.f32 %v2287, %v2387
  %v2389 = vpop.f32.mrb[0].mxu0
  %v2390 = vadd.f32 %v2289, %v2389
  %v2391 = vpop.f32.mrb[0].mxu0
  %v2392 = vadd.f32 %v2291, %v2391
  %v2393 = vpop.f32.mrb[0].mxu0
  %v2394 = vadd.f32 %v2293, %v2393
  %2395 = vmatprep.mubr.bf16.mxu0 %v662
  %2396 = vmatmul.mubr.bf16.gmra.mrb[0].mxu0 %v661
  %v2397 = vpop.f32.mrb[0].mxu0
  %v2398 = vadd.f32 %v2297, %v2397
  %v2399 = vpop.f32.mrb[0].mxu0
  %v2400 = vadd.f32 %v2299, %v2399
  %v2401 = vpop.f32.mrb[0].mxu0
  %v2402 = vadd.f32 %v2301, %v2401
  %v2403 = vpop.f32.mrb[0].mxu0
  %v2404 = vadd.f32 %v2303, %v2403
  %2405 = vmatprep.mubr.bf16.mxu0 %v675
  %2406 = vmatmul.mubr.bf16.gmra.mrb[0].mxu0 %v674
  %v2407 = vpop.f32.mrb[0].mxu0
  %v2408 = vadd.f32 %v2307, %v2407
  %v2409 = vpop.f32.mrb[0].mxu0
  %v2410 = vadd.f32 %v2309, %v2409
  %v2411 = vpop.f32.mrb[0].mxu0
  %v2412 = vpop.f32.mrb[0].mxu0
  %2413 = vdwg.mxu0
  %2414 = vmatprep.subr.bf16.mxu0 %v1585
  %2415 = vmatpush1.bf16.msra.mxu0 %v1584
  %2416 = vmatprep.subr.bf16.mxu0 %v1587
  %2417 = vmatpush1.bf16.msra.mxu0 %v1586
  %2418 = vmatprep.subr.bf16.mxu0 %v1589
  %2419 = vmatpush1.bf16.msra.mxu0 %v1588
  %2420 = vmatprep.subr.bf16.mxu0 %v1591
  %2421 = vmatpush1.bf16.msra.mxu0 %v1590
  %2422 = vmatprep.subr.bf16.mxu0 %v1593
  %2423 = vmatpush1.bf16.msra.mxu0 %v1592
  %2424 = vmatprep.subr.bf16.mxu0 %v1595
  %2425 = vmatpush1.bf16.msra.mxu0 %v1594
  %2426 = vmatprep.subr.bf16.mxu0 %v1597
  %2427 = vmatpush1.bf16.msra.mxu0 %v1596
  %2428 = vmatprep.subr.bf16.mxu0 %v1599
  %2429 = vmatpush1.bf16.msra.mxu0 %v1598
  %2430 = vmatprep.subr.bf16.mxu0 0
  %2431 = vmatpush1.bf16.msra.mxu0 0
  %2432 = vmatprep.subr.bf16.mxu0 0
  %2433 = vmatpush1.bf16.msra.mxu0 0
  %2434 = vmatprep.subr.bf16.mxu0 0
  %2435 = vmatpush1.bf16.msra.mxu0 0
  %2436 = vmatprep.subr.bf16.mxu0 0
  %2437 = vmatpush1.bf16.msra.mxu0 0
  %2438 = vmatprep.subr.bf16.mxu0 0
  %2439 = vmatpush1.bf16.msra.mxu0 0
  %2440 = vmatprep.subr.bf16.mxu0 0
  %2441 = vmatpush1.bf16.msra.mxu0 0
  %2442 = vmatprep.subr.bf16.mxu0 0
  %2443 = vmatpush1.bf16.msra.mxu0 0
  %2444 = vmatprep.subr.bf16.mxu0 0
  %2445 = vmatpush1.bf16.msra.mxu0 0
  %2446 = vmatprep.mubr.bf16.mxu0 0
  %2447 = vmatmul.mubr.bf16.gmra.mrb[0].mxu0 %v598
  %v2448 = vpop.f32.mrb[0].mxu0
  %v2449 = vadd.f32 %v2348, %v2448
  %v2450 = vpop.f32.mrb[0].mxu0
  %v2451 = vadd.f32 %v2350, %v2450
  %v2452 = vpop.f32.mrb[0].mxu0
  %v2453 = vadd.f32 %v2352, %v2452
  %v2454 = vpop.f32.mrb[0].mxu0
  %v2455 = vadd.f32 %v2354, %v2454
  %2456 = vmatprep.mubr.bf16.mxu0 0
  %2457 = vmatmul.mubr.bf16.gmra.mrb[0].mxu0 %v611
  %v2458 = vpop.f32.mrb[0].mxu0
  %v2459 = vadd.f32 %v2358, %v2458
  %v2460 = vpop.f32.mrb[0].mxu0
  %v2461 = vadd.f32 %v2360, %v2460
  %v2462 = vpop.f32.mrb[0].mxu0
  %v2463 = vadd.f32 %v2362, %v2462
  %v2464 = vpop.f32.mrb[0].mxu0
  %v2465 = vadd.f32 %v2364, %v2464
  %2466 = vmatprep.mubr.bf16.mxu0 0
  %2467 = vmatmul.mubr.bf16.gmra.mrb[0].mxu0 %v624
  %v2468 = vpop.f32.mrb[0].mxu0
  %v2469 = vadd.f32 %v2368, %v2468
  %v2470 = vpop.f32.mrb[0].mxu0
  %v2471 = vadd.f32 %v2370, %v2470
  %v2472 = vpop.f32.mrb[0].mxu0
  %v2473 = vadd.f32 %v2372, %v2472
  %v2474 = vpop.f32.mrb[0].mxu0
  %v2475 = vadd.f32 %v2374, %v2474
  %2476 = vmatprep.mubr.bf16.mxu0 0
  %2477 = vmatmul.mubr.bf16.gmra.mrb[0].mxu0 %v637
  %v2478 = vpop.f32.mrb[0].mxu0
  %v2479 = vadd.f32 %v2378, %v2478
  %v2480 = vpop.f32.mrb[0].mxu0
  %v2481 = vadd.f32 %v2380, %v2480
  %v2482 = vpop.f32.mrb[0].mxu0
  %v2483 = vadd.f32 %v2382, %v2482
  %v2484 = vpop.f32.mrb[0].mxu0
  %v2485 = vadd.f32 %v2384, %v2484
  %2486 = vmatprep.mubr.bf16.mxu0 0
  %2487 = vmatmul.mubr.bf16.gmra.mrb[0].mxu0 %v650
  %v2488 = vpop.f32.mrb[0].mxu0
  %v2489 = vadd.f32 %v2388, %v2488
  %v2490 = vpop.f32.mrb[0].mxu0
  %v2491 = vadd.f32 %v2390, %v2490
  %v2492 = vpop.f32.mrb[0].mxu0
  %v2493 = vadd.f32 %v2392, %v2492
  %v2494 = vpop.f32.mrb[0].mxu0
  %v2495 = vadd.f32 %v2394, %v2494
  %2496 = vmatprep.mubr.bf16.mxu0 0
  %2497 = vmatmul.mubr.bf16.gmra.mrb[0].mxu0 %v663
  %v2498 = vpop.f32.mrb[0].mxu0
  %v2499 = vadd.f32 %v2398, %v2498
  %v2500 = vpop.f32.mrb[0].mxu0
  %v2501 = vadd.f32 %v2400, %v2500
  %v2502 = vpop.f32.mrb[0].mxu0
  %v2503 = vadd.f32 %v2402, %v2502
  %v2504 = vpop.f32.mrb[0].mxu0
  %v2505 = vadd.f32 %v2404, %v2504
  %2506 = vmatprep.mubr.bf16.mxu0 0
  %2507 = vmatmul.mubr.bf16.gmra.mrb[0].mxu0 %v676
  %v2508 = vpop.f32.mrb[0].mxu0
  %v2509 = vadd.f32 %v2408, %v2508
  %v2510 = vpop.f32.mrb[0].mxu0
  %v2511 = vadd.f32 %v2410, %v2510
  %v2512 = vpop.f32.mrb[0].mxu0
  %v2513 = vpop.f32.mrb[0].mxu0
  %2514 = vdwg.mxu0
  %vm2515 = vcmp.ge.f32.partialorder %v2449, 0.0
  %vm2516 = vcmp.ge.f32.partialorder %v2451, 0.0
  %vm2517 = vcmp.ge.f32.partialorder %v2453, 0.0
  %vm2518 = vcmp.ge.f32.partialorder %v2455, 0.0
  %vm2519 = vcmp.ge.f32.partialorder %v2459, 0.0
  %vm2520 = vcmp.ge.f32.partialorder %v2461, 0.0
  %vm2521 = vcmp.ge.f32.partialorder %v2463, 0.0
  %vm2522 = vcmp.ge.f32.partialorder %v2465, 0.0
  %vm2523 = vcmp.ge.f32.partialorder %v2469, 0.0
  %vm2524 = vcmp.ge.f32.partialorder %v2471, 0.0
  %vm2525 = vcmp.ge.f32.partialorder %v2473, 0.0
  %vm2526 = vcmp.ge.f32.partialorder %v2475, 0.0
  %vm2527 = vcmp.ge.f32.partialorder %v2479, 0.0
  %vm2528 = vcmp.ge.f32.partialorder %v2481, 0.0
  %vm2529 = vcmp.ge.f32.partialorder %v2483, 0.0
  %vm2530 = vcmp.ge.f32.partialorder %v2485, 0.0
  %vm2531 = vcmp.ge.f32.partialorder %v2489, 0.0
  %vm2532 = vcmp.ge.f32.partialorder %v2491, 0.0
  %vm2533 = vcmp.ge.f32.partialorder %v2493, 0.0
  %vm2534 = vcmp.ge.f32.partialorder %v2495, 0.0
  %vm2535 = vcmp.ge.f32.partialorder %v2499, 0.0
  %vm2536 = vcmp.ge.f32.partialorder %v2501, 0.0
  %vm2537 = vcmp.ge.f32.partialorder %v2503, 0.0
  %vm2538 = vcmp.ge.f32.partialorder %v2505, 0.0
  %vm2539 = vcmp.ge.f32.partialorder %v2509, 0.0
  %vm2540 = vcmp.ge.f32.partialorder %v2511, 0.0
  %v2541 = vmul.f32 %v2449, 0.01
  %v2542 = vmul.f32 %v2451, 0.01
  %v2543 = vmul.f32 %v2453, 0.01
  %v2544 = vmul.f32 %v2455, 0.01
  %v2545 = vmul.f32 %v2459, 0.01
  %v2546 = vmul.f32 %v2461, 0.01
  %v2547 = vmul.f32 %v2463, 0.01
  %v2548 = vmul.f32 %v2465, 0.01
  %v2549 = vmul.f32 %v2469, 0.01
  %v2550 = vmul.f32 %v2471, 0.01
  %v2551 = vmul.f32 %v2473, 0.01
  %v2552 = vmul.f32 %v2475, 0.01
  %v2553 = vmul.f32 %v2479, 0.01
  %v2554 = vmul.f32 %v2481, 0.01
  %v2555 = vmul.f32 %v2483, 0.01
  %v2556 = vmul.f32 %v2485, 0.01
  %v2557 = vmul.f32 %v2489, 0.01
  %v2558 = vmul.f32 %v2491, 0.01
  %v2559 = vmul.f32 %v2493, 0.01
  %v2560 = vmul.f32 %v2495, 0.01
  %v2561 = vmul.f32 %v2499, 0.01
  %v2562 = vmul.f32 %v2501, 0.01
  %v2563 = vmul.f32 %v2503, 0.01
  %v2564 = vmul.f32 %v2505, 0.01
  %v2565 = vmul.f32 %v2509, 0.01
  %v2566 = vmul.f32 %v2511, 0.01
  %v2567 = vsel %vm2515, %v2449, %v2541
  %v2568 = vsel %vm2516, %v2451, %v2542
  %v2569 = vsel %vm2517, %v2453, %v2543
  %v2570 = vsel %vm2518, %v2455, %v2544
  %v2571 = vsel %vm2519, %v2459, %v2545
  %v2572 = vsel %vm2520, %v2461, %v2546
  %v2573 = vsel %vm2521, %v2463, %v2547
  %v2574 = vsel %vm2522, %v2465, %v2548
  %v2575 = vsel %vm2523, %v2469, %v2549
  %v2576 = vsel %vm2524, %v2471, %v2550
  %v2577 = vsel %vm2525, %v2473, %v2551
  %v2578 = vsel %vm2526, %v2475, %v2552
  %v2579 = vsel %vm2527, %v2479, %v2553
  %v2580 = vsel %vm2528, %v2481, %v2554
  %v2581 = vsel %vm2529, %v2483, %v2555
  %v2582 = vsel %vm2530, %v2485, %v2556
  %v2583 = vsel %vm2531, %v2489, %v2557
  %v2584 = vsel %vm2532, %v2491, %v2558
  %v2585 = vsel %vm2533, %v2493, %v2559
  %v2586 = vsel %vm2534, %v2495, %v2560
  %v2587 = vsel %vm2535, %v2499, %v2561
  %v2588 = vsel %vm2536, %v2501, %v2562
  %v2589 = vsel %vm2537, %v2503, %v2563
  %v2590 = vsel %vm2538, %v2505, %v2564
  %v2591 = vsel %vm2539, %v2509, %v2565
  %v2592 = vsel %vm2540, %v2511, %v2566
  %v2593 = vpack.c.bf16 %v2569, %v2567
  %v2594 = vpack.c.bf16 %v2570, %v2568
  %v2595 = vpack.c.bf16 %v2573, %v2571
  %v2596 = vpack.c.bf16 %v2574, %v2572
  %v2597 = vpack.c.bf16 %v2577, %v2575
  %v2598 = vpack.c.bf16 %v2578, %v2576
  %v2599 = vpack.c.bf16 %v2581, %v2579
  %v2600 = vpack.c.bf16 %v2582, %v2580
  %v2601 = vpack.c.bf16 %v2585, %v2583
  %v2602 = vpack.c.bf16 %v2586, %v2584
  %v2603 = vpack.c.bf16 %v2589, %v2587
  %v2604 = vpack.c.bf16 %v2590, %v2588
  %v2605 = vpack.c.bf16 %v2591, %v2591
  %v2606 = vpack.c.bf16 %v2592, %v2592
  %v2621 = vunpack.c.l.b16 %v2593
  %v2622 = vunpack.c.l.b16 %v2594
  %v2623 = vunpack.c.h.b16 %v2593
  %v2624 = vunpack.c.h.b16 %v2594
  %v2625 = vunpack.c.l.b16 %v2595
  %v2626 = vunpack.c.l.b16 %v2596
  %v2627 = vunpack.c.h.b16 %v2595
  %v2628 = vunpack.c.h.b16 %v2596
  %v2629 = vunpack.c.l.b16 %v2597
  %v2630 = vunpack.c.l.b16 %v2598
  %v2631 = vunpack.c.h.b16 %v2597
  %v2632 = vunpack.c.h.b16 %v2598
  %v2633 = vunpack.c.l.b16 %v2599
  %v2634 = vunpack.c.l.b16 %v2600
  %v2635 = vunpack.c.h.b16 %v2599
  %v2636 = vunpack.c.h.b16 %v2600
  %v2637 = vunpack.c.l.b16 %v2601
  %v2638 = vunpack.c.l.b16 %v2602
  %v2639 = vunpack.c.h.b16 %v2601
  %v2640 = vunpack.c.h.b16 %v2602
  %v2641 = vunpack.c.l.b16 %v2603
  %v2642 = vunpack.c.l.b16 %v2604
  %v2643 = vunpack.c.h.b16 %v2603
  %v2644 = vunpack.c.h.b16 %v2604
  %v2645 = vunpack.c.l.b16 %v2605
  %v2646 = vunpack.c.l.b16 %v2606
  %v2647 = vpack.c.b16 %v2622, %v2621
  %v2648 = vpack.c.b16 %v2624, %v2623
  %v2649 = vpack.c.b16 %v2626, %v2625
  %v2650 = vpack.c.b16 %v2628, %v2627
  %v2651 = vpack.c.b16 %v2630, %v2629
  %v2652 = vpack.c.b16 %v2632, %v2631
  %v2653 = vpack.c.b16 %v2634, %v2633
  %v2654 = vpack.c.b16 %v2636, %v2635
  %v2655 = vpack.c.b16 %v2638, %v2637
  %v2656 = vpack.c.b16 %v2640, %v2639
  %v2657 = vpack.c.b16 %v2642, %v2641
  %v2658 = vpack.c.b16 %v2644, %v2643
  %v2659 = vpack.c.b16 %v2646, %v2645
  %vm2673 = vcmask 1043456
  %vm2674 = vcmask 523268
  %vm2675 = vmor %vm2674, %vm2673
  %2676 = vst.msk [vmem:[%s3] sm:$0xff] %vm2675, %v2647
  %2677 = vst.msk [vmem:[%s3 + $0x8] sm:$0xff] %vm2675, %v2648
  %2678 = vst.msk [vmem:[%s3 + $0x10] sm:$0xff] %vm2675, %v2649
  %2679 = vst.msk [vmem:[%s3 + $0x18] sm:$0xff] %vm2675, %v2650
  %2680 = vst.msk [vmem:[%s3 + $0x20] sm:$0xff] %vm2675, %v2651
  %2681 = vst.msk [vmem:[%s3 + $0x28] sm:$0xff] %vm2675, %v2652
  %2682 = vst.msk [vmem:[%s3 + $0x30] sm:$0xff] %vm2675, %v2653
  %2683 = vst.msk [vmem:[%s3 + $0x38] sm:$0xff] %vm2675, %v2654
  %2684 = vst.msk [vmem:[%s3 + $0x40] sm:$0xff] %vm2675, %v2655
  %2685 = vst.msk [vmem:[%s3 + $0x48] sm:$0xff] %vm2675, %v2656
  %2686 = vst.msk [vmem:[%s3 + $0x50] sm:$0xff] %vm2675, %v2657
  %2687 = vst.msk [vmem:[%s3 + $0x58] sm:$0xff] %vm2675, %v2658
  %vm2688 = vcmask 1040384
  %vm2689 = vcmask 520196
  %vm2690 = vmor %vm2689, %vm2688
  %2691 = vst.msk [vmem:[%s3 + $0x60] sm:$0x11] %vm2690, %v2659
  // Predicated region
  $region14: #{discriminator_forward.7} parent=0 // pred_check
    _
  $region15: #{discriminator_forward.7} parent=0 // pred_check_branch
    %2693 = sbr.rel (0) target = $region17
  $region16: #{discriminator_forward.7} parent=0 // pred_region
    _
  $region17: #{discriminator_forward.7} parent=0 // pred_fallthru
    _
  // Predicated region
  $region18: #{discriminator_forward.7} parent=0 // pred_check
    _
  $region19: #{discriminator_forward.7} parent=0 // pred_check_branch
    %2695 = sbr.rel (0) target = $region21
  $region20: #{discriminator_forward.7} parent=0 // pred_region
    _
  $region21: #{discriminator_forward.7} parent=0 // pred_fallthru
    _

// kernel: discriminator_forward.8
$region0: #{discriminator_forward.8}
  #allocation0 [shape = 'u32[]', space=smem, size = 0x4, offset = 0x4, fixed_abs, tag = 'smem constant byte address 0x4 - core index']
  #allocation1 [shape = 'u32[144,128]{1,0:T(1,128)}', space=vmem, size = 0x12000, scoped, tag = 'internal scratch']
  %s0 = inlined_call_operand.vmem [shape: bf16[18,1792], index: 0, kind: input, shape index: {}]
  %s1 = inlined_call_operand.vmem [shape: bf16[1792,384], index: 1, kind: input, shape index: {}]
  %s2 = inlined_call_operand.vmem [shape: f32[1,384], index: 2, kind: input, shape index: {}]
  %s3 = inlined_call_operand.vmem [shape: bf16[18,384], index: 3, kind: output, shape index: {}]
  %s4 = sld [smem:[#allocation0]]
  $region22: #{discriminator_forward.8} parent=0
    _
  %s6 = ssub.s32 1, %s4
  %s7 = scalar_select 0, %s6, %s4
  // Predicated region
  $region2: #{discriminator_forward.8} parent=0 // pred_check
    _
  $region3: #{discriminator_forward.8} parent=0 // pred_check_branch
    %9 = sbr.rel (0) target = $region5
  $region4: #{discriminator_forward.8} parent=0 // pred_region
    _
  $region5: #{discriminator_forward.8} parent=0 // pred_fallthru
    _
  // Predicated region
  $region6: #{discriminator_forward.8} parent=0 // pred_check
    _
  $region7: #{discriminator_forward.8} parent=0 // pred_check_branch
    %11 = sbr.rel (0) target = $region9
  $region8: #{discriminator_forward.8} parent=0 // pred_region
    _
  $region9: #{discriminator_forward.8} parent=0 // pred_fallthru
    _
  // Predicated region
  $region10: #{discriminator_forward.8} parent=0 // pred_check
    _
  $region11: #{discriminator_forward.8} parent=0 // pred_check_branch
    %13 = sbr.rel (0) target = $region13
  $region12: #{discriminator_forward.8} parent=0 // pred_region
    _
  $region13: #{discriminator_forward.8} parent=0 // pred_fallthru
    _
  %v15 = vld [vmem:[%s0] sm:$0xff]
  %v16 = vld [vmem:[%s0 + $0x8] sm:$0xff]
  %v17 = vld [vmem:[%s0 + $0x10] sm:$0xff]
  %v18 = vld [vmem:[%s0 + $0x18] sm:$0xff]
  %v19 = vld [vmem:[%s0 + $0x20] sm:$0xff]
  %v20 = vld [vmem:[%s0 + $0x28] sm:$0xff]
  %v21 = vld [vmem:[%s0 + $0x30] sm:$0xff]
  %v22 = vld [vmem:[%s0 + $0x38] sm:$0xff]
  %v23 = vld [vmem:[%s0 + $0x40] sm:$0xff]
  %v24 = vld [vmem:[%s0 + $0x48] sm:$0xff]
  %v25 = vld [vmem:[%s0 + $0x50] sm:$0xff]
  %v26 = vld [vmem:[%s0 + $0x58] sm:$0xff]
  %v27 = vld [vmem:[%s0 + $0x60] sm:$0xff]
  %v28 = vld [vmem:[%s0 + $0x68] sm:$0xff]
  %v29 = vld [vmem:[%s0 + $0x70] sm:$0x11]
  %v30 = vld [vmem:[%s0 + $0x78] sm:$0x11]
  %v31 = vld [vmem:[%s0 + $0x80] sm:$0x11]
  %v32 = vld [vmem:[%s0 + $0x88] sm:$0x11]
  %v33 = vld [vmem:[%s0 + $0x90] sm:$0x11]
  %v34 = vld [vmem:[%s0 + $0x98] sm:$0x11]
  %v35 = vld [vmem:[%s0 + $0xa0] sm:$0x11]
  %v36 = vld [vmem:[%s1] sm:$0xff]
  %v37 = vld [vmem:[%s1 + $0x8] sm:$0xf]
  %v38 = vld [vmem:[%s1 + $0xc] sm:$0xff]
  %v39 = vld [vmem:[%s1 + $0x14] sm:$0xf]
  %v40 = vld [vmem:[%s1 + $0x18] sm:$0xff]
  %v41 = vld [vmem:[%s1 + $0x20] sm:$0xf]
  %v42 = vld [vmem:[%s1 + $0x24] sm:$0xff]
  %v43 = vld [vmem:[%s1 + $0x2c] sm:$0xf]
  %v44 = vld [vmem:[%s1 + $0x30] sm:$0xff]
  %v45 = vld [vmem:[%s1 + $0x38] sm:$0xf]
  %v46 = vld [vmem:[%s1 + $0x3c] sm:$0xff]
  %v47 = vld [vmem:[%s1 + $0x44] sm:$0xf]
  %v48 = vld [vmem:[%s1 + $0x48] sm:$0xff]
  %v49 = vld [vmem:[%s1 + $0x50] sm:$0xf]
  %v50 = vld [vmem:[%s1 + $0x54] sm:$0xff]
  %v51 = vld [vmem:[%s1 + $0x5c] sm:$0xf]
  %v52 = vld [vmem:[%s1 + $0x60] sm:$0xff]
  %v53 = vld [vmem:[%s1 + $0x68] sm:$0xf]
  %v54 = vld [vmem:[%s1 + $0x6c] sm:$0xff]
  %v55 = vld [vmem:[%s1 + $0x74] sm:$0xf]
  %v56 = vld [vmem:[%s1 + $0x78] sm:$0xff]
  %v57 = vld [vmem:[%s1 + $0x80] sm:$0xf]
  %v58 = vld [vmem:[%s1 + $0x84] sm:$0xff]
  %v59 = vld [vmem:[%s1 + $0x8c] sm:$0xf]
  %v60 = vld [vmem:[%s1 + $0x90] sm:$0xff]
  %v61 = vld [vmem:[%s1 + $0x98] sm:$0xf]
  %v62 = vld [vmem:[%s1 + $0x9c] sm:$0xff]
  %v63 = vld [vmem:[%s1 + $0xa4] sm:$0xf]
  %v64 = vld [vmem:[%s1 + $0xa8] sm:$0xff]
  %v65 = vld [vmem:[%s1 + $0xb0] sm:$0xf]
  %v66 = vld [vmem:[%s1 + $0xb4] sm:$0xff]
  %v67 = vld [vmem:[%s1 + $0xbc] sm:$0xf]
  %v68 = vld [vmem:[%s1 + $0xc0] sm:$0xff]
  %v69 = vld [vmem:[%s1 + $0xc8] sm:$0xf]
  %v70 = vld [vmem:[%s1 + $0xcc] sm:$0xff]
  %v71 = vld [vmem:[%s1 + $0xd4] sm:$0xf]
  %v72 = vld [vmem:[%s1 + $0xd8] sm:$0xff]
  %v73 = vld [vmem:[%s1 + $0xe0] sm:$0xf]
  %v74 = vld [vmem:[%s1 + $0xe4] sm:$0xff]
  %v75 = vld [vmem:[%s1 + $0xec] sm:$0xf]
  %v76 = vld [vmem:[%s1 + $0xf0] sm:$0xff]
  %v77 = vld [vmem:[%s1 + $0xf8] sm:$0xf]
  %v78 = vld [vmem:[%s1 + $0xfc] sm:$0xff]
  %v79 = vld [vmem:[%s1 + $0x104] sm:$0xf]
  %v80 = vld [vmem:[%s1 + $0x108] sm:$0xff]
  %v81 = vld [vmem:[%s1 + $0x110] sm:$0xf]
  %v82 = vld [vmem:[%s1 + $0x114] sm:$0xff]
  %v83 = vld [vmem:[%s1 + $0x11c] sm:$0xf]
  %v84 = vld [vmem:[%s1 + $0x120] sm:$0xff]
  %v85 = vld [vmem:[%s1 + $0x128] sm:$0xf]
  %v86 = vld [vmem:[%s1 + $0x12c] sm:$0xff]
  %v87 = vld [vmem:[%s1 + $0x134] sm:$0xf]
  %v88 = vld [vmem:[%s1 + $0x138] sm:$0xff]
  %v89 = vld [vmem:[%s1 + $0x140] sm:$0xf]
  %v90 = vld [vmem:[%s1 + $0x144] sm:$0xff]
  %v91 = vld [vmem:[%s1 + $0x14c] sm:$0xf]
  %v92 = vld [vmem:[%s1 + $0x150] sm:$0xff]
  %v93 = vld [vmem:[%s1 + $0x158] sm:$0xf]
  %v94 = vld [vmem:[%s1 + $0x15c] sm:$0xff]
  %v95 = vld [vmem:[%s1 + $0x164] sm:$0xf]
  %v96 = vld [vmem:[%s1 + $0x168] sm:$0xff]
  %v97 = vld [vmem:[%s1 + $0x170] sm:$0xf]
  %v98 = vld [vmem:[%s1 + $0x174] sm:$0xff]
  %v99 = vld [vmem:[%s1 + $0x17c] sm:$0xf]
  %v100 = vld [vmem:[%s1 + $0x180] sm:$0xff]
  %v101 = vld [vmem:[%s1 + $0x188] sm:$0xf]
  %v102 = vld [vmem:[%s1 + $0x18c] sm:$0xff]
  %v103 = vld [vmem:[%s1 + $0x194] sm:$0xf]
  %v104 = vld [vmem:[%s1 + $0x198] sm:$0xff]
  %v105 = vld [vmem:[%s1 + $0x1a0] sm:$0xf]
  %v106 = vld [vmem:[%s1 + $0x1a4] sm:$0xff]
  %v107 = vld [vmem:[%s1 + $0x1ac] sm:$0xf]
  %v108 = vld [vmem:[%s1 + $0x1b0] sm:$0xff]
  %v109 = vld [vmem:[%s1 + $0x1b8] sm:$0xf]
  %v110 = vld [vmem:[%s1 + $0x1bc] sm:$0xff]
  %v111 = vld [vmem:[%s1 + $0x1c4] sm:$0xf]
  %v112 = vld [vmem:[%s1 + $0x1c8] sm:$0xff]
  %v113 = vld [vmem:[%s1 + $0x1d0] sm:$0xf]
  %v114 = vld [vmem:[%s1 + $0x1d4] sm:$0xff]
  %v115 = vld [vmem:[%s1 + $0x1dc] sm:$0xf]
  %v116 = vld [vmem:[%s1 + $0x1e0] sm:$0xff]
  %v117 = vld [vmem:[%s1 + $0x1e8] sm:$0xf]
  %v118 = vld [vmem:[%s1 + $0x1ec] sm:$0xff]
  %v119 = vld [vmem:[%s1 + $0x1f4] sm:$0xf]
  %v120 = vld [vmem:[%s1 + $0x1f8] sm:$0xff]
  %v121 = vld [vmem:[%s1 + $0x200] sm:$0xf]
  %v122 = vld [vmem:[%s1 + $0x204] sm:$0xff]
  %v123 = vld [vmem:[%s1 + $0x20c] sm:$0xf]
  %v124 = vld [vmem:[%s1 + $0x210] sm:$0xff]
  %v125 = vld [vmem:[%s1 + $0x218] sm:$0xf]
  %v126 = vld [vmem:[%s1 + $0x21c] sm:$0xff]
  %v127 = vld [vmem:[%s1 + $0x224] sm:$0xf]
  %v128 = vld [vmem:[%s1 + $0x228] sm:$0xff]
  %v129 = vld [vmem:[%s1 + $0x230] sm:$0xf]
  %v130 = vld [vmem:[%s1 + $0x234] sm:$0xff]
  %v131 = vld [vmem:[%s1 + $0x23c] sm:$0xf]
  %v132 = vld [vmem:[%s1 + $0x240] sm:$0xff]
  %v133 = vld [vmem:[%s1 + $0x248] sm:$0xf]
  %v134 = vld [vmem:[%s1 + $0x24c] sm:$0xff]
  %v135 = vld [vmem:[%s1 + $0x254] sm:$0xf]
  %v136 = vld [vmem:[%s1 + $0x258] sm:$0xff]
  %v137 = vld [vmem:[%s1 + $0x260] sm:$0xf]
  %v138 = vld [vmem:[%s1 + $0x264] sm:$0xff]
  %v139 = vld [vmem:[%s1 + $0x26c] sm:$0xf]
  %v140 = vld [vmem:[%s1 + $0x270] sm:$0xff]
  %v141 = vld [vmem:[%s1 + $0x278] sm:$0xf]
  %v142 = vld [vmem:[%s1 + $0x27c] sm:$0xff]
  %v143 = vld [vmem:[%s1 + $0x284] sm:$0xf]
  %v144 = vld [vmem:[%s1 + $0x288] sm:$0xff]
  %v145 = vld [vmem:[%s1 + $0x290] sm:$0xf]
  %v146 = vld [vmem:[%s1 + $0x294] sm:$0xff]
  %v147 = vld [vmem:[%s1 + $0x29c] sm:$0xf]
  %v148 = vld [vmem:[%s1 + $0x2a0] sm:$0xff]
  %v149 = vld [vmem:[%s1 + $0x2a8] sm:$0xf]
  %v150 = vld [vmem:[%s1 + $0x2ac] sm:$0xff]
  %v151 = vld [vmem:[%s1 + $0x2b4] sm:$0xf]
  %v152 = vld [vmem:[%s1 + $0x2b8] sm:$0xff]
  %v153 = vld [vmem:[%s1 + $0x2c0] sm:$0xf]
  %v154 = vld [vmem:[%s1 + $0x2c4] sm:$0xff]
  %v155 = vld [vmem:[%s1 + $0x2cc] sm:$0xf]
  %v156 = vld [vmem:[%s1 + $0x2d0] sm:$0xff]
  %v157 = vld [vmem:[%s1 + $0x2d8] sm:$0xf]
  %v158 = vld [vmem:[%s1 + $0x2dc] sm:$0xff]
  %v159 = vld [vmem:[%s1 + $0x2e4] sm:$0xf]
  %v160 = vld [vmem:[%s1 + $0x2e8] sm:$0xff]
  %v161 = vld [vmem:[%s1 + $0x2f0] sm:$0xf]
  %v162 = vld [vmem:[%s1 + $0x2f4] sm:$0xff]
  %v163 = vld [vmem:[%s1 + $0x2fc] sm:$0xf]
  %v164 = vld [vmem:[%s1 + $0x300] sm:$0xff]
  %v165 = vld [vmem:[%s1 + $0x308] sm:$0xf]
  %v166 = vld [vmem:[%s1 + $0x30c] sm:$0xff]
  %v167 = vld [vmem:[%s1 + $0x314] sm:$0xf]
  %v168 = vld [vmem:[%s1 + $0x318] sm:$0xff]
  %v169 = vld [vmem:[%s1 + $0x320] sm:$0xf]
  %v170 = vld [vmem:[%s1 + $0x324] sm:$0xff]
  %v171 = vld [vmem:[%s1 + $0x32c] sm:$0xf]
  %v172 = vld [vmem:[%s1 + $0x330] sm:$0xff]
  %v173 = vld [vmem:[%s1 + $0x338] sm:$0xf]
  %v174 = vld [vmem:[%s1 + $0x33c] sm:$0xff]
  %v175 = vld [vmem:[%s1 + $0x344] sm:$0xf]
  %v176 = vld [vmem:[%s1 + $0x348] sm:$0xff]
  %v177 = vld [vmem:[%s1 + $0x350] sm:$0xf]
  %v178 = vld [vmem:[%s1 + $0x354] sm:$0xff]
  %v179 = vld [vmem:[%s1 + $0x35c] sm:$0xf]
  %v180 = vld [vmem:[%s1 + $0x360] sm:$0xff]
  %v181 = vld [vmem:[%s1 + $0x368] sm:$0xf]
  %v182 = vld [vmem:[%s1 + $0x36c] sm:$0xff]
  %v183 = vld [vmem:[%s1 + $0x374] sm:$0xf]
  %v184 = vld [vmem:[%s1 + $0x378] sm:$0xff]
  %v185 = vld [vmem:[%s1 + $0x380] sm:$0xf]
  %v186 = vld [vmem:[%s1 + $0x384] sm:$0xff]
  %v187 = vld [vmem:[%s1 + $0x38c] sm:$0xf]
  %v188 = vld [vmem:[%s1 + $0x390] sm:$0xff]
  %v189 = vld [vmem:[%s1 + $0x398] sm:$0xf]
  %v190 = vld [vmem:[%s1 + $0x39c] sm:$0xff]
  %v191 = vld [vmem:[%s1 + $0x3a4] sm:$0xf]
  %v192 = vld [vmem:[%s1 + $0x3a8] sm:$0xff]
  %v193 = vld [vmem:[%s1 + $0x3b0] sm:$0xf]
  %v194 = vld [vmem:[%s1 + $0x3b4] sm:$0xff]
  %v195 = vld [vmem:[%s1 + $0x3bc] sm:$0xf]
  %v196 = vld [vmem:[%s1 + $0x3c0] sm:$0xff]
  %v197 = vld [vmem:[%s1 + $0x3c8] sm:$0xf]
  %v198 = vld [vmem:[%s1 + $0x3cc] sm:$0xff]
  %v199 = vld [vmem:[%s1 + $0x3d4] sm:$0xf]
  %v200 = vld [vmem:[%s1 + $0x3d8] sm:$0xff]
  %v201 = vld [vmem:[%s1 + $0x3e0] sm:$0xf]
  %v202 = vld [vmem:[%s1 + $0x3e4] sm:$0xff]
  %v203 = vld [vmem:[%s1 + $0x3ec] sm:$0xf]
  %v204 = vld [vmem:[%s1 + $0x3f0] sm:$0xff]
  %v205 = vld [vmem:[%s1 + $0x3f8] sm:$0xf]
  %v206 = vld [vmem:[%s1 + $0x3fc] sm:$0xff]
  %v207 = vld [vmem:[%s1 + $0x404] sm:$0xf]
  %v208 = vld [vmem:[%s1 + $0x408] sm:$0xff]
  %v209 = vld [vmem:[%s1 + $0x410] sm:$0xf]
  %v210 = vld [vmem:[%s1 + $0x414] sm:$0xff]
  %v211 = vld [vmem:[%s1 + $0x41c] sm:$0xf]
  %v212 = vld [vmem:[%s1 + $0x420] sm:$0xff]
  %v213 = vld [vmem:[%s1 + $0x428] sm:$0xf]
  %v214 = vld [vmem:[%s1 + $0x42c] sm:$0xff]
  %v215 = vld [vmem:[%s1 + $0x434] sm:$0xf]
  %v216 = vld [vmem:[%s1 + $0x438] sm:$0xff]
  %v217 = vld [vmem:[%s1 + $0x440] sm:$0xf]
  %v218 = vld [vmem:[%s1 + $0x444] sm:$0xff]
  %v219 = vld [vmem:[%s1 + $0x44c] sm:$0xf]
  %v220 = vld [vmem:[%s1 + $0x450] sm:$0xff]
  %v221 = vld [vmem:[%s1 + $0x458] sm:$0xf]
  %v222 = vld [vmem:[%s1 + $0x45c] sm:$0xff]
  %v223 = vld [vmem:[%s1 + $0x464] sm:$0xf]
  %v224 = vld [vmem:[%s1 + $0x468] sm:$0xff]
  %v225 = vld [vmem:[%s1 + $0x470] sm:$0xf]
  %v226 = vld [vmem:[%s1 + $0x474] sm:$0xff]
  %v227 = vld [vmem:[%s1 + $0x47c] sm:$0xf]
  %v228 = vld [vmem:[%s1 + $0x480] sm:$0xff]
  %v229 = vld [vmem:[%s1 + $0x488] sm:$0xf]
  %v230 = vld [vmem:[%s1 + $0x48c] sm:$0xff]
  %v231 = vld [vmem:[%s1 + $0x494] sm:$0xf]
  %v232 = vld [vmem:[%s1 + $0x498] sm:$0xff]
  %v233 = vld [vmem:[%s1 + $0x4a0] sm:$0xf]
  %v234 = vld [vmem:[%s1 + $0x4a4] sm:$0xff]
  %v235 = vld [vmem:[%s1 + $0x4ac] sm:$0xf]
  %v236 = vld [vmem:[%s1 + $0x4b0] sm:$0xff]
  %v237 = vld [vmem:[%s1 + $0x4b8] sm:$0xf]
  %v238 = vld [vmem:[%s1 + $0x4bc] sm:$0xff]
  %v239 = vld [vmem:[%s1 + $0x4c4] sm:$0xf]
  %v240 = vld [vmem:[%s1 + $0x4c8] sm:$0xff]
  %v241 = vld [vmem:[%s1 + $0x4d0] sm:$0xf]
  %v242 = vld [vmem:[%s1 + $0x4d4] sm:$0xff]
  %v243 = vld [vmem:[%s1 + $0x4dc] sm:$0xf]
  %v244 = vld [vmem:[%s1 + $0x4e0] sm:$0xff]
  %v245 = vld [vmem:[%s1 + $0x4e8] sm:$0xf]
  %v246 = vld [vmem:[%s1 + $0x4ec] sm:$0xff]
  %v247 = vld [vmem:[%s1 + $0x4f4] sm:$0xf]
  %v248 = vld [vmem:[%s1 + $0x4f8] sm:$0xff]
  %v249 = vld [vmem:[%s1 + $0x500] sm:$0xf]
  %v250 = vld [vmem:[%s1 + $0x504] sm:$0xff]
  %v251 = vld [vmem:[%s1 + $0x50c] sm:$0xf]
  %v252 = vld [vmem:[%s1 + $0x510] sm:$0xff]
  %v253 = vld [vmem:[%s1 + $0x518] sm:$0xf]
  %v254 = vld [vmem:[%s1 + $0x51c] sm:$0xff]
  %v255 = vld [vmem:[%s1 + $0x524] sm:$0xf]
  %v256 = vld [vmem:[%s1 + $0x528] sm:$0xff]
  %v257 = vld [vmem:[%s1 + $0x530] sm:$0xf]
  %v258 = vld [vmem:[%s1 + $0x534] sm:$0xff]
  %v259 = vld [vmem:[%s1 + $0x53c] sm:$0xf]
  %v260 = vld [vmem:[%s1 + $0x540] sm:$0xff]
  %v261 = vld [vmem:[%s1 + $0x548] sm:$0xf]
  %v262 = vld [vmem:[%s1 + $0x54c] sm:$0xff]
  %v263 = vld [vmem:[%s1 + $0x554] sm:$0xf]
  %v264 = vld [vmem:[%s1 + $0x558] sm:$0xff]
  %v265 = vld [vmem:[%s1 + $0x560] sm:$0xf]
  %v266 = vld [vmem:[%s1 + $0x564] sm:$0xff]
  %v267 = vld [vmem:[%s1 + $0x56c] sm:$0xf]
  %v268 = vld [vmem:[%s1 + $0x570] sm:$0xff]
  %v269 = vld [vmem:[%s1 + $0x578] sm:$0xf]
  %v270 = vld [vmem:[%s1 + $0x57c] sm:$0xff]
  %v271 = vld [vmem:[%s1 + $0x584] sm:$0xf]
  %v272 = vld [vmem:[%s1 + $0x588] sm:$0xff]
  %v273 = vld [vmem:[%s1 + $0x590] sm:$0xf]
  %v274 = vld [vmem:[%s1 + $0x594] sm:$0xff]
  %v275 = vld [vmem:[%s1 + $0x59c] sm:$0xf]
  %v276 = vld [vmem:[%s1 + $0x5a0] sm:$0xff]
  %v277 = vld [vmem:[%s1 + $0x5a8] sm:$0xf]
  %v278 = vld [vmem:[%s1 + $0x5ac] sm:$0xff]
  %v279 = vld [vmem:[%s1 + $0x5b4] sm:$0xf]
  %v280 = vld [vmem:[%s1 + $0x5b8] sm:$0xff]
  %v281 = vld [vmem:[%s1 + $0x5c0] sm:$0xf]
  %v282 = vld [vmem:[%s1 + $0x5c4] sm:$0xff]
  %v283 = vld [vmem:[%s1 + $0x5cc] sm:$0xf]
  %v284 = vld [vmem:[%s1 + $0x5d0] sm:$0xff]
  %v285 = vld [vmem:[%s1 + $0x5d8] sm:$0xf]
  %v286 = vld [vmem:[%s1 + $0x5dc] sm:$0xff]
  %v287 = vld [vmem:[%s1 + $0x5e4] sm:$0xf]
  %v288 = vld [vmem:[%s1 + $0x5e8] sm:$0xff]
  %v289 = vld [vmem:[%s1 + $0x5f0] sm:$0xf]
  %v290 = vld [vmem:[%s1 + $0x5f4] sm:$0xff]
  %v291 = vld [vmem:[%s1 + $0x5fc] sm:$0xf]
  %v292 = vld [vmem:[%s1 + $0x600] sm:$0xff]
  %v293 = vld [vmem:[%s1 + $0x608] sm:$0xf]
  %v294 = vld [vmem:[%s1 + $0x60c] sm:$0xff]
  %v295 = vld [vmem:[%s1 + $0x614] sm:$0xf]
  %v296 = vld [vmem:[%s1 + $0x618] sm:$0xff]
  %v297 = vld [vmem:[%s1 + $0x620] sm:$0xf]
  %v298 = vld [vmem:[%s1 + $0x624] sm:$0xff]
  %v299 = vld [vmem:[%s1 + $0x62c] sm:$0xf]
  %v300 = vld [vmem:[%s1 + $0x630] sm:$0xff]
  %v301 = vld [vmem:[%s1 + $0x638] sm:$0xf]
  %v302 = vld [vmem:[%s1 + $0x63c] sm:$0xff]
  %v303 = vld [vmem:[%s1 + $0x644] sm:$0xf]
  %v304 = vld [vmem:[%s1 + $0x648] sm:$0xff]
  %v305 = vld [vmem:[%s1 + $0x650] sm:$0xf]
  %v306 = vld [vmem:[%s1 + $0x654] sm:$0xff]
  %v307 = vld [vmem:[%s1 + $0x65c] sm:$0xf]
  %v308 = vld [vmem:[%s1 + $0x660] sm:$0xff]
  %v309 = vld [vmem:[%s1 + $0x668] sm:$0xf]
  %v310 = vld [vmem:[%s1 + $0x66c] sm:$0xff]
  %v311 = vld [vmem:[%s1 + $0x674] sm:$0xf]
  %v312 = vld [vmem:[%s1 + $0x678] sm:$0xff]
  %v313 = vld [vmem:[%s1 + $0x680] sm:$0xf]
  %v314 = vld [vmem:[%s1 + $0x684] sm:$0xff]
  %v315 = vld [vmem:[%s1 + $0x68c] sm:$0xf]
  %v316 = vld [vmem:[%s1 + $0x690] sm:$0xff]
  %v317 = vld [vmem:[%s1 + $0x698] sm:$0xf]
  %v318 = vld [vmem:[%s1 + $0x69c] sm:$0xff]
  %v319 = vld [vmem:[%s1 + $0x6a4] sm:$0xf]
  %v320 = vld [vmem:[%s1 + $0x6a8] sm:$0xff]
  %v321 = vld [vmem:[%s1 + $0x6b0] sm:$0xf]
  %v322 = vld [vmem:[%s1 + $0x6b4] sm:$0xff]
  %v323 = vld [vmem:[%s1 + $0x6bc] sm:$0xf]
  %v324 = vld [vmem:[%s1 + $0x6c0] sm:$0xff]
  %v325 = vld [vmem:[%s1 + $0x6c8] sm:$0xf]
  %v326 = vld [vmem:[%s1 + $0x6cc] sm:$0xff]
  %v327 = vld [vmem:[%s1 + $0x6d4] sm:$0xf]
  %v328 = vld [vmem:[%s1 + $0x6d8] sm:$0xff]
  %v329 = vld [vmem:[%s1 + $0x6e0] sm:$0xf]
  %v330 = vld [vmem:[%s1 + $0x6e4] sm:$0xff]
  %v331 = vld [vmem:[%s1 + $0x6ec] sm:$0xf]
  %v332 = vld [vmem:[%s1 + $0x6f0] sm:$0xff]
  %v333 = vld [vmem:[%s1 + $0x6f8] sm:$0xf]
  %v334 = vld [vmem:[%s1 + $0x6fc] sm:$0xff]
  %v335 = vld [vmem:[%s1 + $0x704] sm:$0xf]
  %v336 = vld [vmem:[%s1 + $0x708] sm:$0xff]
  %v337 = vld [vmem:[%s1 + $0x710] sm:$0xf]
  %v338 = vld [vmem:[%s1 + $0x714] sm:$0xff]
  %v339 = vld [vmem:[%s1 + $0x71c] sm:$0xf]
  %v340 = vld [vmem:[%s1 + $0x720] sm:$0xff]
  %v341 = vld [vmem:[%s1 + $0x728] sm:$0xf]
  %v342 = vld [vmem:[%s1 + $0x72c] sm:$0xff]
  %v343 = vld [vmem:[%s1 + $0x734] sm:$0xf]
  %v344 = vld [vmem:[%s1 + $0x738] sm:$0xff]
  %v345 = vld [vmem:[%s1 + $0x740] sm:$0xf]
  %v346 = vld [vmem:[%s1 + $0x744] sm:$0xff]
  %v347 = vld [vmem:[%s1 + $0x74c] sm:$0xf]
  %v348 = vld [vmem:[%s1 + $0x750] sm:$0xff]
  %v349 = vld [vmem:[%s1 + $0x758] sm:$0xf]
  %v350 = vld [vmem:[%s1 + $0x75c] sm:$0xff]
  %v351 = vld [vmem:[%s1 + $0x764] sm:$0xf]
  %v352 = vld [vmem:[%s1 + $0x768] sm:$0xff]
  %v353 = vld [vmem:[%s1 + $0x770] sm:$0xf]
  %v354 = vld [vmem:[%s1 + $0x774] sm:$0xff]
  %v355 = vld [vmem:[%s1 + $0x77c] sm:$0xf]
  %v356 = vld [vmem:[%s1 + $0x780] sm:$0xff]
  %v357 = vld [vmem:[%s1 + $0x788] sm:$0xf]
  %v358 = vld [vmem:[%s1 + $0x78c] sm:$0xff]
  %v359 = vld [vmem:[%s1 + $0x794] sm:$0xf]
  %v360 = vld [vmem:[%s1 + $0x798] sm:$0xff]
  %v361 = vld [vmem:[%s1 + $0x7a0] sm:$0xf]
  %v362 = vld [vmem:[%s1 + $0x7a4] sm:$0xff]
  %v363 = vld [vmem:[%s1 + $0x7ac] sm:$0xf]
  %v364 = vld [vmem:[%s1 + $0x7b0] sm:$0xff]
  %v365 = vld [vmem:[%s1 + $0x7b8] sm:$0xf]
  %v366 = vld [vmem:[%s1 + $0x7bc] sm:$0xff]
  %v367 = vld [vmem:[%s1 + $0x7c4] sm:$0xf]
  %v368 = vld [vmem:[%s1 + $0x7c8] sm:$0xff]
  %v369 = vld [vmem:[%s1 + $0x7d0] sm:$0xf]
  %v370 = vld [vmem:[%s1 + $0x7d4] sm:$0xff]
  %v371 = vld [vmem:[%s1 + $0x7dc] sm:$0xf]
  %v372 = vld [vmem:[%s1 + $0x7e0] sm:$0xff]
  %v373 = vld [vmem:[%s1 + $0x7e8] sm:$0xf]
  %v374 = vld [vmem:[%s1 + $0x7ec] sm:$0xff]
  %v375 = vld [vmem:[%s1 + $0x7f4] sm:$0xf]
  %v376 = vld [vmem:[%s1 + $0x7f8] sm:$0xff]
  %v377 = vld [vmem:[%s1 + $0x800] sm:$0xf]
  %v378 = vld [vmem:[%s1 + $0x804] sm:$0xff]
  %v379 = vld [vmem:[%s1 + $0x80c] sm:$0xf]
  %v380 = vld [vmem:[%s1 + $0x810] sm:$0xff]
  %v381 = vld [vmem:[%s1 + $0x818] sm:$0xf]
  %v382 = vld [vmem:[%s1 + $0x81c] sm:$0xff]
  %v383 = vld [vmem:[%s1 + $0x824] sm:$0xf]
  %v384 = vld [vmem:[%s1 + $0x828] sm:$0xff]
  %v385 = vld [vmem:[%s1 + $0x830] sm:$0xf]
  %v386 = vld [vmem:[%s1 + $0x834] sm:$0xff]
  %v387 = vld [vmem:[%s1 + $0x83c] sm:$0xf]
  %v388 = vld [vmem:[%s1 + $0x840] sm:$0xff]
  %v389 = vld [vmem:[%s1 + $0x848] sm:$0xf]
  %v390 = vld [vmem:[%s1 + $0x84c] sm:$0xff]
  %v391 = vld [vmem:[%s1 + $0x854] sm:$0xf]
  %v392 = vld [vmem:[%s1 + $0x858] sm:$0xff]
  %v393 = vld [vmem:[%s1 + $0x860] sm:$0xf]
  %v394 = vld [vmem:[%s1 + $0x864] sm:$0xff]
  %v395 = vld [vmem:[%s1 + $0x86c] sm:$0xf]
  %v396 = vld [vmem:[%s1 + $0x870] sm:$0xff]
  %v397 = vld [vmem:[%s1 + $0x878] sm:$0xf]
  %v398 = vld [vmem:[%s1 + $0x87c] sm:$0xff]
  %v399 = vld [vmem:[%s1 + $0x884] sm:$0xf]
  %v400 = vld [vmem:[%s1 + $0x888] sm:$0xff]
  %v401 = vld [vmem:[%s1 + $0x890] sm:$0xf]
  %v402 = vld [vmem:[%s1 + $0x894] sm:$0xff]
  %v403 = vld [vmem:[%s1 + $0x89c] sm:$0xf]
  %v404 = vld [vmem:[%s1 + $0x8a0] sm:$0xff]
  %v405 = vld [vmem:[%s1 + $0x8a8] sm:$0xf]
  %v406 = vld [vmem:[%s1 + $0x8ac] sm:$0xff]
  %v407 = vld [vmem:[%s1 + $0x8b4] sm:$0xf]
  %v408 = vld [vmem:[%s1 + $0x8b8] sm:$0xff]
  %v409 = vld [vmem:[%s1 + $0x8c0] sm:$0xf]
  %v410 = vld [vmem:[%s1 + $0x8c4] sm:$0xff]
  %v411 = vld [vmem:[%s1 + $0x8cc] sm:$0xf]
  %v412 = vld [vmem:[%s1 + $0x8d0] sm:$0xff]
  %v413 = vld [vmem:[%s1 + $0x8d8] sm:$0xf]
  %v414 = vld [vmem:[%s1 + $0x8dc] sm:$0xff]
  %v415 = vld [vmem:[%s1 + $0x8e4] sm:$0xf]
  %v416 = vld [vmem:[%s1 + $0x8e8] sm:$0xff]
  %v417 = vld [vmem:[%s1 + $0x8f0] sm:$0xf]
  %v418 = vld [vmem:[%s1 + $0x8f4] sm:$0xff]
  %v419 = vld [vmem:[%s1 + $0x8fc] sm:$0xf]
  %v420 = vld [vmem:[%s1 + $0x900] sm:$0xff]
  %v421 = vld [vmem:[%s1 + $0x908] sm:$0xf]
  %v422 = vld [vmem:[%s1 + $0x90c] sm:$0xff]
  %v423 = vld [vmem:[%s1 + $0x914] sm:$0xf]
  %v424 = vld [vmem:[%s1 + $0x918] sm:$0xff]
  %v425 = vld [vmem:[%s1 + $0x920] sm:$0xf]
  %v426 = vld [vmem:[%s1 + $0x924] sm:$0xff]
  %v427 = vld [vmem:[%s1 + $0x92c] sm:$0xf]
  %v428 = vld [vmem:[%s1 + $0x930] sm:$0xff]
  %v429 = vld [vmem:[%s1 + $0x938] sm:$0xf]
  %v430 = vld [vmem:[%s1 + $0x93c] sm:$0xff]
  %v431 = vld [vmem:[%s1 + $0x944] sm:$0xf]
  %v432 = vld [vmem:[%s1 + $0x948] sm:$0xff]
  %v433 = vld [vmem:[%s1 + $0x950] sm:$0xf]
  %v434 = vld [vmem:[%s1 + $0x954] sm:$0xff]
  %v435 = vld [vmem:[%s1 + $0x95c] sm:$0xf]
  %v436 = vld [vmem:[%s1 + $0x960] sm:$0xff]
  %v437 = vld [vmem:[%s1 + $0x968] sm:$0xf]
  %v438 = vld [vmem:[%s1 + $0x96c] sm:$0xff]
  %v439 = vld [vmem:[%s1 + $0x974] sm:$0xf]
  %v440 = vld [vmem:[%s1 + $0x978] sm:$0xff]
  %v441 = vld [vmem:[%s1 + $0x980] sm:$0xf]
  %v442 = vld [vmem:[%s1 + $0x984] sm:$0xff]
  %v443 = vld [vmem:[%s1 + $0x98c] sm:$0xf]
  %v444 = vld [vmem:[%s1 + $0x990] sm:$0xff]
  %v445 = vld [vmem:[%s1 + $0x998] sm:$0xf]
  %v446 = vld [vmem:[%s1 + $0x99c] sm:$0xff]
  %v447 = vld [vmem:[%s1 + $0x9a4] sm:$0xf]
  %v448 = vld [vmem:[%s1 + $0x9a8] sm:$0xff]
  %v449 = vld [vmem:[%s1 + $0x9b0] sm:$0xf]
  %v450 = vld [vmem:[%s1 + $0x9b4] sm:$0xff]
  %v451 = vld [vmem:[%s1 + $0x9bc] sm:$0xf]
  %v452 = vld [vmem:[%s1 + $0x9c0] sm:$0xff]
  %v453 = vld [vmem:[%s1 + $0x9c8] sm:$0xf]
  %v454 = vld [vmem:[%s1 + $0x9cc] sm:$0xff]
  %v455 = vld [vmem:[%s1 + $0x9d4] sm:$0xf]
  %v456 = vld [vmem:[%s1 + $0x9d8] sm:$0xff]
  %v457 = vld [vmem:[%s1 + $0x9e0] sm:$0xf]
  %v458 = vld [vmem:[%s1 + $0x9e4] sm:$0xff]
  %v459 = vld [vmem:[%s1 + $0x9ec] sm:$0xf]
  %v460 = vld [vmem:[%s1 + $0x9f0] sm:$0xff]
  %v461 = vld [vmem:[%s1 + $0x9f8] sm:$0xf]
  %v462 = vld [vmem:[%s1 + $0x9fc] sm:$0xff]
  %v463 = vld [vmem:[%s1 + $0xa04] sm:$0xf]
  %v464 = vld [vmem:[%s1 + $0xa08] sm:$0xff]
  %v465 = vld [vmem:[%s1 + $0xa10] sm:$0xf]
  %v466 = vld [vmem:[%s1 + $0xa14] sm:$0xff]
  %v467 = vld [vmem:[%s1 + $0xa1c] sm:$0xf]
  %v468 = vld [vmem:[%s1 + $0xa20] sm:$0xff]
  %v469 = vld [vmem:[%s1 + $0xa28] sm:$0xf]
  %v470 = vld [vmem:[%s1 + $0xa2c] sm:$0xff]
  %v471 = vld [vmem:[%s1 + $0xa34] sm:$0xf]
  %v472 = vld [vmem:[%s1 + $0xa38] sm:$0xff]
  %v473 = vld [vmem:[%s1 + $0xa40] sm:$0xf]
  %v474 = vld [vmem:[%s1 + $0xa44] sm:$0xff]
  %v475 = vld [vmem:[%s1 + $0xa4c] sm:$0xf]
  %v476 = vld [vmem:[%s1 + $0xa50] sm:$0xff]
  %v477 = vld [vmem:[%s1 + $0xa58] sm:$0xf]
  %v478 = vld [vmem:[%s1 + $0xa5c] sm:$0xff]
  %v479 = vld [vmem:[%s1 + $0xa64] sm:$0xf]
  %v480 = vld [vmem:[%s1 + $0xa68] sm:$0xff]
  %v481 = vld [vmem:[%s1 + $0xa70] sm:$0xf]
  %v482 = vld [vmem:[%s1 + $0xa74] sm:$0xff]
  %v483 = vld [vmem:[%s1 + $0xa7c] sm:$0xf]
  %v484 = vld [vmem:[%s2] sm:$0x7]
  %v486 = vlaneseq
  %v487 = vshrl.u32 %v486, 7
  %v488 = vsub.s32 0, %v487
  %v489 = vrot.slane %v484, %v488
  %v490 = vlaneseq
  %v491 = vshrl.u32 %v490, 7
  %v492 = vsub.s32 1, %v491
  %v493 = vrot.slane %v484, %v492
  %v494 = vlaneseq
  %v495 = vshrl.u32 %v494, 7
  %v496 = vsub.s32 2, %v495
  %v497 = vrot.slane %v484, %v496
  %v522 = vunpack.c.l.b16 %v15
  %v523 = vunpack.c.h.b16 %v15
  %v524 = vunpack.c.l.b16 %v16
  %v525 = vunpack.c.h.b16 %v16
  %v526 = vunpack.c.l.b16 %v17
  %v527 = vunpack.c.h.b16 %v17
  %v528 = vunpack.c.l.b16 %v18
  %v529 = vunpack.c.h.b16 %v18
  %v530 = vunpack.c.l.b16 %v19
  %v531 = vunpack.c.h.b16 %v19
  %v532 = vunpack.c.l.b16 %v20
  %v533 = vunpack.c.h.b16 %v20
  %v534 = vunpack.c.l.b16 %v21
  %v535 = vunpack.c.h.b16 %v21
  %v536 = vunpack.c.l.b16 %v22
  %v537 = vunpack.c.h.b16 %v22
  %v538 = vunpack.c.l.b16 %v23
  %v539 = vunpack.c.h.b16 %v23
  %v540 = vunpack.c.l.b16 %v24
  %v541 = vunpack.c.h.b16 %v24
  %v542 = vunpack.c.l.b16 %v25
  %v543 = vunpack.c.h.b16 %v25
  %v544 = vunpack.c.l.b16 %v26
  %v545 = vunpack.c.h.b16 %v26
  %v546 = vunpack.c.l.b16 %v27
  %v547 = vunpack.c.h.b16 %v27
  %v548 = vunpack.c.l.b16 %v28
  %v549 = vunpack.c.h.b16 %v28
  %v550 = vunpack.c.l.b16 %v29
  %v551 = vunpack.c.h.b16 %v29
  %v552 = vunpack.c.l.b16 %v30
  %v553 = vunpack.c.h.b16 %v30
  %v554 = vunpack.c.l.b16 %v31
  %v555 = vunpack.c.h.b16 %v31
  %v556 = vunpack.c.l.b16 %v32
  %v557 = vunpack.c.h.b16 %v32
  %v558 = vunpack.c.l.b16 %v33
  %v559 = vunpack.c.h.b16 %v33
  %v560 = vunpack.c.l.b16 %v34
  %v561 = vunpack.c.h.b16 %v34
  %v562 = vunpack.c.l.b16 %v35
  %v563 = vunpack.c.h.b16 %v35
  %v564 = vpack.c.b16 %v536, %v522
  %v565 = vpack.c.b16 %v537, %v523
  %v566 = vpack.c.b16 %v538, %v524
  %v567 = vpack.c.b16 %v539, %v525
  %v568 = vpack.c.b16 %v540, %v526
  %v569 = vpack.c.b16 %v541, %v527
  %v570 = vpack.c.b16 %v542, %v528
  %v571 = vpack.c.b16 %v543, %v529
  %v572 = vpack.c.b16 %v544, %v530
  %v573 = vpack.c.b16 %v545, %v531
  %v574 = vpack.c.b16 %v546, %v532
  %v575 = vpack.c.b16 %v547, %v533
  %v576 = vpack.c.b16 %v548, %v534
  %v577 = vpack.c.b16 %v549, %v535
  %v578 = vpack.c.b16 %v550, %v550
  %v579 = vpack.c.b16 %v551, %v551
  %v580 = vpack.c.b16 %v552, %v552
  %v581 = vpack.c.b16 %v553, %v553
  %v582 = vpack.c.b16 %v554, %v554
  %v583 = vpack.c.b16 %v555, %v555
  %v584 = vpack.c.b16 %v556, %v556
  %v585 = vpack.c.b16 %v557, %v557
  %v586 = vpack.c.b16 %v558, %v558
  %v587 = vpack.c.b16 %v559, %v559
  %v588 = vpack.c.b16 %v560, %v560
  %v589 = vpack.c.b16 %v561, %v561
  %v590 = vpack.c.b16 %v562, %v562
  %v591 = vpack.c.b16 %v563, %v563
  %v1068 = vunpack.c.l.b16 %v36
  %v1069 = vunpack.c.h.b16 %v36
  %v1070 = vunpack.c.l.b16 %v37
  %v1071 = vunpack.c.l.b16 %v38
  %v1072 = vunpack.c.h.b16 %v38
  %v1073 = vunpack.c.l.b16 %v39
  %v1074 = vunpack.c.l.b16 %v40
  %v1075 = vunpack.c.h.b16 %v40
  %v1076 = vunpack.c.l.b16 %v41
  %v1077 = vunpack.c.l.b16 %v42
  %v1078 = vunpack.c.h.b16 %v42
  %v1079 = vunpack.c.l.b16 %v43
  %v1080 = vunpack.c.l.b16 %v44
  %v1081 = vunpack.c.h.b16 %v44
  %v1082 = vunpack.c.l.b16 %v45
  %v1083 = vunpack.c.l.b16 %v46
  %v1084 = vunpack.c.h.b16 %v46
  %v1085 = vunpack.c.l.b16 %v47
  %v1086 = vunpack.c.l.b16 %v48
  %v1087 = vunpack.c.h.b16 %v48
  %v1088 = vunpack.c.l.b16 %v49
  %v1089 = vunpack.c.l.b16 %v50
  %v1090 = vunpack.c.h.b16 %v50
  %v1091 = vunpack.c.l.b16 %v51
  %v1092 = vunpack.c.l.b16 %v52
  %v1093 = vunpack.c.h.b16 %v52
  %v1094 = vunpack.c.l.b16 %v53
  %v1095 = vunpack.c.l.b16 %v54
  %v1096 = vunpack.c.h.b16 %v54
  %v1097 = vunpack.c.l.b16 %v55
  %v1098 = vunpack.c.l.b16 %v56
  %v1099 = vunpack.c.h.b16 %v56
  %v1100 = vunpack.c.l.b16 %v57
  %v1101 = vunpack.c.l.b16 %v58
  %v1102 = vunpack.c.h.b16 %v58
  %v1103 = vunpack.c.l.b16 %v59
  %v1104 = vunpack.c.l.b16 %v60
  %v1105 = vunpack.c.h.b16 %v60
  %v1106 = vunpack.c.l.b16 %v61
  %v1107 = vunpack.c.l.b16 %v62
  %v1108 = vunpack.c.h.b16 %v62
  %v1109 = vunpack.c.l.b16 %v63
  %v1110 = vunpack.c.l.b16 %v64
  %v1111 = vunpack.c.h.b16 %v64
  %v1112 = vunpack.c.l.b16 %v65
  %v1113 = vunpack.c.l.b16 %v66
  %v1114 = vunpack.c.h.b16 %v66
  %v1115 = vunpack.c.l.b16 %v67
  %v1116 = vunpack.c.l.b16 %v68
  %v1117 = vunpack.c.h.b16 %v68
  %v1118 = vunpack.c.l.b16 %v69
  %v1119 = vunpack.c.l.b16 %v70
  %v1120 = vunpack.c.h.b16 %v70
  %v1121 = vunpack.c.l.b16 %v71
  %v1122 = vunpack.c.l.b16 %v72
  %v1123 = vunpack.c.h.b16 %v72
  %v1124 = vunpack.c.l.b16 %v73
  %v1125 = vunpack.c.l.b16 %v74
  %v1126 = vunpack.c.h.b16 %v74
  %v1127 = vunpack.c.l.b16 %v75
  %v1128 = vunpack.c.l.b16 %v76
  %v1129 = vunpack.c.h.b16 %v76
  %v1130 = vunpack.c.l.b16 %v77
  %v1131 = vunpack.c.l.b16 %v78
  %v1132 = vunpack.c.h.b16 %v78
  %v1133 = vunpack.c.l.b16 %v79
  %v1134 = vunpack.c.l.b16 %v80
  %v1135 = vunpack.c.h.b16 %v80
  %v1136 = vunpack.c.l.b16 %v81
  %v1137 = vunpack.c.l.b16 %v82
  %v1138 = vunpack.c.h.b16 %v82
  %v1139 = vunpack.c.l.b16 %v83
  %v1140 = vunpack.c.l.b16 %v84
  %v1141 = vunpack.c.h.b16 %v84
  %v1142 = vunpack.c.l.b16 %v85
  %v1143 = vunpack.c.l.b16 %v86
  %v1144 = vunpack.c.h.b16 %v86
  %v1145 = vunpack.c.l.b16 %v87
  %v1146 = vunpack.c.l.b16 %v88
  %v1147 = vunpack.c.h.b16 %v88
  %v1148 = vunpack.c.l.b16 %v89
  %v1149 = vunpack.c.l.b16 %v90
  %v1150 = vunpack.c.h.b16 %v90
  %v1151 = vunpack.c.l.b16 %v91
  %v1152 = vunpack.c.l.b16 %v92
  %v1153 = vunpack.c.h.b16 %v92
  %v1154 = vunpack.c.l.b16 %v93
  %v1155 = vunpack.c.l.b16 %v94
  %v1156 = vunpack.c.h.b16 %v94
  %v1157 = vunpack.c.l.b16 %v95
  %v1158 = vunpack.c.l.b16 %v96
  %v1159 = vunpack.c.h.b16 %v96
  %v1160 = vunpack.c.l.b16 %v97
  %v1161 = vunpack.c.l.b16 %v98
  %v1162 = vunpack.c.h.b16 %v98
  %v1163 = vunpack.c.l.b16 %v99
  %v1164 = vunpack.c.l.b16 %v100
  %v1165 = vunpack.c.h.b16 %v100
  %v1166 = vunpack.c.l.b16 %v101
  %v1167 = vunpack.c.l.b16 %v102
  %v1168 = vunpack.c.h.b16 %v102
  %v1169 = vunpack.c.l.b16 %v103
  %v1170 = vunpack.c.l.b16 %v104
  %v1171 = vunpack.c.h.b16 %v104
  %v1172 = vunpack.c.l.b16 %v105
  %v1173 = vunpack.c.l.b16 %v106
  %v1174 = vunpack.c.h.b16 %v106
  %v1175 = vunpack.c.l.b16 %v107
  %v1176 = vunpack.c.l.b16 %v108
  %v1177 = vunpack.c.h.b16 %v108
  %v1178 = vunpack.c.l.b16 %v109
  %v1179 = vunpack.c.l.b16 %v110
  %v1180 = vunpack.c.h.b16 %v110
  %v1181 = vunpack.c.l.b16 %v111
  %v1182 = vunpack.c.l.b16 %v112
  %v1183 = vunpack.c.h.b16 %v112
  %v1184 = vunpack.c.l.b16 %v113
  %v1185 = vunpack.c.l.b16 %v114
  %v1186 = vunpack.c.h.b16 %v114
  %v1187 = vunpack.c.l.b16 %v115
  %v1188 = vunpack.c.l.b16 %v116
  %v1189 = vunpack.c.h.b16 %v116
  %v1190 = vunpack.c.l.b16 %v117
  %v1191 = vunpack.c.l.b16 %v118
  %v1192 = vunpack.c.h.b16 %v118
  %v1193 = vunpack.c.l.b16 %v119
  %v1194 = vunpack.c.l.b16 %v120
  %v1195 = vunpack.c.h.b16 %v120
  %v1196 = vunpack.c.l.b16 %v121
  %v1197 = vunpack.c.l.b16 %v122
  %v1198 = vunpack.c.h.b16 %v122
  %v1199 = vunpack.c.l.b16 %v123
  %v1200 = vunpack.c.l.b16 %v124
  %v1201 = vunpack.c.h.b16 %v124
  %v1202 = vunpack.c.l.b16 %v125
  %v1203 = vunpack.c.l.b16 %v126
  %v1204 = vunpack.c.h.b16 %v126
  %v1205 = vunpack.c.l.b16 %v127
  %v1206 = vunpack.c.l.b16 %v128
  %v1207 = vunpack.c.h.b16 %v128
  %v1208 = vunpack.c.l.b16 %v129
  %v1209 = vunpack.c.l.b16 %v130
  %v1210 = vunpack.c.h.b16 %v130
  %v1211 = vunpack.c.l.b16 %v131
  %v1212 = vunpack.c.l.b16 %v132
  %v1213 = vunpack.c.h.b16 %v132
  %v1214 = vunpack.c.l.b16 %v133
  %v1215 = vunpack.c.l.b16 %v134
  %v1216 = vunpack.c.h.b16 %v134
  %v1217 = vunpack.c.l.b16 %v135
  %v1218 = vunpack.c.l.b16 %v136
  %v1219 = vunpack.c.h.b16 %v136
  %v1220 = vunpack.c.l.b16 %v137
  %v1221 = vunpack.c.l.b16 %v138
  %v1222 = vunpack.c.h.b16 %v138
  %v1223 = vunpack.c.l.b16 %v139
  %v1224 = vunpack.c.l.b16 %v140
  %v1225 = vunpack.c.h.b16 %v140
  %v1226 = vunpack.c.l.b16 %v141
  %v1227 = vunpack.c.l.b16 %v142
  %v1228 = vunpack.c.h.b16 %v142
  %v1229 = vunpack.c.l.b16 %v143
  %v1230 = vunpack.c.l.b16 %v144
  %v1231 = vunpack.c.h.b16 %v144
  %v1232 = vunpack.c.l.b16 %v145
  %v1233 = vunpack.c.l.b16 %v146
  %v1234 = vunpack.c.h.b16 %v146
  %v1235 = vunpack.c.l.b16 %v147
  %v1236 = vunpack.c.l.b16 %v148
  %v1237 = vunpack.c.h.b16 %v148
  %v1238 = vunpack.c.l.b16 %v149
  %v1239 = vunpack.c.l.b16 %v150
  %v1240 = vunpack.c.h.b16 %v150
  %v1241 = vunpack.c.l.b16 %v151
  %v1242 = vunpack.c.l.b16 %v152
  %v1243 = vunpack.c.h.b16 %v152
  %v1244 = vunpack.c.l.b16 %v153
  %v1245 = vunpack.c.l.b16 %v154
  %v1246 = vunpack.c.h.b16 %v154
  %v1247 = vunpack.c.l.b16 %v155
  %v1248 = vunpack.c.l.b16 %v156
  %v1249 = vunpack.c.h.b16 %v156
  %v1250 = vunpack.c.l.b16 %v157
  %v1251 = vunpack.c.l.b16 %v158
  %v1252 = vunpack.c.h.b16 %v158
  %v1253 = vunpack.c.l.b16 %v159
  %v1254 = vunpack.c.l.b16 %v160
  %v1255 = vunpack.c.h.b16 %v160
  %v1256 = vunpack.c.l.b16 %v161
  %v1257 = vunpack.c.l.b16 %v162
  %v1258 = vunpack.c.h.b16 %v162
  %v1259 = vunpack.c.l.b16 %v163
  %v1260 = vunpack.c.l.b16 %v164
  %v1261 = vunpack.c.h.b16 %v164
  %v1262 = vunpack.c.l.b16 %v165
  %v1263 = vunpack.c.l.b16 %v166
  %v1264 = vunpack.c.h.b16 %v166
  %v1265 = vunpack.c.l.b16 %v167
  %v1266 = vunpack.c.l.b16 %v168
  %v1267 = vunpack.c.h.b16 %v168
  %v1268 = vunpack.c.l.b16 %v169
  %v1269 = vunpack.c.l.b16 %v170
  %v1270 = vunpack.c.h.b16 %v170
  %v1271 = vunpack.c.l.b16 %v171
  %v1272 = vunpack.c.l.b16 %v172
  %v1273 = vunpack.c.h.b16 %v172
  %v1274 = vunpack.c.l.b16 %v173
  %v1275 = vunpack.c.l.b16 %v174
  %v1276 = vunpack.c.h.b16 %v174
  %v1277 = vunpack.c.l.b16 %v175
  %v1278 = vunpack.c.l.b16 %v176
  %v1279 = vunpack.c.h.b16 %v176
  %v1280 = vunpack.c.l.b16 %v177
  %v1281 = vunpack.c.l.b16 %v178
  %v1282 = vunpack.c.h.b16 %v178
  %v1283 = vunpack.c.l.b16 %v179
  %v1284 = vunpack.c.l.b16 %v180
  %v1285 = vunpack.c.h.b16 %v180
  %v1286 = vunpack.c.l.b16 %v181
  %v1287 = vunpack.c.l.b16 %v182
  %v1288 = vunpack.c.h.b16 %v182
  %v1289 = vunpack.c.l.b16 %v183
  %v1290 = vunpack.c.l.b16 %v184
  %v1291 = vunpack.c.h.b16 %v184
  %v1292 = vunpack.c.l.b16 %v185
  %v1293 = vunpack.c.l.b16 %v186
  %v1294 = vunpack.c.h.b16 %v186
  %v1295 = vunpack.c.l.b16 %v187
  %v1296 = vunpack.c.l.b16 %v188
  %v1297 = vunpack.c.h.b16 %v188
  %v1298 = vunpack.c.l.b16 %v189
  %v1299 = vunpack.c.l.b16 %v190
  %v1300 = vunpack.c.h.b16 %v190
  %v1301 = vunpack.c.l.b16 %v191
  %v1302 = vunpack.c.l.b16 %v192
  %v1303 = vunpack.c.h.b16 %v192
  %v1304 = vunpack.c.l.b16 %v193
  %v1305 = vunpack.c.l.b16 %v194
  %v1306 = vunpack.c.h.b16 %v194
  %v1307 = vunpack.c.l.b16 %v195
  %v1308 = vunpack.c.l.b16 %v196
  %v1309 = vunpack.c.h.b16 %v196
  %v1310 = vunpack.c.l.b16 %v197
  %v1311 = vunpack.c.l.b16 %v198
  %v1312 = vunpack.c.h.b16 %v198
  %v1313 = vunpack.c.l.b16 %v199
  %v1314 = vunpack.c.l.b16 %v200
  %v1315 = vunpack.c.h.b16 %v200
  %v1316 = vunpack.c.l.b16 %v201
  %v1317 = vunpack.c.l.b16 %v202
  %v1318 = vunpack.c.h.b16 %v202
  %v1319 = vunpack.c.l.b16 %v203
  %v1320 = vunpack.c.l.b16 %v204
  %v1321 = vunpack.c.h.b16 %v204
  %v1322 = vunpack.c.l.b16 %v205
  %v1323 = vunpack.c.l.b16 %v206
  %v1324 = vunpack.c.h.b16 %v206
  %v1325 = vunpack.c.l.b16 %v207
  %v1326 = vunpack.c.l.b16 %v208
  %v1327 = vunpack.c.h.b16 %v208
  %v1328 = vunpack.c.l.b16 %v209
  %v1329 = vunpack.c.l.b16 %v210
  %v1330 = vunpack.c.h.b16 %v210
  %v1331 = vunpack.c.l.b16 %v211
  %v1332 = vunpack.c.l.b16 %v212
  %v1333 = vunpack.c.h.b16 %v212
  %v1334 = vunpack.c.l.b16 %v213
  %v1335 = vunpack.c.l.b16 %v214
  %v1336 = vunpack.c.h.b16 %v214
  %v1337 = vunpack.c.l.b16 %v215
  %v1338 = vunpack.c.l.b16 %v216
  %v1339 = vunpack.c.h.b16 %v216
  %v1340 = vunpack.c.l.b16 %v217
  %v1341 = vunpack.c.l.b16 %v218
  %v1342 = vunpack.c.h.b16 %v218
  %v1343 = vunpack.c.l.b16 %v219
  %v1344 = vunpack.c.l.b16 %v220
  %v1345 = vunpack.c.h.b16 %v220
  %v1346 = vunpack.c.l.b16 %v221
  %v1347 = vunpack.c.l.b16 %v222
  %v1348 = vunpack.c.h.b16 %v222
  %v1349 = vunpack.c.l.b16 %v223
  %v1350 = vunpack.c.l.b16 %v224
  %v1351 = vunpack.c.h.b16 %v224
  %v1352 = vunpack.c.l.b16 %v225
  %v1353 = vunpack.c.l.b16 %v226
  %v1354 = vunpack.c.h.b16 %v226
  %v1355 = vunpack.c.l.b16 %v227
  %v1356 = vunpack.c.l.b16 %v228
  %v1357 = vunpack.c.h.b16 %v228
  %v1358 = vunpack.c.l.b16 %v229
  %v1359 = vunpack.c.l.b16 %v230
  %v1360 = vunpack.c.h.b16 %v230
  %v1361 = vunpack.c.l.b16 %v231
  %v1362 = vunpack.c.l.b16 %v232
  %v1363 = vunpack.c.h.b16 %v232
  %v1364 = vunpack.c.l.b16 %v233
  %v1365 = vunpack.c.l.b16 %v234
  %v1366 = vunpack.c.h.b16 %v234
  %v1367 = vunpack.c.l.b16 %v235
  %v1368 = vunpack.c.l.b16 %v236
  %v1369 = vunpack.c.h.b16 %v236
  %v1370 = vunpack.c.l.b16 %v237
  %v1371 = vunpack.c.l.b16 %v238
  %v1372 = vunpack.c.h.b16 %v238
  %v1373 = vunpack.c.l.b16 %v239
  %v1374 = vunpack.c.l.b16 %v240
  %v1375 = vunpack.c.h.b16 %v240
  %v1376 = vunpack.c.l.b16 %v241
  %v1377 = vunpack.c.l.b16 %v242
  %v1378 = vunpack.c.h.b16 %v242
  %v1379 = vunpack.c.l.b16 %v243
  %v1380 = vunpack.c.l.b16 %v244
  %v1381 = vunpack.c.h.b16 %v244
  %v1382 = vunpack.c.l.b16 %v245
  %v1383 = vunpack.c.l.b16 %v246
  %v1384 = vunpack.c.h.b16 %v246
  %v1385 = vunpack.c.l.b16 %v247
  %v1386 = vunpack.c.l.b16 %v248
  %v1387 = vunpack.c.h.b16 %v248
  %v1388 = vunpack.c.l.b16 %v249
  %v1389 = vunpack.c.l.b16 %v250
  %v1390 = vunpack.c.h.b16 %v250
  %v1391 = vunpack.c.l.b16 %v251
  %v1392 = vunpack.c.l.b16 %v252
  %v1393 = vunpack.c.h.b16 %v252
  %v1394 = vunpack.c.l.b16 %v253
  %v1395 = vunpack.c.l.b16 %v254
  %v1396 = vunpack.c.h.b16 %v254
  %v1397 = vunpack.c.l.b16 %v255
  %v1398 = vunpack.c.l.b16 %v256
  %v1399 = vunpack.c.h.b16 %v256
  %v1400 = vunpack.c.l.b16 %v257
  %v1401 = vunpack.c.l.b16 %v258
  %v1402 = vunpack.c.h.b16 %v258
  %v1403 = vunpack.c.l.b16 %v259
  %v1404 = vunpack.c.l.b16 %v260
  %v1405 = vunpack.c.h.b16 %v260
  %v1406 = vunpack.c.l.b16 %v261
  %v1407 = vunpack.c.l.b16 %v262
  %v1408 = vunpack.c.h.b16 %v262
  %v1409 = vunpack.c.l.b16 %v263
  %v1410 = vunpack.c.l.b16 %v264
  %v1411 = vunpack.c.h.b16 %v264
  %v1412 = vunpack.c.l.b16 %v265
  %v1413 = vunpack.c.l.b16 %v266
  %v1414 = vunpack.c.h.b16 %v266
  %v1415 = vunpack.c.l.b16 %v267
  %v1416 = vunpack.c.l.b16 %v268
  %v1417 = vunpack.c.h.b16 %v268
  %v1418 = vunpack.c.l.b16 %v269
  %v1419 = vunpack.c.l.b16 %v270
  %v1420 = vunpack.c.h.b16 %v270
  %v1421 = vunpack.c.l.b16 %v271
  %v1422 = vunpack.c.l.b16 %v272
  %v1423 = vunpack.c.h.b16 %v272
  %v1424 = vunpack.c.l.b16 %v273
  %v1425 = vunpack.c.l.b16 %v274
  %v1426 = vunpack.c.h.b16 %v274
  %v1427 = vunpack.c.l.b16 %v275
  %v1428 = vunpack.c.l.b16 %v276
  %v1429 = vunpack.c.h.b16 %v276
  %v1430 = vunpack.c.l.b16 %v277
  %v1431 = vunpack.c.l.b16 %v278
  %v1432 = vunpack.c.h.b16 %v278
  %v1433 = vunpack.c.l.b16 %v279
  %v1434 = vunpack.c.l.b16 %v280
  %v1435 = vunpack.c.h.b16 %v280
  %v1436 = vunpack.c.l.b16 %v281
  %v1437 = vunpack.c.l.b16 %v282
  %v1438 = vunpack.c.h.b16 %v282
  %v1439 = vunpack.c.l.b16 %v283
  %v1440 = vunpack.c.l.b16 %v284
  %v1441 = vunpack.c.h.b16 %v284
  %v1442 = vunpack.c.l.b16 %v285
  %v1443 = vunpack.c.l.b16 %v286
  %v1444 = vunpack.c.h.b16 %v286
  %v1445 = vunpack.c.l.b16 %v287
  %v1446 = vunpack.c.l.b16 %v288
  %v1447 = vunpack.c.h.b16 %v288
  %v1448 = vunpack.c.l.b16 %v289
  %v1449 = vunpack.c.l.b16 %v290
  %v1450 = vunpack.c.h.b16 %v290
  %v1451 = vunpack.c.l.b16 %v291
  %v1452 = vunpack.c.l.b16 %v292
  %v1453 = vunpack.c.h.b16 %v292
  %v1454 = vunpack.c.l.b16 %v293
  %v1455 = vunpack.c.l.b16 %v294
  %v1456 = vunpack.c.h.b16 %v294
  %v1457 = vunpack.c.l.b16 %v295
  %v1458 = vunpack.c.l.b16 %v296
  %v1459 = vunpack.c.h.b16 %v296
  %v1460 = vunpack.c.l.b16 %v297
  %v1461 = vunpack.c.l.b16 %v298
  %v1462 = vunpack.c.h.b16 %v298
  %v1463 = vunpack.c.l.b16 %v299
  %v1464 = vunpack.c.l.b16 %v300
  %v1465 = vunpack.c.h.b16 %v300
  %v1466 = vunpack.c.l.b16 %v301
  %v1467 = vunpack.c.l.b16 %v302
  %v1468 = vunpack.c.h.b16 %v302
  %v1469 = vunpack.c.l.b16 %v303
  %v1470 = vunpack.c.l.b16 %v304
  %v1471 = vunpack.c.h.b16 %v304
  %v1472 = vunpack.c.l.b16 %v305
  %v1473 = vunpack.c.l.b16 %v306
  %v1474 = vunpack.c.h.b16 %v306
  %v1475 = vunpack.c.l.b16 %v307
  %v1476 = vunpack.c.l.b16 %v308
  %v1477 = vunpack.c.h.b16 %v308
  %v1478 = vunpack.c.l.b16 %v309
  %v1479 = vunpack.c.l.b16 %v310
  %v1480 = vunpack.c.h.b16 %v310
  %v1481 = vunpack.c.l.b16 %v311
  %v1482 = vunpack.c.l.b16 %v312
  %v1483 = vunpack.c.h.b16 %v312
  %v1484 = vunpack.c.l.b16 %v313
  %v1485 = vunpack.c.l.b16 %v314
  %v1486 = vunpack.c.h.b16 %v314
  %v1487 = vunpack.c.l.b16 %v315
  %v1488 = vunpack.c.l.b16 %v316
  %v1489 = vunpack.c.h.b16 %v316
  %v1490 = vunpack.c.l.b16 %v317
  %v1491 = vunpack.c.l.b16 %v318
  %v1492 = vunpack.c.h.b16 %v318
  %v1493 = vunpack.c.l.b16 %v319
  %v1494 = vunpack.c.l.b16 %v320
  %v1495 = vunpack.c.h.b16 %v320
  %v1496 = vunpack.c.l.b16 %v321
  %v1497 = vunpack.c.l.b16 %v322
  %v1498 = vunpack.c.h.b16 %v322
  %v1499 = vunpack.c.l.b16 %v323
  %v1500 = vunpack.c.l.b16 %v324
  %v1501 = vunpack.c.h.b16 %v324
  %v1502 = vunpack.c.l.b16 %v325
  %v1503 = vunpack.c.l.b16 %v326
  %v1504 = vunpack.c.h.b16 %v326
  %v1505 = vunpack.c.l.b16 %v327
  %v1506 = vunpack.c.l.b16 %v328
  %v1507 = vunpack.c.h.b16 %v328
  %v1508 = vunpack.c.l.b16 %v329
  %v1509 = vunpack.c.l.b16 %v330
  %v1510 = vunpack.c.h.b16 %v330
  %v1511 = vunpack.c.l.b16 %v331
  %v1512 = vunpack.c.l.b16 %v332
  %v1513 = vunpack.c.h.b16 %v332
  %v1514 = vunpack.c.l.b16 %v333
  %v1515 = vunpack.c.l.b16 %v334
  %v1516 = vunpack.c.h.b16 %v334
  %v1517 = vunpack.c.l.b16 %v335
  %v1518 = vunpack.c.l.b16 %v336
  %v1519 = vunpack.c.h.b16 %v336
  %v1520 = vunpack.c.l.b16 %v337
  %v1521 = vunpack.c.l.b16 %v338
  %v1522 = vunpack.c.h.b16 %v338
  %v1523 = vunpack.c.l.b16 %v339
  %v1524 = vunpack.c.l.b16 %v340
  %v1525 = vunpack.c.h.b16 %v340
  %v1526 = vunpack.c.l.b16 %v341
  %v1527 = vunpack.c.l.b16 %v342
  %v1528 = vunpack.c.h.b16 %v342
  %v1529 = vunpack.c.l.b16 %v343
  %v1530 = vunpack.c.l.b16 %v344
  %v1531 = vunpack.c.h.b16 %v344
  %v1532 = vunpack.c.l.b16 %v345
  %v1533 = vunpack.c.l.b16 %v346
  %v1534 = vunpack.c.h.b16 %v346
  %v1535 = vunpack.c.l.b16 %v347
  %v1536 = vunpack.c.l.b16 %v348
  %v1537 = vunpack.c.h.b16 %v348
  %v1538 = vunpack.c.l.b16 %v349
  %v1539 = vunpack.c.l.b16 %v350
  %v1540 = vunpack.c.h.b16 %v350
  %v1541 = vunpack.c.l.b16 %v351
  %v1542 = vunpack.c.l.b16 %v352
  %v1543 = vunpack.c.h.b16 %v352
  %v1544 = vunpack.c.l.b16 %v353
  %v1545 = vunpack.c.l.b16 %v354
  %v1546 = vunpack.c.h.b16 %v354
  %v1547 = vunpack.c.l.b16 %v355
  %v1548 = vunpack.c.l.b16 %v356
  %v1549 = vunpack.c.h.b16 %v356
  %v1550 = vunpack.c.l.b16 %v357
  %v1551 = vunpack.c.l.b16 %v358
  %v1552 = vunpack.c.h.b16 %v358
  %v1553 = vunpack.c.l.b16 %v359
  %v1554 = vunpack.c.l.b16 %v360
  %v1555 = vunpack.c.h.b16 %v360
  %v1556 = vunpack.c.l.b16 %v361
  %v1557 = vunpack.c.l.b16 %v362
  %v1558 = vunpack.c.h.b16 %v362
  %v1559 = vunpack.c.l.b16 %v363
  %v1560 = vunpack.c.l.b16 %v364
  %v1561 = vunpack.c.h.b16 %v364
  %v1562 = vunpack.c.l.b16 %v365
  %v1563 = vunpack.c.l.b16 %v366
  %v1564 = vunpack.c.h.b16 %v366
  %v1565 = vunpack.c.l.b16 %v367
  %v1566 = vunpack.c.l.b16 %v368
  %v1567 = vunpack.c.h.b16 %v368
  %v1568 = vunpack.c.l.b16 %v369
  %v1569 = vunpack.c.l.b16 %v370
  %v1570 = vunpack.c.h.b16 %v370
  %v1571 = vunpack.c.l.b16 %v371
  %v1572 = vunpack.c.l.b16 %v372
  %v1573 = vunpack.c.h.b16 %v372
  %v1574 = vunpack.c.l.b16 %v373
  %v1575 = vunpack.c.l.b16 %v374
  %v1576 = vunpack.c.h.b16 %v374
  %v1577 = vunpack.c.l.b16 %v375
  %v1578 = vunpack.c.l.b16 %v376
  %v1579 = vunpack.c.h.b16 %v376
  %v1580 = vunpack.c.l.b16 %v377
  %v1581 = vunpack.c.l.b16 %v378
  %v1582 = vunpack.c.h.b16 %v378
  %v1583 = vunpack.c.l.b16 %v379
  %v1584 = vunpack.c.l.b16 %v380
  %v1585 = vunpack.c.h.b16 %v380
  %v1586 = vunpack.c.l.b16 %v381
  %v1587 = vunpack.c.l.b16 %v382
  %v1588 = vunpack.c.h.b16 %v382
  %v1589 = vunpack.c.l.b16 %v383
  %v1590 = vunpack.c.l.b16 %v384
  %v1591 = vunpack.c.h.b16 %v384
  %v1592 = vunpack.c.l.b16 %v385
  %v1593 = vunpack.c.l.b16 %v386
  %v1594 = vunpack.c.h.b16 %v386
  %v1595 = vunpack.c.l.b16 %v387
  %v1596 = vunpack.c.l.b16 %v388
  %v1597 = vunpack.c.h.b16 %v388
  %v1598 = vunpack.c.l.b16 %v389
  %v1599 = vunpack.c.l.b16 %v390
  %v1600 = vunpack.c.h.b16 %v390
  %v1601 = vunpack.c.l.b16 %v391
  %v1602 = vunpack.c.l.b16 %v392
  %v1603 = vunpack.c.h.b16 %v392
  %v1604 = vunpack.c.l.b16 %v393
  %v1605 = vunpack.c.l.b16 %v394
  %v1606 = vunpack.c.h.b16 %v394
  %v1607 = vunpack.c.l.b16 %v395
  %v1608 = vunpack.c.l.b16 %v396
  %v1609 = vunpack.c.h.b16 %v396
  %v1610 = vunpack.c.l.b16 %v397
  %v1611 = vunpack.c.l.b16 %v398
  %v1612 = vunpack.c.h.b16 %v398
  %v1613 = vunpack.c.l.b16 %v399
  %v1614 = vunpack.c.l.b16 %v400
  %v1615 = vunpack.c.h.b16 %v400
  %v1616 = vunpack.c.l.b16 %v401
  %v1617 = vunpack.c.l.b16 %v402
  %v1618 = vunpack.c.h.b16 %v402
  %v1619 = vunpack.c.l.b16 %v403
  %v1620 = vunpack.c.l.b16 %v404
  %v1621 = vunpack.c.h.b16 %v404
  %v1622 = vunpack.c.l.b16 %v405
  %v1623 = vunpack.c.l.b16 %v406
  %v1624 = vunpack.c.h.b16 %v406
  %v1625 = vunpack.c.l.b16 %v407
  %v1626 = vunpack.c.l.b16 %v408
  %v1627 = vunpack.c.h.b16 %v408
  %v1628 = vunpack.c.l.b16 %v409
  %v1629 = vunpack.c.l.b16 %v410
  %v1630 = vunpack.c.h.b16 %v410
  %v1631 = vunpack.c.l.b16 %v411
  %v1632 = vunpack.c.l.b16 %v412
  %v1633 = vunpack.c.h.b16 %v412
  %v1634 = vunpack.c.l.b16 %v413
  %v1635 = vunpack.c.l.b16 %v414
  %v1636 = vunpack.c.h.b16 %v414
  %v1637 = vunpack.c.l.b16 %v415
  %v1638 = vunpack.c.l.b16 %v416
  %v1639 = vunpack.c.h.b16 %v416
  %v1640 = vunpack.c.l.b16 %v417
  %v1641 = vunpack.c.l.b16 %v418
  %v1642 = vunpack.c.h.b16 %v418
  %v1643 = vunpack.c.l.b16 %v419
  %v1644 = vunpack.c.l.b16 %v420
  %v1645 = vunpack.c.h.b16 %v420
  %v1646 = vunpack.c.l.b16 %v421
  %v1647 = vunpack.c.l.b16 %v422
  %v1648 = vunpack.c.h.b16 %v422
  %v1649 = vunpack.c.l.b16 %v423
  %v1650 = vunpack.c.l.b16 %v424
  %v1651 = vunpack.c.h.b16 %v424
  %v1652 = vunpack.c.l.b16 %v425
  %v1653 = vunpack.c.l.b16 %v426
  %v1654 = vunpack.c.h.b16 %v426
  %v1655 = vunpack.c.l.b16 %v427
  %v1656 = vunpack.c.l.b16 %v428
  %v1657 = vunpack.c.h.b16 %v428
  %v1658 = vunpack.c.l.b16 %v429
  %v1659 = vunpack.c.l.b16 %v430
  %v1660 = vunpack.c.h.b16 %v430
  %v1661 = vunpack.c.l.b16 %v431
  %v1662 = vunpack.c.l.b16 %v432
  %v1663 = vunpack.c.h.b16 %v432
  %v1664 = vunpack.c.l.b16 %v433
  %v1665 = vunpack.c.l.b16 %v434
  %v1666 = vunpack.c.h.b16 %v434
  %v1667 = vunpack.c.l.b16 %v435
  %v1668 = vunpack.c.l.b16 %v436
  %v1669 = vunpack.c.h.b16 %v436
  %v1670 = vunpack.c.l.b16 %v437
  %v1671 = vunpack.c.l.b16 %v438
  %v1672 = vunpack.c.h.b16 %v438
  %v1673 = vunpack.c.l.b16 %v439
  %v1674 = vunpack.c.l.b16 %v440
  %v1675 = vunpack.c.h.b16 %v440
  %v1676 = vunpack.c.l.b16 %v441
  %v1677 = vunpack.c.l.b16 %v442
  %v1678 = vunpack.c.h.b16 %v442
  %v1679 = vunpack.c.l.b16 %v443
  %v1680 = vunpack.c.l.b16 %v444
  %v1681 = vunpack.c.h.b16 %v444
  %v1682 = vunpack.c.l.b16 %v445
  %v1683 = vunpack.c.l.b16 %v446
  %v1684 = vunpack.c.h.b16 %v446
  %v1685 = vunpack.c.l.b16 %v447
  %v1686 = vunpack.c.l.b16 %v448
  %v1687 = vunpack.c.h.b16 %v448
  %v1688 = vunpack.c.l.b16 %v449
  %v1689 = vunpack.c.l.b16 %v450
  %v1690 = vunpack.c.h.b16 %v450
  %v1691 = vunpack.c.l.b16 %v451
  %v1692 = vunpack.c.l.b16 %v452
  %v1693 = vunpack.c.h.b16 %v452
  %v1694 = vunpack.c.l.b16 %v453
  %v1695 = vunpack.c.l.b16 %v454
  %v1696 = vunpack.c.h.b16 %v454
  %v1697 = vunpack.c.l.b16 %v455
  %v1698 = vunpack.c.l.b16 %v456
  %v1699 = vunpack.c.h.b16 %v456
  %v1700 = vunpack.c.l.b16 %v457
  %v1701 = vunpack.c.l.b16 %v458
  %v1702 = vunpack.c.h.b16 %v458
  %v1703 = vunpack.c.l.b16 %v459
  %v1704 = vunpack.c.l.b16 %v460
  %v1705 = vunpack.c.h.b16 %v460
  %v1706 = vunpack.c.l.b16 %v461
  %v1707 = vunpack.c.l.b16 %v462
  %v1708 = vunpack.c.h.b16 %v462
  %v1709 = vunpack.c.l.b16 %v463
  %v1710 = vunpack.c.l.b16 %v464
  %v1711 = vunpack.c.h.b16 %v464
  %v1712 = vunpack.c.l.b16 %v465
  %v1713 = vunpack.c.l.b16 %v466
  %v1714 = vunpack.c.h.b16 %v466
  %v1715 = vunpack.c.l.b16 %v467
  %v1716 = vunpack.c.l.b16 %v468
  %v1717 = vunpack.c.h.b16 %v468
  %v1718 = vunpack.c.l.b16 %v469
  %v1719 = vunpack.c.l.b16 %v470
  %v1720 = vunpack.c.h.b16 %v470
  %v1721 = vunpack.c.l.b16 %v471
  %v1722 = vunpack.c.l.b16 %v472
  %v1723 = vunpack.c.h.b16 %v472
  %v1724 = vunpack.c.l.b16 %v473
  %v1725 = vunpack.c.l.b16 %v474
  %v1726 = vunpack.c.h.b16 %v474
  %v1727 = vunpack.c.l.b16 %v475
  %v1728 = vunpack.c.l.b16 %v476
  %v1729 = vunpack.c.h.b16 %v476
  %v1730 = vunpack.c.l.b16 %v477
  %v1731 = vunpack.c.l.b16 %v478
  %v1732 = vunpack.c.h.b16 %v478
  %v1733 = vunpack.c.l.b16 %v479
  %v1734 = vunpack.c.l.b16 %v480
  %v1735 = vunpack.c.h.b16 %v480
  %v1736 = vunpack.c.l.b16 %v481
  %v1737 = vunpack.c.l.b16 %v482
  %v1738 = vunpack.c.h.b16 %v482
  %v1739 = vunpack.c.l.b16 %v483
  %v1740 = vpack.c.b16 %v1071, %v1068
  %v1741 = vpack.c.b16 %v1072, %v1069
  %v1742 = vpack.c.b16 %v1073, %v1070
  %v1743 = vpack.c.b16 %v1077, %v1074
  %v1744 = vpack.c.b16 %v1078, %v1075
  %v1745 = vpack.c.b16 %v1079, %v1076
  %v1746 = vpack.c.b16 %v1083, %v1080
  %v1747 = vpack.c.b16 %v1084, %v1081
  %v1748 = vpack.c.b16 %v1085, %v1082
  %v1749 = vpack.c.b16 %v1089, %v1086
  %v1750 = vpack.c.b16 %v1090, %v1087
  %v1751 = vpack.c.b16 %v1091, %v1088
  %v1752 = vpack.c.b16 %v1095, %v1092
  %v1753 = vpack.c.b16 %v1096, %v1093
  %v1754 = vpack.c.b16 %v1097, %v1094
  %v1755 = vpack.c.b16 %v1101, %v1098
  %v1756 = vpack.c.b16 %v1102, %v1099
  %v1757 = vpack.c.b16 %v1103, %v1100
  %v1758 = vpack.c.b16 %v1107, %v1104
  %v1759 = vpack.c.b16 %v1108, %v1105
  %v1760 = vpack.c.b16 %v1109, %v1106
  %v1761 = vpack.c.b16 %v1113, %v1110
  %v1762 = vpack.c.b16 %v1114, %v1111
  %v1763 = vpack.c.b16 %v1115, %v1112
  %v1764 = vpack.c.b16 %v1119, %v1116
  %v1765 = vpack.c.b16 %v1120, %v1117
  %v1766 = vpack.c.b16 %v1121, %v1118
  %v1767 = vpack.c.b16 %v1125, %v1122
  %v1768 = vpack.c.b16 %v1126, %v1123
  %v1769 = vpack.c.b16 %v1127, %v1124
  %v1770 = vpack.c.b16 %v1131, %v1128
  %v1771 = vpack.c.b16 %v1132, %v1129
  %v1772 = vpack.c.b16 %v1133, %v1130
  %v1773 = vpack.c.b16 %v1137, %v1134
  %v1774 = vpack.c.b16 %v1138, %v1135
  %v1775 = vpack.c.b16 %v1139, %v1136
  %v1776 = vpack.c.b16 %v1143, %v1140
  %v1777 = vpack.c.b16 %v1144, %v1141
  %v1778 = vpack.c.b16 %v1145, %v1142
  %v1779 = vpack.c.b16 %v1149, %v1146
  %v1780 = vpack.c.b16 %v1150, %v1147
  %v1781 = vpack.c.b16 %v1151, %v1148
  %v1782 = vpack.c.b16 %v1155, %v1152
  %v1783 = vpack.c.b16 %v1156, %v1153
  %v1784 = vpack.c.b16 %v1157, %v1154
  %v1785 = vpack.c.b16 %v1161, %v1158
  %v1786 = vpack.c.b16 %v1162, %v1159
  %v1787 = vpack.c.b16 %v1163, %v1160
  %v1788 = vpack.c.b16 %v1167, %v1164
  %v1789 = vpack.c.b16 %v1168, %v1165
  %v1790 = vpack.c.b16 %v1169, %v1166
  %v1791 = vpack.c.b16 %v1173, %v1170
  %v1792 = vpack.c.b16 %v1174, %v1171
  %v1793 = vpack.c.b16 %v1175, %v1172
  %v1794 = vpack.c.b16 %v1179, %v1176
  %v1795 = vpack.c.b16 %v1180, %v1177
  %v1796 = vpack.c.b16 %v1181, %v1178
  %v1797 = vpack.c.b16 %v1185, %v1182
  %v1798 = vpack.c.b16 %v1186, %v1183
  %v1799 = vpack.c.b16 %v1187, %v1184
  %v1800 = vpack.c.b16 %v1191, %v1188
  %v1801 = vpack.c.b16 %v1192, %v1189
  %v1802 = vpack.c.b16 %v1193, %v1190
  %v1803 = vpack.c.b16 %v1197, %v1194
  %v1804 = vpack.c.b16 %v1198, %v1195
  %v1805 = vpack.c.b16 %v1199, %v1196
  %v1806 = vpack.c.b16 %v1203, %v1200
  %v1807 = vpack.c.b16 %v1204, %v1201
  %v1808 = vpack.c.b16 %v1205, %v1202
  %v1809 = vpack.c.b16 %v1209, %v1206
  %v1810 = vpack.c.b16 %v1210, %v1207
  %v1811 = vpack.c.b16 %v1211, %v1208
  %v1812 = vpack.c.b16 %v1215, %v1212
  %v1813 = vpack.c.b16 %v1216, %v1213
  %v1814 = vpack.c.b16 %v1217, %v1214
  %v1815 = vpack.c.b16 %v1221, %v1218
  %v1816 = vpack.c.b16 %v1222, %v1219
  %v1817 = vpack.c.b16 %v1223, %v1220
  %v1818 = vpack.c.b16 %v1227, %v1224
  %v1819 = vpack.c.b16 %v1228, %v1225
  %v1820 = vpack.c.b16 %v1229, %v1226
  %v1821 = vpack.c.b16 %v1233, %v1230
  %v1822 = vpack.c.b16 %v1234, %v1231
  %v1823 = vpack.c.b16 %v1235, %v1232
  %v1824 = vpack.c.b16 %v1239, %v1236
  %v1825 = vpack.c.b16 %v1240, %v1237
  %v1826 = vpack.c.b16 %v1241, %v1238
  %v1827 = vpack.c.b16 %v1245, %v1242
  %v1828 = vpack.c.b16 %v1246, %v1243
  %v1829 = vpack.c.b16 %v1247, %v1244
  %v1830 = vpack.c.b16 %v1251, %v1248
  %v1831 = vpack.c.b16 %v1252, %v1249
  %v1832 = vpack.c.b16 %v1253, %v1250
  %v1833 = vpack.c.b16 %v1257, %v1254
  %v1834 = vpack.c.b16 %v1258, %v1255
  %v1835 = vpack.c.b16 %v1259, %v1256
  %v1836 = vpack.c.b16 %v1263, %v1260
  %v1837 = vpack.c.b16 %v1264, %v1261
  %v1838 = vpack.c.b16 %v1265, %v1262
  %v1839 = vpack.c.b16 %v1269, %v1266
  %v1840 = vpack.c.b16 %v1270, %v1267
  %v1841 = vpack.c.b16 %v1271, %v1268
  %v1842 = vpack.c.b16 %v1275, %v1272
  %v1843 = vpack.c.b16 %v1276, %v1273
  %v1844 = vpack.c.b16 %v1277, %v1274
  %v1845 = vpack.c.b16 %v1281, %v1278
  %v1846 = vpack.c.b16 %v1282, %v1279
  %v1847 = vpack.c.b16 %v1283, %v1280
  %v1848 = vpack.c.b16 %v1287, %v1284
  %v1849 = vpack.c.b16 %v1288, %v1285
  %v1850 = vpack.c.b16 %v1289, %v1286
  %v1851 = vpack.c.b16 %v1293, %v1290
  %v1852 = vpack.c.b16 %v1294, %v1291
  %v1853 = vpack.c.b16 %v1295, %v1292
  %v1854 = vpack.c.b16 %v1299, %v1296
  %v1855 = vpack.c.b16 %v1300, %v1297
  %v1856 = vpack.c.b16 %v1301, %v1298
  %v1857 = vpack.c.b16 %v1305, %v1302
  %v1858 = vpack.c.b16 %v1306, %v1303
  %v1859 = vpack.c.b16 %v1307, %v1304
  %v1860 = vpack.c.b16 %v1311, %v1308
  %v1861 = vpack.c.b16 %v1312, %v1309
  %v1862 = vpack.c.b16 %v1313, %v1310
  %v1863 = vpack.c.b16 %v1317, %v1314
  %v1864 = vpack.c.b16 %v1318, %v1315
  %v1865 = vpack.c.b16 %v1319, %v1316
  %v1866 = vpack.c.b16 %v1323, %v1320
  %v1867 = vpack.c.b16 %v1324, %v1321
  %v1868 = vpack.c.b16 %v1325, %v1322
  %v1869 = vpack.c.b16 %v1329, %v1326
  %v1870 = vpack.c.b16 %v1330, %v1327
  %v1871 = vpack.c.b16 %v1331, %v1328
  %v1872 = vpack.c.b16 %v1335, %v1332
  %v1873 = vpack.c.b16 %v1336, %v1333
  %v1874 = vpack.c.b16 %v1337, %v1334
  %v1875 = vpack.c.b16 %v1341, %v1338
  %v1876 = vpack.c.b16 %v1342, %v1339
  %v1877 = vpack.c.b16 %v1343, %v1340
  %v1878 = vpack.c.b16 %v1347, %v1344
  %v1879 = vpack.c.b16 %v1348, %v1345
  %v1880 = vpack.c.b16 %v1349, %v1346
  %v1881 = vpack.c.b16 %v1353, %v1350
  %v1882 = vpack.c.b16 %v1354, %v1351
  %v1883 = vpack.c.b16 %v1355, %v1352
  %v1884 = vpack.c.b16 %v1359, %v1356
  %v1885 = vpack.c.b16 %v1360, %v1357
  %v1886 = vpack.c.b16 %v1361, %v1358
  %v1887 = vpack.c.b16 %v1365, %v1362
  %v1888 = vpack.c.b16 %v1366, %v1363
  %v1889 = vpack.c.b16 %v1367, %v1364
  %v1890 = vpack.c.b16 %v1371, %v1368
  %v1891 = vpack.c.b16 %v1372, %v1369
  %v1892 = vpack.c.b16 %v1373, %v1370
  %v1893 = vpack.c.b16 %v1377, %v1374
  %v1894 = vpack.c.b16 %v1378, %v1375
  %v1895 = vpack.c.b16 %v1379, %v1376
  %v1896 = vpack.c.b16 %v1383, %v1380
  %v1897 = vpack.c.b16 %v1384, %v1381
  %v1898 = vpack.c.b16 %v1385, %v1382
  %v1899 = vpack.c.b16 %v1389, %v1386
  %v1900 = vpack.c.b16 %v1390, %v1387
  %v1901 = vpack.c.b16 %v1391, %v1388
  %v1902 = vpack.c.b16 %v1395, %v1392
  %v1903 = vpack.c.b16 %v1396, %v1393
  %v1904 = vpack.c.b16 %v1397, %v1394
  %v1905 = vpack.c.b16 %v1401, %v1398
  %v1906 = vpack.c.b16 %v1402, %v1399
  %v1907 = vpack.c.b16 %v1403, %v1400
  %v1908 = vpack.c.b16 %v1407, %v1404
  %v1909 = vpack.c.b16 %v1408, %v1405
  %v1910 = vpack.c.b16 %v1409, %v1406
  %v1911 = vpack.c.b16 %v1413, %v1410
  %v1912 = vpack.c.b16 %v1414, %v1411
  %v1913 = vpack.c.b16 %v1415, %v1412
  %v1914 = vpack.c.b16 %v1419, %v1416
  %v1915 = vpack.c.b16 %v1420, %v1417
  %v1916 = vpack.c.b16 %v1421, %v1418
  %v1917 = vpack.c.b16 %v1425, %v1422
  %v1918 = vpack.c.b16 %v1426, %v1423
  %v1919 = vpack.c.b16 %v1427, %v1424
  %v1920 = vpack.c.b16 %v1431, %v1428
  %v1921 = vpack.c.b16 %v1432, %v1429
  %v1922 = vpack.c.b16 %v1433, %v1430
  %v1923 = vpack.c.b16 %v1437, %v1434
  %v1924 = vpack.c.b16 %v1438, %v1435
  %v1925 = vpack.c.b16 %v1439, %v1436
  %v1926 = vpack.c.b16 %v1443, %v1440
  %v1927 = vpack.c.b16 %v1444, %v1441
  %v1928 = vpack.c.b16 %v1445, %v1442
  %v1929 = vpack.c.b16 %v1449, %v1446
  %v1930 = vpack.c.b16 %v1450, %v1447
  %v1931 = vpack.c.b16 %v1451, %v1448
  %v1932 = vpack.c.b16 %v1455, %v1452
  %v1933 = vpack.c.b16 %v1456, %v1453
  %v1934 = vpack.c.b16 %v1457, %v1454
  %v1935 = vpack.c.b16 %v1461, %v1458
  %v1936 = vpack.c.b16 %v1462, %v1459
  %v1937 = vpack.c.b16 %v1463, %v1460
  %v1938 = vpack.c.b16 %v1467, %v1464
  %v1939 = vpack.c.b16 %v1468, %v1465
  %v1940 = vpack.c.b16 %v1469, %v1466
  %v1941 = vpack.c.b16 %v1473, %v1470
  %v1942 = vpack.c.b16 %v1474, %v1471
  %v1943 = vpack.c.b16 %v1475, %v1472
  %v1944 = vpack.c.b16 %v1479, %v1476
  %v1945 = vpack.c.b16 %v1480, %v1477
  %v1946 = vpack.c.b16 %v1481, %v1478
  %v1947 = vpack.c.b16 %v1485, %v1482
  %v1948 = vpack.c.b16 %v1486, %v1483
  %v1949 = vpack.c.b16 %v1487, %v1484
  %v1950 = vpack.c.b16 %v1491, %v1488
  %v1951 = vpack.c.b16 %v1492, %v1489
  %v1952 = vpack.c.b16 %v1493, %v1490
  %v1953 = vpack.c.b16 %v1497, %v1494
  %v1954 = vpack.c.b16 %v1498, %v1495
  %v1955 = vpack.c.b16 %v1499, %v1496
  %v1956 = vpack.c.b16 %v1503, %v1500
  %v1957 = vpack.c.b16 %v1504, %v1501
  %v1958 = vpack.c.b16 %v1505, %v1502
  %v1959 = vpack.c.b16 %v1509, %v1506
  %v1960 = vpack.c.b16 %v1510, %v1507
  %v1961 = vpack.c.b16 %v1511, %v1508
  %v1962 = vpack.c.b16 %v1515, %v1512
  %v1963 = vpack.c.b16 %v1516, %v1513
  %v1964 = vpack.c.b16 %v1517, %v1514
  %v1965 = vpack.c.b16 %v1521, %v1518
  %v1966 = vpack.c.b16 %v1522, %v1519
  %v1967 = vpack.c.b16 %v1523, %v1520
  %v1968 = vpack.c.b16 %v1527, %v1524
  %v1969 = vpack.c.b16 %v1528, %v1525
  %v1970 = vpack.c.b16 %v1529, %v1526
  %v1971 = vpack.c.b16 %v1533, %v1530
  %v1972 = vpack.c.b16 %v1534, %v1531
  %v1973 = vpack.c.b16 %v1535, %v1532
  %v1974 = vpack.c.b16 %v1539, %v1536
  %v1975 = vpack.c.b16 %v1540, %v1537
  %v1976 = vpack.c.b16 %v1541, %v1538
  %v1977 = vpack.c.b16 %v1545, %v1542
  %v1978 = vpack.c.b16 %v1546, %v1543
  %v1979 = vpack.c.b16 %v1547, %v1544
  %v1980 = vpack.c.b16 %v1551, %v1548
  %v1981 = vpack.c.b16 %v1552, %v1549
  %v1982 = vpack.c.b16 %v1553, %v1550
  %v1983 = vpack.c.b16 %v1557, %v1554
  %v1984 = vpack.c.b16 %v1558, %v1555
  %v1985 = vpack.c.b16 %v1559, %v1556
  %v1986 = vpack.c.b16 %v1563, %v1560
  %v1987 = vpack.c.b16 %v1564, %v1561
  %v1988 = vpack.c.b16 %v1565, %v1562
  %v1989 = vpack.c.b16 %v1569, %v1566
  %v1990 = vpack.c.b16 %v1570, %v1567
  %v1991 = vpack.c.b16 %v1571, %v1568
  %v1992 = vpack.c.b16 %v1575, %v1572
  %v1993 = vpack.c.b16 %v1576, %v1573
  %v1994 = vpack.c.b16 %v1577, %v1574
  %v1995 = vpack.c.b16 %v1581, %v1578
  %v1996 = vpack.c.b16 %v1582, %v1579
  %v1997 = vpack.c.b16 %v1583, %v1580
  %v1998 = vpack.c.b16 %v1587, %v1584
  %v1999 = vpack.c.b16 %v1588, %v1585
  %v2000 = vpack.c.b16 %v1589, %v1586
  %v2001 = vpack.c.b16 %v1593, %v1590
  %v2002 = vpack.c.b16 %v1594, %v1591
  %v2003 = vpack.c.b16 %v1595, %v1592
  %v2004 = vpack.c.b16 %v1599, %v1596
  %v2005 = vpack.c.b16 %v1600, %v1597
  %v2006 = vpack.c.b16 %v1601, %v1598
  %v2007 = vpack.c.b16 %v1605, %v1602
  %v2008 = vpack.c.b16 %v1606, %v1603
  %v2009 = vpack.c.b16 %v1607, %v1604
  %v2010 = vpack.c.b16 %v1611, %v1608
  %v2011 = vpack.c.b16 %v1612, %v1609
  %v2012 = vpack.c.b16 %v1613, %v1610
  %v2013 = vpack.c.b16 %v1617, %v1614
  %v2014 = vpack.c.b16 %v1618, %v1615
  %v2015 = vpack.c.b16 %v1619, %v1616
  %v2016 = vpack.c.b16 %v1623, %v1620
  %v2017 = vpack.c.b16 %v1624, %v1621
  %v2018 = vpack.c.b16 %v1625, %v1622
  %v2019 = vpack.c.b16 %v1629, %v1626
  %v2020 = vpack.c.b16 %v1630, %v1627
  %v2021 = vpack.c.b16 %v1631, %v1628
  %v2022 = vpack.c.b16 %v1635, %v1632
  %v2023 = vpack.c.b16 %v1636, %v1633
  %v2024 = vpack.c.b16 %v1637, %v1634
  %v2025 = vpack.c.b16 %v1641, %v1638
  %v2026 = vpack.c.b16 %v1642, %v1639
  %v2027 = vpack.c.b16 %v1643, %v1640
  %v2028 = vpack.c.b16 %v1647, %v1644
  %v2029 = vpack.c.b16 %v1648, %v1645
  %v2030 = vpack.c.b16 %v1649, %v1646
  %v2031 = vpack.c.b16 %v1653, %v1650
  %v2032 = vpack.c.b16 %v1654, %v1651
  %v2033 = vpack.c.b16 %v1655, %v1652
  %v2034 = vpack.c.b16 %v1659, %v1656
  %v2035 = vpack.c.b16 %v1660, %v1657
  %v2036 = vpack.c.b16 %v1661, %v1658
  %v2037 = vpack.c.b16 %v1665, %v1662
  %v2038 = vpack.c.b16 %v1666, %v1663
  %v2039 = vpack.c.b16 %v1667, %v1664
  %v2040 = vpack.c.b16 %v1671, %v1668
  %v2041 = vpack.c.b16 %v1672, %v1669
  %v2042 = vpack.c.b16 %v1673, %v1670
  %v2043 = vpack.c.b16 %v1677, %v1674
  %v2044 = vpack.c.b16 %v1678, %v1675
  %v2045 = vpack.c.b16 %v1679, %v1676
  %v2046 = vpack.c.b16 %v1683, %v1680
  %v2047 = vpack.c.b16 %v1684, %v1681
  %v2048 = vpack.c.b16 %v1685, %v1682
  %v2049 = vpack.c.b16 %v1689, %v1686
  %v2050 = vpack.c.b16 %v1690, %v1687
  %v2051 = vpack.c.b16 %v1691, %v1688
  %v2052 = vpack.c.b16 %v1695, %v1692
  %v2053 = vpack.c.b16 %v1696, %v1693
  %v2054 = vpack.c.b16 %v1697, %v1694
  %v2055 = vpack.c.b16 %v1701, %v1698
  %v2056 = vpack.c.b16 %v1702, %v1699
  %v2057 = vpack.c.b16 %v1703, %v1700
  %v2058 = vpack.c.b16 %v1707, %v1704
  %v2059 = vpack.c.b16 %v1708, %v1705
  %v2060 = vpack.c.b16 %v1709, %v1706
  %v2061 = vpack.c.b16 %v1713, %v1710
  %v2062 = vpack.c.b16 %v1714, %v1711
  %v2063 = vpack.c.b16 %v1715, %v1712
  %v2064 = vpack.c.b16 %v1719, %v1716
  %v2065 = vpack.c.b16 %v1720, %v1717
  %v2066 = vpack.c.b16 %v1721, %v1718
  %v2067 = vpack.c.b16 %v1725, %v1722
  %v2068 = vpack.c.b16 %v1726, %v1723
  %v2069 = vpack.c.b16 %v1727, %v1724
  %v2070 = vpack.c.b16 %v1731, %v1728
  %v2071 = vpack.c.b16 %v1732, %v1729
  %v2072 = vpack.c.b16 %v1733, %v1730
  %v2073 = vpack.c.b16 %v1737, %v1734
  %v2074 = vpack.c.b16 %v1738, %v1735
  %v2075 = vpack.c.b16 %v1739, %v1736
  %2412 = vmatprep.subr.bf16.mxu0 %v1741
  %2413 = vmatpush1.bf16.msra.mxu0 %v1740
  %2414 = vmatprep.subr.bf16.mxu0 %v1744
  %2415 = vmatpush1.bf16.msra.mxu0 %v1743
  %2416 = vmatprep.subr.bf16.mxu0 %v1747
  %2417 = vmatpush1.bf16.msra.mxu0 %v1746
  %2418 = vmatprep.subr.bf16.mxu0 %v1750
  %2419 = vmatpush1.bf16.msra.mxu0 %v1749
  %2420 = vmatprep.subr.bf16.mxu0 %v1753
  %2421 = vmatpush1.bf16.msra.mxu0 %v1752
  %2422 = vmatprep.subr.bf16.mxu0 %v1756
  %2423 = vmatpush1.bf16.msra.mxu0 %v1755
  %2424 = vmatprep.subr.bf16.mxu0 %v1759
  %2425 = vmatpush1.bf16.msra.mxu0 %v1758
  %2426 = vmatprep.subr.bf16.mxu0 %v1762
  %2427 = vmatpush1.bf16.msra.mxu0 %v1761
  %2428 = vmatprep.subr.bf16.mxu0 %v1765
  %2429 = vmatpush1.bf16.msra.mxu0 %v1764
  %2430 = vmatprep.subr.bf16.mxu0 %v1768
  %2431 = vmatpush1.bf16.msra.mxu0 %v1767
  %2432 = vmatprep.subr.bf16.mxu0 %v1771
  %2433 = vmatpush1.bf16.msra.mxu0 %v1770
  %2434 = vmatprep.subr.bf16.mxu0 %v1774
  %2435 = vmatpush1.bf16.msra.mxu0 %v1773
  %2436 = vmatprep.subr.bf16.mxu0 %v1777
  %2437 = vmatpush1.bf16.msra.mxu0 %v1776
  %2438 = vmatprep.subr.bf16.mxu0 %v1780
  %2439 = vmatpush1.bf16.msra.mxu0 %v1779
  %2440 = vmatprep.subr.bf16.mxu0 %v1783
  %2441 = vmatpush1.bf16.msra.mxu0 %v1782
  %2442 = vmatprep.subr.bf16.mxu0 %v1786
  %2443 = vmatpush1.bf16.msra.mxu0 %v1785
  %2444 = vmatprep.mubr.bf16.mxu0 %v565
  %2445 = vmatmul.mubr.bf16.gmra.mrb[0].mxu0 %v564
  %v2446 = vpop.f32.mrb[0].mxu0
  %v2447 = vadd.f32 %v489, %v2446
  %v2448 = vpop.f32.mrb[0].mxu0
  %v2449 = vadd.f32 %v493, %v2448
  %v2450 = vpop.f32.mrb[0].mxu0
  %v2451 = vadd.f32 %v489, %v2450
  %v2452 = vpop.f32.mrb[0].mxu0
  %v2453 = vadd.f32 %v493, %v2452
  %2454 = vmatprep.mubr.bf16.mxu0 %v579
  %2455 = vmatmul.mubr.bf16.gmra.mrb[0].mxu0 %v578
  %v2456 = vpop.f32.mrb[0].mxu0
  %v2457 = vadd.f32 %v489, %v2456
  %v2458 = vpop.f32.mrb[0].mxu0
  %v2459 = vadd.f32 %v493, %v2458
  %v2460 = vpop.f32.mrb[0].mxu0
  %v2461 = vpop.f32.mrb[0].mxu0
  %2462 = vdwg.mxu0
  %2463 = vmatprep.subr.bf16.mxu0 %v1789
  %2464 = vmatpush1.bf16.msra.mxu0 %v1788
  %2465 = vmatprep.subr.bf16.mxu0 %v1792
  %2466 = vmatpush1.bf16.msra.mxu0 %v1791
  %2467 = vmatprep.subr.bf16.mxu0 %v1795
  %2468 = vmatpush1.bf16.msra.mxu0 %v1794
  %2469 = vmatprep.subr.bf16.mxu0 %v1798
  %2470 = vmatpush1.bf16.msra.mxu0 %v1797
  %2471 = vmatprep.subr.bf16.mxu0 %v1801
  %2472 = vmatpush1.bf16.msra.mxu0 %v1800
  %2473 = vmatprep.subr.bf16.mxu0 %v1804
  %2474 = vmatpush1.bf16.msra.mxu0 %v1803
  %2475 = vmatprep.subr.bf16.mxu0 %v1807
  %2476 = vmatpush1.bf16.msra.mxu0 %v1806
  %2477 = vmatprep.subr.bf16.mxu0 %v1810
  %2478 = vmatpush1.bf16.msra.mxu0 %v1809
  %2479 = vmatprep.subr.bf16.mxu0 %v1813
  %2480 = vmatpush1.bf16.msra.mxu0 %v1812
  %2481 = vmatprep.subr.bf16.mxu0 %v1816
  %2482 = vmatpush1.bf16.msra.mxu0 %v1815
  %2483 = vmatprep.subr.bf16.mxu0 %v1819
  %2484 = vmatpush1.bf16.msra.mxu0 %v1818
  %2485 = vmatprep.subr.bf16.mxu0 %v1822
  %2486 = vmatpush1.bf16.msra.mxu0 %v1821
  %2487 = vmatprep.subr.bf16.mxu0 %v1825
  %2488 = vmatpush1.bf16.msra.mxu0 %v1824
  %2489 = vmatprep.subr.bf16.mxu0 %v1828
  %2490 = vmatpush1.bf16.msra.mxu0 %v1827
  %2491 = vmatprep.subr.bf16.mxu0 %v1831
  %2492 = vmatpush1.bf16.msra.mxu0 %v1830
  %2493 = vmatprep.subr.bf16.mxu0 %v1834
  %2494 = vmatpush1.bf16.msra.mxu0 %v1833
  %2495 = vmatprep.mubr.bf16.mxu0 %v567
  %2496 = vmatmul.mubr.bf16.gmra.mrb[0].mxu0 %v566
  %v2497 = vpop.f32.mrb[0].mxu0
  %v2498 = vadd.f32 %v2447, %v2497
  %v2499 = vpop.f32.mrb[0].mxu0
  %v2500 = vadd.f32 %v2449, %v2499
  %v2501 = vpop.f32.mrb[0].mxu0
  %v2502 = vadd.f32 %v2451, %v2501
  %v2503 = vpop.f32.mrb[0].mxu0
  %v2504 = vadd.f32 %v2453, %v2503
  %2505 = vmatprep.mubr.bf16.mxu0 %v581
  %2506 = vmatmul.mubr.bf16.gmra.mrb[0].mxu0 %v580
  %v2507 = vpop.f32.mrb[0].mxu0
  %v2508 = vadd.f32 %v2457, %v2507
  %v2509 = vpop.f32.mrb[0].mxu0
  %v2510 = vadd.f32 %v2459, %v2509
  %v2511 = vpop.f32.mrb[0].mxu0
  %v2512 = vpop.f32.mrb[0].mxu0
  %2513 = vdwg.mxu0
  %2514 = vmatprep.subr.bf16.mxu0 %v1837
  %2515 = vmatpush1.bf16.msra.mxu0 %v1836
  %2516 = vmatprep.subr.bf16.mxu0 %v1840
  %2517 = vmatpush1.bf16.msra.mxu0 %v1839
  %2518 = vmatprep.subr.bf16.mxu0 %v1843
  %2519 = vmatpush1.bf16.msra.mxu0 %v1842
  %2520 = vmatprep.subr.bf16.mxu0 %v1846
  %2521 = vmatpush1.bf16.msra.mxu0 %v1845
  %2522 = vmatprep.subr.bf16.mxu0 %v1849
  %2523 = vmatpush1.bf16.msra.mxu0 %v1848
  %2524 = vmatprep.subr.bf16.mxu0 %v1852
  %2525 = vmatpush1.bf16.msra.mxu0 %v1851
  %2526 = vmatprep.subr.bf16.mxu0 %v1855
  %2527 = vmatpush1.bf16.msra.mxu0 %v1854
  %2528 = vmatprep.subr.bf16.mxu0 %v1858
  %2529 = vmatpush1.bf16.msra.mxu0 %v1857
  %2530 = vmatprep.subr.bf16.mxu0 %v1861
  %2531 = vmatpush1.bf16.msra.mxu0 %v1860
  %2532 = vmatprep.subr.bf16.mxu0 %v1864
  %2533 = vmatpush1.bf16.msra.mxu0 %v1863
  %2534 = vmatprep.subr.bf16.mxu0 %v1867
  %2535 = vmatpush1.bf16.msra.mxu0 %v1866
  %2536 = vmatprep.subr.bf16.mxu0 %v1870
  %2537 = vmatpush1.bf16.msra.mxu0 %v1869
  %2538 = vmatprep.subr.bf16.mxu0 %v1873
  %2539 = vmatpush1.bf16.msra.mxu0 %v1872
  %2540 = vmatprep.subr.bf16.mxu0 %v1876
  %2541 = vmatpush1.bf16.msra.mxu0 %v1875
  %2542 = vmatprep.subr.bf16.mxu0 %v1879
  %2543 = vmatpush1.bf16.msra.mxu0 %v1878
  %2544 = vmatprep.subr.bf16.mxu0 %v1882
  %2545 = vmatpush1.bf16.msra.mxu0 %v1881
  %2546 = vmatprep.mubr.bf16.mxu0 %v569
  %2547 = vmatmul.mubr.bf16.gmra.mrb[0].mxu0 %v568
  %v2548 = vpop.f32.mrb[0].mxu0
  %v2549 = vadd.f32 %v2498, %v2548
  %v2550 = vpop.f32.mrb[0].mxu0
  %v2551 = vadd.f32 %v2500, %v2550
  %v2552 = vpop.f32.mrb[0].mxu0
  %v2553 = vadd.f32 %v2502, %v2552
  %v2554 = vpop.f32.mrb[0].mxu0
  %v2555 = vadd.f32 %v2504, %v2554
  %2556 = vmatprep.mubr.bf16.mxu0 %v583
  %2557 = vmatmul.mubr.bf16.gmra.mrb[0].mxu0 %v582
  %v2558 = vpop.f32.mrb[0].mxu0
  %v2559 = vadd.f32 %v2508, %v2558
  %v2560 = vpop.f32.mrb[0].mxu0
  %v2561 = vadd.f32 %v2510, %v2560
  %v2562 = vpop.f32.mrb[0].mxu0
  %v2563 = vpop.f32.mrb[0].mxu0
  %2564 = vdwg.mxu0
  %2565 = vmatprep.subr.bf16.mxu0 %v1885
  %2566 = vmatpush1.bf16.msra.mxu0 %v1884
  %2567 = vmatprep.subr.bf16.mxu0 %v1888
  %2568 = vmatpush1.bf16.msra.mxu0 %v1887
  %2569 = vmatprep.subr.bf16.mxu0 %v1891
  %2570 = vmatpush1.bf16.msra.mxu0 %v1890
  %2571 = vmatprep.subr.bf16.mxu0 %v1894
  %2572 = vmatpush1.bf16.msra.mxu0 %v1893
  %2573 = vmatprep.subr.bf16.mxu0 %v1897
  %2574 = vmatpush1.bf16.msra.mxu0 %v1896
  %2575 = vmatprep.subr.bf16.mxu0 %v1900
  %2576 = vmatpush1.bf16.msra.mxu0 %v1899
  %2577 = vmatprep.subr.bf16.mxu0 %v1903
  %2578 = vmatpush1.bf16.msra.mxu0 %v1902
  %2579 = vmatprep.subr.bf16.mxu0 %v1906
  %2580 = vmatpush1.bf16.msra.mxu0 %v1905
  %2581 = vmatprep.subr.bf16.mxu0 %v1909
  %2582 = vmatpush1.bf16.msra.mxu0 %v1908
  %2583 = vmatprep.subr.bf16.mxu0 %v1912
  %2584 = vmatpush1.bf16.msra.mxu0 %v1911
  %2585 = vmatprep.subr.bf16.mxu0 %v1915
  %2586 = vmatpush1.bf16.msra.mxu0 %v1914
  %2587 = vmatprep.subr.bf16.mxu0 %v1918
  %2588 = vmatpush1.bf16.msra.mxu0 %v1917
  %2589 = vmatprep.subr.bf16.mxu0 %v1921
  %2590 = vmatpush1.bf16.msra.mxu0 %v1920
  %2591 = vmatprep.subr.bf16.mxu0 %v1924
  %2592 = vmatpush1.bf16.msra.mxu0 %v1923
  %2593 = vmatprep.subr.bf16.mxu0 %v1927
  %2594 = vmatpush1.bf16.msra.mxu0 %v1926
  %2595 = vmatprep.subr.bf16.mxu0 %v1930
  %2596 = vmatpush1.bf16.msra.mxu0 %v1929
  %2597 = vmatprep.mubr.bf16.mxu0 %v571
  %2598 = vmatmul.mubr.bf16.gmra.mrb[0].mxu0 %v570
  %v2599 = vpop.f32.mrb[0].mxu0
  %v2600 = vadd.f32 %v2549, %v2599
  %v2601 = vpop.f32.mrb[0].mxu0
  %v2602 = vadd.f32 %v2551, %v2601
  %v2603 = vpop.f32.mrb[0].mxu0
  %v2604 = vadd.f32 %v2553, %v2603
  %v2605 = vpop.f32.mrb[0].mxu0
  %v2606 = vadd.f32 %v2555, %v2605
  %2607 = vmatprep.mubr.bf16.mxu0 %v585
  %2608 = vmatmul.mubr.bf16.gmra.mrb[0].mxu0 %v584
  %v2609 = vpop.f32.mrb[0].mxu0
  %v2610 = vadd.f32 %v2559, %v2609
  %v2611 = vpop.f32.mrb[0].mxu0
  %v2612 = vadd.f32 %v2561, %v2611
  %v2613 = vpop.f32.mrb[0].mxu0
  %v2614 = vpop.f32.mrb[0].mxu0
  %2615 = vdwg.mxu0
  %2616 = vmatprep.subr.bf16.mxu0 %v1933
  %2617 = vmatpush1.bf16.msra.mxu0 %v1932
  %2618 = vmatprep.subr.bf16.mxu0 %v1936
  %2619 = vmatpush1.bf16.msra.mxu0 %v1935
  %2620 = vmatprep.subr.bf16.mxu0 %v1939
  %2621 = vmatpush1.bf16.msra.mxu0 %v1938
  %2622 = vmatprep.subr.bf16.mxu0 %v1942
  %2623 = vmatpush1.bf16.msra.mxu0 %v1941
  %2624 = vmatprep.subr.bf16.mxu0 %v1945
  %2625 = vmatpush1.bf16.msra.mxu0 %v1944
  %2626 = vmatprep.subr.bf16.mxu0 %v1948
  %2627 = vmatpush1.bf16.msra.mxu0 %v1947
  %2628 = vmatprep.subr.bf16.mxu0 %v1951
  %2629 = vmatpush1.bf16.msra.mxu0 %v1950
  %2630 = vmatprep.subr.bf16.mxu0 %v1954
  %2631 = vmatpush1.bf16.msra.mxu0 %v1953
  %2632 = vmatprep.subr.bf16.mxu0 %v1957
  %2633 = vmatpush1.bf16.msra.mxu0 %v1956
  %2634 = vmatprep.subr.bf16.mxu0 %v1960
  %2635 = vmatpush1.bf16.msra.mxu0 %v1959
  %2636 = vmatprep.subr.bf16.mxu0 %v1963
  %2637 = vmatpush1.bf16.msra.mxu0 %v1962
  %2638 = vmatprep.subr.bf16.mxu0 %v1966
  %2639 = vmatpush1.bf16.msra.mxu0 %v1965
  %2640 = vmatprep.subr.bf16.mxu0 %v1969
  %2641 = vmatpush1.bf16.msra.mxu0 %v1968
  %2642 = vmatprep.subr.bf16.mxu0 %v1972
  %2643 = vmatpush1.bf16.msra.mxu0 %v1971
  %2644 = vmatprep.subr.bf16.mxu0 %v1975
  %2645 = vmatpush1.bf16.msra.mxu0 %v1974
  %2646 = vmatprep.subr.bf16.mxu0 %v1978
  %2647 = vmatpush1.bf16.msra.mxu0 %v1977
  %2648 = vmatprep.mubr.bf16.mxu0 %v573
  %2649 = vmatmul.mubr.bf16.gmra.mrb[0].mxu0 %v572
  %v2650 = vpop.f32.mrb[0].mxu0
  %v2651 = vadd.f32 %v2600, %v2650
  %v2652 = vpop.f32.mrb[0].mxu0
  %v2653 = vadd.f32 %v2602, %v2652
  %v2654 = vpop.f32.mrb[0].mxu0
  %v2655 = vadd.f32 %v2604, %v2654
  %v2656 = vpop.f32.mrb[0].mxu0
  %v2657 = vadd.f32 %v2606, %v2656
  %2658 = vmatprep.mubr.bf16.mxu0 %v587
  %2659 = vmatmul.mubr.bf16.gmra.mrb[0].mxu0 %v586
  %v2660 = vpop.f32.mrb[0].mxu0
  %v2661 = vadd.f32 %v2610, %v2660
  %v2662 = vpop.f32.mrb[0].mxu0
  %v2663 = vadd.f32 %v2612, %v2662
  %v2664 = vpop.f32.mrb[0].mxu0
  %v2665 = vpop.f32.mrb[0].mxu0
  %2666 = vdwg.mxu0
  %2667 = vmatprep.subr.bf16.mxu0 %v1981
  %2668 = vmatpush1.bf16.msra.mxu0 %v1980
  %2669 = vmatprep.subr.bf16.mxu0 %v1984
  %2670 = vmatpush1.bf16.msra.mxu0 %v1983
  %2671 = vmatprep.subr.bf16.mxu0 %v1987
  %2672 = vmatpush1.bf16.msra.mxu0 %v1986
  %2673 = vmatprep.subr.bf16.mxu0 %v1990
  %2674 = vmatpush1.bf16.msra.mxu0 %v1989
  %2675 = vmatprep.subr.bf16.mxu0 %v1993
  %2676 = vmatpush1.bf16.msra.mxu0 %v1992
  %2677 = vmatprep.subr.bf16.mxu0 %v1996
  %2678 = vmatpush1.bf16.msra.mxu0 %v1995
  %2679 = vmatprep.subr.bf16.mxu0 %v1999
  %2680 = vmatpush1.bf16.msra.mxu0 %v1998
  %2681 = vmatprep.subr.bf16.mxu0 %v2002
  %2682 = vmatpush1.bf16.msra.mxu0 %v2001
  %2683 = vmatprep.subr.bf16.mxu0 %v2005
  %2684 = vmatpush1.bf16.msra.mxu0 %v2004
  %2685 = vmatprep.subr.bf16.mxu0 %v2008
  %2686 = vmatpush1.bf16.msra.mxu0 %v2007
  %2687 = vmatprep.subr.bf16.mxu0 %v2011
  %2688 = vmatpush1.bf16.msra.mxu0 %v2010
  %2689 = vmatprep.subr.bf16.mxu0 %v2014
  %2690 = vmatpush1.bf16.msra.mxu0 %v2013
  %2691 = vmatprep.subr.bf16.mxu0 %v2017
  %2692 = vmatpush1.bf16.msra.mxu0 %v2016
  %2693 = vmatprep.subr.bf16.mxu0 %v2020
  %2694 = vmatpush1.bf16.msra.mxu0 %v2019
  %2695 = vmatprep.subr.bf16.mxu0 %v2023
  %2696 = vmatpush1.bf16.msra.mxu0 %v2022
  %2697 = vmatprep.subr.bf16.mxu0 %v2026
  %2698 = vmatpush1.bf16.msra.mxu0 %v2025
  %2699 = vmatprep.mubr.bf16.mxu0 %v575
  %2700 = vmatmul.mubr.bf16.gmra.mrb[0].mxu0 %v574
  %v2701 = vpop.f32.mrb[0].mxu0
  %v2702 = vadd.f32 %v2651, %v2701
  %v2703 = vpop.f32.mrb[0].mxu0
  %v2704 = vadd.f32 %v2653, %v2703
  %v2705 = vpop.f32.mrb[0].mxu0
  %v2706 = vadd.f32 %v2655, %v2705
  %v2707 = vpop.f32.mrb[0].mxu0
  %v2708 = vadd.f32 %v2657, %v2707
  %2709 = vmatprep.mubr.bf16.mxu0 %v589
  %2710 = vmatmul.mubr.bf16.gmra.mrb[0].mxu0 %v588
  %v2711 = vpop.f32.mrb[0].mxu0
  %v2712 = vadd.f32 %v2661, %v2711
  %v2713 = vpop.f32.mrb[0].mxu0
  %v2714 = vadd.f32 %v2663, %v2713
  %v2715 = vpop.f32.mrb[0].mxu0
  %v2716 = vpop.f32.mrb[0].mxu0
  %2717 = vdwg.mxu0
  %2718 = vmatprep.subr.bf16.mxu0 %v2029
  %2719 = vmatpush1.bf16.msra.mxu0 %v2028
  %2720 = vmatprep.subr.bf16.mxu0 %v2032
  %2721 = vmatpush1.bf16.msra.mxu0 %v2031
  %2722 = vmatprep.subr.bf16.mxu0 %v2035
  %2723 = vmatpush1.bf16.msra.mxu0 %v2034
  %2724 = vmatprep.subr.bf16.mxu0 %v2038
  %2725 = vmatpush1.bf16.msra.mxu0 %v2037
  %2726 = vmatprep.subr.bf16.mxu0 %v2041
  %2727 = vmatpush1.bf16.msra.mxu0 %v2040
  %2728 = vmatprep.subr.bf16.mxu0 %v2044
  %2729 = vmatpush1.bf16.msra.mxu0 %v2043
  %2730 = vmatprep.subr.bf16.mxu0 %v2047
  %2731 = vmatpush1.bf16.msra.mxu0 %v2046
  %2732 = vmatprep.subr.bf16.mxu0 %v2050
  %2733 = vmatpush1.bf16.msra.mxu0 %v2049
  %2734 = vmatprep.subr.bf16.mxu0 %v2053
  %2735 = vmatpush1.bf16.msra.mxu0 %v2052
  %2736 = vmatprep.subr.bf16.mxu0 %v2056
  %2737 = vmatpush1.bf16.msra.mxu0 %v2055
  %2738 = vmatprep.subr.bf16.mxu0 %v2059
  %2739 = vmatpush1.bf16.msra.mxu0 %v2058
  %2740 = vmatprep.subr.bf16.mxu0 %v2062
  %2741 = vmatpush1.bf16.msra.mxu0 %v2061
  %2742 = vmatprep.subr.bf16.mxu0 %v2065
  %2743 = vmatpush1.bf16.msra.mxu0 %v2064
  %2744 = vmatprep.subr.bf16.mxu0 %v2068
  %2745 = vmatpush1.bf16.msra.mxu0 %v2067
  %2746 = vmatprep.subr.bf16.mxu0 %v2071
  %2747 = vmatpush1.bf16.msra.mxu0 %v2070
  %2748 = vmatprep.subr.bf16.mxu0 %v2074
  %2749 = vmatpush1.bf16.msra.mxu0 %v2073
  %2750 = vmatprep.mubr.bf16.mxu0 %v577
  %2751 = vmatmul.mubr.bf16.gmra.mrb[0].mxu0 %v576
  %v2752 = vpop.f32.mrb[0].mxu0
  %v2753 = vadd.f32 %v2702, %v2752
  %v2754 = vpop.f32.mrb[0].mxu0
  %v2755 = vadd.f32 %v2704, %v2754
  %v2756 = vpop.f32.mrb[0].mxu0
  %v2757 = vadd.f32 %v2706, %v2756
  %v2758 = vpop.f32.mrb[0].mxu0
  %v2759 = vadd.f32 %v2708, %v2758
  %2760 = vmatprep.mubr.bf16.mxu0 %v591
  %2761 = vmatmul.mubr.bf16.gmra.mrb[0].mxu0 %v590
  %v2762 = vpop.f32.mrb[0].mxu0
  %v2763 = vadd.f32 %v2712, %v2762
  %v2764 = vpop.f32.mrb[0].mxu0
  %v2765 = vadd.f32 %v2714, %v2764
  %v2766 = vpop.f32.mrb[0].mxu0
  %v2767 = vpop.f32.mrb[0].mxu0
  %2768 = vdwg.mxu0
  %2769 = vmatprep.subr.bf16.mxu0 0
  %2770 = vmatpush1.bf16.msra.mxu0 %v1742
  %2771 = vmatprep.subr.bf16.mxu0 0
  %2772 = vmatpush1.bf16.msra.mxu0 %v1745
  %2773 = vmatprep.subr.bf16.mxu0 0
  %2774 = vmatpush1.bf16.msra.mxu0 %v1748
  %2775 = vmatprep.subr.bf16.mxu0 0
  %2776 = vmatpush1.bf16.msra.mxu0 %v1751
  %2777 = vmatprep.subr.bf16.mxu0 0
  %2778 = vmatpush1.bf16.msra.mxu0 %v1754
  %2779 = vmatprep.subr.bf16.mxu0 0
  %2780 = vmatpush1.bf16.msra.mxu0 %v1757
  %2781 = vmatprep.subr.bf16.mxu0 0
  %2782 = vmatpush1.bf16.msra.mxu0 %v1760
  %2783 = vmatprep.subr.bf16.mxu0 0
  %2784 = vmatpush1.bf16.msra.mxu0 %v1763
  %2785 = vmatprep.subr.bf16.mxu0 0
  %2786 = vmatpush1.bf16.msra.mxu0 %v1766
  %2787 = vmatprep.subr.bf16.mxu0 0
  %2788 = vmatpush1.bf16.msra.mxu0 %v1769
  %2789 = vmatprep.subr.bf16.mxu0 0
  %2790 = vmatpush1.bf16.msra.mxu0 %v1772
  %2791 = vmatprep.subr.bf16.mxu0 0
  %2792 = vmatpush1.bf16.msra.mxu0 %v1775
  %2793 = vmatprep.subr.bf16.mxu0 0
  %2794 = vmatpush1.bf16.msra.mxu0 %v1778
  %2795 = vmatprep.subr.bf16.mxu0 0
  %2796 = vmatpush1.bf16.msra.mxu0 %v1781
  %2797 = vmatprep.subr.bf16.mxu0 0
  %2798 = vmatpush1.bf16.msra.mxu0 %v1784
  %2799 = vmatprep.subr.bf16.mxu0 0
  %2800 = vmatpush1.bf16.msra.mxu0 %v1787
  %2801 = vmatprep.mubr.bf16.mxu0 %v565
  %2802 = vmatmul.mubr.bf16.gmra.mrb[0].mxu0 %v564
  %v2803 = vpop.f32.mrb[0].mxu0
  %v2804 = vadd.f32 %v497, %v2803
  %v2805 = vpop.f32.mrb[0].mxu0
  %v2806 = vpop.f32.mrb[0].mxu0
  %v2807 = vadd.f32 %v497, %v2806
  %v2808 = vpop.f32.mrb[0].mxu0
  %2809 = vmatprep.mubr.bf16.mxu0 %v579
  %2810 = vmatmul.mubr.bf16.gmra.mrb[0].mxu0 %v578
  %v2811 = vpop.f32.mrb[0].mxu0
  %v2812 = vadd.f32 %v497, %v2811
  %v2813 = vpop.f32.mrb[0].mxu0
  %v2814 = vpop.f32.mrb[0].mxu0
  %v2815 = vpop.f32.mrb[0].mxu0
  %2816 = vdwg.mxu0
  %2817 = vmatprep.subr.bf16.mxu0 0
  %2818 = vmatpush1.bf16.msra.mxu0 %v1790
  %2819 = vmatprep.subr.bf16.mxu0 0
  %2820 = vmatpush1.bf16.msra.mxu0 %v1793
  %2821 = vmatprep.subr.bf16.mxu0 0
  %2822 = vmatpush1.bf16.msra.mxu0 %v1796
  %2823 = vmatprep.subr.bf16.mxu0 0
  %2824 = vmatpush1.bf16.msra.mxu0 %v1799
  %2825 = vmatprep.subr.bf16.mxu0 0
  %2826 = vmatpush1.bf16.msra.mxu0 %v1802
  %2827 = vmatprep.subr.bf16.mxu0 0
  %2828 = vmatpush1.bf16.msra.mxu0 %v1805
  %2829 = vmatprep.subr.bf16.mxu0 0
  %2830 = vmatpush1.bf16.msra.mxu0 %v1808
  %2831 = vmatprep.subr.bf16.mxu0 0
  %2832 = vmatpush1.bf16.msra.mxu0 %v1811
  %2833 = vmatprep.subr.bf16.mxu0 0
  %2834 = vmatpush1.bf16.msra.mxu0 %v1814
  %2835 = vmatprep.subr.bf16.mxu0 0
  %2836 = vmatpush1.bf16.msra.mxu0 %v1817
  %2837 = vmatprep.subr.bf16.mxu0 0
  %2838 = vmatpush1.bf16.msra.mxu0 %v1820
  %2839 = vmatprep.subr.bf16.mxu0 0
  %2840 = vmatpush1.bf16.msra.mxu0 %v1823
  %2841 = vmatprep.subr.bf16.mxu0 0
  %2842 = vmatpush1.bf16.msra.mxu0 %v1826
  %2843 = vmatprep.subr.bf16.mxu0 0
  %2844 = vmatpush1.bf16.msra.mxu0 %v1829
  %2845 = vmatprep.subr.bf16.mxu0 0
  %2846 = vmatpush1.bf16.msra.mxu0 %v1832
  %2847 = vmatprep.subr.bf16.mxu0 0
  %2848 = vmatpush1.bf16.msra.mxu0 %v1835
  %2849 = vmatprep.mubr.bf16.mxu0 %v567
  %2850 = vmatmul.mubr.bf16.gmra.mrb[0].mxu0 %v566
  %v2851 = vpop.f32.mrb[0].mxu0
  %v2852 = vadd.f32 %v2804, %v2851
  %v2853 = vpop.f32.mrb[0].mxu0
  %v2854 = vpop.f32.mrb[0].mxu0
  %v2855 = vadd.f32 %v2807, %v2854
  %v2856 = vpop.f32.mrb[0].mxu0
  %2857 = vmatprep.mubr.bf16.mxu0 %v581
  %2858 = vmatmul.mubr.bf16.gmra.mrb[0].mxu0 %v580
  %v2859 = vpop.f32.mrb[0].mxu0
  %v2860 = vadd.f32 %v2812, %v2859
  %v2861 = vpop.f32.mrb[0].mxu0
  %v2862 = vpop.f32.mrb[0].mxu0
  %v2863 = vpop.f32.mrb[0].mxu0
  %2864 = vdwg.mxu0
  %2865 = vmatprep.subr.bf16.mxu0 0
  %2866 = vmatpush1.bf16.msra.mxu0 %v1838
  %2867 = vmatprep.subr.bf16.mxu0 0
  %2868 = vmatpush1.bf16.msra.mxu0 %v1841
  %2869 = vmatprep.subr.bf16.mxu0 0
  %2870 = vmatpush1.bf16.msra.mxu0 %v1844
  %2871 = vmatprep.subr.bf16.mxu0 0
  %2872 = vmatpush1.bf16.msra.mxu0 %v1847
  %2873 = vmatprep.subr.bf16.mxu0 0
  %2874 = vmatpush1.bf16.msra.mxu0 %v1850
  %2875 = vmatprep.subr.bf16.mxu0 0
  %2876 = vmatpush1.bf16.msra.mxu0 %v1853
  %2877 = vmatprep.subr.bf16.mxu0 0
  %2878 = vmatpush1.bf16.msra.mxu0 %v1856
  %2879 = vmatprep.subr.bf16.mxu0 0
  %2880 = vmatpush1.bf16.msra.mxu0 %v1859
  %2881 = vmatprep.subr.bf16.mxu0 0
  %2882 = vmatpush1.bf16.msra.mxu0 %v1862
  %2883 = vmatprep.subr.bf16.mxu0 0
  %2884 = vmatpush1.bf16.msra.mxu0 %v1865
  %2885 = vmatprep.subr.bf16.mxu0 0
  %2886 = vmatpush1.bf16.msra.mxu0 %v1868
  %2887 = vmatprep.subr.bf16.mxu0 0
  %2888 = vmatpush1.bf16.msra.mxu0 %v1871
  %2889 = vmatprep.subr.bf16.mxu0 0
  %2890 = vmatpush1.bf16.msra.mxu0 %v1874
  %2891 = vmatprep.subr.bf16.mxu0 0
  %2892 = vmatpush1.bf16.msra.mxu0 %v1877
  %2893 = vmatprep.subr.bf16.mxu0 0
  %2894 = vmatpush1.bf16.msra.mxu0 %v1880
  %2895 = vmatprep.subr.bf16.mxu0 0
  %2896 = vmatpush1.bf16.msra.mxu0 %v1883
  %2897 = vmatprep.mubr.bf16.mxu0 %v569
  %2898 = vmatmul.mubr.bf16.gmra.mrb[0].mxu0 %v568
  %v2899 = vpop.f32.mrb[0].mxu0
  %v2900 = vadd.f32 %v2852, %v2899
  %v2901 = vpop.f32.mrb[0].mxu0
  %v2902 = vpop.f32.mrb[0].mxu0
  %v2903 = vadd.f32 %v2855, %v2902
  %v2904 = vpop.f32.mrb[0].mxu0
  %2905 = vmatprep.mubr.bf16.mxu0 %v583
  %2906 = vmatmul.mubr.bf16.gmra.mrb[0].mxu0 %v582
  %v2907 = vpop.f32.mrb[0].mxu0
  %v2908 = vadd.f32 %v2860, %v2907
  %v2909 = vpop.f32.mrb[0].mxu0
  %v2910 = vpop.f32.mrb[0].mxu0
  %v2911 = vpop.f32.mrb[0].mxu0
  %2912 = vdwg.mxu0
  %2913 = vmatprep.subr.bf16.mxu0 0
  %2914 = vmatpush1.bf16.msra.mxu0 %v1886
  %2915 = vmatprep.subr.bf16.mxu0 0
  %2916 = vmatpush1.bf16.msra.mxu0 %v1889
  %2917 = vmatprep.subr.bf16.mxu0 0
  %2918 = vmatpush1.bf16.msra.mxu0 %v1892
  %2919 = vmatprep.subr.bf16.mxu0 0
  %2920 = vmatpush1.bf16.msra.mxu0 %v1895
  %2921 = vmatprep.subr.bf16.mxu0 0
  %2922 = vmatpush1.bf16.msra.mxu0 %v1898
  %2923 = vmatprep.subr.bf16.mxu0 0
  %2924 = vmatpush1.bf16.msra.mxu0 %v1901
  %2925 = vmatprep.subr.bf16.mxu0 0
  %2926 = vmatpush1.bf16.msra.mxu0 %v1904
  %2927 = vmatprep.subr.bf16.mxu0 0
  %2928 = vmatpush1.bf16.msra.mxu0 %v1907
  %2929 = vmatprep.subr.bf16.mxu0 0
  %2930 = vmatpush1.bf16.msra.mxu0 %v1910
  %2931 = vmatprep.subr.bf16.mxu0 0
  %2932 = vmatpush1.bf16.msra.mxu0 %v1913
  %2933 = vmatprep.subr.bf16.mxu0 0
  %2934 = vmatpush1.bf16.msra.mxu0 %v1916
  %2935 = vmatprep.subr.bf16.mxu0 0
  %2936 = vmatpush1.bf16.msra.mxu0 %v1919
  %2937 = vmatprep.subr.bf16.mxu0 0
  %2938 = vmatpush1.bf16.msra.mxu0 %v1922
  %2939 = vmatprep.subr.bf16.mxu0 0
  %2940 = vmatpush1.bf16.msra.mxu0 %v1925
  %2941 = vmatprep.subr.bf16.mxu0 0
  %2942 = vmatpush1.bf16.msra.mxu0 %v1928
  %2943 = vmatprep.subr.bf16.mxu0 0
  %2944 = vmatpush1.bf16.msra.mxu0 %v1931
  %2945 = vmatprep.mubr.bf16.mxu0 %v571
  %2946 = vmatmul.mubr.bf16.gmra.mrb[0].mxu0 %v570
  %v2947 = vpop.f32.mrb[0].mxu0
  %v2948 = vadd.f32 %v2900, %v2947
  %v2949 = vpop.f32.mrb[0].mxu0
  %v2950 = vpop.f32.mrb[0].mxu0
  %v2951 = vadd.f32 %v2903, %v2950
  %v2952 = vpop.f32.mrb[0].mxu0
  %2953 = vmatprep.mubr.bf16.mxu0 %v585
  %2954 = vmatmul.mubr.bf16.gmra.mrb[0].mxu0 %v584
  %v2955 = vpop.f32.mrb[0].mxu0
  %v2956 = vadd.f32 %v2908, %v2955
  %v2957 = vpop.f32.mrb[0].mxu0
  %v2958 = vpop.f32.mrb[0].mxu0
  %v2959 = vpop.f32.mrb[0].mxu0
  %2960 = vdwg.mxu0
  %2961 = vmatprep.subr.bf16.mxu0 0
  %2962 = vmatpush1.bf16.msra.mxu0 %v1934
  %2963 = vmatprep.subr.bf16.mxu0 0
  %2964 = vmatpush1.bf16.msra.mxu0 %v1937
  %2965 = vmatprep.subr.bf16.mxu0 0
  %2966 = vmatpush1.bf16.msra.mxu0 %v1940
  %2967 = vmatprep.subr.bf16.mxu0 0
  %2968 = vmatpush1.bf16.msra.mxu0 %v1943
  %2969 = vmatprep.subr.bf16.mxu0 0
  %2970 = vmatpush1.bf16.msra.mxu0 %v1946
  %2971 = vmatprep.subr.bf16.mxu0 0
  %2972 = vmatpush1.bf16.msra.mxu0 %v1949
  %2973 = vmatprep.subr.bf16.mxu0 0
  %2974 = vmatpush1.bf16.msra.mxu0 %v1952
  %2975 = vmatprep.subr.bf16.mxu0 0
  %2976 = vmatpush1.bf16.msra.mxu0 %v1955
  %2977 = vmatprep.subr.bf16.mxu0 0
  %2978 = vmatpush1.bf16.msra.mxu0 %v1958
  %2979 = vmatprep.subr.bf16.mxu0 0
  %2980 = vmatpush1.bf16.msra.mxu0 %v1961
  %2981 = vmatprep.subr.bf16.mxu0 0
  %2982 = vmatpush1.bf16.msra.mxu0 %v1964
  %2983 = vmatprep.subr.bf16.mxu0 0
  %2984 = vmatpush1.bf16.msra.mxu0 %v1967
  %2985 = vmatprep.subr.bf16.mxu0 0
  %2986 = vmatpush1.bf16.msra.mxu0 %v1970
  %2987 = vmatprep.subr.bf16.mxu0 0
  %2988 = vmatpush1.bf16.msra.mxu0 %v1973
  %2989 = vmatprep.subr.bf16.mxu0 0
  %2990 = vmatpush1.bf16.msra.mxu0 %v1976
  %2991 = vmatprep.subr.bf16.mxu0 0
  %2992 = vmatpush1.bf16.msra.mxu0 %v1979
  %2993 = vmatprep.mubr.bf16.mxu0 %v573
  %2994 = vmatmul.mubr.bf16.gmra.mrb[0].mxu0 %v572
  %v2995 = vpop.f32.mrb[0].mxu0
  %v2996 = vadd.f32 %v2948, %v2995
  %v2997 = vpop.f32.mrb[0].mxu0
  %v2998 = vpop.f32.mrb[0].mxu0
  %v2999 = vadd.f32 %v2951, %v2998
  %v3000 = vpop.f32.mrb[0].mxu0
  %3001 = vmatprep.mubr.bf16.mxu0 %v587
  %3002 = vmatmul.mubr.bf16.gmra.mrb[0].mxu0 %v586
  %v3003 = vpop.f32.mrb[0].mxu0
  %v3004 = vadd.f32 %v2956, %v3003
  %v3005 = vpop.f32.mrb[0].mxu0
  %v3006 = vpop.f32.mrb[0].mxu0
  %v3007 = vpop.f32.mrb[0].mxu0
  %3008 = vdwg.mxu0
  %3009 = vmatprep.subr.bf16.mxu0 0
  %3010 = vmatpush1.bf16.msra.mxu0 %v1982
  %3011 = vmatprep.subr.bf16.mxu0 0
  %3012 = vmatpush1.bf16.msra.mxu0 %v1985
  %3013 = vmatprep.subr.bf16.mxu0 0
  %3014 = vmatpush1.bf16.msra.mxu0 %v1988
  %3015 = vmatprep.subr.bf16.mxu0 0
  %3016 = vmatpush1.bf16.msra.mxu0 %v1991
  %3017 = vmatprep.subr.bf16.mxu0 0
  %3018 = vmatpush1.bf16.msra.mxu0 %v1994
  %3019 = vmatprep.subr.bf16.mxu0 0
  %3020 = vmatpush1.bf16.msra.mxu0 %v1997
  %3021 = vmatprep.subr.bf16.mxu0 0
  %3022 = vmatpush1.bf16.msra.mxu0 %v2000
  %3023 = vmatprep.subr.bf16.mxu0 0
  %3024 = vmatpush1.bf16.msra.mxu0 %v2003
  %3025 = vmatprep.subr.bf16.mxu0 0
  %3026 = vmatpush1.bf16.msra.mxu0 %v2006
  %3027 = vmatprep.subr.bf16.mxu0 0
  %3028 = vmatpush1.bf16.msra.mxu0 %v2009
  %3029 = vmatprep.subr.bf16.mxu0 0
  %3030 = vmatpush1.bf16.msra.mxu0 %v2012
  %3031 = vmatprep.subr.bf16.mxu0 0
  %3032 = vmatpush1.bf16.msra.mxu0 %v2015
  %3033 = vmatprep.subr.bf16.mxu0 0
  %3034 = vmatpush1.bf16.msra.mxu0 %v2018
  %3035 = vmatprep.subr.bf16.mxu0 0
  %3036 = vmatpush1.bf16.msra.mxu0 %v2021
  %3037 = vmatprep.subr.bf16.mxu0 0
  %3038 = vmatpush1.bf16.msra.mxu0 %v2024
  %3039 = vmatprep.subr.bf16.mxu0 0
  %3040 = vmatpush1.bf16.msra.mxu0 %v2027
  %3041 = vmatprep.mubr.bf16.mxu0 %v575
  %3042 = vmatmul.mubr.bf16.gmra.mrb[0].mxu0 %v574
  %v3043 = vpop.f32.mrb[0].mxu0
  %v3044 = vadd.f32 %v2996, %v3043
  %v3045 = vpop.f32.mrb[0].mxu0
  %v3046 = vpop.f32.mrb[0].mxu0
  %v3047 = vadd.f32 %v2999, %v3046
  %v3048 = vpop.f32.mrb[0].mxu0
  %3049 = vmatprep.mubr.bf16.mxu0 %v589
  %3050 = vmatmul.mubr.bf16.gmra.mrb[0].mxu0 %v588
  %v3051 = vpop.f32.mrb[0].mxu0
  %v3052 = vadd.f32 %v3004, %v3051
  %v3053 = vpop.f32.mrb[0].mxu0
  %v3054 = vpop.f32.mrb[0].mxu0
  %v3055 = vpop.f32.mrb[0].mxu0
  %3056 = vdwg.mxu0
  %3057 = vmatprep.subr.bf16.mxu0 0
  %3058 = vmatpush1.bf16.msra.mxu0 %v2030
  %3059 = vmatprep.subr.bf16.mxu0 0
  %3060 = vmatpush1.bf16.msra.mxu0 %v2033
  %3061 = vmatprep.subr.bf16.mxu0 0
  %3062 = vmatpush1.bf16.msra.mxu0 %v2036
  %3063 = vmatprep.subr.bf16.mxu0 0
  %3064 = vmatpush1.bf16.msra.mxu0 %v2039
  %3065 = vmatprep.subr.bf16.mxu0 0
  %3066 = vmatpush1.bf16.msra.mxu0 %v2042
  %3067 = vmatprep.subr.bf16.mxu0 0
  %3068 = vmatpush1.bf16.msra.mxu0 %v2045
  %3069 = vmatprep.subr.bf16.mxu0 0
  %3070 = vmatpush1.bf16.msra.mxu0 %v2048
  %3071 = vmatprep.subr.bf16.mxu0 0
  %3072 = vmatpush1.bf16.msra.mxu0 %v2051
  %3073 = vmatprep.subr.bf16.mxu0 0
  %3074 = vmatpush1.bf16.msra.mxu0 %v2054
  %3075 = vmatprep.subr.bf16.mxu0 0
  %3076 = vmatpush1.bf16.msra.mxu0 %v2057
  %3077 = vmatprep.subr.bf16.mxu0 0
  %3078 = vmatpush1.bf16.msra.mxu0 %v2060
  %3079 = vmatprep.subr.bf16.mxu0 0
  %3080 = vmatpush1.bf16.msra.mxu0 %v2063
  %3081 = vmatprep.subr.bf16.mxu0 0
  %3082 = vmatpush1.bf16.msra.mxu0 %v2066
  %3083 = vmatprep.subr.bf16.mxu0 0
  %3084 = vmatpush1.bf16.msra.mxu0 %v2069
  %3085 = vmatprep.subr.bf16.mxu0 0
  %3086 = vmatpush1.bf16.msra.mxu0 %v2072
  %3087 = vmatprep.subr.bf16.mxu0 0
  %3088 = vmatpush1.bf16.msra.mxu0 %v2075
  %3089 = vmatprep.mubr.bf16.mxu0 %v577
  %3090 = vmatmul.mubr.bf16.gmra.mrb[0].mxu0 %v576
  %v3091 = vpop.f32.mrb[0].mxu0
  %v3092 = vadd.f32 %v3044, %v3091
  %v3093 = vpop.f32.mrb[0].mxu0
  %v3094 = vpop.f32.mrb[0].mxu0
  %v3095 = vadd.f32 %v3047, %v3094
  %v3096 = vpop.f32.mrb[0].mxu0
  %3097 = vmatprep.mubr.bf16.mxu0 %v591
  %3098 = vmatmul.mubr.bf16.gmra.mrb[0].mxu0 %v590
  %v3099 = vpop.f32.mrb[0].mxu0
  %v3100 = vadd.f32 %v3052, %v3099
  %v3101 = vpop.f32.mrb[0].mxu0
  %v3102 = vpop.f32.mrb[0].mxu0
  %v3103 = vpop.f32.mrb[0].mxu0
  %3104 = vdwg.mxu0
  %vm3105 = vcmp.ge.f32.partialorder %v2753, 0.0
  %vm3106 = vcmp.ge.f32.partialorder %v2755, 0.0
  %vm3107 = vcmp.ge.f32.partialorder %v3092, 0.0
  %vm3108 = vcmp.ge.f32.partialorder %v2757, 0.0
  %vm3109 = vcmp.ge.f32.partialorder %v2759, 0.0
  %vm3110 = vcmp.ge.f32.partialorder %v3095, 0.0
  %vm3111 = vcmp.ge.f32.partialorder %v2763, 0.0
  %vm3112 = vcmp.ge.f32.partialorder %v2765, 0.0
  %vm3113 = vcmp.ge.f32.partialorder %v3100, 0.0
  %v3114 = vmul.f32 %v2753, 0.01
  %v3115 = vmul.f32 %v2755, 0.01
  %v3116 = vmul.f32 %v3092, 0.01
  %v3117 = vmul.f32 %v2757, 0.01
  %v3118 = vmul.f32 %v2759, 0.01
  %v3119 = vmul.f32 %v3095, 0.01
  %v3120 = vmul.f32 %v2763, 0.01
  %v3121 = vmul.f32 %v2765, 0.01
  %v3122 = vmul.f32 %v3100, 0.01
  %v3123 = vsel %vm3105, %v2753, %v3114
  %v3124 = vsel %vm3106, %v2755, %v3115
  %v3125 = vsel %vm3107, %v3092, %v3116
  %v3126 = vsel %vm3108, %v2757, %v3117
  %v3127 = vsel %vm3109, %v2759, %v3118
  %v3128 = vsel %vm3110, %v3095, %v3119
  %v3129 = vsel %vm3111, %v2763, %v3120
  %v3130 = vsel %vm3112, %v2765, %v3121
  %v3131 = vsel %vm3113, %v3100, %v3122
  %v3132 = vpack.c.bf16 %v3126, %v3123
  %v3133 = vpack.c.bf16 %v3127, %v3124
  %v3134 = vpack.c.bf16 %v3128, %v3125
  %v3135 = vpack.c.bf16 %v3129, %v3129
  %v3136 = vpack.c.bf16 %v3130, %v3130
  %v3137 = vpack.c.bf16 %v3131, %v3131
  %v3144 = vunpack.c.l.b16 %v3132
  %v3145 = vunpack.c.l.b16 %v3133
  %v3146 = vunpack.c.l.b16 %v3134
  %v3147 = vunpack.c.h.b16 %v3132
  %v3148 = vunpack.c.h.b16 %v3133
  %v3149 = vunpack.c.h.b16 %v3134
  %v3150 = vunpack.c.l.b16 %v3135
  %v3151 = vunpack.c.l.b16 %v3136
  %v3152 = vunpack.c.l.b16 %v3137
  %v3153 = vpack.c.b16 %v3145, %v3144
  %v3154 = vpack.c.b16 %v3146, %v3146
  %v3155 = vpack.c.b16 %v3148, %v3147
  %v3156 = vpack.c.b16 %v3149, %v3149
  %v3157 = vpack.c.b16 %v3151, %v3150
  %v3158 = vpack.c.b16 %v3152, %v3152
  %3165 = vst [vmem:[%s3] sm:$0xff] %v3153
  %3166 = vst [vmem:[%s3 + $0x8] sm:$0xf] %v3154
  %3167 = vst [vmem:[%s3 + $0xc] sm:$0xff] %v3155
  %3168 = vst [vmem:[%s3 + $0x14] sm:$0xf] %v3156
  %3169 = vst [vmem:[%s3 + $0x18] sm:$0x11] %v3157
  %3170 = vst [vmem:[%s3 + $0x20] sm:$0x1] %v3158
  // Predicated region
  $region14: #{discriminator_forward.8} parent=0 // pred_check
    _
  $region15: #{discriminator_forward.8} parent=0 // pred_check_branch
    %3172 = sbr.rel (0) target = $region17
  $region16: #{discriminator_forward.8} parent=0 // pred_region
    _
  $region17: #{discriminator_forward.8} parent=0 // pred_fallthru
    _
  // Predicated region
  $region18: #{discriminator_forward.8} parent=0 // pred_check
    _
  $region19: #{discriminator_forward.8} parent=0 // pred_check_branch
    %3174 = sbr.rel (0) target = $region21
  $region20: #{discriminator_forward.8} parent=0 // pred_region
    _
  $region21: #{discriminator_forward.8} parent=0 // pred_fallthru
    _

// kernel: discriminator_forward.9
$region0: #{discriminator_forward.9}
  #allocation0 [shape = 'u32[]', space=smem, size = 0x4, offset = 0x4, fixed_abs, tag = 'smem constant byte address 0x4 - core index']
  #allocation1 [shape = 'u32[144,128]{1,0:T(1,128)}', space=vmem, size = 0x12000, scoped, tag = 'internal scratch']
  %s0 = inlined_call_operand.vmem [shape: bf16[18,3456], index: 0, kind: input, shape index: {}]
  %s1 = inlined_call_operand.vmem [shape: bf16[3456,256], index: 1, kind: input, shape index: {}]
  %s2 = inlined_call_operand.vmem [shape: f32[1,256], index: 2, kind: input, shape index: {}]
  %s3 = inlined_call_operand.vmem [shape: bf16[18,256], index: 3, kind: output, shape index: {}]
  %s4 = sld [smem:[#allocation0]]
  $region22: #{discriminator_forward.9} parent=0
    _
  %s6 = ssub.s32 1, %s4
  %s7 = scalar_select 0, %s6, %s4
  // Predicated region
  $region2: #{discriminator_forward.9} parent=0 // pred_check
    _
  $region3: #{discriminator_forward.9} parent=0 // pred_check_branch
    %9 = sbr.rel (0) target = $region5
  $region4: #{discriminator_forward.9} parent=0 // pred_region
    _
  $region5: #{discriminator_forward.9} parent=0 // pred_fallthru
    _
  // Predicated region
  $region6: #{discriminator_forward.9} parent=0 // pred_check
    _
  $region7: #{discriminator_forward.9} parent=0 // pred_check_branch
    %11 = sbr.rel (0) target = $region9
  $region8: #{discriminator_forward.9} parent=0 // pred_region
    _
  $region9: #{discriminator_forward.9} parent=0 // pred_fallthru
    _
  // Predicated region
  $region10: #{discriminator_forward.9} parent=0 // pred_check
    _
  $region11: #{discriminator_forward.9} parent=0 // pred_check_branch
    %13 = sbr.rel (0) target = $region13
  $region12: #{discriminator_forward.9} parent=0 // pred_region
    _
  $region13: #{discriminator_forward.9} parent=0 // pred_fallthru
    _
  %v15 = vld [vmem:[%s0] sm:$0xff]
  %v16 = vld [vmem:[%s0 + $0x8] sm:$0xff]
  %v17 = vld [vmem:[%s0 + $0x10] sm:$0xff]
  %v18 = vld [vmem:[%s0 + $0x18] sm:$0xff]
  %v19 = vld [vmem:[%s0 + $0x20] sm:$0xff]
  %v20 = vld [vmem:[%s0 + $0x28] sm:$0xff]
  %v21 = vld [vmem:[%s0 + $0x30] sm:$0xff]
  %v22 = vld [vmem:[%s0 + $0x38] sm:$0xff]
  %v23 = vld [vmem:[%s0 + $0x40] sm:$0xff]
  %v24 = vld [vmem:[%s0 + $0x48] sm:$0xff]
  %v25 = vld [vmem:[%s0 + $0x50] sm:$0xff]
  %v26 = vld [vmem:[%s0 + $0x58] sm:$0xff]
  %v27 = vld [vmem:[%s0 + $0x60] sm:$0xff]
  %v28 = vld [vmem:[%s0 + $0x68] sm:$0xf]
  %v29 = vld [vmem:[%s0 + $0x6c] sm:$0xff]
  %v30 = vld [vmem:[%s0 + $0x74] sm:$0xff]
  %v31 = vld [vmem:[%s0 + $0x7c] sm:$0xff]
  %v32 = vld [vmem:[%s0 + $0x84] sm:$0xff]
  %v33 = vld [vmem:[%s0 + $0x8c] sm:$0xff]
  %v34 = vld [vmem:[%s0 + $0x94] sm:$0xff]
  %v35 = vld [vmem:[%s0 + $0x9c] sm:$0xff]
  %v36 = vld [vmem:[%s0 + $0xa4] sm:$0xff]
  %v37 = vld [vmem:[%s0 + $0xac] sm:$0xff]
  %v38 = vld [vmem:[%s0 + $0xb4] sm:$0xff]
  %v39 = vld [vmem:[%s0 + $0xbc] sm:$0xff]
  %v40 = vld [vmem:[%s0 + $0xc4] sm:$0xff]
  %v41 = vld [vmem:[%s0 + $0xcc] sm:$0xff]
  %v42 = vld [vmem:[%s0 + $0xd4] sm:$0xf]
  %v43 = vld [vmem:[%s0 + $0xd8] sm:$0x11]
  %v44 = vld [vmem:[%s0 + $0xe0] sm:$0x11]
  %v45 = vld [vmem:[%s0 + $0xe8] sm:$0x11]
  %v46 = vld [vmem:[%s0 + $0xf0] sm:$0x11]
  %v47 = vld [vmem:[%s0 + $0xf8] sm:$0x11]
  %v48 = vld [vmem:[%s0 + $0x100] sm:$0x11]
  %v49 = vld [vmem:[%s0 + $0x108] sm:$0x11]
  %v50 = vld [vmem:[%s0 + $0x110] sm:$0x11]
  %v51 = vld [vmem:[%s0 + $0x118] sm:$0x11]
  %v52 = vld [vmem:[%s0 + $0x120] sm:$0x11]
  %v53 = vld [vmem:[%s0 + $0x128] sm:$0x11]
  %v54 = vld [vmem:[%s0 + $0x130] sm:$0x11]
  %v55 = vld [vmem:[%s0 + $0x138] sm:$0x11]
  %v56 = vld [vmem:[%s0 + $0x140] sm:$0x1]
  %v57 = vld [vmem:[%s1] sm:$0xff]
  %v58 = vld [vmem:[%s1 + $0x8] sm:$0xff]
  %v59 = vld [vmem:[%s1 + $0x10] sm:$0xff]
  %v60 = vld [vmem:[%s1 + $0x18] sm:$0xff]
  %v61 = vld [vmem:[%s1 + $0x20] sm:$0xff]
  %v62 = vld [vmem:[%s1 + $0x28] sm:$0xff]
  %v63 = vld [vmem:[%s1 + $0x30] sm:$0xff]
  %v64 = vld [vmem:[%s1 + $0x38] sm:$0xff]
  %v65 = vld [vmem:[%s1 + $0x40] sm:$0xff]
  %v66 = vld [vmem:[%s1 + $0x48] sm:$0xff]
  %v67 = vld [vmem:[%s1 + $0x50] sm:$0xff]
  %v68 = vld [vmem:[%s1 + $0x58] sm:$0xff]
  %v69 = vld [vmem:[%s1 + $0x60] sm:$0xff]
  %v70 = vld [vmem:[%s1 + $0x68] sm:$0xff]
  %v71 = vld [vmem:[%s1 + $0x70] sm:$0xff]
  %v72 = vld [vmem:[%s1 + $0x78] sm:$0xff]
  %v73 = vld [vmem:[%s1 + $0x80] sm:$0xff]
  %v74 = vld [vmem:[%s1 + $0x88] sm:$0xff]
  %v75 = vld [vmem:[%s1 + $0x90] sm:$0xff]
  %v76 = vld [vmem:[%s1 + $0x98] sm:$0xff]
  %v77 = vld [vmem:[%s1 + $0xa0] sm:$0xff]
  %v78 = vld [vmem:[%s1 + $0xa8] sm:$0xff]
  %v79 = vld [vmem:[%s1 + $0xb0] sm:$0xff]
  %v80 = vld [vmem:[%s1 + $0xb8] sm:$0xff]
  %v81 = vld [vmem:[%s1 + $0xc0] sm:$0xff]
  %v82 = vld [vmem:[%s1 + $0xc8] sm:$0xff]
  %v83 = vld [vmem:[%s1 + $0xd0] sm:$0xff]
  %v84 = vld [vmem:[%s1 + $0xd8] sm:$0xff]
  %v85 = vld [vmem:[%s1 + $0xe0] sm:$0xff]
  %v86 = vld [vmem:[%s1 + $0xe8] sm:$0xff]
  %v87 = vld [vmem:[%s1 + $0xf0] sm:$0xff]
  %v88 = vld [vmem:[%s1 + $0xf8] sm:$0xff]
  %v89 = vld [vmem:[%s1 + $0x100] sm:$0xff]
  %v90 = vld [vmem:[%s1 + $0x108] sm:$0xff]
  %v91 = vld [vmem:[%s1 + $0x110] sm:$0xff]
  %v92 = vld [vmem:[%s1 + $0x118] sm:$0xff]
  %v93 = vld [vmem:[%s1 + $0x120] sm:$0xff]
  %v94 = vld [vmem:[%s1 + $0x128] sm:$0xff]
  %v95 = vld [vmem:[%s1 + $0x130] sm:$0xff]
  %v96 = vld [vmem:[%s1 + $0x138] sm:$0xff]
  %v97 = vld [vmem:[%s1 + $0x140] sm:$0xff]
  %v98 = vld [vmem:[%s1 + $0x148] sm:$0xff]
  %v99 = vld [vmem:[%s1 + $0x150] sm:$0xff]
  %v100 = vld [vmem:[%s1 + $0x158] sm:$0xff]
  %v101 = vld [vmem:[%s1 + $0x160] sm:$0xff]
  %v102 = vld [vmem:[%s1 + $0x168] sm:$0xff]
  %v103 = vld [vmem:[%s1 + $0x170] sm:$0xff]
  %v104 = vld [vmem:[%s1 + $0x178] sm:$0xff]
  %v105 = vld [vmem:[%s1 + $0x180] sm:$0xff]
  %v106 = vld [vmem:[%s1 + $0x188] sm:$0xff]
  %v107 = vld [vmem:[%s1 + $0x190] sm:$0xff]
  %v108 = vld [vmem:[%s1 + $0x198] sm:$0xff]
  %v109 = vld [vmem:[%s1 + $0x1a0] sm:$0xff]
  %v110 = vld [vmem:[%s1 + $0x1a8] sm:$0xff]
  %v111 = vld [vmem:[%s1 + $0x1b0] sm:$0xff]
  %v112 = vld [vmem:[%s1 + $0x1b8] sm:$0xff]
  %v113 = vld [vmem:[%s1 + $0x1c0] sm:$0xff]
  %v114 = vld [vmem:[%s1 + $0x1c8] sm:$0xff]
  %v115 = vld [vmem:[%s1 + $0x1d0] sm:$0xff]
  %v116 = vld [vmem:[%s1 + $0x1d8] sm:$0xff]
  %v117 = vld [vmem:[%s1 + $0x1e0] sm:$0xff]
  %v118 = vld [vmem:[%s1 + $0x1e8] sm:$0xff]
  %v119 = vld [vmem:[%s1 + $0x1f0] sm:$0xff]
  %v120 = vld [vmem:[%s1 + $0x1f8] sm:$0xff]
  %v121 = vld [vmem:[%s1 + $0x200] sm:$0xff]
  %v122 = vld [vmem:[%s1 + $0x208] sm:$0xff]
  %v123 = vld [vmem:[%s1 + $0x210] sm:$0xff]
  %v124 = vld [vmem:[%s1 + $0x218] sm:$0xff]
  %v125 = vld [vmem:[%s1 + $0x220] sm:$0xff]
  %v126 = vld [vmem:[%s1 + $0x228] sm:$0xff]
  %v127 = vld [vmem:[%s1 + $0x230] sm:$0xff]
  %v128 = vld [vmem:[%s1 + $0x238] sm:$0xff]
  %v129 = vld [vmem:[%s1 + $0x240] sm:$0xff]
  %v130 = vld [vmem:[%s1 + $0x248] sm:$0xff]
  %v131 = vld [vmem:[%s1 + $0x250] sm:$0xff]
  %v132 = vld [vmem:[%s1 + $0x258] sm:$0xff]
  %v133 = vld [vmem:[%s1 + $0x260] sm:$0xff]
  %v134 = vld [vmem:[%s1 + $0x268] sm:$0xff]
  %v135 = vld [vmem:[%s1 + $0x270] sm:$0xff]
  %v136 = vld [vmem:[%s1 + $0x278] sm:$0xff]
  %v137 = vld [vmem:[%s1 + $0x280] sm:$0xff]
  %v138 = vld [vmem:[%s1 + $0x288] sm:$0xff]
  %v139 = vld [vmem:[%s1 + $0x290] sm:$0xff]
  %v140 = vld [vmem:[%s1 + $0x298] sm:$0xff]
  %v141 = vld [vmem:[%s1 + $0x2a0] sm:$0xff]
  %v142 = vld [vmem:[%s1 + $0x2a8] sm:$0xff]
  %v143 = vld [vmem:[%s1 + $0x2b0] sm:$0xff]
  %v144 = vld [vmem:[%s1 + $0x2b8] sm:$0xff]
  %v145 = vld [vmem:[%s1 + $0x2c0] sm:$0xff]
  %v146 = vld [vmem:[%s1 + $0x2c8] sm:$0xff]
  %v147 = vld [vmem:[%s1 + $0x2d0] sm:$0xff]
  %v148 = vld [vmem:[%s1 + $0x2d8] sm:$0xff]
  %v149 = vld [vmem:[%s1 + $0x2e0] sm:$0xff]
  %v150 = vld [vmem:[%s1 + $0x2e8] sm:$0xff]
  %v151 = vld [vmem:[%s1 + $0x2f0] sm:$0xff]
  %v152 = vld [vmem:[%s1 + $0x2f8] sm:$0xff]
  %v153 = vld [vmem:[%s1 + $0x300] sm:$0xff]
  %v154 = vld [vmem:[%s1 + $0x308] sm:$0xff]
  %v155 = vld [vmem:[%s1 + $0x310] sm:$0xff]
  %v156 = vld [vmem:[%s1 + $0x318] sm:$0xff]
  %v157 = vld [vmem:[%s1 + $0x320] sm:$0xff]
  %v158 = vld [vmem:[%s1 + $0x328] sm:$0xff]
  %v159 = vld [vmem:[%s1 + $0x330] sm:$0xff]
  %v160 = vld [vmem:[%s1 + $0x338] sm:$0xff]
  %v161 = vld [vmem:[%s1 + $0x340] sm:$0xff]
  %v162 = vld [vmem:[%s1 + $0x348] sm:$0xff]
  %v163 = vld [vmem:[%s1 + $0x350] sm:$0xff]
  %v164 = vld [vmem:[%s1 + $0x358] sm:$0xff]
  %v165 = vld [vmem:[%s1 + $0x360] sm:$0xff]
  %v166 = vld [vmem:[%s1 + $0x368] sm:$0xff]
  %v167 = vld [vmem:[%s1 + $0x370] sm:$0xff]
  %v168 = vld [vmem:[%s1 + $0x378] sm:$0xff]
  %v169 = vld [vmem:[%s1 + $0x380] sm:$0xff]
  %v170 = vld [vmem:[%s1 + $0x388] sm:$0xff]
  %v171 = vld [vmem:[%s1 + $0x390] sm:$0xff]
  %v172 = vld [vmem:[%s1 + $0x398] sm:$0xff]
  %v173 = vld [vmem:[%s1 + $0x3a0] sm:$0xff]
  %v174 = vld [vmem:[%s1 + $0x3a8] sm:$0xff]
  %v175 = vld [vmem:[%s1 + $0x3b0] sm:$0xff]
  %v176 = vld [vmem:[%s1 + $0x3b8] sm:$0xff]
  %v177 = vld [vmem:[%s1 + $0x3c0] sm:$0xff]
  %v178 = vld [vmem:[%s1 + $0x3c8] sm:$0xff]
  %v179 = vld [vmem:[%s1 + $0x3d0] sm:$0xff]
  %v180 = vld [vmem:[%s1 + $0x3d8] sm:$0xff]
  %v181 = vld [vmem:[%s1 + $0x3e0] sm:$0xff]
  %v182 = vld [vmem:[%s1 + $0x3e8] sm:$0xff]
  %v183 = vld [vmem:[%s1 + $0x3f0] sm:$0xff]
  %v184 = vld [vmem:[%s1 + $0x3f8] sm:$0xff]
  %v185 = vld [vmem:[%s1 + $0x400] sm:$0xff]
  %v186 = vld [vmem:[%s1 + $0x408] sm:$0xff]
  %v187 = vld [vmem:[%s1 + $0x410] sm:$0xff]
  %v188 = vld [vmem:[%s1 + $0x418] sm:$0xff]
  %v189 = vld [vmem:[%s1 + $0x420] sm:$0xff]
  %v190 = vld [vmem:[%s1 + $0x428] sm:$0xff]
  %v191 = vld [vmem:[%s1 + $0x430] sm:$0xff]
  %v192 = vld [vmem:[%s1 + $0x438] sm:$0xff]
  %v193 = vld [vmem:[%s1 + $0x440] sm:$0xff]
  %v194 = vld [vmem:[%s1 + $0x448] sm:$0xff]
  %v195 = vld [vmem:[%s1 + $0x450] sm:$0xff]
  %v196 = vld [vmem:[%s1 + $0x458] sm:$0xff]
  %v197 = vld [vmem:[%s1 + $0x460] sm:$0xff]
  %v198 = vld [vmem:[%s1 + $0x468] sm:$0xff]
  %v199 = vld [vmem:[%s1 + $0x470] sm:$0xff]
  %v200 = vld [vmem:[%s1 + $0x478] sm:$0xff]
  %v201 = vld [vmem:[%s1 + $0x480] sm:$0xff]
  %v202 = vld [vmem:[%s1 + $0x488] sm:$0xff]
  %v203 = vld [vmem:[%s1 + $0x490] sm:$0xff]
  %v204 = vld [vmem:[%s1 + $0x498] sm:$0xff]
  %v205 = vld [vmem:[%s1 + $0x4a0] sm:$0xff]
  %v206 = vld [vmem:[%s1 + $0x4a8] sm:$0xff]
  %v207 = vld [vmem:[%s1 + $0x4b0] sm:$0xff]
  %v208 = vld [vmem:[%s1 + $0x4b8] sm:$0xff]
  %v209 = vld [vmem:[%s1 + $0x4c0] sm:$0xff]
  %v210 = vld [vmem:[%s1 + $0x4c8] sm:$0xff]
  %v211 = vld [vmem:[%s1 + $0x4d0] sm:$0xff]
  %v212 = vld [vmem:[%s1 + $0x4d8] sm:$0xff]
  %v213 = vld [vmem:[%s1 + $0x4e0] sm:$0xff]
  %v214 = vld [vmem:[%s1 + $0x4e8] sm:$0xff]
  %v215 = vld [vmem:[%s1 + $0x4f0] sm:$0xff]
  %v216 = vld [vmem:[%s1 + $0x4f8] sm:$0xff]
  %v217 = vld [vmem:[%s1 + $0x500] sm:$0xff]
  %v218 = vld [vmem:[%s1 + $0x508] sm:$0xff]
  %v219 = vld [vmem:[%s1 + $0x510] sm:$0xff]
  %v220 = vld [vmem:[%s1 + $0x518] sm:$0xff]
  %v221 = vld [vmem:[%s1 + $0x520] sm:$0xff]
  %v222 = vld [vmem:[%s1 + $0x528] sm:$0xff]
  %v223 = vld [vmem:[%s1 + $0x530] sm:$0xff]
  %v224 = vld [vmem:[%s1 + $0x538] sm:$0xff]
  %v225 = vld [vmem:[%s1 + $0x540] sm:$0xff]
  %v226 = vld [vmem:[%s1 + $0x548] sm:$0xff]
  %v227 = vld [vmem:[%s1 + $0x550] sm:$0xff]
  %v228 = vld [vmem:[%s1 + $0x558] sm:$0xff]
  %v229 = vld [vmem:[%s1 + $0x560] sm:$0xff]
  %v230 = vld [vmem:[%s1 + $0x568] sm:$0xff]
  %v231 = vld [vmem:[%s1 + $0x570] sm:$0xff]
  %v232 = vld [vmem:[%s1 + $0x578] sm:$0xff]
  %v233 = vld [vmem:[%s1 + $0x580] sm:$0xff]
  %v234 = vld [vmem:[%s1 + $0x588] sm:$0xff]
  %v235 = vld [vmem:[%s1 + $0x590] sm:$0xff]
  %v236 = vld [vmem:[%s1 + $0x598] sm:$0xff]
  %v237 = vld [vmem:[%s1 + $0x5a0] sm:$0xff]
  %v238 = vld [vmem:[%s1 + $0x5a8] sm:$0xff]
  %v239 = vld [vmem:[%s1 + $0x5b0] sm:$0xff]
  %v240 = vld [vmem:[%s1 + $0x5b8] sm:$0xff]
  %v241 = vld [vmem:[%s1 + $0x5c0] sm:$0xff]
  %v242 = vld [vmem:[%s1 + $0x5c8] sm:$0xff]
  %v243 = vld [vmem:[%s1 + $0x5d0] sm:$0xff]
  %v244 = vld [vmem:[%s1 + $0x5d8] sm:$0xff]
  %v245 = vld [vmem:[%s1 + $0x5e0] sm:$0xff]
  %v246 = vld [vmem:[%s1 + $0x5e8] sm:$0xff]
  %v247 = vld [vmem:[%s1 + $0x5f0] sm:$0xff]
  %v248 = vld [vmem:[%s1 + $0x5f8] sm:$0xff]
  %v249 = vld [vmem:[%s1 + $0x600] sm:$0xff]
  %v250 = vld [vmem:[%s1 + $0x608] sm:$0xff]
  %v251 = vld [vmem:[%s1 + $0x610] sm:$0xff]
  %v252 = vld [vmem:[%s1 + $0x618] sm:$0xff]
  %v253 = vld [vmem:[%s1 + $0x620] sm:$0xff]
  %v254 = vld [vmem:[%s1 + $0x628] sm:$0xff]
  %v255 = vld [vmem:[%s1 + $0x630] sm:$0xff]
  %v256 = vld [vmem:[%s1 + $0x638] sm:$0xff]
  %v257 = vld [vmem:[%s1 + $0x640] sm:$0xff]
  %v258 = vld [vmem:[%s1 + $0x648] sm:$0xff]
  %v259 = vld [vmem:[%s1 + $0x650] sm:$0xff]
  %v260 = vld [vmem:[%s1 + $0x658] sm:$0xff]
  %v261 = vld [vmem:[%s1 + $0x660] sm:$0xff]
  %v262 = vld [vmem:[%s1 + $0x668] sm:$0xff]
  %v263 = vld [vmem:[%s1 + $0x670] sm:$0xff]
  %v264 = vld [vmem:[%s1 + $0x678] sm:$0xff]
  %v265 = vld [vmem:[%s1 + $0x680] sm:$0xff]
  %v266 = vld [vmem:[%s1 + $0x688] sm:$0xff]
  %v267 = vld [vmem:[%s1 + $0x690] sm:$0xff]
  %v268 = vld [vmem:[%s1 + $0x698] sm:$0xff]
  %v269 = vld [vmem:[%s1 + $0x6a0] sm:$0xff]
  %v270 = vld [vmem:[%s1 + $0x6a8] sm:$0xff]
  %v271 = vld [vmem:[%s1 + $0x6b0] sm:$0xff]
  %v272 = vld [vmem:[%s1 + $0x6b8] sm:$0xff]
  %v273 = vld [vmem:[%s1 + $0x6c0] sm:$0xff]
  %v274 = vld [vmem:[%s1 + $0x6c8] sm:$0xff]
  %v275 = vld [vmem:[%s1 + $0x6d0] sm:$0xff]
  %v276 = vld [vmem:[%s1 + $0x6d8] sm:$0xff]
  %v277 = vld [vmem:[%s1 + $0x6e0] sm:$0xff]
  %v278 = vld [vmem:[%s1 + $0x6e8] sm:$0xff]
  %v279 = vld [vmem:[%s1 + $0x6f0] sm:$0xff]
  %v280 = vld [vmem:[%s1 + $0x6f8] sm:$0xff]
  %v281 = vld [vmem:[%s1 + $0x700] sm:$0xff]
  %v282 = vld [vmem:[%s1 + $0x708] sm:$0xff]
  %v283 = vld [vmem:[%s1 + $0x710] sm:$0xff]
  %v284 = vld [vmem:[%s1 + $0x718] sm:$0xff]
  %v285 = vld [vmem:[%s1 + $0x720] sm:$0xff]
  %v286 = vld [vmem:[%s1 + $0x728] sm:$0xff]
  %v287 = vld [vmem:[%s1 + $0x730] sm:$0xff]
  %v288 = vld [vmem:[%s1 + $0x738] sm:$0xff]
  %v289 = vld [vmem:[%s1 + $0x740] sm:$0xff]
  %v290 = vld [vmem:[%s1 + $0x748] sm:$0xff]
  %v291 = vld [vmem:[%s1 + $0x750] sm:$0xff]
  %v292 = vld [vmem:[%s1 + $0x758] sm:$0xff]
  %v293 = vld [vmem:[%s1 + $0x760] sm:$0xff]
  %v294 = vld [vmem:[%s1 + $0x768] sm:$0xff]
  %v295 = vld [vmem:[%s1 + $0x770] sm:$0xff]
  %v296 = vld [vmem:[%s1 + $0x778] sm:$0xff]
  %v297 = vld [vmem:[%s1 + $0x780] sm:$0xff]
  %v298 = vld [vmem:[%s1 + $0x788] sm:$0xff]
  %v299 = vld [vmem:[%s1 + $0x790] sm:$0xff]
  %v300 = vld [vmem:[%s1 + $0x798] sm:$0xff]
  %v301 = vld [vmem:[%s1 + $0x7a0] sm:$0xff]
  %v302 = vld [vmem:[%s1 + $0x7a8] sm:$0xff]
  %v303 = vld [vmem:[%s1 + $0x7b0] sm:$0xff]
  %v304 = vld [vmem:[%s1 + $0x7b8] sm:$0xff]
  %v305 = vld [vmem:[%s1 + $0x7c0] sm:$0xff]
  %v306 = vld [vmem:[%s1 + $0x7c8] sm:$0xff]
  %v307 = vld [vmem:[%s1 + $0x7d0] sm:$0xff]
  %v308 = vld [vmem:[%s1 + $0x7d8] sm:$0xff]
  %v309 = vld [vmem:[%s1 + $0x7e0] sm:$0xff]
  %v310 = vld [vmem:[%s1 + $0x7e8] sm:$0xff]
  %v311 = vld [vmem:[%s1 + $0x7f0] sm:$0xff]
  %v312 = vld [vmem:[%s1 + $0x7f8] sm:$0xff]
  %v313 = vld [vmem:[%s1 + $0x800] sm:$0xff]
  %v314 = vld [vmem:[%s1 + $0x808] sm:$0xff]
  %v315 = vld [vmem:[%s1 + $0x810] sm:$0xff]
  %v316 = vld [vmem:[%s1 + $0x818] sm:$0xff]
  %v317 = vld [vmem:[%s1 + $0x820] sm:$0xff]
  %v318 = vld [vmem:[%s1 + $0x828] sm:$0xff]
  %v319 = vld [vmem:[%s1 + $0x830] sm:$0xff]
  %v320 = vld [vmem:[%s1 + $0x838] sm:$0xff]
  %v321 = vld [vmem:[%s1 + $0x840] sm:$0xff]
  %v322 = vld [vmem:[%s1 + $0x848] sm:$0xff]
  %v323 = vld [vmem:[%s1 + $0x850] sm:$0xff]
  %v324 = vld [vmem:[%s1 + $0x858] sm:$0xff]
  %v325 = vld [vmem:[%s1 + $0x860] sm:$0xff]
  %v326 = vld [vmem:[%s1 + $0x868] sm:$0xff]
  %v327 = vld [vmem:[%s1 + $0x870] sm:$0xff]
  %v328 = vld [vmem:[%s1 + $0x878] sm:$0xff]
  %v329 = vld [vmem:[%s1 + $0x880] sm:$0xff]
  %v330 = vld [vmem:[%s1 + $0x888] sm:$0xff]
  %v331 = vld [vmem:[%s1 + $0x890] sm:$0xff]
  %v332 = vld [vmem:[%s1 + $0x898] sm:$0xff]
  %v333 = vld [vmem:[%s1 + $0x8a0] sm:$0xff]
  %v334 = vld [vmem:[%s1 + $0x8a8] sm:$0xff]
  %v335 = vld [vmem:[%s1 + $0x8b0] sm:$0xff]
  %v336 = vld [vmem:[%s1 + $0x8b8] sm:$0xff]
  %v337 = vld [vmem:[%s1 + $0x8c0] sm:$0xff]
  %v338 = vld [vmem:[%s1 + $0x8c8] sm:$0xff]
  %v339 = vld [vmem:[%s1 + $0x8d0] sm:$0xff]
  %v340 = vld [vmem:[%s1 + $0x8d8] sm:$0xff]
  %v341 = vld [vmem:[%s1 + $0x8e0] sm:$0xff]
  %v342 = vld [vmem:[%s1 + $0x8e8] sm:$0xff]
  %v343 = vld [vmem:[%s1 + $0x8f0] sm:$0xff]
  %v344 = vld [vmem:[%s1 + $0x8f8] sm:$0xff]
  %v345 = vld [vmem:[%s1 + $0x900] sm:$0xff]
  %v346 = vld [vmem:[%s1 + $0x908] sm:$0xff]
  %v347 = vld [vmem:[%s1 + $0x910] sm:$0xff]
  %v348 = vld [vmem:[%s1 + $0x918] sm:$0xff]
  %v349 = vld [vmem:[%s1 + $0x920] sm:$0xff]
  %v350 = vld [vmem:[%s1 + $0x928] sm:$0xff]
  %v351 = vld [vmem:[%s1 + $0x930] sm:$0xff]
  %v352 = vld [vmem:[%s1 + $0x938] sm:$0xff]
  %v353 = vld [vmem:[%s1 + $0x940] sm:$0xff]
  %v354 = vld [vmem:[%s1 + $0x948] sm:$0xff]
  %v355 = vld [vmem:[%s1 + $0x950] sm:$0xff]
  %v356 = vld [vmem:[%s1 + $0x958] sm:$0xff]
  %v357 = vld [vmem:[%s1 + $0x960] sm:$0xff]
  %v358 = vld [vmem:[%s1 + $0x968] sm:$0xff]
  %v359 = vld [vmem:[%s1 + $0x970] sm:$0xff]
  %v360 = vld [vmem:[%s1 + $0x978] sm:$0xff]
  %v361 = vld [vmem:[%s1 + $0x980] sm:$0xff]
  %v362 = vld [vmem:[%s1 + $0x988] sm:$0xff]
  %v363 = vld [vmem:[%s1 + $0x990] sm:$0xff]
  %v364 = vld [vmem:[%s1 + $0x998] sm:$0xff]
  %v365 = vld [vmem:[%s1 + $0x9a0] sm:$0xff]
  %v366 = vld [vmem:[%s1 + $0x9a8] sm:$0xff]
  %v367 = vld [vmem:[%s1 + $0x9b0] sm:$0xff]
  %v368 = vld [vmem:[%s1 + $0x9b8] sm:$0xff]
  %v369 = vld [vmem:[%s1 + $0x9c0] sm:$0xff]
  %v370 = vld [vmem:[%s1 + $0x9c8] sm:$0xff]
  %v371 = vld [vmem:[%s1 + $0x9d0] sm:$0xff]
  %v372 = vld [vmem:[%s1 + $0x9d8] sm:$0xff]
  %v373 = vld [vmem:[%s1 + $0x9e0] sm:$0xff]
  %v374 = vld [vmem:[%s1 + $0x9e8] sm:$0xff]
  %v375 = vld [vmem:[%s1 + $0x9f0] sm:$0xff]
  %v376 = vld [vmem:[%s1 + $0x9f8] sm:$0xff]
  %v377 = vld [vmem:[%s1 + $0xa00] sm:$0xff]
  %v378 = vld [vmem:[%s1 + $0xa08] sm:$0xff]
  %v379 = vld [vmem:[%s1 + $0xa10] sm:$0xff]
  %v380 = vld [vmem:[%s1 + $0xa18] sm:$0xff]
  %v381 = vld [vmem:[%s1 + $0xa20] sm:$0xff]
  %v382 = vld [vmem:[%s1 + $0xa28] sm:$0xff]
  %v383 = vld [vmem:[%s1 + $0xa30] sm:$0xff]
  %v384 = vld [vmem:[%s1 + $0xa38] sm:$0xff]
  %v385 = vld [vmem:[%s1 + $0xa40] sm:$0xff]
  %v386 = vld [vmem:[%s1 + $0xa48] sm:$0xff]
  %v387 = vld [vmem:[%s1 + $0xa50] sm:$0xff]
  %v388 = vld [vmem:[%s1 + $0xa58] sm:$0xff]
  %v389 = vld [vmem:[%s1 + $0xa60] sm:$0xff]
  %v390 = vld [vmem:[%s1 + $0xa68] sm:$0xff]
  %v391 = vld [vmem:[%s1 + $0xa70] sm:$0xff]
  %v392 = vld [vmem:[%s1 + $0xa78] sm:$0xff]
  %v393 = vld [vmem:[%s1 + $0xa80] sm:$0xff]
  %v394 = vld [vmem:[%s1 + $0xa88] sm:$0xff]
  %v395 = vld [vmem:[%s1 + $0xa90] sm:$0xff]
  %v396 = vld [vmem:[%s1 + $0xa98] sm:$0xff]
  %v397 = vld [vmem:[%s1 + $0xaa0] sm:$0xff]
  %v398 = vld [vmem:[%s1 + $0xaa8] sm:$0xff]
  %v399 = vld [vmem:[%s1 + $0xab0] sm:$0xff]
  %v400 = vld [vmem:[%s1 + $0xab8] sm:$0xff]
  %v401 = vld [vmem:[%s1 + $0xac0] sm:$0xff]
  %v402 = vld [vmem:[%s1 + $0xac8] sm:$0xff]
  %v403 = vld [vmem:[%s1 + $0xad0] sm:$0xff]
  %v404 = vld [vmem:[%s1 + $0xad8] sm:$0xff]
  %v405 = vld [vmem:[%s1 + $0xae0] sm:$0xff]
  %v406 = vld [vmem:[%s1 + $0xae8] sm:$0xff]
  %v407 = vld [vmem:[%s1 + $0xaf0] sm:$0xff]
  %v408 = vld [vmem:[%s1 + $0xaf8] sm:$0xff]
  %v409 = vld [vmem:[%s1 + $0xb00] sm:$0xff]
  %v410 = vld [vmem:[%s1 + $0xb08] sm:$0xff]
  %v411 = vld [vmem:[%s1 + $0xb10] sm:$0xff]
  %v412 = vld [vmem:[%s1 + $0xb18] sm:$0xff]
  %v413 = vld [vmem:[%s1 + $0xb20] sm:$0xff]
  %v414 = vld [vmem:[%s1 + $0xb28] sm:$0xff]
  %v415 = vld [vmem:[%s1 + $0xb30] sm:$0xff]
  %v416 = vld [vmem:[%s1 + $0xb38] sm:$0xff]
  %v417 = vld [vmem:[%s1 + $0xb40] sm:$0xff]
  %v418 = vld [vmem:[%s1 + $0xb48] sm:$0xff]
  %v419 = vld [vmem:[%s1 + $0xb50] sm:$0xff]
  %v420 = vld [vmem:[%s1 + $0xb58] sm:$0xff]
  %v421 = vld [vmem:[%s1 + $0xb60] sm:$0xff]
  %v422 = vld [vmem:[%s1 + $0xb68] sm:$0xff]
  %v423 = vld [vmem:[%s1 + $0xb70] sm:$0xff]
  %v424 = vld [vmem:[%s1 + $0xb78] sm:$0xff]
  %v425 = vld [vmem:[%s1 + $0xb80] sm:$0xff]
  %v426 = vld [vmem:[%s1 + $0xb88] sm:$0xff]
  %v427 = vld [vmem:[%s1 + $0xb90] sm:$0xff]
  %v428 = vld [vmem:[%s1 + $0xb98] sm:$0xff]
  %v429 = vld [vmem:[%s1 + $0xba0] sm:$0xff]
  %v430 = vld [vmem:[%s1 + $0xba8] sm:$0xff]
  %v431 = vld [vmem:[%s1 + $0xbb0] sm:$0xff]
  %v432 = vld [vmem:[%s1 + $0xbb8] sm:$0xff]
  %v433 = vld [vmem:[%s1 + $0xbc0] sm:$0xff]
  %v434 = vld [vmem:[%s1 + $0xbc8] sm:$0xff]
  %v435 = vld [vmem:[%s1 + $0xbd0] sm:$0xff]
  %v436 = vld [vmem:[%s1 + $0xbd8] sm:$0xff]
  %v437 = vld [vmem:[%s1 + $0xbe0] sm:$0xff]
  %v438 = vld [vmem:[%s1 + $0xbe8] sm:$0xff]
  %v439 = vld [vmem:[%s1 + $0xbf0] sm:$0xff]
  %v440 = vld [vmem:[%s1 + $0xbf8] sm:$0xff]
  %v441 = vld [vmem:[%s1 + $0xc00] sm:$0xff]
  %v442 = vld [vmem:[%s1 + $0xc08] sm:$0xff]
  %v443 = vld [vmem:[%s1 + $0xc10] sm:$0xff]
  %v444 = vld [vmem:[%s1 + $0xc18] sm:$0xff]
  %v445 = vld [vmem:[%s1 + $0xc20] sm:$0xff]
  %v446 = vld [vmem:[%s1 + $0xc28] sm:$0xff]
  %v447 = vld [vmem:[%s1 + $0xc30] sm:$0xff]
  %v448 = vld [vmem:[%s1 + $0xc38] sm:$0xff]
  %v449 = vld [vmem:[%s1 + $0xc40] sm:$0xff]
  %v450 = vld [vmem:[%s1 + $0xc48] sm:$0xff]
  %v451 = vld [vmem:[%s1 + $0xc50] sm:$0xff]
  %v452 = vld [vmem:[%s1 + $0xc58] sm:$0xff]
  %v453 = vld [vmem:[%s1 + $0xc60] sm:$0xff]
  %v454 = vld [vmem:[%s1 + $0xc68] sm:$0xff]
  %v455 = vld [vmem:[%s1 + $0xc70] sm:$0xff]
  %v456 = vld [vmem:[%s1 + $0xc78] sm:$0xff]
  %v457 = vld [vmem:[%s1 + $0xc80] sm:$0xff]
  %v458 = vld [vmem:[%s1 + $0xc88] sm:$0xff]
  %v459 = vld [vmem:[%s1 + $0xc90] sm:$0xff]
  %v460 = vld [vmem:[%s1 + $0xc98] sm:$0xff]
  %v461 = vld [vmem:[%s1 + $0xca0] sm:$0xff]
  %v462 = vld [vmem:[%s1 + $0xca8] sm:$0xff]
  %v463 = vld [vmem:[%s1 + $0xcb0] sm:$0xff]
  %v464 = vld [vmem:[%s1 + $0xcb8] sm:$0xff]
  %v465 = vld [vmem:[%s1 + $0xcc0] sm:$0xff]
  %v466 = vld [vmem:[%s1 + $0xcc8] sm:$0xff]
  %v467 = vld [vmem:[%s1 + $0xcd0] sm:$0xff]
  %v468 = vld [vmem:[%s1 + $0xcd8] sm:$0xff]
  %v469 = vld [vmem:[%s1 + $0xce0] sm:$0xff]
  %v470 = vld [vmem:[%s1 + $0xce8] sm:$0xff]
  %v471 = vld [vmem:[%s1 + $0xcf0] sm:$0xff]
  %v472 = vld [vmem:[%s1 + $0xcf8] sm:$0xff]
  %v473 = vld [vmem:[%s1 + $0xd00] sm:$0xff]
  %v474 = vld [vmem:[%s1 + $0xd08] sm:$0xff]
  %v475 = vld [vmem:[%s1 + $0xd10] sm:$0xff]
  %v476 = vld [vmem:[%s1 + $0xd18] sm:$0xff]
  %v477 = vld [vmem:[%s1 + $0xd20] sm:$0xff]
  %v478 = vld [vmem:[%s1 + $0xd28] sm:$0xff]
  %v479 = vld [vmem:[%s1 + $0xd30] sm:$0xff]
  %v480 = vld [vmem:[%s1 + $0xd38] sm:$0xff]
  %v481 = vld [vmem:[%s1 + $0xd40] sm:$0xff]
  %v482 = vld [vmem:[%s1 + $0xd48] sm:$0xff]
  %v483 = vld [vmem:[%s1 + $0xd50] sm:$0xff]
  %v484 = vld [vmem:[%s1 + $0xd58] sm:$0xff]
  %v485 = vld [vmem:[%s1 + $0xd60] sm:$0xff]
  %v486 = vld [vmem:[%s1 + $0xd68] sm:$0xff]
  %v487 = vld [vmem:[%s1 + $0xd70] sm:$0xff]
  %v488 = vld [vmem:[%s1 + $0xd78] sm:$0xff]
  %v489 = vld [vmem:[%s2] sm:$0x3]
  %v491 = vlaneseq
  %v492 = vshrl.u32 %v491, 7
  %v493 = vsub.s32 0, %v492
  %v494 = vrot.slane %v489, %v493
  %v495 = vlaneseq
  %v496 = vshrl.u32 %v495, 7
  %v497 = vsub.s32 1, %v496
  %v498 = vrot.slane %v489, %v497
  %v543 = vunpack.c.l.b16 %v15
  %v544 = vunpack.c.h.b16 %v15
  %v545 = vunpack.c.l.b16 %v16
  %v546 = vunpack.c.h.b16 %v16
  %v547 = vunpack.c.l.b16 %v17
  %v548 = vunpack.c.h.b16 %v17
  %v549 = vunpack.c.l.b16 %v18
  %v550 = vunpack.c.h.b16 %v18
  %v551 = vunpack.c.l.b16 %v19
  %v552 = vunpack.c.h.b16 %v19
  %v553 = vunpack.c.l.b16 %v20
  %v554 = vunpack.c.h.b16 %v20
  %v555 = vunpack.c.l.b16 %v21
  %v556 = vunpack.c.h.b16 %v21
  %v557 = vunpack.c.l.b16 %v22
  %v558 = vunpack.c.h.b16 %v22
  %v559 = vunpack.c.l.b16 %v23
  %v560 = vunpack.c.h.b16 %v23
  %v561 = vunpack.c.l.b16 %v24
  %v562 = vunpack.c.h.b16 %v24
  %v563 = vunpack.c.l.b16 %v25
  %v564 = vunpack.c.h.b16 %v25
  %v565 = vunpack.c.l.b16 %v26
  %v566 = vunpack.c.h.b16 %v26
  %v567 = vunpack.c.l.b16 %v27
  %v568 = vunpack.c.h.b16 %v27
  %v569 = vunpack.c.l.b16 %v28
  %v570 = vunpack.c.l.b16 %v29
  %v571 = vunpack.c.h.b16 %v29
  %v572 = vunpack.c.l.b16 %v30
  %v573 = vunpack.c.h.b16 %v30
  %v574 = vunpack.c.l.b16 %v31
  %v575 = vunpack.c.h.b16 %v31
  %v576 = vunpack.c.l.b16 %v32
  %v577 = vunpack.c.h.b16 %v32
  %v578 = vunpack.c.l.b16 %v33
  %v579 = vunpack.c.h.b16 %v33
  %v580 = vunpack.c.l.b16 %v34
  %v581 = vunpack.c.h.b16 %v34
  %v582 = vunpack.c.l.b16 %v35
  %v583 = vunpack.c.h.b16 %v35
  %v584 = vunpack.c.l.b16 %v36
  %v585 = vunpack.c.h.b16 %v36
  %v586 = vunpack.c.l.b16 %v37
  %v587 = vunpack.c.h.b16 %v37
  %v588 = vunpack.c.l.b16 %v38
  %v589 = vunpack.c.h.b16 %v38
  %v590 = vunpack.c.l.b16 %v39
  %v591 = vunpack.c.h.b16 %v39
  %v592 = vunpack.c.l.b16 %v40
  %v593 = vunpack.c.h.b16 %v40
  %v594 = vunpack.c.l.b16 %v41
  %v595 = vunpack.c.h.b16 %v41
  %v596 = vunpack.c.l.b16 %v42
  %v597 = vunpack.c.l.b16 %v43
  %v598 = vunpack.c.h.b16 %v43
  %v599 = vunpack.c.l.b16 %v44
  %v600 = vunpack.c.h.b16 %v44
  %v601 = vunpack.c.l.b16 %v45
  %v602 = vunpack.c.h.b16 %v45
  %v603 = vunpack.c.l.b16 %v46
  %v604 = vunpack.c.h.b16 %v46
  %v605 = vunpack.c.l.b16 %v47
  %v606 = vunpack.c.h.b16 %v47
  %v607 = vunpack.c.l.b16 %v48
  %v608 = vunpack.c.h.b16 %v48
  %v609 = vunpack.c.l.b16 %v49
  %v610 = vunpack.c.h.b16 %v49
  %v611 = vunpack.c.l.b16 %v50
  %v612 = vunpack.c.h.b16 %v50
  %v613 = vunpack.c.l.b16 %v51
  %v614 = vunpack.c.h.b16 %v51
  %v615 = vunpack.c.l.b16 %v52
  %v616 = vunpack.c.h.b16 %v52
  %v617 = vunpack.c.l.b16 %v53
  %v618 = vunpack.c.h.b16 %v53
  %v619 = vunpack.c.l.b16 %v54
  %v620 = vunpack.c.h.b16 %v54
  %v621 = vunpack.c.l.b16 %v55
  %v622 = vunpack.c.h.b16 %v55
  %v623 = vunpack.c.l.b16 %v56
  %v624 = vpack.c.b16 %v570, %v543
  %v625 = vpack.c.b16 %v571, %v544
  %v626 = vpack.c.b16 %v572, %v545
  %v627 = vpack.c.b16 %v573, %v546
  %v628 = vpack.c.b16 %v574, %v547
  %v629 = vpack.c.b16 %v575, %v548
  %v630 = vpack.c.b16 %v576, %v549
  %v631 = vpack.c.b16 %v577, %v550
  %v632 = vpack.c.b16 %v578, %v551
  %v633 = vpack.c.b16 %v579, %v552
  %v634 = vpack.c.b16 %v580, %v553
  %v635 = vpack.c.b16 %v581, %v554
  %v636 = vpack.c.b16 %v582, %v555
  %v637 = vpack.c.b16 %v583, %v556
  %v638 = vpack.c.b16 %v584, %v557
  %v639 = vpack.c.b16 %v585, %v558
  %v640 = vpack.c.b16 %v586, %v559
  %v641 = vpack.c.b16 %v587, %v560
  %v642 = vpack.c.b16 %v588, %v561
  %v643 = vpack.c.b16 %v589, %v562
  %v644 = vpack.c.b16 %v590, %v563
  %v645 = vpack.c.b16 %v591, %v564
  %v646 = vpack.c.b16 %v592, %v565
  %v647 = vpack.c.b16 %v593, %v566
  %v648 = vpack.c.b16 %v594, %v567
  %v649 = vpack.c.b16 %v595, %v568
  %v650 = vpack.c.b16 %v596, %v569
  %v651 = vpack.c.b16 %v597, %v597
  %v652 = vpack.c.b16 %v598, %v598
  %v653 = vpack.c.b16 %v599, %v599
  %v654 = vpack.c.b16 %v600, %v600
  %v655 = vpack.c.b16 %v601, %v601
  %v656 = vpack.c.b16 %v602, %v602
  %v657 = vpack.c.b16 %v603, %v603
  %v658 = vpack.c.b16 %v604, %v604
  %v659 = vpack.c.b16 %v605, %v605
  %v660 = vpack.c.b16 %v606, %v606
  %v661 = vpack.c.b16 %v607, %v607
  %v662 = vpack.c.b16 %v608, %v608
  %v663 = vpack.c.b16 %v609, %v609
  %v664 = vpack.c.b16 %v610, %v610
  %v665 = vpack.c.b16 %v611, %v611
  %v666 = vpack.c.b16 %v612, %v612
  %v667 = vpack.c.b16 %v613, %v613
  %v668 = vpack.c.b16 %v614, %v614
  %v669 = vpack.c.b16 %v615, %v615
  %v670 = vpack.c.b16 %v616, %v616
  %v671 = vpack.c.b16 %v617, %v617
  %v672 = vpack.c.b16 %v618, %v618
  %v673 = vpack.c.b16 %v619, %v619
  %v674 = vpack.c.b16 %v620, %v620
  %v675 = vpack.c.b16 %v621, %v621
  %v676 = vpack.c.b16 %v622, %v622
  %v677 = vpack.c.b16 %v623, %v623
  %v1164 = vunpack.c.l.b16 %v57
  %v1165 = vunpack.c.h.b16 %v57
  %v1166 = vunpack.c.l.b16 %v58
  %v1167 = vunpack.c.h.b16 %v58
  %v1168 = vunpack.c.l.b16 %v59
  %v1169 = vunpack.c.h.b16 %v59
  %v1170 = vunpack.c.l.b16 %v60
  %v1171 = vunpack.c.h.b16 %v60
  %v1172 = vunpack.c.l.b16 %v61
  %v1173 = vunpack.c.h.b16 %v61
  %v1174 = vunpack.c.l.b16 %v62
  %v1175 = vunpack.c.h.b16 %v62
  %v1176 = vunpack.c.l.b16 %v63
  %v1177 = vunpack.c.h.b16 %v63
  %v1178 = vunpack.c.l.b16 %v64
  %v1179 = vunpack.c.h.b16 %v64
  %v1180 = vunpack.c.l.b16 %v65
  %v1181 = vunpack.c.h.b16 %v65
  %v1182 = vunpack.c.l.b16 %v66
  %v1183 = vunpack.c.h.b16 %v66
  %v1184 = vunpack.c.l.b16 %v67
  %v1185 = vunpack.c.h.b16 %v67
  %v1186 = vunpack.c.l.b16 %v68
  %v1187 = vunpack.c.h.b16 %v68
  %v1188 = vunpack.c.l.b16 %v69
  %v1189 = vunpack.c.h.b16 %v69
  %v1190 = vunpack.c.l.b16 %v70
  %v1191 = vunpack.c.h.b16 %v70
  %v1192 = vunpack.c.l.b16 %v71
  %v1193 = vunpack.c.h.b16 %v71
  %v1194 = vunpack.c.l.b16 %v72
  %v1195 = vunpack.c.h.b16 %v72
  %v1196 = vunpack.c.l.b16 %v73
  %v1197 = vunpack.c.h.b16 %v73
  %v1198 = vunpack.c.l.b16 %v74
  %v1199 = vunpack.c.h.b16 %v74
  %v1200 = vunpack.c.l.b16 %v75
  %v1201 = vunpack.c.h.b16 %v75
  %v1202 = vunpack.c.l.b16 %v76
  %v1203 = vunpack.c.h.b16 %v76
  %v1204 = vunpack.c.l.b16 %v77
  %v1205 = vunpack.c.h.b16 %v77
  %v1206 = vunpack.c.l.b16 %v78
  %v1207 = vunpack.c.h.b16 %v78
  %v1208 = vunpack.c.l.b16 %v79
  %v1209 = vunpack.c.h.b16 %v79
  %v1210 = vunpack.c.l.b16 %v80
  %v1211 = vunpack.c.h.b16 %v80
  %v1212 = vunpack.c.l.b16 %v81
  %v1213 = vunpack.c.h.b16 %v81
  %v1214 = vunpack.c.l.b16 %v82
  %v1215 = vunpack.c.h.b16 %v82
  %v1216 = vunpack.c.l.b16 %v83
  %v1217 = vunpack.c.h.b16 %v83
  %v1218 = vunpack.c.l.b16 %v84
  %v1219 = vunpack.c.h.b16 %v84
  %v1220 = vunpack.c.l.b16 %v85
  %v1221 = vunpack.c.h.b16 %v85
  %v1222 = vunpack.c.l.b16 %v86
  %v1223 = vunpack.c.h.b16 %v86
  %v1224 = vunpack.c.l.b16 %v87
  %v1225 = vunpack.c.h.b16 %v87
  %v1226 = vunpack.c.l.b16 %v88
  %v1227 = vunpack.c.h.b16 %v88
  %v1228 = vunpack.c.l.b16 %v89
  %v1229 = vunpack.c.h.b16 %v89
  %v1230 = vunpack.c.l.b16 %v90
  %v1231 = vunpack.c.h.b16 %v90
  %v1232 = vunpack.c.l.b16 %v91
  %v1233 = vunpack.c.h.b16 %v91
  %v1234 = vunpack.c.l.b16 %v92
  %v1235 = vunpack.c.h.b16 %v92
  %v1236 = vunpack.c.l.b16 %v93
  %v1237 = vunpack.c.h.b16 %v93
  %v1238 = vunpack.c.l.b16 %v94
  %v1239 = vunpack.c.h.b16 %v94
  %v1240 = vunpack.c.l.b16 %v95
  %v1241 = vunpack.c.h.b16 %v95
  %v1242 = vunpack.c.l.b16 %v96
  %v1243 = vunpack.c.h.b16 %v96
  %v1244 = vunpack.c.l.b16 %v97
  %v1245 = vunpack.c.h.b16 %v97
  %v1246 = vunpack.c.l.b16 %v98
  %v1247 = vunpack.c.h.b16 %v98
  %v1248 = vunpack.c.l.b16 %v99
  %v1249 = vunpack.c.h.b16 %v99
  %v1250 = vunpack.c.l.b16 %v100
  %v1251 = vunpack.c.h.b16 %v100
  %v1252 = vunpack.c.l.b16 %v101
  %v1253 = vunpack.c.h.b16 %v101
  %v1254 = vunpack.c.l.b16 %v102
  %v1255 = vunpack.c.h.b16 %v102
  %v1256 = vunpack.c.l.b16 %v103
  %v1257 = vunpack.c.h.b16 %v103
  %v1258 = vunpack.c.l.b16 %v104
  %v1259 = vunpack.c.h.b16 %v104
  %v1260 = vunpack.c.l.b16 %v105
  %v1261 = vunpack.c.h.b16 %v105
  %v1262 = vunpack.c.l.b16 %v106
  %v1263 = vunpack.c.h.b16 %v106
  %v1264 = vunpack.c.l.b16 %v107
  %v1265 = vunpack.c.h.b16 %v107
  %v1266 = vunpack.c.l.b16 %v108
  %v1267 = vunpack.c.h.b16 %v108
  %v1268 = vunpack.c.l.b16 %v109
  %v1269 = vunpack.c.h.b16 %v109
  %v1270 = vunpack.c.l.b16 %v110
  %v1271 = vunpack.c.h.b16 %v110
  %v1272 = vunpack.c.l.b16 %v111
  %v1273 = vunpack.c.h.b16 %v111
  %v1274 = vunpack.c.l.b16 %v112
  %v1275 = vunpack.c.h.b16 %v112
  %v1276 = vunpack.c.l.b16 %v113
  %v1277 = vunpack.c.h.b16 %v113
  %v1278 = vunpack.c.l.b16 %v114
  %v1279 = vunpack.c.h.b16 %v114
  %v1280 = vunpack.c.l.b16 %v115
  %v1281 = vunpack.c.h.b16 %v115
  %v1282 = vunpack.c.l.b16 %v116
  %v1283 = vunpack.c.h.b16 %v116
  %v1284 = vunpack.c.l.b16 %v117
  %v1285 = vunpack.c.h.b16 %v117
  %v1286 = vunpack.c.l.b16 %v118
  %v1287 = vunpack.c.h.b16 %v118
  %v1288 = vunpack.c.l.b16 %v119
  %v1289 = vunpack.c.h.b16 %v119
  %v1290 = vunpack.c.l.b16 %v120
  %v1291 = vunpack.c.h.b16 %v120
  %v1292 = vunpack.c.l.b16 %v121
  %v1293 = vunpack.c.h.b16 %v121
  %v1294 = vunpack.c.l.b16 %v122
  %v1295 = vunpack.c.h.b16 %v122
  %v1296 = vunpack.c.l.b16 %v123
  %v1297 = vunpack.c.h.b16 %v123
  %v1298 = vunpack.c.l.b16 %v124
  %v1299 = vunpack.c.h.b16 %v124
  %v1300 = vunpack.c.l.b16 %v125
  %v1301 = vunpack.c.h.b16 %v125
  %v1302 = vunpack.c.l.b16 %v126
  %v1303 = vunpack.c.h.b16 %v126
  %v1304 = vunpack.c.l.b16 %v127
  %v1305 = vunpack.c.h.b16 %v127
  %v1306 = vunpack.c.l.b16 %v128
  %v1307 = vunpack.c.h.b16 %v128
  %v1308 = vunpack.c.l.b16 %v129
  %v1309 = vunpack.c.h.b16 %v129
  %v1310 = vunpack.c.l.b16 %v130
  %v1311 = vunpack.c.h.b16 %v130
  %v1312 = vunpack.c.l.b16 %v131
  %v1313 = vunpack.c.h.b16 %v131
  %v1314 = vunpack.c.l.b16 %v132
  %v1315 = vunpack.c.h.b16 %v132
  %v1316 = vunpack.c.l.b16 %v133
  %v1317 = vunpack.c.h.b16 %v133
  %v1318 = vunpack.c.l.b16 %v134
  %v1319 = vunpack.c.h.b16 %v134
  %v1320 = vunpack.c.l.b16 %v135
  %v1321 = vunpack.c.h.b16 %v135
  %v1322 = vunpack.c.l.b16 %v136
  %v1323 = vunpack.c.h.b16 %v136
  %v1324 = vunpack.c.l.b16 %v137
  %v1325 = vunpack.c.h.b16 %v137
  %v1326 = vunpack.c.l.b16 %v138
  %v1327 = vunpack.c.h.b16 %v138
  %v1328 = vunpack.c.l.b16 %v139
  %v1329 = vunpack.c.h.b16 %v139
  %v1330 = vunpack.c.l.b16 %v140
  %v1331 = vunpack.c.h.b16 %v140
  %v1332 = vunpack.c.l.b16 %v141
  %v1333 = vunpack.c.h.b16 %v141
  %v1334 = vunpack.c.l.b16 %v142
  %v1335 = vunpack.c.h.b16 %v142
  %v1336 = vunpack.c.l.b16 %v143
  %v1337 = vunpack.c.h.b16 %v143
  %v1338 = vunpack.c.l.b16 %v144
  %v1339 = vunpack.c.h.b16 %v144
  %v1340 = vunpack.c.l.b16 %v145
  %v1341 = vunpack.c.h.b16 %v145
  %v1342 = vunpack.c.l.b16 %v146
  %v1343 = vunpack.c.h.b16 %v146
  %v1344 = vunpack.c.l.b16 %v147
  %v1345 = vunpack.c.h.b16 %v147
  %v1346 = vunpack.c.l.b16 %v148
  %v1347 = vunpack.c.h.b16 %v148
  %v1348 = vunpack.c.l.b16 %v149
  %v1349 = vunpack.c.h.b16 %v149
  %v1350 = vunpack.c.l.b16 %v150
  %v1351 = vunpack.c.h.b16 %v150
  %v1352 = vunpack.c.l.b16 %v151
  %v1353 = vunpack.c.h.b16 %v151
  %v1354 = vunpack.c.l.b16 %v152
  %v1355 = vunpack.c.h.b16 %v152
  %v1356 = vunpack.c.l.b16 %v153
  %v1357 = vunpack.c.h.b16 %v153
  %v1358 = vunpack.c.l.b16 %v154
  %v1359 = vunpack.c.h.b16 %v154
  %v1360 = vunpack.c.l.b16 %v155
  %v1361 = vunpack.c.h.b16 %v155
  %v1362 = vunpack.c.l.b16 %v156
  %v1363 = vunpack.c.h.b16 %v156
  %v1364 = vunpack.c.l.b16 %v157
  %v1365 = vunpack.c.h.b16 %v157
  %v1366 = vunpack.c.l.b16 %v158
  %v1367 = vunpack.c.h.b16 %v158
  %v1368 = vunpack.c.l.b16 %v159
  %v1369 = vunpack.c.h.b16 %v159
  %v1370 = vunpack.c.l.b16 %v160
  %v1371 = vunpack.c.h.b16 %v160
  %v1372 = vunpack.c.l.b16 %v161
  %v1373 = vunpack.c.h.b16 %v161
  %v1374 = vunpack.c.l.b16 %v162
  %v1375 = vunpack.c.h.b16 %v162
  %v1376 = vunpack.c.l.b16 %v163
  %v1377 = vunpack.c.h.b16 %v163
  %v1378 = vunpack.c.l.b16 %v164
  %v1379 = vunpack.c.h.b16 %v164
  %v1380 = vunpack.c.l.b16 %v165
  %v1381 = vunpack.c.h.b16 %v165
  %v1382 = vunpack.c.l.b16 %v166
  %v1383 = vunpack.c.h.b16 %v166
  %v1384 = vunpack.c.l.b16 %v167
  %v1385 = vunpack.c.h.b16 %v167
  %v1386 = vunpack.c.l.b16 %v168
  %v1387 = vunpack.c.h.b16 %v168
  %v1388 = vunpack.c.l.b16 %v169
  %v1389 = vunpack.c.h.b16 %v169
  %v1390 = vunpack.c.l.b16 %v170
  %v1391 = vunpack.c.h.b16 %v170
  %v1392 = vunpack.c.l.b16 %v171
  %v1393 = vunpack.c.h.b16 %v171
  %v1394 = vunpack.c.l.b16 %v172
  %v1395 = vunpack.c.h.b16 %v172
  %v1396 = vunpack.c.l.b16 %v173
  %v1397 = vunpack.c.h.b16 %v173
  %v1398 = vunpack.c.l.b16 %v174
  %v1399 = vunpack.c.h.b16 %v174
  %v1400 = vunpack.c.l.b16 %v175
  %v1401 = vunpack.c.h.b16 %v175
  %v1402 = vunpack.c.l.b16 %v176
  %v1403 = vunpack.c.h.b16 %v176
  %v1404 = vunpack.c.l.b16 %v177
  %v1405 = vunpack.c.h.b16 %v177
  %v1406 = vunpack.c.l.b16 %v178
  %v1407 = vunpack.c.h.b16 %v178
  %v1408 = vunpack.c.l.b16 %v179
  %v1409 = vunpack.c.h.b16 %v179
  %v1410 = vunpack.c.l.b16 %v180
  %v1411 = vunpack.c.h.b16 %v180
  %v1412 = vunpack.c.l.b16 %v181
  %v1413 = vunpack.c.h.b16 %v181
  %v1414 = vunpack.c.l.b16 %v182
  %v1415 = vunpack.c.h.b16 %v182
  %v1416 = vunpack.c.l.b16 %v183
  %v1417 = vunpack.c.h.b16 %v183
  %v1418 = vunpack.c.l.b16 %v184
  %v1419 = vunpack.c.h.b16 %v184
  %v1420 = vunpack.c.l.b16 %v185
  %v1421 = vunpack.c.h.b16 %v185
  %v1422 = vunpack.c.l.b16 %v186
  %v1423 = vunpack.c.h.b16 %v186
  %v1424 = vunpack.c.l.b16 %v187
  %v1425 = vunpack.c.h.b16 %v187
  %v1426 = vunpack.c.l.b16 %v188
  %v1427 = vunpack.c.h.b16 %v188
  %v1428 = vunpack.c.l.b16 %v189
  %v1429 = vunpack.c.h.b16 %v189
  %v1430 = vunpack.c.l.b16 %v190
  %v1431 = vunpack.c.h.b16 %v190
  %v1432 = vunpack.c.l.b16 %v191
  %v1433 = vunpack.c.h.b16 %v191
  %v1434 = vunpack.c.l.b16 %v192
  %v1435 = vunpack.c.h.b16 %v192
  %v1436 = vunpack.c.l.b16 %v193
  %v1437 = vunpack.c.h.b16 %v193
  %v1438 = vunpack.c.l.b16 %v194
  %v1439 = vunpack.c.h.b16 %v194
  %v1440 = vunpack.c.l.b16 %v195
  %v1441 = vunpack.c.h.b16 %v195
  %v1442 = vunpack.c.l.b16 %v196
  %v1443 = vunpack.c.h.b16 %v196
  %v1444 = vunpack.c.l.b16 %v197
  %v1445 = vunpack.c.h.b16 %v197
  %v1446 = vunpack.c.l.b16 %v198
  %v1447 = vunpack.c.h.b16 %v198
  %v1448 = vunpack.c.l.b16 %v199
  %v1449 = vunpack.c.h.b16 %v199
  %v1450 = vunpack.c.l.b16 %v200
  %v1451 = vunpack.c.h.b16 %v200
  %v1452 = vunpack.c.l.b16 %v201
  %v1453 = vunpack.c.h.b16 %v201
  %v1454 = vunpack.c.l.b16 %v202
  %v1455 = vunpack.c.h.b16 %v202
  %v1456 = vunpack.c.l.b16 %v203
  %v1457 = vunpack.c.h.b16 %v203
  %v1458 = vunpack.c.l.b16 %v204
  %v1459 = vunpack.c.h.b16 %v204
  %v1460 = vunpack.c.l.b16 %v205
  %v1461 = vunpack.c.h.b16 %v205
  %v1462 = vunpack.c.l.b16 %v206
  %v1463 = vunpack.c.h.b16 %v206
  %v1464 = vunpack.c.l.b16 %v207
  %v1465 = vunpack.c.h.b16 %v207
  %v1466 = vunpack.c.l.b16 %v208
  %v1467 = vunpack.c.h.b16 %v208
  %v1468 = vunpack.c.l.b16 %v209
  %v1469 = vunpack.c.h.b16 %v209
  %v1470 = vunpack.c.l.b16 %v210
  %v1471 = vunpack.c.h.b16 %v210
  %v1472 = vunpack.c.l.b16 %v211
  %v1473 = vunpack.c.h.b16 %v211
  %v1474 = vunpack.c.l.b16 %v212
  %v1475 = vunpack.c.h.b16 %v212
  %v1476 = vunpack.c.l.b16 %v213
  %v1477 = vunpack.c.h.b16 %v213
  %v1478 = vunpack.c.l.b16 %v214
  %v1479 = vunpack.c.h.b16 %v214
  %v1480 = vunpack.c.l.b16 %v215
  %v1481 = vunpack.c.h.b16 %v215
  %v1482 = vunpack.c.l.b16 %v216
  %v1483 = vunpack.c.h.b16 %v216
  %v1484 = vunpack.c.l.b16 %v217
  %v1485 = vunpack.c.h.b16 %v217
  %v1486 = vunpack.c.l.b16 %v218
  %v1487 = vunpack.c.h.b16 %v218
  %v1488 = vunpack.c.l.b16 %v219
  %v1489 = vunpack.c.h.b16 %v219
  %v1490 = vunpack.c.l.b16 %v220
  %v1491 = vunpack.c.h.b16 %v220
  %v1492 = vunpack.c.l.b16 %v221
  %v1493 = vunpack.c.h.b16 %v221
  %v1494 = vunpack.c.l.b16 %v222
  %v1495 = vunpack.c.h.b16 %v222
  %v1496 = vunpack.c.l.b16 %v223
  %v1497 = vunpack.c.h.b16 %v223
  %v1498 = vunpack.c.l.b16 %v224
  %v1499 = vunpack.c.h.b16 %v224
  %v1500 = vunpack.c.l.b16 %v225
  %v1501 = vunpack.c.h.b16 %v225
  %v1502 = vunpack.c.l.b16 %v226
  %v1503 = vunpack.c.h.b16 %v226
  %v1504 = vunpack.c.l.b16 %v227
  %v1505 = vunpack.c.h.b16 %v227
  %v1506 = vunpack.c.l.b16 %v228
  %v1507 = vunpack.c.h.b16 %v228
  %v1508 = vunpack.c.l.b16 %v229
  %v1509 = vunpack.c.h.b16 %v229
  %v1510 = vunpack.c.l.b16 %v230
  %v1511 = vunpack.c.h.b16 %v230
  %v1512 = vunpack.c.l.b16 %v231
  %v1513 = vunpack.c.h.b16 %v231
  %v1514 = vunpack.c.l.b16 %v232
  %v1515 = vunpack.c.h.b16 %v232
  %v1516 = vunpack.c.l.b16 %v233
  %v1517 = vunpack.c.h.b16 %v233
  %v1518 = vunpack.c.l.b16 %v234
  %v1519 = vunpack.c.h.b16 %v234
  %v1520 = vunpack.c.l.b16 %v235
  %v1521 = vunpack.c.h.b16 %v235
  %v1522 = vunpack.c.l.b16 %v236
  %v1523 = vunpack.c.h.b16 %v236
  %v1524 = vunpack.c.l.b16 %v237
  %v1525 = vunpack.c.h.b16 %v237
  %v1526 = vunpack.c.l.b16 %v238
  %v1527 = vunpack.c.h.b16 %v238
  %v1528 = vunpack.c.l.b16 %v239
  %v1529 = vunpack.c.h.b16 %v239
  %v1530 = vunpack.c.l.b16 %v240
  %v1531 = vunpack.c.h.b16 %v240
  %v1532 = vunpack.c.l.b16 %v241
  %v1533 = vunpack.c.h.b16 %v241
  %v1534 = vunpack.c.l.b16 %v242
  %v1535 = vunpack.c.h.b16 %v242
  %v1536 = vunpack.c.l.b16 %v243
  %v1537 = vunpack.c.h.b16 %v243
  %v1538 = vunpack.c.l.b16 %v244
  %v1539 = vunpack.c.h.b16 %v244
  %v1540 = vunpack.c.l.b16 %v245
  %v1541 = vunpack.c.h.b16 %v245
  %v1542 = vunpack.c.l.b16 %v246
  %v1543 = vunpack.c.h.b16 %v246
  %v1544 = vunpack.c.l.b16 %v247
  %v1545 = vunpack.c.h.b16 %v247
  %v1546 = vunpack.c.l.b16 %v248
  %v1547 = vunpack.c.h.b16 %v248
  %v1548 = vunpack.c.l.b16 %v249
  %v1549 = vunpack.c.h.b16 %v249
  %v1550 = vunpack.c.l.b16 %v250
  %v1551 = vunpack.c.h.b16 %v250
  %v1552 = vunpack.c.l.b16 %v251
  %v1553 = vunpack.c.h.b16 %v251
  %v1554 = vunpack.c.l.b16 %v252
  %v1555 = vunpack.c.h.b16 %v252
  %v1556 = vunpack.c.l.b16 %v253
  %v1557 = vunpack.c.h.b16 %v253
  %v1558 = vunpack.c.l.b16 %v254
  %v1559 = vunpack.c.h.b16 %v254
  %v1560 = vunpack.c.l.b16 %v255
  %v1561 = vunpack.c.h.b16 %v255
  %v1562 = vunpack.c.l.b16 %v256
  %v1563 = vunpack.c.h.b16 %v256
  %v1564 = vunpack.c.l.b16 %v257
  %v1565 = vunpack.c.h.b16 %v257
  %v1566 = vunpack.c.l.b16 %v258
  %v1567 = vunpack.c.h.b16 %v258
  %v1568 = vunpack.c.l.b16 %v259
  %v1569 = vunpack.c.h.b16 %v259
  %v1570 = vunpack.c.l.b16 %v260
  %v1571 = vunpack.c.h.b16 %v260
  %v1572 = vunpack.c.l.b16 %v261
  %v1573 = vunpack.c.h.b16 %v261
  %v1574 = vunpack.c.l.b16 %v262
  %v1575 = vunpack.c.h.b16 %v262
  %v1576 = vunpack.c.l.b16 %v263
  %v1577 = vunpack.c.h.b16 %v263
  %v1578 = vunpack.c.l.b16 %v264
  %v1579 = vunpack.c.h.b16 %v264
  %v1580 = vunpack.c.l.b16 %v265
  %v1581 = vunpack.c.h.b16 %v265
  %v1582 = vunpack.c.l.b16 %v266
  %v1583 = vunpack.c.h.b16 %v266
  %v1584 = vunpack.c.l.b16 %v267
  %v1585 = vunpack.c.h.b16 %v267
  %v1586 = vunpack.c.l.b16 %v268
  %v1587 = vunpack.c.h.b16 %v268
  %v1588 = vunpack.c.l.b16 %v269
  %v1589 = vunpack.c.h.b16 %v269
  %v1590 = vunpack.c.l.b16 %v270
  %v1591 = vunpack.c.h.b16 %v270
  %v1592 = vunpack.c.l.b16 %v271
  %v1593 = vunpack.c.h.b16 %v271
  %v1594 = vunpack.c.l.b16 %v272
  %v1595 = vunpack.c.h.b16 %v272
  %v1596 = vunpack.c.l.b16 %v273
  %v1597 = vunpack.c.h.b16 %v273
  %v1598 = vunpack.c.l.b16 %v274
  %v1599 = vunpack.c.h.b16 %v274
  %v1600 = vunpack.c.l.b16 %v275
  %v1601 = vunpack.c.h.b16 %v275
  %v1602 = vunpack.c.l.b16 %v276
  %v1603 = vunpack.c.h.b16 %v276
  %v1604 = vunpack.c.l.b16 %v277
  %v1605 = vunpack.c.h.b16 %v277
  %v1606 = vunpack.c.l.b16 %v278
  %v1607 = vunpack.c.h.b16 %v278
  %v1608 = vunpack.c.l.b16 %v279
  %v1609 = vunpack.c.h.b16 %v279
  %v1610 = vunpack.c.l.b16 %v280
  %v1611 = vunpack.c.h.b16 %v280
  %v1612 = vunpack.c.l.b16 %v281
  %v1613 = vunpack.c.h.b16 %v281
  %v1614 = vunpack.c.l.b16 %v282
  %v1615 = vunpack.c.h.b16 %v282
  %v1616 = vunpack.c.l.b16 %v283
  %v1617 = vunpack.c.h.b16 %v283
  %v1618 = vunpack.c.l.b16 %v284
  %v1619 = vunpack.c.h.b16 %v284
  %v1620 = vunpack.c.l.b16 %v285
  %v1621 = vunpack.c.h.b16 %v285
  %v1622 = vunpack.c.l.b16 %v286
  %v1623 = vunpack.c.h.b16 %v286
  %v1624 = vunpack.c.l.b16 %v287
  %v1625 = vunpack.c.h.b16 %v287
  %v1626 = vunpack.c.l.b16 %v288
  %v1627 = vunpack.c.h.b16 %v288
  %v1628 = vunpack.c.l.b16 %v289
  %v1629 = vunpack.c.h.b16 %v289
  %v1630 = vunpack.c.l.b16 %v290
  %v1631 = vunpack.c.h.b16 %v290
  %v1632 = vunpack.c.l.b16 %v291
  %v1633 = vunpack.c.h.b16 %v291
  %v1634 = vunpack.c.l.b16 %v292
  %v1635 = vunpack.c.h.b16 %v292
  %v1636 = vunpack.c.l.b16 %v293
  %v1637 = vunpack.c.h.b16 %v293
  %v1638 = vunpack.c.l.b16 %v294
  %v1639 = vunpack.c.h.b16 %v294
  %v1640 = vunpack.c.l.b16 %v295
  %v1641 = vunpack.c.h.b16 %v295
  %v1642 = vunpack.c.l.b16 %v296
  %v1643 = vunpack.c.h.b16 %v296
  %v1644 = vunpack.c.l.b16 %v297
  %v1645 = vunpack.c.h.b16 %v297
  %v1646 = vunpack.c.l.b16 %v298
  %v1647 = vunpack.c.h.b16 %v298
  %v1648 = vunpack.c.l.b16 %v299
  %v1649 = vunpack.c.h.b16 %v299
  %v1650 = vunpack.c.l.b16 %v300
  %v1651 = vunpack.c.h.b16 %v300
  %v1652 = vunpack.c.l.b16 %v301
  %v1653 = vunpack.c.h.b16 %v301
  %v1654 = vunpack.c.l.b16 %v302
  %v1655 = vunpack.c.h.b16 %v302
  %v1656 = vunpack.c.l.b16 %v303
  %v1657 = vunpack.c.h.b16 %v303
  %v1658 = vunpack.c.l.b16 %v304
  %v1659 = vunpack.c.h.b16 %v304
  %v1660 = vunpack.c.l.b16 %v305
  %v1661 = vunpack.c.h.b16 %v305
  %v1662 = vunpack.c.l.b16 %v306
  %v1663 = vunpack.c.h.b16 %v306
  %v1664 = vunpack.c.l.b16 %v307
  %v1665 = vunpack.c.h.b16 %v307
  %v1666 = vunpack.c.l.b16 %v308
  %v1667 = vunpack.c.h.b16 %v308
  %v1668 = vunpack.c.l.b16 %v309
  %v1669 = vunpack.c.h.b16 %v309
  %v1670 = vunpack.c.l.b16 %v310
  %v1671 = vunpack.c.h.b16 %v310
  %v1672 = vunpack.c.l.b16 %v311
  %v1673 = vunpack.c.h.b16 %v311
  %v1674 = vunpack.c.l.b16 %v312
  %v1675 = vunpack.c.h.b16 %v312
  %v1676 = vunpack.c.l.b16 %v313
  %v1677 = vunpack.c.h.b16 %v313
  %v1678 = vunpack.c.l.b16 %v314
  %v1679 = vunpack.c.h.b16 %v314
  %v1680 = vunpack.c.l.b16 %v315
  %v1681 = vunpack.c.h.b16 %v315
  %v1682 = vunpack.c.l.b16 %v316
  %v1683 = vunpack.c.h.b16 %v316
  %v1684 = vunpack.c.l.b16 %v317
  %v1685 = vunpack.c.h.b16 %v317
  %v1686 = vunpack.c.l.b16 %v318
  %v1687 = vunpack.c.h.b16 %v318
  %v1688 = vunpack.c.l.b16 %v319
  %v1689 = vunpack.c.h.b16 %v319
  %v1690 = vunpack.c.l.b16 %v320
  %v1691 = vunpack.c.h.b16 %v320
  %v1692 = vunpack.c.l.b16 %v321
  %v1693 = vunpack.c.h.b16 %v321
  %v1694 = vunpack.c.l.b16 %v322
  %v1695 = vunpack.c.h.b16 %v322
  %v1696 = vunpack.c.l.b16 %v323
  %v1697 = vunpack.c.h.b16 %v323
  %v1698 = vunpack.c.l.b16 %v324
  %v1699 = vunpack.c.h.b16 %v324
  %v1700 = vunpack.c.l.b16 %v325
  %v1701 = vunpack.c.h.b16 %v325
  %v1702 = vunpack.c.l.b16 %v326
  %v1703 = vunpack.c.h.b16 %v326
  %v1704 = vunpack.c.l.b16 %v327
  %v1705 = vunpack.c.h.b16 %v327
  %v1706 = vunpack.c.l.b16 %v328
  %v1707 = vunpack.c.h.b16 %v328
  %v1708 = vunpack.c.l.b16 %v329
  %v1709 = vunpack.c.h.b16 %v329
  %v1710 = vunpack.c.l.b16 %v330
  %v1711 = vunpack.c.h.b16 %v330
  %v1712 = vunpack.c.l.b16 %v331
  %v1713 = vunpack.c.h.b16 %v331
  %v1714 = vunpack.c.l.b16 %v332
  %v1715 = vunpack.c.h.b16 %v332
  %v1716 = vunpack.c.l.b16 %v333
  %v1717 = vunpack.c.h.b16 %v333
  %v1718 = vunpack.c.l.b16 %v334
  %v1719 = vunpack.c.h.b16 %v334
  %v1720 = vunpack.c.l.b16 %v335
  %v1721 = vunpack.c.h.b16 %v335
  %v1722 = vunpack.c.l.b16 %v336
  %v1723 = vunpack.c.h.b16 %v336
  %v1724 = vunpack.c.l.b16 %v337
  %v1725 = vunpack.c.h.b16 %v337
  %v1726 = vunpack.c.l.b16 %v338
  %v1727 = vunpack.c.h.b16 %v338
  %v1728 = vunpack.c.l.b16 %v339
  %v1729 = vunpack.c.h.b16 %v339
  %v1730 = vunpack.c.l.b16 %v340
  %v1731 = vunpack.c.h.b16 %v340
  %v1732 = vunpack.c.l.b16 %v341
  %v1733 = vunpack.c.h.b16 %v341
  %v1734 = vunpack.c.l.b16 %v342
  %v1735 = vunpack.c.h.b16 %v342
  %v1736 = vunpack.c.l.b16 %v343
  %v1737 = vunpack.c.h.b16 %v343
  %v1738 = vunpack.c.l.b16 %v344
  %v1739 = vunpack.c.h.b16 %v344
  %v1740 = vunpack.c.l.b16 %v345
  %v1741 = vunpack.c.h.b16 %v345
  %v1742 = vunpack.c.l.b16 %v346
  %v1743 = vunpack.c.h.b16 %v346
  %v1744 = vunpack.c.l.b16 %v347
  %v1745 = vunpack.c.h.b16 %v347
  %v1746 = vunpack.c.l.b16 %v348
  %v1747 = vunpack.c.h.b16 %v348
  %v1748 = vunpack.c.l.b16 %v349
  %v1749 = vunpack.c.h.b16 %v349
  %v1750 = vunpack.c.l.b16 %v350
  %v1751 = vunpack.c.h.b16 %v350
  %v1752 = vunpack.c.l.b16 %v351
  %v1753 = vunpack.c.h.b16 %v351
  %v1754 = vunpack.c.l.b16 %v352
  %v1755 = vunpack.c.h.b16 %v352
  %v1756 = vunpack.c.l.b16 %v353
  %v1757 = vunpack.c.h.b16 %v353
  %v1758 = vunpack.c.l.b16 %v354
  %v1759 = vunpack.c.h.b16 %v354
  %v1760 = vunpack.c.l.b16 %v355
  %v1761 = vunpack.c.h.b16 %v355
  %v1762 = vunpack.c.l.b16 %v356
  %v1763 = vunpack.c.h.b16 %v356
  %v1764 = vunpack.c.l.b16 %v357
  %v1765 = vunpack.c.h.b16 %v357
  %v1766 = vunpack.c.l.b16 %v358
  %v1767 = vunpack.c.h.b16 %v358
  %v1768 = vunpack.c.l.b16 %v359
  %v1769 = vunpack.c.h.b16 %v359
  %v1770 = vunpack.c.l.b16 %v360
  %v1771 = vunpack.c.h.b16 %v360
  %v1772 = vunpack.c.l.b16 %v361
  %v1773 = vunpack.c.h.b16 %v361
  %v1774 = vunpack.c.l.b16 %v362
  %v1775 = vunpack.c.h.b16 %v362
  %v1776 = vunpack.c.l.b16 %v363
  %v1777 = vunpack.c.h.b16 %v363
  %v1778 = vunpack.c.l.b16 %v364
  %v1779 = vunpack.c.h.b16 %v364
  %v1780 = vunpack.c.l.b16 %v365
  %v1781 = vunpack.c.h.b16 %v365
  %v1782 = vunpack.c.l.b16 %v366
  %v1783 = vunpack.c.h.b16 %v366
  %v1784 = vunpack.c.l.b16 %v367
  %v1785 = vunpack.c.h.b16 %v367
  %v1786 = vunpack.c.l.b16 %v368
  %v1787 = vunpack.c.h.b16 %v368
  %v1788 = vunpack.c.l.b16 %v369
  %v1789 = vunpack.c.h.b16 %v369
  %v1790 = vunpack.c.l.b16 %v370
  %v1791 = vunpack.c.h.b16 %v370
  %v1792 = vunpack.c.l.b16 %v371
  %v1793 = vunpack.c.h.b16 %v371
  %v1794 = vunpack.c.l.b16 %v372
  %v1795 = vunpack.c.h.b16 %v372
  %v1796 = vunpack.c.l.b16 %v373
  %v1797 = vunpack.c.h.b16 %v373
  %v1798 = vunpack.c.l.b16 %v374
  %v1799 = vunpack.c.h.b16 %v374
  %v1800 = vunpack.c.l.b16 %v375
  %v1801 = vunpack.c.h.b16 %v375
  %v1802 = vunpack.c.l.b16 %v376
  %v1803 = vunpack.c.h.b16 %v376
  %v1804 = vunpack.c.l.b16 %v377
  %v1805 = vunpack.c.h.b16 %v377
  %v1806 = vunpack.c.l.b16 %v378
  %v1807 = vunpack.c.h.b16 %v378
  %v1808 = vunpack.c.l.b16 %v379
  %v1809 = vunpack.c.h.b16 %v379
  %v1810 = vunpack.c.l.b16 %v380
  %v1811 = vunpack.c.h.b16 %v380
  %v1812 = vunpack.c.l.b16 %v381
  %v1813 = vunpack.c.h.b16 %v381
  %v1814 = vunpack.c.l.b16 %v382
  %v1815 = vunpack.c.h.b16 %v382
  %v1816 = vunpack.c.l.b16 %v383
  %v1817 = vunpack.c.h.b16 %v383
  %v1818 = vunpack.c.l.b16 %v384
  %v1819 = vunpack.c.h.b16 %v384
  %v1820 = vunpack.c.l.b16 %v385
  %v1821 = vunpack.c.h.b16 %v385
  %v1822 = vunpack.c.l.b16 %v386
  %v1823 = vunpack.c.h.b16 %v386
  %v1824 = vunpack.c.l.b16 %v387
  %v1825 = vunpack.c.h.b16 %v387
  %v1826 = vunpack.c.l.b16 %v388
  %v1827 = vunpack.c.h.b16 %v388
  %v1828 = vunpack.c.l.b16 %v389
  %v1829 = vunpack.c.h.b16 %v389
  %v1830 = vunpack.c.l.b16 %v390
  %v1831 = vunpack.c.h.b16 %v390
  %v1832 = vunpack.c.l.b16 %v391
  %v1833 = vunpack.c.h.b16 %v391
  %v1834 = vunpack.c.l.b16 %v392
  %v1835 = vunpack.c.h.b16 %v392
  %v1836 = vunpack.c.l.b16 %v393
  %v1837 = vunpack.c.h.b16 %v393
  %v1838 = vunpack.c.l.b16 %v394
  %v1839 = vunpack.c.h.b16 %v394
  %v1840 = vunpack.c.l.b16 %v395
  %v1841 = vunpack.c.h.b16 %v395
  %v1842 = vunpack.c.l.b16 %v396
  %v1843 = vunpack.c.h.b16 %v396
  %v1844 = vunpack.c.l.b16 %v397
  %v1845 = vunpack.c.h.b16 %v397
  %v1846 = vunpack.c.l.b16 %v398
  %v1847 = vunpack.c.h.b16 %v398
  %v1848 = vunpack.c.l.b16 %v399
  %v1849 = vunpack.c.h.b16 %v399
  %v1850 = vunpack.c.l.b16 %v400
  %v1851 = vunpack.c.h.b16 %v400
  %v1852 = vunpack.c.l.b16 %v401
  %v1853 = vunpack.c.h.b16 %v401
  %v1854 = vunpack.c.l.b16 %v402
  %v1855 = vunpack.c.h.b16 %v402
  %v1856 = vunpack.c.l.b16 %v403
  %v1857 = vunpack.c.h.b16 %v403
  %v1858 = vunpack.c.l.b16 %v404
  %v1859 = vunpack.c.h.b16 %v404
  %v1860 = vunpack.c.l.b16 %v405
  %v1861 = vunpack.c.h.b16 %v405
  %v1862 = vunpack.c.l.b16 %v406
  %v1863 = vunpack.c.h.b16 %v406
  %v1864 = vunpack.c.l.b16 %v407
  %v1865 = vunpack.c.h.b16 %v407
  %v1866 = vunpack.c.l.b16 %v408
  %v1867 = vunpack.c.h.b16 %v408
  %v1868 = vunpack.c.l.b16 %v409
  %v1869 = vunpack.c.h.b16 %v409
  %v1870 = vunpack.c.l.b16 %v410
  %v1871 = vunpack.c.h.b16 %v410
  %v1872 = vunpack.c.l.b16 %v411
  %v1873 = vunpack.c.h.b16 %v411
  %v1874 = vunpack.c.l.b16 %v412
  %v1875 = vunpack.c.h.b16 %v412
  %v1876 = vunpack.c.l.b16 %v413
  %v1877 = vunpack.c.h.b16 %v413
  %v1878 = vunpack.c.l.b16 %v414
  %v1879 = vunpack.c.h.b16 %v414
  %v1880 = vunpack.c.l.b16 %v415
  %v1881 = vunpack.c.h.b16 %v415
  %v1882 = vunpack.c.l.b16 %v416
  %v1883 = vunpack.c.h.b16 %v416
  %v1884 = vunpack.c.l.b16 %v417
  %v1885 = vunpack.c.h.b16 %v417
  %v1886 = vunpack.c.l.b16 %v418
  %v1887 = vunpack.c.h.b16 %v418
  %v1888 = vunpack.c.l.b16 %v419
  %v1889 = vunpack.c.h.b16 %v419
  %v1890 = vunpack.c.l.b16 %v420
  %v1891 = vunpack.c.h.b16 %v420
  %v1892 = vunpack.c.l.b16 %v421
  %v1893 = vunpack.c.h.b16 %v421
  %v1894 = vunpack.c.l.b16 %v422
  %v1895 = vunpack.c.h.b16 %v422
  %v1896 = vunpack.c.l.b16 %v423
  %v1897 = vunpack.c.h.b16 %v423
  %v1898 = vunpack.c.l.b16 %v424
  %v1899 = vunpack.c.h.b16 %v424
  %v1900 = vunpack.c.l.b16 %v425
  %v1901 = vunpack.c.h.b16 %v425
  %v1902 = vunpack.c.l.b16 %v426
  %v1903 = vunpack.c.h.b16 %v426
  %v1904 = vunpack.c.l.b16 %v427
  %v1905 = vunpack.c.h.b16 %v427
  %v1906 = vunpack.c.l.b16 %v428
  %v1907 = vunpack.c.h.b16 %v428
  %v1908 = vunpack.c.l.b16 %v429
  %v1909 = vunpack.c.h.b16 %v429
  %v1910 = vunpack.c.l.b16 %v430
  %v1911 = vunpack.c.h.b16 %v430
  %v1912 = vunpack.c.l.b16 %v431
  %v1913 = vunpack.c.h.b16 %v431
  %v1914 = vunpack.c.l.b16 %v432
  %v1915 = vunpack.c.h.b16 %v432
  %v1916 = vunpack.c.l.b16 %v433
  %v1917 = vunpack.c.h.b16 %v433
  %v1918 = vunpack.c.l.b16 %v434
  %v1919 = vunpack.c.h.b16 %v434
  %v1920 = vunpack.c.l.b16 %v435
  %v1921 = vunpack.c.h.b16 %v435
  %v1922 = vunpack.c.l.b16 %v436
  %v1923 = vunpack.c.h.b16 %v436
  %v1924 = vunpack.c.l.b16 %v437
  %v1925 = vunpack.c.h.b16 %v437
  %v1926 = vunpack.c.l.b16 %v438
  %v1927 = vunpack.c.h.b16 %v438
  %v1928 = vunpack.c.l.b16 %v439
  %v1929 = vunpack.c.h.b16 %v439
  %v1930 = vunpack.c.l.b16 %v440
  %v1931 = vunpack.c.h.b16 %v440
  %v1932 = vunpack.c.l.b16 %v441
  %v1933 = vunpack.c.h.b16 %v441
  %v1934 = vunpack.c.l.b16 %v442
  %v1935 = vunpack.c.h.b16 %v442
  %v1936 = vunpack.c.l.b16 %v443
  %v1937 = vunpack.c.h.b16 %v443
  %v1938 = vunpack.c.l.b16 %v444
  %v1939 = vunpack.c.h.b16 %v444
  %v1940 = vunpack.c.l.b16 %v445
  %v1941 = vunpack.c.h.b16 %v445
  %v1942 = vunpack.c.l.b16 %v446
  %v1943 = vunpack.c.h.b16 %v446
  %v1944 = vunpack.c.l.b16 %v447
  %v1945 = vunpack.c.h.b16 %v447
  %v1946 = vunpack.c.l.b16 %v448
  %v1947 = vunpack.c.h.b16 %v448
  %v1948 = vunpack.c.l.b16 %v449
  %v1949 = vunpack.c.h.b16 %v449
  %v1950 = vunpack.c.l.b16 %v450
  %v1951 = vunpack.c.h.b16 %v450
  %v1952 = vunpack.c.l.b16 %v451
  %v1953 = vunpack.c.h.b16 %v451
  %v1954 = vunpack.c.l.b16 %v452
  %v1955 = vunpack.c.h.b16 %v452
  %v1956 = vunpack.c.l.b16 %v453
  %v1957 = vunpack.c.h.b16 %v453
  %v1958 = vunpack.c.l.b16 %v454
  %v1959 = vunpack.c.h.b16 %v454
  %v1960 = vunpack.c.l.b16 %v455
  %v1961 = vunpack.c.h.b16 %v455
  %v1962 = vunpack.c.l.b16 %v456
  %v1963 = vunpack.c.h.b16 %v456
  %v1964 = vunpack.c.l.b16 %v457
  %v1965 = vunpack.c.h.b16 %v457
  %v1966 = vunpack.c.l.b16 %v458
  %v1967 = vunpack.c.h.b16 %v458
  %v1968 = vunpack.c.l.b16 %v459
  %v1969 = vunpack.c.h.b16 %v459
  %v1970 = vunpack.c.l.b16 %v460
  %v1971 = vunpack.c.h.b16 %v460
  %v1972 = vunpack.c.l.b16 %v461
  %v1973 = vunpack.c.h.b16 %v461
  %v1974 = vunpack.c.l.b16 %v462
  %v1975 = vunpack.c.h.b16 %v462
  %v1976 = vunpack.c.l.b16 %v463
  %v1977 = vunpack.c.h.b16 %v463
  %v1978 = vunpack.c.l.b16 %v464
  %v1979 = vunpack.c.h.b16 %v464
  %v1980 = vunpack.c.l.b16 %v465
  %v1981 = vunpack.c.h.b16 %v465
  %v1982 = vunpack.c.l.b16 %v466
  %v1983 = vunpack.c.h.b16 %v466
  %v1984 = vunpack.c.l.b16 %v467
  %v1985 = vunpack.c.h.b16 %v467
  %v1986 = vunpack.c.l.b16 %v468
  %v1987 = vunpack.c.h.b16 %v468
  %v1988 = vunpack.c.l.b16 %v469
  %v1989 = vunpack.c.h.b16 %v469
  %v1990 = vunpack.c.l.b16 %v470
  %v1991 = vunpack.c.h.b16 %v470
  %v1992 = vunpack.c.l.b16 %v471
  %v1993 = vunpack.c.h.b16 %v471
  %v1994 = vunpack.c.l.b16 %v472
  %v1995 = vunpack.c.h.b16 %v472
  %v1996 = vunpack.c.l.b16 %v473
  %v1997 = vunpack.c.h.b16 %v473
  %v1998 = vunpack.c.l.b16 %v474
  %v1999 = vunpack.c.h.b16 %v474
  %v2000 = vunpack.c.l.b16 %v475
  %v2001 = vunpack.c.h.b16 %v475
  %v2002 = vunpack.c.l.b16 %v476
  %v2003 = vunpack.c.h.b16 %v476
  %v2004 = vunpack.c.l.b16 %v477
  %v2005 = vunpack.c.h.b16 %v477
  %v2006 = vunpack.c.l.b16 %v478
  %v2007 = vunpack.c.h.b16 %v478
  %v2008 = vunpack.c.l.b16 %v479
  %v2009 = vunpack.c.h.b16 %v479
  %v2010 = vunpack.c.l.b16 %v480
  %v2011 = vunpack.c.h.b16 %v480
  %v2012 = vunpack.c.l.b16 %v481
  %v2013 = vunpack.c.h.b16 %v481
  %v2014 = vunpack.c.l.b16 %v482
  %v2015 = vunpack.c.h.b16 %v482
  %v2016 = vunpack.c.l.b16 %v483
  %v2017 = vunpack.c.h.b16 %v483
  %v2018 = vunpack.c.l.b16 %v484
  %v2019 = vunpack.c.h.b16 %v484
  %v2020 = vunpack.c.l.b16 %v485
  %v2021 = vunpack.c.h.b16 %v485
  %v2022 = vunpack.c.l.b16 %v486
  %v2023 = vunpack.c.h.b16 %v486
  %v2024 = vunpack.c.l.b16 %v487
  %v2025 = vunpack.c.h.b16 %v487
  %v2026 = vunpack.c.l.b16 %v488
  %v2027 = vunpack.c.h.b16 %v488
  %v2028 = vpack.c.b16 %v1166, %v1164
  %v2029 = vpack.c.b16 %v1167, %v1165
  %v2030 = vpack.c.b16 %v1170, %v1168
  %v2031 = vpack.c.b16 %v1171, %v1169
  %v2032 = vpack.c.b16 %v1174, %v1172
  %v2033 = vpack.c.b16 %v1175, %v1173
  %v2034 = vpack.c.b16 %v1178, %v1176
  %v2035 = vpack.c.b16 %v1179, %v1177
  %v2036 = vpack.c.b16 %v1182, %v1180
  %v2037 = vpack.c.b16 %v1183, %v1181
  %v2038 = vpack.c.b16 %v1186, %v1184
  %v2039 = vpack.c.b16 %v1187, %v1185
  %v2040 = vpack.c.b16 %v1190, %v1188
  %v2041 = vpack.c.b16 %v1191, %v1189
  %v2042 = vpack.c.b16 %v1194, %v1192
  %v2043 = vpack.c.b16 %v1195, %v1193
  %v2044 = vpack.c.b16 %v1198, %v1196
  %v2045 = vpack.c.b16 %v1199, %v1197
  %v2046 = vpack.c.b16 %v1202, %v1200
  %v2047 = vpack.c.b16 %v1203, %v1201
  %v2048 = vpack.c.b16 %v1206, %v1204
  %v2049 = vpack.c.b16 %v1207, %v1205
  %v2050 = vpack.c.b16 %v1210, %v1208
  %v2051 = vpack.c.b16 %v1211, %v1209
  %v2052 = vpack.c.b16 %v1214, %v1212
  %v2053 = vpack.c.b16 %v1215, %v1213
  %v2054 = vpack.c.b16 %v1218, %v1216
  %v2055 = vpack.c.b16 %v1219, %v1217
  %v2056 = vpack.c.b16 %v1222, %v1220
  %v2057 = vpack.c.b16 %v1223, %v1221
  %v2058 = vpack.c.b16 %v1226, %v1224
  %v2059 = vpack.c.b16 %v1227, %v1225
  %v2060 = vpack.c.b16 %v1230, %v1228
  %v2061 = vpack.c.b16 %v1231, %v1229
  %v2062 = vpack.c.b16 %v1234, %v1232
  %v2063 = vpack.c.b16 %v1235, %v1233
  %v2064 = vpack.c.b16 %v1238, %v1236
  %v2065 = vpack.c.b16 %v1239, %v1237
  %v2066 = vpack.c.b16 %v1242, %v1240
  %v2067 = vpack.c.b16 %v1243, %v1241
  %v2068 = vpack.c.b16 %v1246, %v1244
  %v2069 = vpack.c.b16 %v1247, %v1245
  %v2070 = vpack.c.b16 %v1250, %v1248
  %v2071 = vpack.c.b16 %v1251, %v1249
  %v2072 = vpack.c.b16 %v1254, %v1252
  %v2073 = vpack.c.b16 %v1255, %v1253
  %v2074 = vpack.c.b16 %v1258, %v1256
  %v2075 = vpack.c.b16 %v1259, %v1257
  %v2076 = vpack.c.b16 %v1262, %v1260
  %v2077 = vpack.c.b16 %v1263, %v1261
  %v2078 = vpack.c.b16 %v1266, %v1264
  %v2079 = vpack.c.b16 %v1267, %v1265
  %v2080 = vpack.c.b16 %v1270, %v1268
  %v2081 = vpack.c.b16 %v1271, %v1269
  %v2082 = vpack.c.b16 %v1274, %v1272
  %v2083 = vpack.c.b16 %v1275, %v1273
  %v2084 = vpack.c.b16 %v1278, %v1276
  %v2085 = vpack.c.b16 %v1279, %v1277
  %v2086 = vpack.c.b16 %v1282, %v1280
  %v2087 = vpack.c.b16 %v1283, %v1281
  %v2088 = vpack.c.b16 %v1286, %v1284
  %v2089 = vpack.c.b16 %v1287, %v1285
  %v2090 = vpack.c.b16 %v1290, %v1288
  %v2091 = vpack.c.b16 %v1291, %v1289
  %v2092 = vpack.c.b16 %v1294, %v1292
  %v2093 = vpack.c.b16 %v1295, %v1293
  %v2094 = vpack.c.b16 %v1298, %v1296
  %v2095 = vpack.c.b16 %v1299, %v1297
  %v2096 = vpack.c.b16 %v1302, %v1300
  %v2097 = vpack.c.b16 %v1303, %v1301
  %v2098 = vpack.c.b16 %v1306, %v1304
  %v2099 = vpack.c.b16 %v1307, %v1305
  %v2100 = vpack.c.b16 %v1310, %v1308
  %v2101 = vpack.c.b16 %v1311, %v1309
  %v2102 = vpack.c.b16 %v1314, %v1312
  %v2103 = vpack.c.b16 %v1315, %v1313
  %v2104 = vpack.c.b16 %v1318, %v1316
  %v2105 = vpack.c.b16 %v1319, %v1317
  %v2106 = vpack.c.b16 %v1322, %v1320
  %v2107 = vpack.c.b16 %v1323, %v1321
  %v2108 = vpack.c.b16 %v1326, %v1324
  %v2109 = vpack.c.b16 %v1327, %v1325
  %v2110 = vpack.c.b16 %v1330, %v1328
  %v2111 = vpack.c.b16 %v1331, %v1329
  %v2112 = vpack.c.b16 %v1334, %v1332
  %v2113 = vpack.c.b16 %v1335, %v1333
  %v2114 = vpack.c.b16 %v1338, %v1336
  %v2115 = vpack.c.b16 %v1339, %v1337
  %v2116 = vpack.c.b16 %v1342, %v1340
  %v2117 = vpack.c.b16 %v1343, %v1341
  %v2118 = vpack.c.b16 %v1346, %v1344
  %v2119 = vpack.c.b16 %v1347, %v1345
  %v2120 = vpack.c.b16 %v1350, %v1348
  %v2121 = vpack.c.b16 %v1351, %v1349
  %v2122 = vpack.c.b16 %v1354, %v1352
  %v2123 = vpack.c.b16 %v1355, %v1353
  %v2124 = vpack.c.b16 %v1358, %v1356
  %v2125 = vpack.c.b16 %v1359, %v1357
  %v2126 = vpack.c.b16 %v1362, %v1360
  %v2127 = vpack.c.b16 %v1363, %v1361
  %v2128 = vpack.c.b16 %v1366, %v1364
  %v2129 = vpack.c.b16 %v1367, %v1365
  %v2130 = vpack.c.b16 %v1370, %v1368
  %v2131 = vpack.c.b16 %v1371, %v1369
  %v2132 = vpack.c.b16 %v1374, %v1372
  %v2133 = vpack.c.b16 %v1375, %v1373
  %v2134 = vpack.c.b16 %v1378, %v1376
  %v2135 = vpack.c.b16 %v1379, %v1377
  %v2136 = vpack.c.b16 %v1382, %v1380
  %v2137 = vpack.c.b16 %v1383, %v1381
  %v2138 = vpack.c.b16 %v1386, %v1384
  %v2139 = vpack.c.b16 %v1387, %v1385
  %v2140 = vpack.c.b16 %v1390, %v1388
  %v2141 = vpack.c.b16 %v1391, %v1389
  %v2142 = vpack.c.b16 %v1394, %v1392
  %v2143 = vpack.c.b16 %v1395, %v1393
  %v2144 = vpack.c.b16 %v1398, %v1396
  %v2145 = vpack.c.b16 %v1399, %v1397
  %v2146 = vpack.c.b16 %v1402, %v1400
  %v2147 = vpack.c.b16 %v1403, %v1401
  %v2148 = vpack.c.b16 %v1406, %v1404
  %v2149 = vpack.c.b16 %v1407, %v1405
  %v2150 = vpack.c.b16 %v1410, %v1408
  %v2151 = vpack.c.b16 %v1411, %v1409
  %v2152 = vpack.c.b16 %v1414, %v1412
  %v2153 = vpack.c.b16 %v1415, %v1413
  %v2154 = vpack.c.b16 %v1418, %v1416
  %v2155 = vpack.c.b16 %v1419, %v1417
  %v2156 = vpack.c.b16 %v1422, %v1420
  %v2157 = vpack.c.b16 %v1423, %v1421
  %v2158 = vpack.c.b16 %v1426, %v1424
  %v2159 = vpack.c.b16 %v1427, %v1425
  %v2160 = vpack.c.b16 %v1430, %v1428
  %v2161 = vpack.c.b16 %v1431, %v1429
  %v2162 = vpack.c.b16 %v1434, %v1432
  %v2163 = vpack.c.b16 %v1435, %v1433
  %v2164 = vpack.c.b16 %v1438, %v1436
  %v2165 = vpack.c.b16 %v1439, %v1437
  %v2166 = vpack.c.b16 %v1442, %v1440
  %v2167 = vpack.c.b16 %v1443, %v1441
  %v2168 = vpack.c.b16 %v1446, %v1444
  %v2169 = vpack.c.b16 %v1447, %v1445
  %v2170 = vpack.c.b16 %v1450, %v1448
  %v2171 = vpack.c.b16 %v1451, %v1449
  %v2172 = vpack.c.b16 %v1454, %v1452
  %v2173 = vpack.c.b16 %v1455, %v1453
  %v2174 = vpack.c.b16 %v1458, %v1456
  %v2175 = vpack.c.b16 %v1459, %v1457
  %v2176 = vpack.c.b16 %v1462, %v1460
  %v2177 = vpack.c.b16 %v1463, %v1461
  %v2178 = vpack.c.b16 %v1466, %v1464
  %v2179 = vpack.c.b16 %v1467, %v1465
  %v2180 = vpack.c.b16 %v1470, %v1468
  %v2181 = vpack.c.b16 %v1471, %v1469
  %v2182 = vpack.c.b16 %v1474, %v1472
  %v2183 = vpack.c.b16 %v1475, %v1473
  %v2184 = vpack.c.b16 %v1478, %v1476
  %v2185 = vpack.c.b16 %v1479, %v1477
  %v2186 = vpack.c.b16 %v1482, %v1480
  %v2187 = vpack.c.b16 %v1483, %v1481
  %v2188 = vpack.c.b16 %v1486, %v1484
  %v2189 = vpack.c.b16 %v1487, %v1485
  %v2190 = vpack.c.b16 %v1490, %v1488
  %v2191 = vpack.c.b16 %v1491, %v1489
  %v2192 = vpack.c.b16 %v1494, %v1492
  %v2193 = vpack.c.b16 %v1495, %v1493
  %v2194 = vpack.c.b16 %v1498, %v1496
  %v2195 = vpack.c.b16 %v1499, %v1497
  %v2196 = vpack.c.b16 %v1502, %v1500
  %v2197 = vpack.c.b16 %v1503, %v1501
  %v2198 = vpack.c.b16 %v1506, %v1504
  %v2199 = vpack.c.b16 %v1507, %v1505
  %v2200 = vpack.c.b16 %v1510, %v1508
  %v2201 = vpack.c.b16 %v1511, %v1509
  %v2202 = vpack.c.b16 %v1514, %v1512
  %v2203 = vpack.c.b16 %v1515, %v1513
  %v2204 = vpack.c.b16 %v1518, %v1516
  %v2205 = vpack.c.b16 %v1519, %v1517
  %v2206 = vpack.c.b16 %v1522, %v1520
  %v2207 = vpack.c.b16 %v1523, %v1521
  %v2208 = vpack.c.b16 %v1526, %v1524
  %v2209 = vpack.c.b16 %v1527, %v1525
  %v2210 = vpack.c.b16 %v1530, %v1528
  %v2211 = vpack.c.b16 %v1531, %v1529
  %v2212 = vpack.c.b16 %v1534, %v1532
  %v2213 = vpack.c.b16 %v1535, %v1533
  %v2214 = vpack.c.b16 %v1538, %v1536
  %v2215 = vpack.c.b16 %v1539, %v1537
  %v2216 = vpack.c.b16 %v1542, %v1540
  %v2217 = vpack.c.b16 %v1543, %v1541
  %v2218 = vpack.c.b16 %v1546, %v1544
  %v2219 = vpack.c.b16 %v1547, %v1545
  %v2220 = vpack.c.b16 %v1550, %v1548
  %v2221 = vpack.c.b16 %v1551, %v1549
  %v2222 = vpack.c.b16 %v1554, %v1552
  %v2223 = vpack.c.b16 %v1555, %v1553
  %v2224 = vpack.c.b16 %v1558, %v1556
  %v2225 = vpack.c.b16 %v1559, %v1557
  %v2226 = vpack.c.b16 %v1562, %v1560
  %v2227 = vpack.c.b16 %v1563, %v1561
  %v2228 = vpack.c.b16 %v1566, %v1564
  %v2229 = vpack.c.b16 %v1567, %v1565
  %v2230 = vpack.c.b16 %v1570, %v1568
  %v2231 = vpack.c.b16 %v1571, %v1569
  %v2232 = vpack.c.b16 %v1574, %v1572
  %v2233 = vpack.c.b16 %v1575, %v1573
  %v2234 = vpack.c.b16 %v1578, %v1576
  %v2235 = vpack.c.b16 %v1579, %v1577
  %v2236 = vpack.c.b16 %v1582, %v1580
  %v2237 = vpack.c.b16 %v1583, %v1581
  %v2238 = vpack.c.b16 %v1586, %v1584
  %v2239 = vpack.c.b16 %v1587, %v1585
  %v2240 = vpack.c.b16 %v1590, %v1588
  %v2241 = vpack.c.b16 %v1591, %v1589
  %v2242 = vpack.c.b16 %v1594, %v1592
  %v2243 = vpack.c.b16 %v1595, %v1593
  %v2244 = vpack.c.b16 %v1598, %v1596
  %v2245 = vpack.c.b16 %v1599, %v1597
  %v2246 = vpack.c.b16 %v1602, %v1600
  %v2247 = vpack.c.b16 %v1603, %v1601
  %v2248 = vpack.c.b16 %v1606, %v1604
  %v2249 = vpack.c.b16 %v1607, %v1605
  %v2250 = vpack.c.b16 %v1610, %v1608
  %v2251 = vpack.c.b16 %v1611, %v1609
  %v2252 = vpack.c.b16 %v1614, %v1612
  %v2253 = vpack.c.b16 %v1615, %v1613
  %v2254 = vpack.c.b16 %v1618, %v1616
  %v2255 = vpack.c.b16 %v1619, %v1617
  %v2256 = vpack.c.b16 %v1622, %v1620
  %v2257 = vpack.c.b16 %v1623, %v1621
  %v2258 = vpack.c.b16 %v1626, %v1624
  %v2259 = vpack.c.b16 %v1627, %v1625
  %v2260 = vpack.c.b16 %v1630, %v1628
  %v2261 = vpack.c.b16 %v1631, %v1629
  %v2262 = vpack.c.b16 %v1634, %v1632
  %v2263 = vpack.c.b16 %v1635, %v1633
  %v2264 = vpack.c.b16 %v1638, %v1636
  %v2265 = vpack.c.b16 %v1639, %v1637
  %v2266 = vpack.c.b16 %v1642, %v1640
  %v2267 = vpack.c.b16 %v1643, %v1641
  %v2268 = vpack.c.b16 %v1646, %v1644
  %v2269 = vpack.c.b16 %v1647, %v1645
  %v2270 = vpack.c.b16 %v1650, %v1648
  %v2271 = vpack.c.b16 %v1651, %v1649
  %v2272 = vpack.c.b16 %v1654, %v1652
  %v2273 = vpack.c.b16 %v1655, %v1653
  %v2274 = vpack.c.b16 %v1658, %v1656
  %v2275 = vpack.c.b16 %v1659, %v1657
  %v2276 = vpack.c.b16 %v1662, %v1660
  %v2277 = vpack.c.b16 %v1663, %v1661
  %v2278 = vpack.c.b16 %v1666, %v1664
  %v2279 = vpack.c.b16 %v1667, %v1665
  %v2280 = vpack.c.b16 %v1670, %v1668
  %v2281 = vpack.c.b16 %v1671, %v1669
  %v2282 = vpack.c.b16 %v1674, %v1672
  %v2283 = vpack.c.b16 %v1675, %v1673
  %v2284 = vpack.c.b16 %v1678, %v1676
  %v2285 = vpack.c.b16 %v1679, %v1677
  %v2286 = vpack.c.b16 %v1682, %v1680
  %v2287 = vpack.c.b16 %v1683, %v1681
  %v2288 = vpack.c.b16 %v1686, %v1684
  %v2289 = vpack.c.b16 %v1687, %v1685
  %v2290 = vpack.c.b16 %v1690, %v1688
  %v2291 = vpack.c.b16 %v1691, %v1689
  %v2292 = vpack.c.b16 %v1694, %v1692
  %v2293 = vpack.c.b16 %v1695, %v1693
  %v2294 = vpack.c.b16 %v1698, %v1696
  %v2295 = vpack.c.b16 %v1699, %v1697
  %v2296 = vpack.c.b16 %v1702, %v1700
  %v2297 = vpack.c.b16 %v1703, %v1701
  %v2298 = vpack.c.b16 %v1706, %v1704
  %v2299 = vpack.c.b16 %v1707, %v1705
  %v2300 = vpack.c.b16 %v1710, %v1708
  %v2301 = vpack.c.b16 %v1711, %v1709
  %v2302 = vpack.c.b16 %v1714, %v1712
  %v2303 = vpack.c.b16 %v1715, %v1713
  %v2304 = vpack.c.b16 %v1718, %v1716
  %v2305 = vpack.c.b16 %v1719, %v1717
  %v2306 = vpack.c.b16 %v1722, %v1720
  %v2307 = vpack.c.b16 %v1723, %v1721
  %v2308 = vpack.c.b16 %v1726, %v1724
  %v2309 = vpack.c.b16 %v1727, %v1725
  %v2310 = vpack.c.b16 %v1730, %v1728
  %v2311 = vpack.c.b16 %v1731, %v1729
  %v2312 = vpack.c.b16 %v1734, %v1732
  %v2313 = vpack.c.b16 %v1735, %v1733
  %v2314 = vpack.c.b16 %v1738, %v1736
  %v2315 = vpack.c.b16 %v1739, %v1737
  %v2316 = vpack.c.b16 %v1742, %v1740
  %v2317 = vpack.c.b16 %v1743, %v1741
  %v2318 = vpack.c.b16 %v1746, %v1744
  %v2319 = vpack.c.b16 %v1747, %v1745
  %v2320 = vpack.c.b16 %v1750, %v1748
  %v2321 = vpack.c.b16 %v1751, %v1749
  %v2322 = vpack.c.b16 %v1754, %v1752
  %v2323 = vpack.c.b16 %v1755, %v1753
  %v2324 = vpack.c.b16 %v1758, %v1756
  %v2325 = vpack.c.b16 %v1759, %v1757
  %v2326 = vpack.c.b16 %v1762, %v1760
  %v2327 = vpack.c.b16 %v1763, %v1761
  %v2328 = vpack.c.b16 %v1766, %v1764
  %v2329 = vpack.c.b16 %v1767, %v1765
  %v2330 = vpack.c.b16 %v1770, %v1768
  %v2331 = vpack.c.b16 %v1771, %v1769
  %v2332 = vpack.c.b16 %v1774, %v1772
  %v2333 = vpack.c.b16 %v1775, %v1773
  %v2334 = vpack.c.b16 %v1778, %v1776
  %v2335 = vpack.c.b16 %v1779, %v1777
  %v2336 = vpack.c.b16 %v1782, %v1780
  %v2337 = vpack.c.b16 %v1783, %v1781
  %v2338 = vpack.c.b16 %v1786, %v1784
  %v2339 = vpack.c.b16 %v1787, %v1785
  %v2340 = vpack.c.b16 %v1790, %v1788
  %v2341 = vpack.c.b16 %v1791, %v1789
  %v2342 = vpack.c.b16 %v1794, %v1792
  %v2343 = vpack.c.b16 %v1795, %v1793
  %v2344 = vpack.c.b16 %v1798, %v1796
  %v2345 = vpack.c.b16 %v1799, %v1797
  %v2346 = vpack.c.b16 %v1802, %v1800
  %v2347 = vpack.c.b16 %v1803, %v1801
  %v2348 = vpack.c.b16 %v1806, %v1804
  %v2349 = vpack.c.b16 %v1807, %v1805
  %v2350 = vpack.c.b16 %v1810, %v1808
  %v2351 = vpack.c.b16 %v1811, %v1809
  %v2352 = vpack.c.b16 %v1814, %v1812
  %v2353 = vpack.c.b16 %v1815, %v1813
  %v2354 = vpack.c.b16 %v1818, %v1816
  %v2355 = vpack.c.b16 %v1819, %v1817
  %v2356 = vpack.c.b16 %v1822, %v1820
  %v2357 = vpack.c.b16 %v1823, %v1821
  %v2358 = vpack.c.b16 %v1826, %v1824
  %v2359 = vpack.c.b16 %v1827, %v1825
  %v2360 = vpack.c.b16 %v1830, %v1828
  %v2361 = vpack.c.b16 %v1831, %v1829
  %v2362 = vpack.c.b16 %v1834, %v1832
  %v2363 = vpack.c.b16 %v1835, %v1833
  %v2364 = vpack.c.b16 %v1838, %v1836
  %v2365 = vpack.c.b16 %v1839, %v1837
  %v2366 = vpack.c.b16 %v1842, %v1840
  %v2367 = vpack.c.b16 %v1843, %v1841
  %v2368 = vpack.c.b16 %v1846, %v1844
  %v2369 = vpack.c.b16 %v1847, %v1845
  %v2370 = vpack.c.b16 %v1850, %v1848
  %v2371 = vpack.c.b16 %v1851, %v1849
  %v2372 = vpack.c.b16 %v1854, %v1852
  %v2373 = vpack.c.b16 %v1855, %v1853
  %v2374 = vpack.c.b16 %v1858, %v1856
  %v2375 = vpack.c.b16 %v1859, %v1857
  %v2376 = vpack.c.b16 %v1862, %v1860
  %v2377 = vpack.c.b16 %v1863, %v1861
  %v2378 = vpack.c.b16 %v1866, %v1864
  %v2379 = vpack.c.b16 %v1867, %v1865
  %v2380 = vpack.c.b16 %v1870, %v1868
  %v2381 = vpack.c.b16 %v1871, %v1869
  %v2382 = vpack.c.b16 %v1874, %v1872
  %v2383 = vpack.c.b16 %v1875, %v1873
  %v2384 = vpack.c.b16 %v1878, %v1876
  %v2385 = vpack.c.b16 %v1879, %v1877
  %v2386 = vpack.c.b16 %v1882, %v1880
  %v2387 = vpack.c.b16 %v1883, %v1881
  %v2388 = vpack.c.b16 %v1886, %v1884
  %v2389 = vpack.c.b16 %v1887, %v1885
  %v2390 = vpack.c.b16 %v1890, %v1888
  %v2391 = vpack.c.b16 %v1891, %v1889
  %v2392 = vpack.c.b16 %v1894, %v1892
  %v2393 = vpack.c.b16 %v1895, %v1893
  %v2394 = vpack.c.b16 %v1898, %v1896
  %v2395 = vpack.c.b16 %v1899, %v1897
  %v2396 = vpack.c.b16 %v1902, %v1900
  %v2397 = vpack.c.b16 %v1903, %v1901
  %v2398 = vpack.c.b16 %v1906, %v1904
  %v2399 = vpack.c.b16 %v1907, %v1905
  %v2400 = vpack.c.b16 %v1910, %v1908
  %v2401 = vpack.c.b16 %v1911, %v1909
  %v2402 = vpack.c.b16 %v1914, %v1912
  %v2403 = vpack.c.b16 %v1915, %v1913
  %v2404 = vpack.c.b16 %v1918, %v1916
  %v2405 = vpack.c.b16 %v1919, %v1917
  %v2406 = vpack.c.b16 %v1922, %v1920
  %v2407 = vpack.c.b16 %v1923, %v1921
  %v2408 = vpack.c.b16 %v1926, %v1924
  %v2409 = vpack.c.b16 %v1927, %v1925
  %v2410 = vpack.c.b16 %v1930, %v1928
  %v2411 = vpack.c.b16 %v1931, %v1929
  %v2412 = vpack.c.b16 %v1934, %v1932
  %v2413 = vpack.c.b16 %v1935, %v1933
  %v2414 = vpack.c.b16 %v1938, %v1936
  %v2415 = vpack.c.b16 %v1939, %v1937
  %v2416 = vpack.c.b16 %v1942, %v1940
  %v2417 = vpack.c.b16 %v1943, %v1941
  %v2418 = vpack.c.b16 %v1946, %v1944
  %v2419 = vpack.c.b16 %v1947, %v1945
  %v2420 = vpack.c.b16 %v1950, %v1948
  %v2421 = vpack.c.b16 %v1951, %v1949
  %v2422 = vpack.c.b16 %v1954, %v1952
  %v2423 = vpack.c.b16 %v1955, %v1953
  %v2424 = vpack.c.b16 %v1958, %v1956
  %v2425 = vpack.c.b16 %v1959, %v1957
  %v2426 = vpack.c.b16 %v1962, %v1960
  %v2427 = vpack.c.b16 %v1963, %v1961
  %v2428 = vpack.c.b16 %v1966, %v1964
  %v2429 = vpack.c.b16 %v1967, %v1965
  %v2430 = vpack.c.b16 %v1970, %v1968
  %v2431 = vpack.c.b16 %v1971, %v1969
  %v2432 = vpack.c.b16 %v1974, %v1972
  %v2433 = vpack.c.b16 %v1975, %v1973
  %v2434 = vpack.c.b16 %v1978, %v1976
  %v2435 = vpack.c.b16 %v1979, %v1977
  %v2436 = vpack.c.b16 %v1982, %v1980
  %v2437 = vpack.c.b16 %v1983, %v1981
  %v2438 = vpack.c.b16 %v1986, %v1984
  %v2439 = vpack.c.b16 %v1987, %v1985
  %v2440 = vpack.c.b16 %v1990, %v1988
  %v2441 = vpack.c.b16 %v1991, %v1989
  %v2442 = vpack.c.b16 %v1994, %v1992
  %v2443 = vpack.c.b16 %v1995, %v1993
  %v2444 = vpack.c.b16 %v1998, %v1996
  %v2445 = vpack.c.b16 %v1999, %v1997
  %v2446 = vpack.c.b16 %v2002, %v2000
  %v2447 = vpack.c.b16 %v2003, %v2001
  %v2448 = vpack.c.b16 %v2006, %v2004
  %v2449 = vpack.c.b16 %v2007, %v2005
  %v2450 = vpack.c.b16 %v2010, %v2008
  %v2451 = vpack.c.b16 %v2011, %v2009
  %v2452 = vpack.c.b16 %v2014, %v2012
  %v2453 = vpack.c.b16 %v2015, %v2013
  %v2454 = vpack.c.b16 %v2018, %v2016
  %v2455 = vpack.c.b16 %v2019, %v2017
  %v2456 = vpack.c.b16 %v2022, %v2020
  %v2457 = vpack.c.b16 %v2023, %v2021
  %v2458 = vpack.c.b16 %v2026, %v2024
  %v2459 = vpack.c.b16 %v2027, %v2025
  %2892 = vmatprep.subr.bf16.mxu0 %v2029
  %2893 = vmatpush1.bf16.msra.mxu0 %v2028
  %2894 = vmatprep.subr.bf16.mxu0 %v2031
  %2895 = vmatpush1.bf16.msra.mxu0 %v2030
  %2896 = vmatprep.subr.bf16.mxu0 %v2033
  %2897 = vmatpush1.bf16.msra.mxu0 %v2032
  %2898 = vmatprep.subr.bf16.mxu0 %v2035
  %2899 = vmatpush1.bf16.msra.mxu0 %v2034
  %2900 = vmatprep.subr.bf16.mxu0 %v2037
  %2901 = vmatpush1.bf16.msra.mxu0 %v2036
  %2902 = vmatprep.subr.bf16.mxu0 %v2039
  %2903 = vmatpush1.bf16.msra.mxu0 %v2038
  %2904 = vmatprep.subr.bf16.mxu0 %v2041
  %2905 = vmatpush1.bf16.msra.mxu0 %v2040
  %2906 = vmatprep.subr.bf16.mxu0 %v2043
  %2907 = vmatpush1.bf16.msra.mxu0 %v2042
  %2908 = vmatprep.subr.bf16.mxu0 %v2045
  %2909 = vmatpush1.bf16.msra.mxu0 %v2044
  %2910 = vmatprep.subr.bf16.mxu0 %v2047
  %2911 = vmatpush1.bf16.msra.mxu0 %v2046
  %2912 = vmatprep.subr.bf16.mxu0 %v2049
  %2913 = vmatpush1.bf16.msra.mxu0 %v2048
  %2914 = vmatprep.subr.bf16.mxu0 %v2051
  %2915 = vmatpush1.bf16.msra.mxu0 %v2050
  %2916 = vmatprep.subr.bf16.mxu0 %v2053
  %2917 = vmatpush1.bf16.msra.mxu0 %v2052
  %2918 = vmatprep.subr.bf16.mxu0 %v2055
  %2919 = vmatpush1.bf16.msra.mxu0 %v2054
  %2920 = vmatprep.subr.bf16.mxu0 %v2057
  %2921 = vmatpush1.bf16.msra.mxu0 %v2056
  %2922 = vmatprep.subr.bf16.mxu0 %v2059
  %2923 = vmatpush1.bf16.msra.mxu0 %v2058
  %2924 = vmatprep.mubr.bf16.mxu0 %v625
  %2925 = vmatmul.mubr.bf16.gmra.mrb[0].mxu0 %v624
  %v2926 = vpop.f32.mrb[0].mxu0
  %v2927 = vadd.f32 %v494, %v2926
  %v2928 = vpop.f32.mrb[0].mxu0
  %v2929 = vadd.f32 %v498, %v2928
  %v2930 = vpop.f32.mrb[0].mxu0
  %v2931 = vadd.f32 %v494, %v2930
  %v2932 = vpop.f32.mrb[0].mxu0
  %v2933 = vadd.f32 %v498, %v2932
  %2934 = vmatprep.mubr.bf16.mxu0 %v652
  %2935 = vmatmul.mubr.bf16.gmra.mrb[0].mxu0 %v651
  %v2936 = vpop.f32.mrb[0].mxu0
  %v2937 = vadd.f32 %v494, %v2936
  %v2938 = vpop.f32.mrb[0].mxu0
  %v2939 = vadd.f32 %v498, %v2938
  %v2940 = vpop.f32.mrb[0].mxu0
  %v2941 = vpop.f32.mrb[0].mxu0
  %2942 = vdwg.mxu0
  %2943 = vmatprep.subr.bf16.mxu0 %v2061
  %2944 = vmatpush1.bf16.msra.mxu0 %v2060
  %2945 = vmatprep.subr.bf16.mxu0 %v2063
  %2946 = vmatpush1.bf16.msra.mxu0 %v2062
  %2947 = vmatprep.subr.bf16.mxu0 %v2065
  %2948 = vmatpush1.bf16.msra.mxu0 %v2064
  %2949 = vmatprep.subr.bf16.mxu0 %v2067
  %2950 = vmatpush1.bf16.msra.mxu0 %v2066
  %2951 = vmatprep.subr.bf16.mxu0 %v2069
  %2952 = vmatpush1.bf16.msra.mxu0 %v2068
  %2953 = vmatprep.subr.bf16.mxu0 %v2071
  %2954 = vmatpush1.bf16.msra.mxu0 %v2070
  %2955 = vmatprep.subr.bf16.mxu0 %v2073
  %2956 = vmatpush1.bf16.msra.mxu0 %v2072
  %2957 = vmatprep.subr.bf16.mxu0 %v2075
  %2958 = vmatpush1.bf16.msra.mxu0 %v2074
  %2959 = vmatprep.subr.bf16.mxu0 %v2077
  %2960 = vmatpush1.bf16.msra.mxu0 %v2076
  %2961 = vmatprep.subr.bf16.mxu0 %v2079
  %2962 = vmatpush1.bf16.msra.mxu0 %v2078
  %2963 = vmatprep.subr.bf16.mxu0 %v2081
  %2964 = vmatpush1.bf16.msra.mxu0 %v2080
  %2965 = vmatprep.subr.bf16.mxu0 %v2083
  %2966 = vmatpush1.bf16.msra.mxu0 %v2082
  %2967 = vmatprep.subr.bf16.mxu0 %v2085
  %2968 = vmatpush1.bf16.msra.mxu0 %v2084
  %2969 = vmatprep.subr.bf16.mxu0 %v2087
  %2970 = vmatpush1.bf16.msra.mxu0 %v2086
  %2971 = vmatprep.subr.bf16.mxu0 %v2089
  %2972 = vmatpush1.bf16.msra.mxu0 %v2088
  %2973 = vmatprep.subr.bf16.mxu0 %v2091
  %2974 = vmatpush1.bf16.msra.mxu0 %v2090
  %2975 = vmatprep.mubr.bf16.mxu0 %v627
  %2976 = vmatmul.mubr.bf16.gmra.mrb[0].mxu0 %v626
  %v2977 = vpop.f32.mrb[0].mxu0
  %v2978 = vadd.f32 %v2927, %v2977
  %v2979 = vpop.f32.mrb[0].mxu0
  %v2980 = vadd.f32 %v2929, %v2979
  %v2981 = vpop.f32.mrb[0].mxu0
  %v2982 = vadd.f32 %v2931, %v2981
  %v2983 = vpop.f32.mrb[0].mxu0
  %v2984 = vadd.f32 %v2933, %v2983
  %2985 = vmatprep.mubr.bf16.mxu0 %v654
  %2986 = vmatmul.mubr.bf16.gmra.mrb[0].mxu0 %v653
  %v2987 = vpop.f32.mrb[0].mxu0
  %v2988 = vadd.f32 %v2937, %v2987
  %v2989 = vpop.f32.mrb[0].mxu0
  %v2990 = vadd.f32 %v2939, %v2989
  %v2991 = vpop.f32.mrb[0].mxu0
  %v2992 = vpop.f32.mrb[0].mxu0
  %2993 = vdwg.mxu0
  %2994 = vmatprep.subr.bf16.mxu0 %v2093
  %2995 = vmatpush1.bf16.msra.mxu0 %v2092
  %2996 = vmatprep.subr.bf16.mxu0 %v2095
  %2997 = vmatpush1.bf16.msra.mxu0 %v2094
  %2998 = vmatprep.subr.bf16.mxu0 %v2097
  %2999 = vmatpush1.bf16.msra.mxu0 %v2096
  %3000 = vmatprep.subr.bf16.mxu0 %v2099
  %3001 = vmatpush1.bf16.msra.mxu0 %v2098
  %3002 = vmatprep.subr.bf16.mxu0 %v2101
  %3003 = vmatpush1.bf16.msra.mxu0 %v2100
  %3004 = vmatprep.subr.bf16.mxu0 %v2103
  %3005 = vmatpush1.bf16.msra.mxu0 %v2102
  %3006 = vmatprep.subr.bf16.mxu0 %v2105
  %3007 = vmatpush1.bf16.msra.mxu0 %v2104
  %3008 = vmatprep.subr.bf16.mxu0 %v2107
  %3009 = vmatpush1.bf16.msra.mxu0 %v2106
  %3010 = vmatprep.subr.bf16.mxu0 %v2109
  %3011 = vmatpush1.bf16.msra.mxu0 %v2108
  %3012 = vmatprep.subr.bf16.mxu0 %v2111
  %3013 = vmatpush1.bf16.msra.mxu0 %v2110
  %3014 = vmatprep.subr.bf16.mxu0 %v2113
  %3015 = vmatpush1.bf16.msra.mxu0 %v2112
  %3016 = vmatprep.subr.bf16.mxu0 %v2115
  %3017 = vmatpush1.bf16.msra.mxu0 %v2114
  %3018 = vmatprep.subr.bf16.mxu0 %v2117
  %3019 = vmatpush1.bf16.msra.mxu0 %v2116
  %3020 = vmatprep.subr.bf16.mxu0 %v2119
  %3021 = vmatpush1.bf16.msra.mxu0 %v2118
  %3022 = vmatprep.subr.bf16.mxu0 %v2121
  %3023 = vmatpush1.bf16.msra.mxu0 %v2120
  %3024 = vmatprep.subr.bf16.mxu0 %v2123
  %3025 = vmatpush1.bf16.msra.mxu0 %v2122
  %3026 = vmatprep.mubr.bf16.mxu0 %v629
  %3027 = vmatmul.mubr.bf16.gmra.mrb[0].mxu0 %v628
  %v3028 = vpop.f32.mrb[0].mxu0
  %v3029 = vadd.f32 %v2978, %v3028
  %v3030 = vpop.f32.mrb[0].mxu0
  %v3031 = vadd.f32 %v2980, %v3030
  %v3032 = vpop.f32.mrb[0].mxu0
  %v3033 = vadd.f32 %v2982, %v3032
  %v3034 = vpop.f32.mrb[0].mxu0
  %v3035 = vadd.f32 %v2984, %v3034
  %3036 = vmatprep.mubr.bf16.mxu0 %v656
  %3037 = vmatmul.mubr.bf16.gmra.mrb[0].mxu0 %v655
  %v3038 = vpop.f32.mrb[0].mxu0
  %v3039 = vadd.f32 %v2988, %v3038
  %v3040 = vpop.f32.mrb[0].mxu0
  %v3041 = vadd.f32 %v2990, %v3040
  %v3042 = vpop.f32.mrb[0].mxu0
  %v3043 = vpop.f32.mrb[0].mxu0
  %3044 = vdwg.mxu0
  %3045 = vmatprep.subr.bf16.mxu0 %v2125
  %3046 = vmatpush1.bf16.msra.mxu0 %v2124
  %3047 = vmatprep.subr.bf16.mxu0 %v2127
  %3048 = vmatpush1.bf16.msra.mxu0 %v2126
  %3049 = vmatprep.subr.bf16.mxu0 %v2129
  %3050 = vmatpush1.bf16.msra.mxu0 %v2128
  %3051 = vmatprep.subr.bf16.mxu0 %v2131
  %3052 = vmatpush1.bf16.msra.mxu0 %v2130
  %3053 = vmatprep.subr.bf16.mxu0 %v2133
  %3054 = vmatpush1.bf16.msra.mxu0 %v2132
  %3055 = vmatprep.subr.bf16.mxu0 %v2135
  %3056 = vmatpush1.bf16.msra.mxu0 %v2134
  %3057 = vmatprep.subr.bf16.mxu0 %v2137
  %3058 = vmatpush1.bf16.msra.mxu0 %v2136
  %3059 = vmatprep.subr.bf16.mxu0 %v2139
  %3060 = vmatpush1.bf16.msra.mxu0 %v2138
  %3061 = vmatprep.subr.bf16.mxu0 %v2141
  %3062 = vmatpush1.bf16.msra.mxu0 %v2140
  %3063 = vmatprep.subr.bf16.mxu0 %v2143
  %3064 = vmatpush1.bf16.msra.mxu0 %v2142
  %3065 = vmatprep.subr.bf16.mxu0 %v2145
  %3066 = vmatpush1.bf16.msra.mxu0 %v2144
  %3067 = vmatprep.subr.bf16.mxu0 %v2147
  %3068 = vmatpush1.bf16.msra.mxu0 %v2146
  %3069 = vmatprep.subr.bf16.mxu0 %v2149
  %3070 = vmatpush1.bf16.msra.mxu0 %v2148
  %3071 = vmatprep.subr.bf16.mxu0 %v2151
  %3072 = vmatpush1.bf16.msra.mxu0 %v2150
  %3073 = vmatprep.subr.bf16.mxu0 %v2153
  %3074 = vmatpush1.bf16.msra.mxu0 %v2152
  %3075 = vmatprep.subr.bf16.mxu0 %v2155
  %3076 = vmatpush1.bf16.msra.mxu0 %v2154
  %3077 = vmatprep.mubr.bf16.mxu0 %v631
  %3078 = vmatmul.mubr.bf16.gmra.mrb[0].mxu0 %v630
  %v3079 = vpop.f32.mrb[0].mxu0
  %v3080 = vadd.f32 %v3029, %v3079
  %v3081 = vpop.f32.mrb[0].mxu0
  %v3082 = vadd.f32 %v3031, %v3081
  %v3083 = vpop.f32.mrb[0].mxu0
  %v3084 = vadd.f32 %v3033, %v3083
  %v3085 = vpop.f32.mrb[0].mxu0
  %v3086 = vadd.f32 %v3035, %v3085
  %3087 = vmatprep.mubr.bf16.mxu0 %v658
  %3088 = vmatmul.mubr.bf16.gmra.mrb[0].mxu0 %v657
  %v3089 = vpop.f32.mrb[0].mxu0
  %v3090 = vadd.f32 %v3039, %v3089
  %v3091 = vpop.f32.mrb[0].mxu0
  %v3092 = vadd.f32 %v3041, %v3091
  %v3093 = vpop.f32.mrb[0].mxu0
  %v3094 = vpop.f32.mrb[0].mxu0
  %3095 = vdwg.mxu0
  %3096 = vmatprep.subr.bf16.mxu0 %v2157
  %3097 = vmatpush1.bf16.msra.mxu0 %v2156
  %3098 = vmatprep.subr.bf16.mxu0 %v2159
  %3099 = vmatpush1.bf16.msra.mxu0 %v2158
  %3100 = vmatprep.subr.bf16.mxu0 %v2161
  %3101 = vmatpush1.bf16.msra.mxu0 %v2160
  %3102 = vmatprep.subr.bf16.mxu0 %v2163
  %3103 = vmatpush1.bf16.msra.mxu0 %v2162
  %3104 = vmatprep.subr.bf16.mxu0 %v2165
  %3105 = vmatpush1.bf16.msra.mxu0 %v2164
  %3106 = vmatprep.subr.bf16.mxu0 %v2167
  %3107 = vmatpush1.bf16.msra.mxu0 %v2166
  %3108 = vmatprep.subr.bf16.mxu0 %v2169
  %3109 = vmatpush1.bf16.msra.mxu0 %v2168
  %3110 = vmatprep.subr.bf16.mxu0 %v2171
  %3111 = vmatpush1.bf16.msra.mxu0 %v2170
  %3112 = vmatprep.subr.bf16.mxu0 %v2173
  %3113 = vmatpush1.bf16.msra.mxu0 %v2172
  %3114 = vmatprep.subr.bf16.mxu0 %v2175
  %3115 = vmatpush1.bf16.msra.mxu0 %v2174
  %3116 = vmatprep.subr.bf16.mxu0 %v2177
  %3117 = vmatpush1.bf16.msra.mxu0 %v2176
  %3118 = vmatprep.subr.bf16.mxu0 %v2179
  %3119 = vmatpush1.bf16.msra.mxu0 %v2178
  %3120 = vmatprep.subr.bf16.mxu0 %v2181
  %3121 = vmatpush1.bf16.msra.mxu0 %v2180
  %3122 = vmatprep.subr.bf16.mxu0 %v2183
  %3123 = vmatpush1.bf16.msra.mxu0 %v2182
  %3124 = vmatprep.subr.bf16.mxu0 %v2185
  %3125 = vmatpush1.bf16.msra.mxu0 %v2184
  %3126 = vmatprep.subr.bf16.mxu0 %v2187
  %3127 = vmatpush1.bf16.msra.mxu0 %v2186
  %3128 = vmatprep.mubr.bf16.mxu0 %v633
  %3129 = vmatmul.mubr.bf16.gmra.mrb[0].mxu0 %v632
  %v3130 = vpop.f32.mrb[0].mxu0
  %v3131 = vadd.f32 %v3080, %v3130
  %v3132 = vpop.f32.mrb[0].mxu0
  %v3133 = vadd.f32 %v3082, %v3132
  %v3134 = vpop.f32.mrb[0].mxu0
  %v3135 = vadd.f32 %v3084, %v3134
  %v3136 = vpop.f32.mrb[0].mxu0
  %v3137 = vadd.f32 %v3086, %v3136
  %3138 = vmatprep.mubr.bf16.mxu0 %v660
  %3139 = vmatmul.mubr.bf16.gmra.mrb[0].mxu0 %v659
  %v3140 = vpop.f32.mrb[0].mxu0
  %v3141 = vadd.f32 %v3090, %v3140
  %v3142 = vpop.f32.mrb[0].mxu0
  %v3143 = vadd.f32 %v3092, %v3142
  %v3144 = vpop.f32.mrb[0].mxu0
  %v3145 = vpop.f32.mrb[0].mxu0
  %3146 = vdwg.mxu0
  %3147 = vmatprep.subr.bf16.mxu0 %v2189
  %3148 = vmatpush1.bf16.msra.mxu0 %v2188
  %3149 = vmatprep.subr.bf16.mxu0 %v2191
  %3150 = vmatpush1.bf16.msra.mxu0 %v2190
  %3151 = vmatprep.subr.bf16.mxu0 %v2193
  %3152 = vmatpush1.bf16.msra.mxu0 %v2192
  %3153 = vmatprep.subr.bf16.mxu0 %v2195
  %3154 = vmatpush1.bf16.msra.mxu0 %v2194
  %3155 = vmatprep.subr.bf16.mxu0 %v2197
  %3156 = vmatpush1.bf16.msra.mxu0 %v2196
  %3157 = vmatprep.subr.bf16.mxu0 %v2199
  %3158 = vmatpush1.bf16.msra.mxu0 %v2198
  %3159 = vmatprep.subr.bf16.mxu0 %v2201
  %3160 = vmatpush1.bf16.msra.mxu0 %v2200
  %3161 = vmatprep.subr.bf16.mxu0 %v2203
  %3162 = vmatpush1.bf16.msra.mxu0 %v2202
  %3163 = vmatprep.subr.bf16.mxu0 %v2205
  %3164 = vmatpush1.bf16.msra.mxu0 %v2204
  %3165 = vmatprep.subr.bf16.mxu0 %v2207
  %3166 = vmatpush1.bf16.msra.mxu0 %v2206
  %3167 = vmatprep.subr.bf16.mxu0 %v2209
  %3168 = vmatpush1.bf16.msra.mxu0 %v2208
  %3169 = vmatprep.subr.bf16.mxu0 %v2211
  %3170 = vmatpush1.bf16.msra.mxu0 %v2210
  %3171 = vmatprep.subr.bf16.mxu0 %v2213
  %3172 = vmatpush1.bf16.msra.mxu0 %v2212
  %3173 = vmatprep.subr.bf16.mxu0 %v2215
  %3174 = vmatpush1.bf16.msra.mxu0 %v2214
  %3175 = vmatprep.subr.bf16.mxu0 %v2217
  %3176 = vmatpush1.bf16.msra.mxu0 %v2216
  %3177 = vmatprep.subr.bf16.mxu0 %v2219
  %3178 = vmatpush1.bf16.msra.mxu0 %v2218
  %3179 = vmatprep.mubr.bf16.mxu0 %v635
  %3180 = vmatmul.mubr.bf16.gmra.mrb[0].mxu0 %v634
  %v3181 = vpop.f32.mrb[0].mxu0
  %v3182 = vadd.f32 %v3131, %v3181
  %v3183 = vpop.f32.mrb[0].mxu0
  %v3184 = vadd.f32 %v3133, %v3183
  %v3185 = vpop.f32.mrb[0].mxu0
  %v3186 = vadd.f32 %v3135, %v3185
  %v3187 = vpop.f32.mrb[0].mxu0
  %v3188 = vadd.f32 %v3137, %v3187
  %3189 = vmatprep.mubr.bf16.mxu0 %v662
  %3190 = vmatmul.mubr.bf16.gmra.mrb[0].mxu0 %v661
  %v3191 = vpop.f32.mrb[0].mxu0
  %v3192 = vadd.f32 %v3141, %v3191
  %v3193 = vpop.f32.mrb[0].mxu0
  %v3194 = vadd.f32 %v3143, %v3193
  %v3195 = vpop.f32.mrb[0].mxu0
  %v3196 = vpop.f32.mrb[0].mxu0
  %3197 = vdwg.mxu0
  %3198 = vmatprep.subr.bf16.mxu0 %v2221
  %3199 = vmatpush1.bf16.msra.mxu0 %v2220
  %3200 = vmatprep.subr.bf16.mxu0 %v2223
  %3201 = vmatpush1.bf16.msra.mxu0 %v2222
  %3202 = vmatprep.subr.bf16.mxu0 %v2225
  %3203 = vmatpush1.bf16.msra.mxu0 %v2224
  %3204 = vmatprep.subr.bf16.mxu0 %v2227
  %3205 = vmatpush1.bf16.msra.mxu0 %v2226
  %3206 = vmatprep.subr.bf16.mxu0 %v2229
  %3207 = vmatpush1.bf16.msra.mxu0 %v2228
  %3208 = vmatprep.subr.bf16.mxu0 %v2231
  %3209 = vmatpush1.bf16.msra.mxu0 %v2230
  %3210 = vmatprep.subr.bf16.mxu0 %v2233
  %3211 = vmatpush1.bf16.msra.mxu0 %v2232
  %3212 = vmatprep.subr.bf16.mxu0 %v2235
  %3213 = vmatpush1.bf16.msra.mxu0 %v2234
  %3214 = vmatprep.subr.bf16.mxu0 %v2237
  %3215 = vmatpush1.bf16.msra.mxu0 %v2236
  %3216 = vmatprep.subr.bf16.mxu0 %v2239
  %3217 = vmatpush1.bf16.msra.mxu0 %v2238
  %3218 = vmatprep.subr.bf16.mxu0 %v2241
  %3219 = vmatpush1.bf16.msra.mxu0 %v2240
  %3220 = vmatprep.subr.bf16.mxu0 %v2243
  %3221 = vmatpush1.bf16.msra.mxu0 %v2242
  %3222 = vmatprep.subr.bf16.mxu0 %v2245
  %3223 = vmatpush1.bf16.msra.mxu0 %v2244
  %3224 = vmatprep.subr.bf16.mxu0 %v2247
  %3225 = vmatpush1.bf16.msra.mxu0 %v2246
  %3226 = vmatprep.subr.bf16.mxu0 %v2249
  %3227 = vmatpush1.bf16.msra.mxu0 %v2248
  %3228 = vmatprep.subr.bf16.mxu0 %v2251
  %3229 = vmatpush1.bf16.msra.mxu0 %v2250
  %3230 = vmatprep.mubr.bf16.mxu0 %v637
  %3231 = vmatmul.mubr.bf16.gmra.mrb[0].mxu0 %v636
  %v3232 = vpop.f32.mrb[0].mxu0
  %v3233 = vadd.f32 %v3182, %v3232
  %v3234 = vpop.f32.mrb[0].mxu0
  %v3235 = vadd.f32 %v3184, %v3234
  %v3236 = vpop.f32.mrb[0].mxu0
  %v3237 = vadd.f32 %v3186, %v3236
  %v3238 = vpop.f32.mrb[0].mxu0
  %v3239 = vadd.f32 %v3188, %v3238
  %3240 = vmatprep.mubr.bf16.mxu0 %v664
  %3241 = vmatmul.mubr.bf16.gmra.mrb[0].mxu0 %v663
  %v3242 = vpop.f32.mrb[0].mxu0
  %v3243 = vadd.f32 %v3192, %v3242
  %v3244 = vpop.f32.mrb[0].mxu0
  %v3245 = vadd.f32 %v3194, %v3244
  %v3246 = vpop.f32.mrb[0].mxu0
  %v3247 = vpop.f32.mrb[0].mxu0
  %3248 = vdwg.mxu0
  %3249 = vmatprep.subr.bf16.mxu0 %v2253
  %3250 = vmatpush1.bf16.msra.mxu0 %v2252
  %3251 = vmatprep.subr.bf16.mxu0 %v2255
  %3252 = vmatpush1.bf16.msra.mxu0 %v2254
  %3253 = vmatprep.subr.bf16.mxu0 %v2257
  %3254 = vmatpush1.bf16.msra.mxu0 %v2256
  %3255 = vmatprep.subr.bf16.mxu0 %v2259
  %3256 = vmatpush1.bf16.msra.mxu0 %v2258
  %3257 = vmatprep.subr.bf16.mxu0 %v2261
  %3258 = vmatpush1.bf16.msra.mxu0 %v2260
  %3259 = vmatprep.subr.bf16.mxu0 %v2263
  %3260 = vmatpush1.bf16.msra.mxu0 %v2262
  %3261 = vmatprep.subr.bf16.mxu0 %v2265
  %3262 = vmatpush1.bf16.msra.mxu0 %v2264
  %3263 = vmatprep.subr.bf16.mxu0 %v2267
  %3264 = vmatpush1.bf16.msra.mxu0 %v2266
  %3265 = vmatprep.subr.bf16.mxu0 %v2269
  %3266 = vmatpush1.bf16.msra.mxu0 %v2268
  %3267 = vmatprep.subr.bf16.mxu0 %v2271
  %3268 = vmatpush1.bf16.msra.mxu0 %v2270
  %3269 = vmatprep.subr.bf16.mxu0 %v2273
  %3270 = vmatpush1.bf16.msra.mxu0 %v2272
  %3271 = vmatprep.subr.bf16.mxu0 %v2275
  %3272 = vmatpush1.bf16.msra.mxu0 %v2274
  %3273 = vmatprep.subr.bf16.mxu0 %v2277
  %3274 = vmatpush1.bf16.msra.mxu0 %v2276
  %3275 = vmatprep.subr.bf16.mxu0 %v2279
  %3276 = vmatpush1.bf16.msra.mxu0 %v2278
  %3277 = vmatprep.subr.bf16.mxu0 %v2281
  %3278 = vmatpush1.bf16.msra.mxu0 %v2280
  %3279 = vmatprep.subr.bf16.mxu0 %v2283
  %3280 = vmatpush1.bf16.msra.mxu0 %v2282
  %3281 = vmatprep.mubr.bf16.mxu0 %v639
  %3282 = vmatmul.mubr.bf16.gmra.mrb[0].mxu0 %v638
  %v3283 = vpop.f32.mrb[0].mxu0
  %v3284 = vadd.f32 %v3233, %v3283
  %v3285 = vpop.f32.mrb[0].mxu0
  %v3286 = vadd.f32 %v3235, %v3285
  %v3287 = vpop.f32.mrb[0].mxu0
  %v3288 = vadd.f32 %v3237, %v3287
  %v3289 = vpop.f32.mrb[0].mxu0
  %v3290 = vadd.f32 %v3239, %v3289
  %3291 = vmatprep.mubr.bf16.mxu0 %v666
  %3292 = vmatmul.mubr.bf16.gmra.mrb[0].mxu0 %v665
  %v3293 = vpop.f32.mrb[0].mxu0
  %v3294 = vadd.f32 %v3243, %v3293
  %v3295 = vpop.f32.mrb[0].mxu0
  %v3296 = vadd.f32 %v3245, %v3295
  %v3297 = vpop.f32.mrb[0].mxu0
  %v3298 = vpop.f32.mrb[0].mxu0
  %3299 = vdwg.mxu0
  %3300 = vmatprep.subr.bf16.mxu0 %v2285
  %3301 = vmatpush1.bf16.msra.mxu0 %v2284
  %3302 = vmatprep.subr.bf16.mxu0 %v2287
  %3303 = vmatpush1.bf16.msra.mxu0 %v2286
  %3304 = vmatprep.subr.bf16.mxu0 %v2289
  %3305 = vmatpush1.bf16.msra.mxu0 %v2288
  %3306 = vmatprep.subr.bf16.mxu0 %v2291
  %3307 = vmatpush1.bf16.msra.mxu0 %v2290
  %3308 = vmatprep.subr.bf16.mxu0 %v2293
  %3309 = vmatpush1.bf16.msra.mxu0 %v2292
  %3310 = vmatprep.subr.bf16.mxu0 %v2295
  %3311 = vmatpush1.bf16.msra.mxu0 %v2294
  %3312 = vmatprep.subr.bf16.mxu0 %v2297
  %3313 = vmatpush1.bf16.msra.mxu0 %v2296
  %3314 = vmatprep.subr.bf16.mxu0 %v2299
  %3315 = vmatpush1.bf16.msra.mxu0 %v2298
  %3316 = vmatprep.subr.bf16.mxu0 %v2301
  %3317 = vmatpush1.bf16.msra.mxu0 %v2300
  %3318 = vmatprep.subr.bf16.mxu0 %v2303
  %3319 = vmatpush1.bf16.msra.mxu0 %v2302
  %3320 = vmatprep.subr.bf16.mxu0 %v2305
  %3321 = vmatpush1.bf16.msra.mxu0 %v2304
  %3322 = vmatprep.subr.bf16.mxu0 %v2307
  %3323 = vmatpush1.bf16.msra.mxu0 %v2306
  %3324 = vmatprep.subr.bf16.mxu0 %v2309
  %3325 = vmatpush1.bf16.msra.mxu0 %v2308
  %3326 = vmatprep.subr.bf16.mxu0 %v2311
  %3327 = vmatpush1.bf16.msra.mxu0 %v2310
  %3328 = vmatprep.subr.bf16.mxu0 %v2313
  %3329 = vmatpush1.bf16.msra.mxu0 %v2312
  %3330 = vmatprep.subr.bf16.mxu0 %v2315
  %3331 = vmatpush1.bf16.msra.mxu0 %v2314
  %3332 = vmatprep.mubr.bf16.mxu0 %v641
  %3333 = vmatmul.mubr.bf16.gmra.mrb[0].mxu0 %v640
  %v3334 = vpop.f32.mrb[0].mxu0
  %v3335 = vadd.f32 %v3284, %v3334
  %v3336 = vpop.f32.mrb[0].mxu0
  %v3337 = vadd.f32 %v3286, %v3336
  %v3338 = vpop.f32.mrb[0].mxu0
  %v3339 = vadd.f32 %v3288, %v3338
  %v3340 = vpop.f32.mrb[0].mxu0
  %v3341 = vadd.f32 %v3290, %v3340
  %3342 = vmatprep.mubr.bf16.mxu0 %v668
  %3343 = vmatmul.mubr.bf16.gmra.mrb[0].mxu0 %v667
  %v3344 = vpop.f32.mrb[0].mxu0
  %v3345 = vadd.f32 %v3294, %v3344
  %v3346 = vpop.f32.mrb[0].mxu0
  %v3347 = vadd.f32 %v3296, %v3346
  %v3348 = vpop.f32.mrb[0].mxu0
  %v3349 = vpop.f32.mrb[0].mxu0
  %3350 = vdwg.mxu0
  %3351 = vmatprep.subr.bf16.mxu0 %v2317
  %3352 = vmatpush1.bf16.msra.mxu0 %v2316
  %3353 = vmatprep.subr.bf16.mxu0 %v2319
  %3354 = vmatpush1.bf16.msra.mxu0 %v2318
  %3355 = vmatprep.subr.bf16.mxu0 %v2321
  %3356 = vmatpush1.bf16.msra.mxu0 %v2320
  %3357 = vmatprep.subr.bf16.mxu0 %v2323
  %3358 = vmatpush1.bf16.msra.mxu0 %v2322
  %3359 = vmatprep.subr.bf16.mxu0 %v2325
  %3360 = vmatpush1.bf16.msra.mxu0 %v2324
  %3361 = vmatprep.subr.bf16.mxu0 %v2327
  %3362 = vmatpush1.bf16.msra.mxu0 %v2326
  %3363 = vmatprep.subr.bf16.mxu0 %v2329
  %3364 = vmatpush1.bf16.msra.mxu0 %v2328
  %3365 = vmatprep.subr.bf16.mxu0 %v2331
  %3366 = vmatpush1.bf16.msra.mxu0 %v2330
  %3367 = vmatprep.subr.bf16.mxu0 %v2333
  %3368 = vmatpush1.bf16.msra.mxu0 %v2332
  %3369 = vmatprep.subr.bf16.mxu0 %v2335
  %3370 = vmatpush1.bf16.msra.mxu0 %v2334
  %3371 = vmatprep.subr.bf16.mxu0 %v2337
  %3372 = vmatpush1.bf16.msra.mxu0 %v2336
  %3373 = vmatprep.subr.bf16.mxu0 %v2339
  %3374 = vmatpush1.bf16.msra.mxu0 %v2338
  %3375 = vmatprep.subr.bf16.mxu0 %v2341
  %3376 = vmatpush1.bf16.msra.mxu0 %v2340
  %3377 = vmatprep.subr.bf16.mxu0 %v2343
  %3378 = vmatpush1.bf16.msra.mxu0 %v2342
  %3379 = vmatprep.subr.bf16.mxu0 %v2345
  %3380 = vmatpush1.bf16.msra.mxu0 %v2344
  %3381 = vmatprep.subr.bf16.mxu0 %v2347
  %3382 = vmatpush1.bf16.msra.mxu0 %v2346
  %3383 = vmatprep.mubr.bf16.mxu0 %v643
  %3384 = vmatmul.mubr.bf16.gmra.mrb[0].mxu0 %v642
  %v3385 = vpop.f32.mrb[0].mxu0
  %v3386 = vadd.f32 %v3335, %v3385
  %v3387 = vpop.f32.mrb[0].mxu0
  %v3388 = vadd.f32 %v3337, %v3387
  %v3389 = vpop.f32.mrb[0].mxu0
  %v3390 = vadd.f32 %v3339, %v3389
  %v3391 = vpop.f32.mrb[0].mxu0
  %v3392 = vadd.f32 %v3341, %v3391
  %3393 = vmatprep.mubr.bf16.mxu0 %v670
  %3394 = vmatmul.mubr.bf16.gmra.mrb[0].mxu0 %v669
  %v3395 = vpop.f32.mrb[0].mxu0
  %v3396 = vadd.f32 %v3345, %v3395
  %v3397 = vpop.f32.mrb[0].mxu0
  %v3398 = vadd.f32 %v3347, %v3397
  %v3399 = vpop.f32.mrb[0].mxu0
  %v3400 = vpop.f32.mrb[0].mxu0
  %3401 = vdwg.mxu0
  %3402 = vmatprep.subr.bf16.mxu0 %v2349
  %3403 = vmatpush1.bf16.msra.mxu0 %v2348
  %3404 = vmatprep.subr.bf16.mxu0 %v2351
  %3405 = vmatpush1.bf16.msra.mxu0 %v2350
  %3406 = vmatprep.subr.bf16.mxu0 %v2353
  %3407 = vmatpush1.bf16.msra.mxu0 %v2352
  %3408 = vmatprep.subr.bf16.mxu0 %v2355
  %3409 = vmatpush1.bf16.msra.mxu0 %v2354
  %3410 = vmatprep.subr.bf16.mxu0 %v2357
  %3411 = vmatpush1.bf16.msra.mxu0 %v2356
  %3412 = vmatprep.subr.bf16.mxu0 %v2359
  %3413 = vmatpush1.bf16.msra.mxu0 %v2358
  %3414 = vmatprep.subr.bf16.mxu0 %v2361
  %3415 = vmatpush1.bf16.msra.mxu0 %v2360
  %3416 = vmatprep.subr.bf16.mxu0 %v2363
  %3417 = vmatpush1.bf16.msra.mxu0 %v2362
  %3418 = vmatprep.subr.bf16.mxu0 %v2365
  %3419 = vmatpush1.bf16.msra.mxu0 %v2364
  %3420 = vmatprep.subr.bf16.mxu0 %v2367
  %3421 = vmatpush1.bf16.msra.mxu0 %v2366
  %3422 = vmatprep.subr.bf16.mxu0 %v2369
  %3423 = vmatpush1.bf16.msra.mxu0 %v2368
  %3424 = vmatprep.subr.bf16.mxu0 %v2371
  %3425 = vmatpush1.bf16.msra.mxu0 %v2370
  %3426 = vmatprep.subr.bf16.mxu0 %v2373
  %3427 = vmatpush1.bf16.msra.mxu0 %v2372
  %3428 = vmatprep.subr.bf16.mxu0 %v2375
  %3429 = vmatpush1.bf16.msra.mxu0 %v2374
  %3430 = vmatprep.subr.bf16.mxu0 %v2377
  %3431 = vmatpush1.bf16.msra.mxu0 %v2376
  %3432 = vmatprep.subr.bf16.mxu0 %v2379
  %3433 = vmatpush1.bf16.msra.mxu0 %v2378
  %3434 = vmatprep.mubr.bf16.mxu0 %v645
  %3435 = vmatmul.mubr.bf16.gmra.mrb[0].mxu0 %v644
  %v3436 = vpop.f32.mrb[0].mxu0
  %v3437 = vadd.f32 %v3386, %v3436
  %v3438 = vpop.f32.mrb[0].mxu0
  %v3439 = vadd.f32 %v3388, %v3438
  %v3440 = vpop.f32.mrb[0].mxu0
  %v3441 = vadd.f32 %v3390, %v3440
  %v3442 = vpop.f32.mrb[0].mxu0
  %v3443 = vadd.f32 %v3392, %v3442
  %3444 = vmatprep.mubr.bf16.mxu0 %v672
  %3445 = vmatmul.mubr.bf16.gmra.mrb[0].mxu0 %v671
  %v3446 = vpop.f32.mrb[0].mxu0
  %v3447 = vadd.f32 %v3396, %v3446
  %v3448 = vpop.f32.mrb[0].mxu0
  %v3449 = vadd.f32 %v3398, %v3448
  %v3450 = vpop.f32.mrb[0].mxu0
  %v3451 = vpop.f32.mrb[0].mxu0
  %3452 = vdwg.mxu0
  %3453 = vmatprep.subr.bf16.mxu0 %v2381
  %3454 = vmatpush1.bf16.msra.mxu0 %v2380
  %3455 = vmatprep.subr.bf16.mxu0 %v2383
  %3456 = vmatpush1.bf16.msra.mxu0 %v2382
  %3457 = vmatprep.subr.bf16.mxu0 %v2385
  %3458 = vmatpush1.bf16.msra.mxu0 %v2384
  %3459 = vmatprep.subr.bf16.mxu0 %v2387
  %3460 = vmatpush1.bf16.msra.mxu0 %v2386
  %3461 = vmatprep.subr.bf16.mxu0 %v2389
  %3462 = vmatpush1.bf16.msra.mxu0 %v2388
  %3463 = vmatprep.subr.bf16.mxu0 %v2391
  %3464 = vmatpush1.bf16.msra.mxu0 %v2390
  %3465 = vmatprep.subr.bf16.mxu0 %v2393
  %3466 = vmatpush1.bf16.msra.mxu0 %v2392
  %3467 = vmatprep.subr.bf16.mxu0 %v2395
  %3468 = vmatpush1.bf16.msra.mxu0 %v2394
  %3469 = vmatprep.subr.bf16.mxu0 %v2397
  %3470 = vmatpush1.bf16.msra.mxu0 %v2396
  %3471 = vmatprep.subr.bf16.mxu0 %v2399
  %3472 = vmatpush1.bf16.msra.mxu0 %v2398
  %3473 = vmatprep.subr.bf16.mxu0 %v2401
  %3474 = vmatpush1.bf16.msra.mxu0 %v2400
  %3475 = vmatprep.subr.bf16.mxu0 %v2403
  %3476 = vmatpush1.bf16.msra.mxu0 %v2402
  %3477 = vmatprep.subr.bf16.mxu0 %v2405
  %3478 = vmatpush1.bf16.msra.mxu0 %v2404
  %3479 = vmatprep.subr.bf16.mxu0 %v2407
  %3480 = vmatpush1.bf16.msra.mxu0 %v2406
  %3481 = vmatprep.subr.bf16.mxu0 %v2409
  %3482 = vmatpush1.bf16.msra.mxu0 %v2408
  %3483 = vmatprep.subr.bf16.mxu0 %v2411
  %3484 = vmatpush1.bf16.msra.mxu0 %v2410
  %3485 = vmatprep.mubr.bf16.mxu0 %v647
  %3486 = vmatmul.mubr.bf16.gmra.mrb[0].mxu0 %v646
  %v3487 = vpop.f32.mrb[0].mxu0
  %v3488 = vadd.f32 %v3437, %v3487
  %v3489 = vpop.f32.mrb[0].mxu0
  %v3490 = vadd.f32 %v3439, %v3489
  %v3491 = vpop.f32.mrb[0].mxu0
  %v3492 = vadd.f32 %v3441, %v3491
  %v3493 = vpop.f32.mrb[0].mxu0
  %v3494 = vadd.f32 %v3443, %v3493
  %3495 = vmatprep.mubr.bf16.mxu0 %v674
  %3496 = vmatmul.mubr.bf16.gmra.mrb[0].mxu0 %v673
  %v3497 = vpop.f32.mrb[0].mxu0
  %v3498 = vadd.f32 %v3447, %v3497
  %v3499 = vpop.f32.mrb[0].mxu0
  %v3500 = vadd.f32 %v3449, %v3499
  %v3501 = vpop.f32.mrb[0].mxu0
  %v3502 = vpop.f32.mrb[0].mxu0
  %3503 = vdwg.mxu0
  %3504 = vmatprep.subr.bf16.mxu0 %v2413
  %3505 = vmatpush1.bf16.msra.mxu0 %v2412
  %3506 = vmatprep.subr.bf16.mxu0 %v2415
  %3507 = vmatpush1.bf16.msra.mxu0 %v2414
  %3508 = vmatprep.subr.bf16.mxu0 %v2417
  %3509 = vmatpush1.bf16.msra.mxu0 %v2416
  %3510 = vmatprep.subr.bf16.mxu0 %v2419
  %3511 = vmatpush1.bf16.msra.mxu0 %v2418
  %3512 = vmatprep.subr.bf16.mxu0 %v2421
  %3513 = vmatpush1.bf16.msra.mxu0 %v2420
  %3514 = vmatprep.subr.bf16.mxu0 %v2423
  %3515 = vmatpush1.bf16.msra.mxu0 %v2422
  %3516 = vmatprep.subr.bf16.mxu0 %v2425
  %3517 = vmatpush1.bf16.msra.mxu0 %v2424
  %3518 = vmatprep.subr.bf16.mxu0 %v2427
  %3519 = vmatpush1.bf16.msra.mxu0 %v2426
  %3520 = vmatprep.subr.bf16.mxu0 %v2429
  %3521 = vmatpush1.bf16.msra.mxu0 %v2428
  %3522 = vmatprep.subr.bf16.mxu0 %v2431
  %3523 = vmatpush1.bf16.msra.mxu0 %v2430
  %3524 = vmatprep.subr.bf16.mxu0 %v2433
  %3525 = vmatpush1.bf16.msra.mxu0 %v2432
  %3526 = vmatprep.subr.bf16.mxu0 %v2435
  %3527 = vmatpush1.bf16.msra.mxu0 %v2434
  %3528 = vmatprep.subr.bf16.mxu0 %v2437
  %3529 = vmatpush1.bf16.msra.mxu0 %v2436
  %3530 = vmatprep.subr.bf16.mxu0 %v2439
  %3531 = vmatpush1.bf16.msra.mxu0 %v2438
  %3532 = vmatprep.subr.bf16.mxu0 %v2441
  %3533 = vmatpush1.bf16.msra.mxu0 %v2440
  %3534 = vmatprep.subr.bf16.mxu0 %v2443
  %3535 = vmatpush1.bf16.msra.mxu0 %v2442
  %3536 = vmatprep.mubr.bf16.mxu0 %v649
  %3537 = vmatmul.mubr.bf16.gmra.mrb[0].mxu0 %v648
  %v3538 = vpop.f32.mrb[0].mxu0
  %v3539 = vadd.f32 %v3488, %v3538
  %v3540 = vpop.f32.mrb[0].mxu0
  %v3541 = vadd.f32 %v3490, %v3540
  %v3542 = vpop.f32.mrb[0].mxu0
  %v3543 = vadd.f32 %v3492, %v3542
  %v3544 = vpop.f32.mrb[0].mxu0
  %v3545 = vadd.f32 %v3494, %v3544
  %3546 = vmatprep.mubr.bf16.mxu0 %v676
  %3547 = vmatmul.mubr.bf16.gmra.mrb[0].mxu0 %v675
  %v3548 = vpop.f32.mrb[0].mxu0
  %v3549 = vadd.f32 %v3498, %v3548
  %v3550 = vpop.f32.mrb[0].mxu0
  %v3551 = vadd.f32 %v3500, %v3550
  %v3552 = vpop.f32.mrb[0].mxu0
  %v3553 = vpop.f32.mrb[0].mxu0
  %3554 = vdwg.mxu0
  %3555 = vmatprep.subr.bf16.mxu0 %v2445
  %3556 = vmatpush1.bf16.msra.mxu0 %v2444
  %3557 = vmatprep.subr.bf16.mxu0 %v2447
  %3558 = vmatpush1.bf16.msra.mxu0 %v2446
  %3559 = vmatprep.subr.bf16.mxu0 %v2449
  %3560 = vmatpush1.bf16.msra.mxu0 %v2448
  %3561 = vmatprep.subr.bf16.mxu0 %v2451
  %3562 = vmatpush1.bf16.msra.mxu0 %v2450
  %3563 = vmatprep.subr.bf16.mxu0 %v2453
  %3564 = vmatpush1.bf16.msra.mxu0 %v2452
  %3565 = vmatprep.subr.bf16.mxu0 %v2455
  %3566 = vmatpush1.bf16.msra.mxu0 %v2454
  %3567 = vmatprep.subr.bf16.mxu0 %v2457
  %3568 = vmatpush1.bf16.msra.mxu0 %v2456
  %3569 = vmatprep.subr.bf16.mxu0 %v2459
  %3570 = vmatpush1.bf16.msra.mxu0 %v2458
  %3571 = vmatprep.subr.bf16.mxu0 0
  %3572 = vmatpush1.bf16.msra.mxu0 0
  %3573 = vmatprep.subr.bf16.mxu0 0
  %3574 = vmatpush1.bf16.msra.mxu0 0
  %3575 = vmatprep.subr.bf16.mxu0 0
  %3576 = vmatpush1.bf16.msra.mxu0 0
  %3577 = vmatprep.subr.bf16.mxu0 0
  %3578 = vmatpush1.bf16.msra.mxu0 0
  %3579 = vmatprep.subr.bf16.mxu0 0
  %3580 = vmatpush1.bf16.msra.mxu0 0
  %3581 = vmatprep.subr.bf16.mxu0 0
  %3582 = vmatpush1.bf16.msra.mxu0 0
  %3583 = vmatprep.subr.bf16.mxu0 0
  %3584 = vmatpush1.bf16.msra.mxu0 0
  %3585 = vmatprep.subr.bf16.mxu0 0
  %3586 = vmatpush1.bf16.msra.mxu0 0
  %3587 = vmatprep.mubr.bf16.mxu0 0
  %3588 = vmatmul.mubr.bf16.gmra.mrb[0].mxu0 %v650
  %v3589 = vpop.f32.mrb[0].mxu0
  %v3590 = vadd.f32 %v3539, %v3589
  %v3591 = vpop.f32.mrb[0].mxu0
  %v3592 = vadd.f32 %v3541, %v3591
  %v3593 = vpop.f32.mrb[0].mxu0
  %v3594 = vadd.f32 %v3543, %v3593
  %v3595 = vpop.f32.mrb[0].mxu0
  %v3596 = vadd.f32 %v3545, %v3595
  %3597 = vmatprep.mubr.bf16.mxu0 0
  %3598 = vmatmul.mubr.bf16.gmra.mrb[0].mxu0 %v677
  %v3599 = vpop.f32.mrb[0].mxu0
  %v3600 = vadd.f32 %v3549, %v3599
  %v3601 = vpop.f32.mrb[0].mxu0
  %v3602 = vadd.f32 %v3551, %v3601
  %v3603 = vpop.f32.mrb[0].mxu0
  %v3604 = vpop.f32.mrb[0].mxu0
  %3605 = vdwg.mxu0
  %vm3606 = vcmp.ge.f32.partialorder %v3590, 0.0
  %vm3607 = vcmp.ge.f32.partialorder %v3592, 0.0
  %vm3608 = vcmp.ge.f32.partialorder %v3594, 0.0
  %vm3609 = vcmp.ge.f32.partialorder %v3596, 0.0
  %vm3610 = vcmp.ge.f32.partialorder %v3600, 0.0
  %vm3611 = vcmp.ge.f32.partialorder %v3602, 0.0
  %v3612 = vmul.f32 %v3590, 0.01
  %v3613 = vmul.f32 %v3592, 0.01
  %v3614 = vmul.f32 %v3594, 0.01
  %v3615 = vmul.f32 %v3596, 0.01
  %v3616 = vmul.f32 %v3600, 0.01
  %v3617 = vmul.f32 %v3602, 0.01
  %v3618 = vsel %vm3606, %v3590, %v3612
  %v3619 = vsel %vm3607, %v3592, %v3613
  %v3620 = vsel %vm3608, %v3594, %v3614
  %v3621 = vsel %vm3609, %v3596, %v3615
  %v3622 = vsel %vm3610, %v3600, %v3616
  %v3623 = vsel %vm3611, %v3602, %v3617
  %v3624 = vpack.c.bf16 %v3620, %v3618
  %v3625 = vpack.c.bf16 %v3621, %v3619
  %v3626 = vpack.c.bf16 %v3622, %v3622
  %v3627 = vpack.c.bf16 %v3623, %v3623
  %v3632 = vunpack.c.l.b16 %v3624
  %v3633 = vunpack.c.l.b16 %v3625
  %v3634 = vunpack.c.h.b16 %v3624
  %v3635 = vunpack.c.h.b16 %v3625
  %v3636 = vunpack.c.l.b16 %v3626
  %v3637 = vunpack.c.l.b16 %v3627
  %v3638 = vpack.c.b16 %v3633, %v3632
  %v3639 = vpack.c.b16 %v3635, %v3634
  %v3640 = vpack.c.b16 %v3637, %v3636
  %3644 = vst [vmem:[%s3] sm:$0xff] %v3638
  %3645 = vst [vmem:[%s3 + $0x8] sm:$0xff] %v3639
  %3646 = vst [vmem:[%s3 + $0x10] sm:$0x11] %v3640
  // Predicated region
  $region14: #{discriminator_forward.9} parent=0 // pred_check
    _
  $region15: #{discriminator_forward.9} parent=0 // pred_check_branch
    %3648 = sbr.rel (0) target = $region17
  $region16: #{discriminator_forward.9} parent=0 // pred_region
    _
  $region17: #{discriminator_forward.9} parent=0 // pred_fallthru
    _
  // Predicated region
  $region18: #{discriminator_forward.9} parent=0 // pred_check
    _
  $region19: #{discriminator_forward.9} parent=0 // pred_check_branch
    %3650 = sbr.rel (0) target = $region21
  $region20: #{discriminator_forward.9} parent=0 // pred_region
    _
  $region21: #{discriminator_forward.9} parent=0 // pred_fallthru
    _

// kernel: discriminator_forward.10
$region0: #{discriminator_forward.10}
  #allocation0 [shape = 'u32[]', space=smem, size = 0x4, offset = 0x4, fixed_abs, tag = 'smem constant byte address 0x4 - core index']
  #allocation1 [shape = 'u32[144,128]{1,0:T(1,128)}', space=vmem, size = 0x12000, scoped, tag = 'internal scratch']
  %s0 = inlined_call_operand.vmem [shape: bf16[18,2304], index: 0, kind: input, shape index: {}]
  %s1 = inlined_call_operand.vmem [shape: bf16[2304,256], index: 1, kind: input, shape index: {}]
  %s2 = inlined_call_operand.vmem [shape: f32[1,256], index: 2, kind: input, shape index: {}]
  %s3 = inlined_call_operand.vmem [shape: bf16[18,256], index: 3, kind: output, shape index: {}]
  %s4 = sld [smem:[#allocation0]]
  $region22: #{discriminator_forward.10} parent=0
    _
  %s6 = ssub.s32 1, %s4
  %s7 = scalar_select 0, %s6, %s4
  // Predicated region
  $region2: #{discriminator_forward.10} parent=0 // pred_check
    _
  $region3: #{discriminator_forward.10} parent=0 // pred_check_branch
    %9 = sbr.rel (0) target = $region5
  $region4: #{discriminator_forward.10} parent=0 // pred_region
    _
  $region5: #{discriminator_forward.10} parent=0 // pred_fallthru
    _
  // Predicated region
  $region6: #{discriminator_forward.10} parent=0 // pred_check
    _
  $region7: #{discriminator_forward.10} parent=0 // pred_check_branch
    %11 = sbr.rel (0) target = $region9
  $region8: #{discriminator_forward.10} parent=0 // pred_region
    _
  $region9: #{discriminator_forward.10} parent=0 // pred_fallthru
    _
  // Predicated region
  $region10: #{discriminator_forward.10} parent=0 // pred_check
    _
  $region11: #{discriminator_forward.10} parent=0 // pred_check_branch
    %13 = sbr.rel (0) target = $region13
  $region12: #{discriminator_forward.10} parent=0 // pred_region
    _
  $region13: #{discriminator_forward.10} parent=0 // pred_fallthru
    _
  %v14 = vld [vmem:[%s0] sm:$0xff]
  %v15 = vld [vmem:[%s0 + $0x8] sm:$0xff]
  %v16 = vld [vmem:[%s0 + $0x10] sm:$0xff]
  %v17 = vld [vmem:[%s0 + $0x18] sm:$0xff]
  %v18 = vld [vmem:[%s0 + $0x20] sm:$0xff]
  %v19 = vld [vmem:[%s0 + $0x28] sm:$0xff]
  %v20 = vld [vmem:[%s0 + $0x30] sm:$0xff]
  %v21 = vld [vmem:[%s0 + $0x38] sm:$0xff]
  %v22 = vld [vmem:[%s0 + $0x40] sm:$0xff]
  %v23 = vld [vmem:[%s0 + $0x48] sm:$0xff]
  %v24 = vld [vmem:[%s0 + $0x50] sm:$0xff]
  %v25 = vld [vmem:[%s0 + $0x58] sm:$0xff]
  %v26 = vld [vmem:[%s0 + $0x60] sm:$0xff]
  %v27 = vld [vmem:[%s0 + $0x68] sm:$0xff]
  %v28 = vld [vmem:[%s0 + $0x70] sm:$0xff]
  %v29 = vld [vmem:[%s0 + $0x78] sm:$0xff]
  %v30 = vld [vmem:[%s0 + $0x80] sm:$0xff]
  %v31 = vld [vmem:[%s0 + $0x88] sm:$0xff]
  %v32 = vld [vmem:[%s0 + $0x90] sm:$0x11]
  %v33 = vld [vmem:[%s0 + $0x98] sm:$0x11]
  %v34 = vld [vmem:[%s0 + $0xa0] sm:$0x11]
  %v35 = vld [vmem:[%s0 + $0xa8] sm:$0x11]
  %v36 = vld [vmem:[%s0 + $0xb0] sm:$0x11]
  %v37 = vld [vmem:[%s0 + $0xb8] sm:$0x11]
  %v38 = vld [vmem:[%s0 + $0xc0] sm:$0x11]
  %v39 = vld [vmem:[%s0 + $0xc8] sm:$0x11]
  %v40 = vld [vmem:[%s0 + $0xd0] sm:$0x11]
  %v41 = vld [vmem:[%s1] sm:$0xff]
  %v42 = vld [vmem:[%s1 + $0x8] sm:$0xff]
  %v43 = vld [vmem:[%s1 + $0x10] sm:$0xff]
  %v44 = vld [vmem:[%s1 + $0x18] sm:$0xff]
  %v45 = vld [vmem:[%s1 + $0x20] sm:$0xff]
  %v46 = vld [vmem:[%s1 + $0x28] sm:$0xff]
  %v47 = vld [vmem:[%s1 + $0x30] sm:$0xff]
  %v48 = vld [vmem:[%s1 + $0x38] sm:$0xff]
  %v49 = vld [vmem:[%s1 + $0x40] sm:$0xff]
  %v50 = vld [vmem:[%s1 + $0x48] sm:$0xff]
  %v51 = vld [vmem:[%s1 + $0x50] sm:$0xff]
  %v52 = vld [vmem:[%s1 + $0x58] sm:$0xff]
  %v53 = vld [vmem:[%s1 + $0x60] sm:$0xff]
  %v54 = vld [vmem:[%s1 + $0x68] sm:$0xff]
  %v55 = vld [vmem:[%s1 + $0x70] sm:$0xff]
  %v56 = vld [vmem:[%s1 + $0x78] sm:$0xff]
  %v57 = vld [vmem:[%s1 + $0x80] sm:$0xff]
  %v58 = vld [vmem:[%s1 + $0x88] sm:$0xff]
  %v59 = vld [vmem:[%s1 + $0x90] sm:$0xff]
  %v60 = vld [vmem:[%s1 + $0x98] sm:$0xff]
  %v61 = vld [vmem:[%s1 + $0xa0] sm:$0xff]
  %v62 = vld [vmem:[%s1 + $0xa8] sm:$0xff]
  %v63 = vld [vmem:[%s1 + $0xb0] sm:$0xff]
  %v64 = vld [vmem:[%s1 + $0xb8] sm:$0xff]
  %v65 = vld [vmem:[%s1 + $0xc0] sm:$0xff]
  %v66 = vld [vmem:[%s1 + $0xc8] sm:$0xff]
  %v67 = vld [vmem:[%s1 + $0xd0] sm:$0xff]
  %v68 = vld [vmem:[%s1 + $0xd8] sm:$0xff]
  %v69 = vld [vmem:[%s1 + $0xe0] sm:$0xff]
  %v70 = vld [vmem:[%s1 + $0xe8] sm:$0xff]
  %v71 = vld [vmem:[%s1 + $0xf0] sm:$0xff]
  %v72 = vld [vmem:[%s1 + $0xf8] sm:$0xff]
  %v73 = vld [vmem:[%s1 + $0x100] sm:$0xff]
  %v74 = vld [vmem:[%s1 + $0x108] sm:$0xff]
  %v75 = vld [vmem:[%s1 + $0x110] sm:$0xff]
  %v76 = vld [vmem:[%s1 + $0x118] sm:$0xff]
  %v77 = vld [vmem:[%s1 + $0x120] sm:$0xff]
  %v78 = vld [vmem:[%s1 + $0x128] sm:$0xff]
  %v79 = vld [vmem:[%s1 + $0x130] sm:$0xff]
  %v80 = vld [vmem:[%s1 + $0x138] sm:$0xff]
  %v81 = vld [vmem:[%s1 + $0x140] sm:$0xff]
  %v82 = vld [vmem:[%s1 + $0x148] sm:$0xff]
  %v83 = vld [vmem:[%s1 + $0x150] sm:$0xff]
  %v84 = vld [vmem:[%s1 + $0x158] sm:$0xff]
  %v85 = vld [vmem:[%s1 + $0x160] sm:$0xff]
  %v86 = vld [vmem:[%s1 + $0x168] sm:$0xff]
  %v87 = vld [vmem:[%s1 + $0x170] sm:$0xff]
  %v88 = vld [vmem:[%s1 + $0x178] sm:$0xff]
  %v89 = vld [vmem:[%s1 + $0x180] sm:$0xff]
  %v90 = vld [vmem:[%s1 + $0x188] sm:$0xff]
  %v91 = vld [vmem:[%s1 + $0x190] sm:$0xff]
  %v92 = vld [vmem:[%s1 + $0x198] sm:$0xff]
  %v93 = vld [vmem:[%s1 + $0x1a0] sm:$0xff]
  %v94 = vld [vmem:[%s1 + $0x1a8] sm:$0xff]
  %v95 = vld [vmem:[%s1 + $0x1b0] sm:$0xff]
  %v96 = vld [vmem:[%s1 + $0x1b8] sm:$0xff]
  %v97 = vld [vmem:[%s1 + $0x1c0] sm:$0xff]
  %v98 = vld [vmem:[%s1 + $0x1c8] sm:$0xff]
  %v99 = vld [vmem:[%s1 + $0x1d0] sm:$0xff]
  %v100 = vld [vmem:[%s1 + $0x1d8] sm:$0xff]
  %v101 = vld [vmem:[%s1 + $0x1e0] sm:$0xff]
  %v102 = vld [vmem:[%s1 + $0x1e8] sm:$0xff]
  %v103 = vld [vmem:[%s1 + $0x1f0] sm:$0xff]
  %v104 = vld [vmem:[%s1 + $0x1f8] sm:$0xff]
  %v105 = vld [vmem:[%s1 + $0x200] sm:$0xff]
  %v106 = vld [vmem:[%s1 + $0x208] sm:$0xff]
  %v107 = vld [vmem:[%s1 + $0x210] sm:$0xff]
  %v108 = vld [vmem:[%s1 + $0x218] sm:$0xff]
  %v109 = vld [vmem:[%s1 + $0x220] sm:$0xff]
  %v110 = vld [vmem:[%s1 + $0x228] sm:$0xff]
  %v111 = vld [vmem:[%s1 + $0x230] sm:$0xff]
  %v112 = vld [vmem:[%s1 + $0x238] sm:$0xff]
  %v113 = vld [vmem:[%s1 + $0x240] sm:$0xff]
  %v114 = vld [vmem:[%s1 + $0x248] sm:$0xff]
  %v115 = vld [vmem:[%s1 + $0x250] sm:$0xff]
  %v116 = vld [vmem:[%s1 + $0x258] sm:$0xff]
  %v117 = vld [vmem:[%s1 + $0x260] sm:$0xff]
  %v118 = vld [vmem:[%s1 + $0x268] sm:$0xff]
  %v119 = vld [vmem:[%s1 + $0x270] sm:$0xff]
  %v120 = vld [vmem:[%s1 + $0x278] sm:$0xff]
  %v121 = vld [vmem:[%s1 + $0x280] sm:$0xff]
  %v122 = vld [vmem:[%s1 + $0x288] sm:$0xff]
  %v123 = vld [vmem:[%s1 + $0x290] sm:$0xff]
  %v124 = vld [vmem:[%s1 + $0x298] sm:$0xff]
  %v125 = vld [vmem:[%s1 + $0x2a0] sm:$0xff]
  %v126 = vld [vmem:[%s1 + $0x2a8] sm:$0xff]
  %v127 = vld [vmem:[%s1 + $0x2b0] sm:$0xff]
  %v128 = vld [vmem:[%s1 + $0x2b8] sm:$0xff]
  %v129 = vld [vmem:[%s1 + $0x2c0] sm:$0xff]
  %v130 = vld [vmem:[%s1 + $0x2c8] sm:$0xff]
  %v131 = vld [vmem:[%s1 + $0x2d0] sm:$0xff]
  %v132 = vld [vmem:[%s1 + $0x2d8] sm:$0xff]
  %v133 = vld [vmem:[%s1 + $0x2e0] sm:$0xff]
  %v134 = vld [vmem:[%s1 + $0x2e8] sm:$0xff]
  %v135 = vld [vmem:[%s1 + $0x2f0] sm:$0xff]
  %v136 = vld [vmem:[%s1 + $0x2f8] sm:$0xff]
  %v137 = vld [vmem:[%s1 + $0x300] sm:$0xff]
  %v138 = vld [vmem:[%s1 + $0x308] sm:$0xff]
  %v139 = vld [vmem:[%s1 + $0x310] sm:$0xff]
  %v140 = vld [vmem:[%s1 + $0x318] sm:$0xff]
  %v141 = vld [vmem:[%s1 + $0x320] sm:$0xff]
  %v142 = vld [vmem:[%s1 + $0x328] sm:$0xff]
  %v143 = vld [vmem:[%s1 + $0x330] sm:$0xff]
  %v144 = vld [vmem:[%s1 + $0x338] sm:$0xff]
  %v145 = vld [vmem:[%s1 + $0x340] sm:$0xff]
  %v146 = vld [vmem:[%s1 + $0x348] sm:$0xff]
  %v147 = vld [vmem:[%s1 + $0x350] sm:$0xff]
  %v148 = vld [vmem:[%s1 + $0x358] sm:$0xff]
  %v149 = vld [vmem:[%s1 + $0x360] sm:$0xff]
  %v150 = vld [vmem:[%s1 + $0x368] sm:$0xff]
  %v151 = vld [vmem:[%s1 + $0x370] sm:$0xff]
  %v152 = vld [vmem:[%s1 + $0x378] sm:$0xff]
  %v153 = vld [vmem:[%s1 + $0x380] sm:$0xff]
  %v154 = vld [vmem:[%s1 + $0x388] sm:$0xff]
  %v155 = vld [vmem:[%s1 + $0x390] sm:$0xff]
  %v156 = vld [vmem:[%s1 + $0x398] sm:$0xff]
  %v157 = vld [vmem:[%s1 + $0x3a0] sm:$0xff]
  %v158 = vld [vmem:[%s1 + $0x3a8] sm:$0xff]
  %v159 = vld [vmem:[%s1 + $0x3b0] sm:$0xff]
  %v160 = vld [vmem:[%s1 + $0x3b8] sm:$0xff]
  %v161 = vld [vmem:[%s1 + $0x3c0] sm:$0xff]
  %v162 = vld [vmem:[%s1 + $0x3c8] sm:$0xff]
  %v163 = vld [vmem:[%s1 + $0x3d0] sm:$0xff]
  %v164 = vld [vmem:[%s1 + $0x3d8] sm:$0xff]
  %v165 = vld [vmem:[%s1 + $0x3e0] sm:$0xff]
  %v166 = vld [vmem:[%s1 + $0x3e8] sm:$0xff]
  %v167 = vld [vmem:[%s1 + $0x3f0] sm:$0xff]
  %v168 = vld [vmem:[%s1 + $0x3f8] sm:$0xff]
  %v169 = vld [vmem:[%s1 + $0x400] sm:$0xff]
  %v170 = vld [vmem:[%s1 + $0x408] sm:$0xff]
  %v171 = vld [vmem:[%s1 + $0x410] sm:$0xff]
  %v172 = vld [vmem:[%s1 + $0x418] sm:$0xff]
  %v173 = vld [vmem:[%s1 + $0x420] sm:$0xff]
  %v174 = vld [vmem:[%s1 + $0x428] sm:$0xff]
  %v175 = vld [vmem:[%s1 + $0x430] sm:$0xff]
  %v176 = vld [vmem:[%s1 + $0x438] sm:$0xff]
  %v177 = vld [vmem:[%s1 + $0x440] sm:$0xff]
  %v178 = vld [vmem:[%s1 + $0x448] sm:$0xff]
  %v179 = vld [vmem:[%s1 + $0x450] sm:$0xff]
  %v180 = vld [vmem:[%s1 + $0x458] sm:$0xff]
  %v181 = vld [vmem:[%s1 + $0x460] sm:$0xff]
  %v182 = vld [vmem:[%s1 + $0x468] sm:$0xff]
  %v183 = vld [vmem:[%s1 + $0x470] sm:$0xff]
  %v184 = vld [vmem:[%s1 + $0x478] sm:$0xff]
  %v185 = vld [vmem:[%s1 + $0x480] sm:$0xff]
  %v186 = vld [vmem:[%s1 + $0x488] sm:$0xff]
  %v187 = vld [vmem:[%s1 + $0x490] sm:$0xff]
  %v188 = vld [vmem:[%s1 + $0x498] sm:$0xff]
  %v189 = vld [vmem:[%s1 + $0x4a0] sm:$0xff]
  %v190 = vld [vmem:[%s1 + $0x4a8] sm:$0xff]
  %v191 = vld [vmem:[%s1 + $0x4b0] sm:$0xff]
  %v192 = vld [vmem:[%s1 + $0x4b8] sm:$0xff]
  %v193 = vld [vmem:[%s1 + $0x4c0] sm:$0xff]
  %v194 = vld [vmem:[%s1 + $0x4c8] sm:$0xff]
  %v195 = vld [vmem:[%s1 + $0x4d0] sm:$0xff]
  %v196 = vld [vmem:[%s1 + $0x4d8] sm:$0xff]
  %v197 = vld [vmem:[%s1 + $0x4e0] sm:$0xff]
  %v198 = vld [vmem:[%s1 + $0x4e8] sm:$0xff]
  %v199 = vld [vmem:[%s1 + $0x4f0] sm:$0xff]
  %v200 = vld [vmem:[%s1 + $0x4f8] sm:$0xff]
  %v201 = vld [vmem:[%s1 + $0x500] sm:$0xff]
  %v202 = vld [vmem:[%s1 + $0x508] sm:$0xff]
  %v203 = vld [vmem:[%s1 + $0x510] sm:$0xff]
  %v204 = vld [vmem:[%s1 + $0x518] sm:$0xff]
  %v205 = vld [vmem:[%s1 + $0x520] sm:$0xff]
  %v206 = vld [vmem:[%s1 + $0x528] sm:$0xff]
  %v207 = vld [vmem:[%s1 + $0x530] sm:$0xff]
  %v208 = vld [vmem:[%s1 + $0x538] sm:$0xff]
  %v209 = vld [vmem:[%s1 + $0x540] sm:$0xff]
  %v210 = vld [vmem:[%s1 + $0x548] sm:$0xff]
  %v211 = vld [vmem:[%s1 + $0x550] sm:$0xff]
  %v212 = vld [vmem:[%s1 + $0x558] sm:$0xff]
  %v213 = vld [vmem:[%s1 + $0x560] sm:$0xff]
  %v214 = vld [vmem:[%s1 + $0x568] sm:$0xff]
  %v215 = vld [vmem:[%s1 + $0x570] sm:$0xff]
  %v216 = vld [vmem:[%s1 + $0x578] sm:$0xff]
  %v217 = vld [vmem:[%s1 + $0x580] sm:$0xff]
  %v218 = vld [vmem:[%s1 + $0x588] sm:$0xff]
  %v219 = vld [vmem:[%s1 + $0x590] sm:$0xff]
  %v220 = vld [vmem:[%s1 + $0x598] sm:$0xff]
  %v221 = vld [vmem:[%s1 + $0x5a0] sm:$0xff]
  %v222 = vld [vmem:[%s1 + $0x5a8] sm:$0xff]
  %v223 = vld [vmem:[%s1 + $0x5b0] sm:$0xff]
  %v224 = vld [vmem:[%s1 + $0x5b8] sm:$0xff]
  %v225 = vld [vmem:[%s1 + $0x5c0] sm:$0xff]
  %v226 = vld [vmem:[%s1 + $0x5c8] sm:$0xff]
  %v227 = vld [vmem:[%s1 + $0x5d0] sm:$0xff]
  %v228 = vld [vmem:[%s1 + $0x5d8] sm:$0xff]
  %v229 = vld [vmem:[%s1 + $0x5e0] sm:$0xff]
  %v230 = vld [vmem:[%s1 + $0x5e8] sm:$0xff]
  %v231 = vld [vmem:[%s1 + $0x5f0] sm:$0xff]
  %v232 = vld [vmem:[%s1 + $0x5f8] sm:$0xff]
  %v233 = vld [vmem:[%s1 + $0x600] sm:$0xff]
  %v234 = vld [vmem:[%s1 + $0x608] sm:$0xff]
  %v235 = vld [vmem:[%s1 + $0x610] sm:$0xff]
  %v236 = vld [vmem:[%s1 + $0x618] sm:$0xff]
  %v237 = vld [vmem:[%s1 + $0x620] sm:$0xff]
  %v238 = vld [vmem:[%s1 + $0x628] sm:$0xff]
  %v239 = vld [vmem:[%s1 + $0x630] sm:$0xff]
  %v240 = vld [vmem:[%s1 + $0x638] sm:$0xff]
  %v241 = vld [vmem:[%s1 + $0x640] sm:$0xff]
  %v242 = vld [vmem:[%s1 + $0x648] sm:$0xff]
  %v243 = vld [vmem:[%s1 + $0x650] sm:$0xff]
  %v244 = vld [vmem:[%s1 + $0x658] sm:$0xff]
  %v245 = vld [vmem:[%s1 + $0x660] sm:$0xff]
  %v246 = vld [vmem:[%s1 + $0x668] sm:$0xff]
  %v247 = vld [vmem:[%s1 + $0x670] sm:$0xff]
  %v248 = vld [vmem:[%s1 + $0x678] sm:$0xff]
  %v249 = vld [vmem:[%s1 + $0x680] sm:$0xff]
  %v250 = vld [vmem:[%s1 + $0x688] sm:$0xff]
  %v251 = vld [vmem:[%s1 + $0x690] sm:$0xff]
  %v252 = vld [vmem:[%s1 + $0x698] sm:$0xff]
  %v253 = vld [vmem:[%s1 + $0x6a0] sm:$0xff]
  %v254 = vld [vmem:[%s1 + $0x6a8] sm:$0xff]
  %v255 = vld [vmem:[%s1 + $0x6b0] sm:$0xff]
  %v256 = vld [vmem:[%s1 + $0x6b8] sm:$0xff]
  %v257 = vld [vmem:[%s1 + $0x6c0] sm:$0xff]
  %v258 = vld [vmem:[%s1 + $0x6c8] sm:$0xff]
  %v259 = vld [vmem:[%s1 + $0x6d0] sm:$0xff]
  %v260 = vld [vmem:[%s1 + $0x6d8] sm:$0xff]
  %v261 = vld [vmem:[%s1 + $0x6e0] sm:$0xff]
  %v262 = vld [vmem:[%s1 + $0x6e8] sm:$0xff]
  %v263 = vld [vmem:[%s1 + $0x6f0] sm:$0xff]
  %v264 = vld [vmem:[%s1 + $0x6f8] sm:$0xff]
  %v265 = vld [vmem:[%s1 + $0x700] sm:$0xff]
  %v266 = vld [vmem:[%s1 + $0x708] sm:$0xff]
  %v267 = vld [vmem:[%s1 + $0x710] sm:$0xff]
  %v268 = vld [vmem:[%s1 + $0x718] sm:$0xff]
  %v269 = vld [vmem:[%s1 + $0x720] sm:$0xff]
  %v270 = vld [vmem:[%s1 + $0x728] sm:$0xff]
  %v271 = vld [vmem:[%s1 + $0x730] sm:$0xff]
  %v272 = vld [vmem:[%s1 + $0x738] sm:$0xff]
  %v273 = vld [vmem:[%s1 + $0x740] sm:$0xff]
  %v274 = vld [vmem:[%s1 + $0x748] sm:$0xff]
  %v275 = vld [vmem:[%s1 + $0x750] sm:$0xff]
  %v276 = vld [vmem:[%s1 + $0x758] sm:$0xff]
  %v277 = vld [vmem:[%s1 + $0x760] sm:$0xff]
  %v278 = vld [vmem:[%s1 + $0x768] sm:$0xff]
  %v279 = vld [vmem:[%s1 + $0x770] sm:$0xff]
  %v280 = vld [vmem:[%s1 + $0x778] sm:$0xff]
  %v281 = vld [vmem:[%s1 + $0x780] sm:$0xff]
  %v282 = vld [vmem:[%s1 + $0x788] sm:$0xff]
  %v283 = vld [vmem:[%s1 + $0x790] sm:$0xff]
  %v284 = vld [vmem:[%s1 + $0x798] sm:$0xff]
  %v285 = vld [vmem:[%s1 + $0x7a0] sm:$0xff]
  %v286 = vld [vmem:[%s1 + $0x7a8] sm:$0xff]
  %v287 = vld [vmem:[%s1 + $0x7b0] sm:$0xff]
  %v288 = vld [vmem:[%s1 + $0x7b8] sm:$0xff]
  %v289 = vld [vmem:[%s1 + $0x7c0] sm:$0xff]
  %v290 = vld [vmem:[%s1 + $0x7c8] sm:$0xff]
  %v291 = vld [vmem:[%s1 + $0x7d0] sm:$0xff]
  %v292 = vld [vmem:[%s1 + $0x7d8] sm:$0xff]
  %v293 = vld [vmem:[%s1 + $0x7e0] sm:$0xff]
  %v294 = vld [vmem:[%s1 + $0x7e8] sm:$0xff]
  %v295 = vld [vmem:[%s1 + $0x7f0] sm:$0xff]
  %v296 = vld [vmem:[%s1 + $0x7f8] sm:$0xff]
  %v297 = vld [vmem:[%s1 + $0x800] sm:$0xff]
  %v298 = vld [vmem:[%s1 + $0x808] sm:$0xff]
  %v299 = vld [vmem:[%s1 + $0x810] sm:$0xff]
  %v300 = vld [vmem:[%s1 + $0x818] sm:$0xff]
  %v301 = vld [vmem:[%s1 + $0x820] sm:$0xff]
  %v302 = vld [vmem:[%s1 + $0x828] sm:$0xff]
  %v303 = vld [vmem:[%s1 + $0x830] sm:$0xff]
  %v304 = vld [vmem:[%s1 + $0x838] sm:$0xff]
  %v305 = vld [vmem:[%s1 + $0x840] sm:$0xff]
  %v306 = vld [vmem:[%s1 + $0x848] sm:$0xff]
  %v307 = vld [vmem:[%s1 + $0x850] sm:$0xff]
  %v308 = vld [vmem:[%s1 + $0x858] sm:$0xff]
  %v309 = vld [vmem:[%s1 + $0x860] sm:$0xff]
  %v310 = vld [vmem:[%s1 + $0x868] sm:$0xff]
  %v311 = vld [vmem:[%s1 + $0x870] sm:$0xff]
  %v312 = vld [vmem:[%s1 + $0x878] sm:$0xff]
  %v313 = vld [vmem:[%s1 + $0x880] sm:$0xff]
  %v314 = vld [vmem:[%s1 + $0x888] sm:$0xff]
  %v315 = vld [vmem:[%s1 + $0x890] sm:$0xff]
  %v316 = vld [vmem:[%s1 + $0x898] sm:$0xff]
  %v317 = vld [vmem:[%s1 + $0x8a0] sm:$0xff]
  %v318 = vld [vmem:[%s1 + $0x8a8] sm:$0xff]
  %v319 = vld [vmem:[%s1 + $0x8b0] sm:$0xff]
  %v320 = vld [vmem:[%s1 + $0x8b8] sm:$0xff]
  %v321 = vld [vmem:[%s1 + $0x8c0] sm:$0xff]
  %v322 = vld [vmem:[%s1 + $0x8c8] sm:$0xff]
  %v323 = vld [vmem:[%s1 + $0x8d0] sm:$0xff]
  %v324 = vld [vmem:[%s1 + $0x8d8] sm:$0xff]
  %v325 = vld [vmem:[%s1 + $0x8e0] sm:$0xff]
  %v326 = vld [vmem:[%s1 + $0x8e8] sm:$0xff]
  %v327 = vld [vmem:[%s1 + $0x8f0] sm:$0xff]
  %v328 = vld [vmem:[%s1 + $0x8f8] sm:$0xff]
  %v329 = vld [vmem:[%s2] sm:$0x3]
  %v331 = vlaneseq
  %v332 = vshrl.u32 %v331, 7
  %v333 = vsub.s32 0, %v332
  %v334 = vrot.slane %v329, %v333
  %v335 = vlaneseq
  %v336 = vshrl.u32 %v335, 7
  %v337 = vsub.s32 1, %v336
  %v338 = vrot.slane %v329, %v337
  %v368 = vunpack.c.l.b16 %v14
  %v369 = vunpack.c.h.b16 %v14
  %v370 = vunpack.c.l.b16 %v15
  %v371 = vunpack.c.h.b16 %v15
  %v372 = vunpack.c.l.b16 %v16
  %v373 = vunpack.c.h.b16 %v16
  %v374 = vunpack.c.l.b16 %v17
  %v375 = vunpack.c.h.b16 %v17
  %v376 = vunpack.c.l.b16 %v18
  %v377 = vunpack.c.h.b16 %v18
  %v378 = vunpack.c.l.b16 %v19
  %v379 = vunpack.c.h.b16 %v19
  %v380 = vunpack.c.l.b16 %v20
  %v381 = vunpack.c.h.b16 %v20
  %v382 = vunpack.c.l.b16 %v21
  %v383 = vunpack.c.h.b16 %v21
  %v384 = vunpack.c.l.b16 %v22
  %v385 = vunpack.c.h.b16 %v22
  %v386 = vunpack.c.l.b16 %v23
  %v387 = vunpack.c.h.b16 %v23
  %v388 = vunpack.c.l.b16 %v24
  %v389 = vunpack.c.h.b16 %v24
  %v390 = vunpack.c.l.b16 %v25
  %v391 = vunpack.c.h.b16 %v25
  %v392 = vunpack.c.l.b16 %v26
  %v393 = vunpack.c.h.b16 %v26
  %v394 = vunpack.c.l.b16 %v27
  %v395 = vunpack.c.h.b16 %v27
  %v396 = vunpack.c.l.b16 %v28
  %v397 = vunpack.c.h.b16 %v28
  %v398 = vunpack.c.l.b16 %v29
  %v399 = vunpack.c.h.b16 %v29
  %v400 = vunpack.c.l.b16 %v30
  %v401 = vunpack.c.h.b16 %v30
  %v402 = vunpack.c.l.b16 %v31
  %v403 = vunpack.c.h.b16 %v31
  %v404 = vunpack.c.l.b16 %v32
  %v405 = vunpack.c.h.b16 %v32
  %v406 = vunpack.c.l.b16 %v33
  %v407 = vunpack.c.h.b16 %v33
  %v408 = vunpack.c.l.b16 %v34
  %v409 = vunpack.c.h.b16 %v34
  %v410 = vunpack.c.l.b16 %v35
  %v411 = vunpack.c.h.b16 %v35
  %v412 = vunpack.c.l.b16 %v36
  %v413 = vunpack.c.h.b16 %v36
  %v414 = vunpack.c.l.b16 %v37
  %v415 = vunpack.c.h.b16 %v37
  %v416 = vunpack.c.l.b16 %v38
  %v417 = vunpack.c.h.b16 %v38
  %v418 = vunpack.c.l.b16 %v39
  %v419 = vunpack.c.h.b16 %v39
  %v420 = vunpack.c.l.b16 %v40
  %v421 = vunpack.c.h.b16 %v40
  %v422 = vpack.c.b16 %v386, %v368
  %v423 = vpack.c.b16 %v387, %v369
  %v424 = vpack.c.b16 %v388, %v370
  %v425 = vpack.c.b16 %v389, %v371
  %v426 = vpack.c.b16 %v390, %v372
  %v427 = vpack.c.b16 %v391, %v373
  %v428 = vpack.c.b16 %v392, %v374
  %v429 = vpack.c.b16 %v393, %v375
  %v430 = vpack.c.b16 %v394, %v376
  %v431 = vpack.c.b16 %v395, %v377
  %v432 = vpack.c.b16 %v396, %v378
  %v433 = vpack.c.b16 %v397, %v379
  %v434 = vpack.c.b16 %v398, %v380
  %v435 = vpack.c.b16 %v399, %v381
  %v436 = vpack.c.b16 %v400, %v382
  %v437 = vpack.c.b16 %v401, %v383
  %v438 = vpack.c.b16 %v402, %v384
  %v439 = vpack.c.b16 %v403, %v385
  %v440 = vpack.c.b16 %v404, %v404
  %v441 = vpack.c.b16 %v405, %v405
  %v442 = vpack.c.b16 %v406, %v406
  %v443 = vpack.c.b16 %v407, %v407
  %v444 = vpack.c.b16 %v408, %v408
  %v445 = vpack.c.b16 %v409, %v409
  %v446 = vpack.c.b16 %v410, %v410
  %v447 = vpack.c.b16 %v411, %v411
  %v448 = vpack.c.b16 %v412, %v412
  %v449 = vpack.c.b16 %v413, %v413
  %v450 = vpack.c.b16 %v414, %v414
  %v451 = vpack.c.b16 %v415, %v415
  %v452 = vpack.c.b16 %v416, %v416
  %v453 = vpack.c.b16 %v417, %v417
  %v454 = vpack.c.b16 %v418, %v418
  %v455 = vpack.c.b16 %v419, %v419
  %v456 = vpack.c.b16 %v420, %v420
  %v457 = vpack.c.b16 %v421, %v421
  %v782 = vunpack.c.l.b16 %v41
  %v783 = vunpack.c.h.b16 %v41
  %v784 = vunpack.c.l.b16 %v42
  %v785 = vunpack.c.h.b16 %v42
  %v786 = vunpack.c.l.b16 %v43
  %v787 = vunpack.c.h.b16 %v43
  %v788 = vunpack.c.l.b16 %v44
  %v789 = vunpack.c.h.b16 %v44
  %v790 = vunpack.c.l.b16 %v45
  %v791 = vunpack.c.h.b16 %v45
  %v792 = vunpack.c.l.b16 %v46
  %v793 = vunpack.c.h.b16 %v46
  %v794 = vunpack.c.l.b16 %v47
  %v795 = vunpack.c.h.b16 %v47
  %v796 = vunpack.c.l.b16 %v48
  %v797 = vunpack.c.h.b16 %v48
  %v798 = vunpack.c.l.b16 %v49
  %v799 = vunpack.c.h.b16 %v49
  %v800 = vunpack.c.l.b16 %v50
  %v801 = vunpack.c.h.b16 %v50
  %v802 = vunpack.c.l.b16 %v51
  %v803 = vunpack.c.h.b16 %v51
  %v804 = vunpack.c.l.b16 %v52
  %v805 = vunpack.c.h.b16 %v52
  %v806 = vunpack.c.l.b16 %v53
  %v807 = vunpack.c.h.b16 %v53
  %v808 = vunpack.c.l.b16 %v54
  %v809 = vunpack.c.h.b16 %v54
  %v810 = vunpack.c.l.b16 %v55
  %v811 = vunpack.c.h.b16 %v55
  %v812 = vunpack.c.l.b16 %v56
  %v813 = vunpack.c.h.b16 %v56
  %v814 = vunpack.c.l.b16 %v57
  %v815 = vunpack.c.h.b16 %v57
  %v816 = vunpack.c.l.b16 %v58
  %v817 = vunpack.c.h.b16 %v58
  %v818 = vunpack.c.l.b16 %v59
  %v819 = vunpack.c.h.b16 %v59
  %v820 = vunpack.c.l.b16 %v60
  %v821 = vunpack.c.h.b16 %v60
  %v822 = vunpack.c.l.b16 %v61
  %v823 = vunpack.c.h.b16 %v61
  %v824 = vunpack.c.l.b16 %v62
  %v825 = vunpack.c.h.b16 %v62
  %v826 = vunpack.c.l.b16 %v63
  %v827 = vunpack.c.h.b16 %v63
  %v828 = vunpack.c.l.b16 %v64
  %v829 = vunpack.c.h.b16 %v64
  %v830 = vunpack.c.l.b16 %v65
  %v831 = vunpack.c.h.b16 %v65
  %v832 = vunpack.c.l.b16 %v66
  %v833 = vunpack.c.h.b16 %v66
  %v834 = vunpack.c.l.b16 %v67
  %v835 = vunpack.c.h.b16 %v67
  %v836 = vunpack.c.l.b16 %v68
  %v837 = vunpack.c.h.b16 %v68
  %v838 = vunpack.c.l.b16 %v69
  %v839 = vunpack.c.h.b16 %v69
  %v840 = vunpack.c.l.b16 %v70
  %v841 = vunpack.c.h.b16 %v70
  %v842 = vunpack.c.l.b16 %v71
  %v843 = vunpack.c.h.b16 %v71
  %v844 = vunpack.c.l.b16 %v72
  %v845 = vunpack.c.h.b16 %v72
  %v846 = vunpack.c.l.b16 %v73
  %v847 = vunpack.c.h.b16 %v73
  %v848 = vunpack.c.l.b16 %v74
  %v849 = vunpack.c.h.b16 %v74
  %v850 = vunpack.c.l.b16 %v75
  %v851 = vunpack.c.h.b16 %v75
  %v852 = vunpack.c.l.b16 %v76
  %v853 = vunpack.c.h.b16 %v76
  %v854 = vunpack.c.l.b16 %v77
  %v855 = vunpack.c.h.b16 %v77
  %v856 = vunpack.c.l.b16 %v78
  %v857 = vunpack.c.h.b16 %v78
  %v858 = vunpack.c.l.b16 %v79
  %v859 = vunpack.c.h.b16 %v79
  %v860 = vunpack.c.l.b16 %v80
  %v861 = vunpack.c.h.b16 %v80
  %v862 = vunpack.c.l.b16 %v81
  %v863 = vunpack.c.h.b16 %v81
  %v864 = vunpack.c.l.b16 %v82
  %v865 = vunpack.c.h.b16 %v82
  %v866 = vunpack.c.l.b16 %v83
  %v867 = vunpack.c.h.b16 %v83
  %v868 = vunpack.c.l.b16 %v84
  %v869 = vunpack.c.h.b16 %v84
  %v870 = vunpack.c.l.b16 %v85
  %v871 = vunpack.c.h.b16 %v85
  %v872 = vunpack.c.l.b16 %v86
  %v873 = vunpack.c.h.b16 %v86
  %v874 = vunpack.c.l.b16 %v87
  %v875 = vunpack.c.h.b16 %v87
  %v876 = vunpack.c.l.b16 %v88
  %v877 = vunpack.c.h.b16 %v88
  %v878 = vunpack.c.l.b16 %v89
  %v879 = vunpack.c.h.b16 %v89
  %v880 = vunpack.c.l.b16 %v90
  %v881 = vunpack.c.h.b16 %v90
  %v882 = vunpack.c.l.b16 %v91
  %v883 = vunpack.c.h.b16 %v91
  %v884 = vunpack.c.l.b16 %v92
  %v885 = vunpack.c.h.b16 %v92
  %v886 = vunpack.c.l.b16 %v93
  %v887 = vunpack.c.h.b16 %v93
  %v888 = vunpack.c.l.b16 %v94
  %v889 = vunpack.c.h.b16 %v94
  %v890 = vunpack.c.l.b16 %v95
  %v891 = vunpack.c.h.b16 %v95
  %v892 = vunpack.c.l.b16 %v96
  %v893 = vunpack.c.h.b16 %v96
  %v894 = vunpack.c.l.b16 %v97
  %v895 = vunpack.c.h.b16 %v97
  %v896 = vunpack.c.l.b16 %v98
  %v897 = vunpack.c.h.b16 %v98
  %v898 = vunpack.c.l.b16 %v99
  %v899 = vunpack.c.h.b16 %v99
  %v900 = vunpack.c.l.b16 %v100
  %v901 = vunpack.c.h.b16 %v100
  %v902 = vunpack.c.l.b16 %v101
  %v903 = vunpack.c.h.b16 %v101
  %v904 = vunpack.c.l.b16 %v102
  %v905 = vunpack.c.h.b16 %v102
  %v906 = vunpack.c.l.b16 %v103
  %v907 = vunpack.c.h.b16 %v103
  %v908 = vunpack.c.l.b16 %v104
  %v909 = vunpack.c.h.b16 %v104
  %v910 = vunpack.c.l.b16 %v105
  %v911 = vunpack.c.h.b16 %v105
  %v912 = vunpack.c.l.b16 %v106
  %v913 = vunpack.c.h.b16 %v106
  %v914 = vunpack.c.l.b16 %v107
  %v915 = vunpack.c.h.b16 %v107
  %v916 = vunpack.c.l.b16 %v108
  %v917 = vunpack.c.h.b16 %v108
  %v918 = vunpack.c.l.b16 %v109
  %v919 = vunpack.c.h.b16 %v109
  %v920 = vunpack.c.l.b16 %v110
  %v921 = vunpack.c.h.b16 %v110
  %v922 = vunpack.c.l.b16 %v111
  %v923 = vunpack.c.h.b16 %v111
  %v924 = vunpack.c.l.b16 %v112
  %v925 = vunpack.c.h.b16 %v112
  %v926 = vunpack.c.l.b16 %v113
  %v927 = vunpack.c.h.b16 %v113
  %v928 = vunpack.c.l.b16 %v114
  %v929 = vunpack.c.h.b16 %v114
  %v930 = vunpack.c.l.b16 %v115
  %v931 = vunpack.c.h.b16 %v115
  %v932 = vunpack.c.l.b16 %v116
  %v933 = vunpack.c.h.b16 %v116
  %v934 = vunpack.c.l.b16 %v117
  %v935 = vunpack.c.h.b16 %v117
  %v936 = vunpack.c.l.b16 %v118
  %v937 = vunpack.c.h.b16 %v118
  %v938 = vunpack.c.l.b16 %v119
  %v939 = vunpack.c.h.b16 %v119
  %v940 = vunpack.c.l.b16 %v120
  %v941 = vunpack.c.h.b16 %v120
  %v942 = vunpack.c.l.b16 %v121
  %v943 = vunpack.c.h.b16 %v121
  %v944 = vunpack.c.l.b16 %v122
  %v945 = vunpack.c.h.b16 %v122
  %v946 = vunpack.c.l.b16 %v123
  %v947 = vunpack.c.h.b16 %v123
  %v948 = vunpack.c.l.b16 %v124
  %v949 = vunpack.c.h.b16 %v124
  %v950 = vunpack.c.l.b16 %v125
  %v951 = vunpack.c.h.b16 %v125
  %v952 = vunpack.c.l.b16 %v126
  %v953 = vunpack.c.h.b16 %v126
  %v954 = vunpack.c.l.b16 %v127
  %v955 = vunpack.c.h.b16 %v127
  %v956 = vunpack.c.l.b16 %v128
  %v957 = vunpack.c.h.b16 %v128
  %v958 = vunpack.c.l.b16 %v129
  %v959 = vunpack.c.h.b16 %v129
  %v960 = vunpack.c.l.b16 %v130
  %v961 = vunpack.c.h.b16 %v130
  %v962 = vunpack.c.l.b16 %v131
  %v963 = vunpack.c.h.b16 %v131
  %v964 = vunpack.c.l.b16 %v132
  %v965 = vunpack.c.h.b16 %v132
  %v966 = vunpack.c.l.b16 %v133
  %v967 = vunpack.c.h.b16 %v133
  %v968 = vunpack.c.l.b16 %v134
  %v969 = vunpack.c.h.b16 %v134
  %v970 = vunpack.c.l.b16 %v135
  %v971 = vunpack.c.h.b16 %v135
  %v972 = vunpack.c.l.b16 %v136
  %v973 = vunpack.c.h.b16 %v136
  %v974 = vunpack.c.l.b16 %v137
  %v975 = vunpack.c.h.b16 %v137
  %v976 = vunpack.c.l.b16 %v138
  %v977 = vunpack.c.h.b16 %v138
  %v978 = vunpack.c.l.b16 %v139
  %v979 = vunpack.c.h.b16 %v139
  %v980 = vunpack.c.l.b16 %v140
  %v981 = vunpack.c.h.b16 %v140
  %v982 = vunpack.c.l.b16 %v141
  %v983 = vunpack.c.h.b16 %v141
  %v984 = vunpack.c.l.b16 %v142
  %v985 = vunpack.c.h.b16 %v142
  %v986 = vunpack.c.l.b16 %v143
  %v987 = vunpack.c.h.b16 %v143
  %v988 = vunpack.c.l.b16 %v144
  %v989 = vunpack.c.h.b16 %v144
  %v990 = vunpack.c.l.b16 %v145
  %v991 = vunpack.c.h.b16 %v145
  %v992 = vunpack.c.l.b16 %v146
  %v993 = vunpack.c.h.b16 %v146
  %v994 = vunpack.c.l.b16 %v147
  %v995 = vunpack.c.h.b16 %v147
  %v996 = vunpack.c.l.b16 %v148
  %v997 = vunpack.c.h.b16 %v148
  %v998 = vunpack.c.l.b16 %v149
  %v999 = vunpack.c.h.b16 %v149
  %v1000 = vunpack.c.l.b16 %v150
  %v1001 = vunpack.c.h.b16 %v150
  %v1002 = vunpack.c.l.b16 %v151
  %v1003 = vunpack.c.h.b16 %v151
  %v1004 = vunpack.c.l.b16 %v152
  %v1005 = vunpack.c.h.b16 %v152
  %v1006 = vunpack.c.l.b16 %v153
  %v1007 = vunpack.c.h.b16 %v153
  %v1008 = vunpack.c.l.b16 %v154
  %v1009 = vunpack.c.h.b16 %v154
  %v1010 = vunpack.c.l.b16 %v155
  %v1011 = vunpack.c.h.b16 %v155
  %v1012 = vunpack.c.l.b16 %v156
  %v1013 = vunpack.c.h.b16 %v156
  %v1014 = vunpack.c.l.b16 %v157
  %v1015 = vunpack.c.h.b16 %v157
  %v1016 = vunpack.c.l.b16 %v158
  %v1017 = vunpack.c.h.b16 %v158
  %v1018 = vunpack.c.l.b16 %v159
  %v1019 = vunpack.c.h.b16 %v159
  %v1020 = vunpack.c.l.b16 %v160
  %v1021 = vunpack.c.h.b16 %v160
  %v1022 = vunpack.c.l.b16 %v161
  %v1023 = vunpack.c.h.b16 %v161
  %v1024 = vunpack.c.l.b16 %v162
  %v1025 = vunpack.c.h.b16 %v162
  %v1026 = vunpack.c.l.b16 %v163
  %v1027 = vunpack.c.h.b16 %v163
  %v1028 = vunpack.c.l.b16 %v164
  %v1029 = vunpack.c.h.b16 %v164
  %v1030 = vunpack.c.l.b16 %v165
  %v1031 = vunpack.c.h.b16 %v165
  %v1032 = vunpack.c.l.b16 %v166
  %v1033 = vunpack.c.h.b16 %v166
  %v1034 = vunpack.c.l.b16 %v167
  %v1035 = vunpack.c.h.b16 %v167
  %v1036 = vunpack.c.l.b16 %v168
  %v1037 = vunpack.c.h.b16 %v168
  %v1038 = vunpack.c.l.b16 %v169
  %v1039 = vunpack.c.h.b16 %v169
  %v1040 = vunpack.c.l.b16 %v170
  %v1041 = vunpack.c.h.b16 %v170
  %v1042 = vunpack.c.l.b16 %v171
  %v1043 = vunpack.c.h.b16 %v171
  %v1044 = vunpack.c.l.b16 %v172
  %v1045 = vunpack.c.h.b16 %v172
  %v1046 = vunpack.c.l.b16 %v173
  %v1047 = vunpack.c.h.b16 %v173
  %v1048 = vunpack.c.l.b16 %v174
  %v1049 = vunpack.c.h.b16 %v174
  %v1050 = vunpack.c.l.b16 %v175
  %v1051 = vunpack.c.h.b16 %v175
  %v1052 = vunpack.c.l.b16 %v176
  %v1053 = vunpack.c.h.b16 %v176
  %v1054 = vunpack.c.l.b16 %v177
  %v1055 = vunpack.c.h.b16 %v177
  %v1056 = vunpack.c.l.b16 %v178
  %v1057 = vunpack.c.h.b16 %v178
  %v1058 = vunpack.c.l.b16 %v179
  %v1059 = vunpack.c.h.b16 %v179
  %v1060 = vunpack.c.l.b16 %v180
  %v1061 = vunpack.c.h.b16 %v180
  %v1062 = vunpack.c.l.b16 %v181
  %v1063 = vunpack.c.h.b16 %v181
  %v1064 = vunpack.c.l.b16 %v182
  %v1065 = vunpack.c.h.b16 %v182
  %v1066 = vunpack.c.l.b16 %v183
  %v1067 = vunpack.c.h.b16 %v183
  %v1068 = vunpack.c.l.b16 %v184
  %v1069 = vunpack.c.h.b16 %v184
  %v1070 = vunpack.c.l.b16 %v185
  %v1071 = vunpack.c.h.b16 %v185
  %v1072 = vunpack.c.l.b16 %v186
  %v1073 = vunpack.c.h.b16 %v186
  %v1074 = vunpack.c.l.b16 %v187
  %v1075 = vunpack.c.h.b16 %v187
  %v1076 = vunpack.c.l.b16 %v188
  %v1077 = vunpack.c.h.b16 %v188
  %v1078 = vunpack.c.l.b16 %v189
  %v1079 = vunpack.c.h.b16 %v189
  %v1080 = vunpack.c.l.b16 %v190
  %v1081 = vunpack.c.h.b16 %v190
  %v1082 = vunpack.c.l.b16 %v191
  %v1083 = vunpack.c.h.b16 %v191
  %v1084 = vunpack.c.l.b16 %v192
  %v1085 = vunpack.c.h.b16 %v192
  %v1086 = vunpack.c.l.b16 %v193
  %v1087 = vunpack.c.h.b16 %v193
  %v1088 = vunpack.c.l.b16 %v194
  %v1089 = vunpack.c.h.b16 %v194
  %v1090 = vunpack.c.l.b16 %v195
  %v1091 = vunpack.c.h.b16 %v195
  %v1092 = vunpack.c.l.b16 %v196
  %v1093 = vunpack.c.h.b16 %v196
  %v1094 = vunpack.c.l.b16 %v197
  %v1095 = vunpack.c.h.b16 %v197
  %v1096 = vunpack.c.l.b16 %v198
  %v1097 = vunpack.c.h.b16 %v198
  %v1098 = vunpack.c.l.b16 %v199
  %v1099 = vunpack.c.h.b16 %v199
  %v1100 = vunpack.c.l.b16 %v200
  %v1101 = vunpack.c.h.b16 %v200
  %v1102 = vunpack.c.l.b16 %v201
  %v1103 = vunpack.c.h.b16 %v201
  %v1104 = vunpack.c.l.b16 %v202
  %v1105 = vunpack.c.h.b16 %v202
  %v1106 = vunpack.c.l.b16 %v203
  %v1107 = vunpack.c.h.b16 %v203
  %v1108 = vunpack.c.l.b16 %v204
  %v1109 = vunpack.c.h.b16 %v204
  %v1110 = vunpack.c.l.b16 %v205
  %v1111 = vunpack.c.h.b16 %v205
  %v1112 = vunpack.c.l.b16 %v206
  %v1113 = vunpack.c.h.b16 %v206
  %v1114 = vunpack.c.l.b16 %v207
  %v1115 = vunpack.c.h.b16 %v207
  %v1116 = vunpack.c.l.b16 %v208
  %v1117 = vunpack.c.h.b16 %v208
  %v1118 = vunpack.c.l.b16 %v209
  %v1119 = vunpack.c.h.b16 %v209
  %v1120 = vunpack.c.l.b16 %v210
  %v1121 = vunpack.c.h.b16 %v210
  %v1122 = vunpack.c.l.b16 %v211
  %v1123 = vunpack.c.h.b16 %v211
  %v1124 = vunpack.c.l.b16 %v212
  %v1125 = vunpack.c.h.b16 %v212
  %v1126 = vunpack.c.l.b16 %v213
  %v1127 = vunpack.c.h.b16 %v213
  %v1128 = vunpack.c.l.b16 %v214
  %v1129 = vunpack.c.h.b16 %v214
  %v1130 = vunpack.c.l.b16 %v215
  %v1131 = vunpack.c.h.b16 %v215
  %v1132 = vunpack.c.l.b16 %v216
  %v1133 = vunpack.c.h.b16 %v216
  %v1134 = vunpack.c.l.b16 %v217
  %v1135 = vunpack.c.h.b16 %v217
  %v1136 = vunpack.c.l.b16 %v218
  %v1137 = vunpack.c.h.b16 %v218
  %v1138 = vunpack.c.l.b16 %v219
  %v1139 = vunpack.c.h.b16 %v219
  %v1140 = vunpack.c.l.b16 %v220
  %v1141 = vunpack.c.h.b16 %v220
  %v1142 = vunpack.c.l.b16 %v221
  %v1143 = vunpack.c.h.b16 %v221
  %v1144 = vunpack.c.l.b16 %v222
  %v1145 = vunpack.c.h.b16 %v222
  %v1146 = vunpack.c.l.b16 %v223
  %v1147 = vunpack.c.h.b16 %v223
  %v1148 = vunpack.c.l.b16 %v224
  %v1149 = vunpack.c.h.b16 %v224
  %v1150 = vunpack.c.l.b16 %v225
  %v1151 = vunpack.c.h.b16 %v225
  %v1152 = vunpack.c.l.b16 %v226
  %v1153 = vunpack.c.h.b16 %v226
  %v1154 = vunpack.c.l.b16 %v227
  %v1155 = vunpack.c.h.b16 %v227
  %v1156 = vunpack.c.l.b16 %v228
  %v1157 = vunpack.c.h.b16 %v228
  %v1158 = vunpack.c.l.b16 %v229
  %v1159 = vunpack.c.h.b16 %v229
  %v1160 = vunpack.c.l.b16 %v230
  %v1161 = vunpack.c.h.b16 %v230
  %v1162 = vunpack.c.l.b16 %v231
  %v1163 = vunpack.c.h.b16 %v231
  %v1164 = vunpack.c.l.b16 %v232
  %v1165 = vunpack.c.h.b16 %v232
  %v1166 = vunpack.c.l.b16 %v233
  %v1167 = vunpack.c.h.b16 %v233
  %v1168 = vunpack.c.l.b16 %v234
  %v1169 = vunpack.c.h.b16 %v234
  %v1170 = vunpack.c.l.b16 %v235
  %v1171 = vunpack.c.h.b16 %v235
  %v1172 = vunpack.c.l.b16 %v236
  %v1173 = vunpack.c.h.b16 %v236
  %v1174 = vunpack.c.l.b16 %v237
  %v1175 = vunpack.c.h.b16 %v237
  %v1176 = vunpack.c.l.b16 %v238
  %v1177 = vunpack.c.h.b16 %v238
  %v1178 = vunpack.c.l.b16 %v239
  %v1179 = vunpack.c.h.b16 %v239
  %v1180 = vunpack.c.l.b16 %v240
  %v1181 = vunpack.c.h.b16 %v240
  %v1182 = vunpack.c.l.b16 %v241
  %v1183 = vunpack.c.h.b16 %v241
  %v1184 = vunpack.c.l.b16 %v242
  %v1185 = vunpack.c.h.b16 %v242
  %v1186 = vunpack.c.l.b16 %v243
  %v1187 = vunpack.c.h.b16 %v243
  %v1188 = vunpack.c.l.b16 %v244
  %v1189 = vunpack.c.h.b16 %v244
  %v1190 = vunpack.c.l.b16 %v245
  %v1191 = vunpack.c.h.b16 %v245
  %v1192 = vunpack.c.l.b16 %v246
  %v1193 = vunpack.c.h.b16 %v246
  %v1194 = vunpack.c.l.b16 %v247
  %v1195 = vunpack.c.h.b16 %v247
  %v1196 = vunpack.c.l.b16 %v248
  %v1197 = vunpack.c.h.b16 %v248
  %v1198 = vunpack.c.l.b16 %v249
  %v1199 = vunpack.c.h.b16 %v249
  %v1200 = vunpack.c.l.b16 %v250
  %v1201 = vunpack.c.h.b16 %v250
  %v1202 = vunpack.c.l.b16 %v251
  %v1203 = vunpack.c.h.b16 %v251
  %v1204 = vunpack.c.l.b16 %v252
  %v1205 = vunpack.c.h.b16 %v252
  %v1206 = vunpack.c.l.b16 %v253
  %v1207 = vunpack.c.h.b16 %v253
  %v1208 = vunpack.c.l.b16 %v254
  %v1209 = vunpack.c.h.b16 %v254
  %v1210 = vunpack.c.l.b16 %v255
  %v1211 = vunpack.c.h.b16 %v255
  %v1212 = vunpack.c.l.b16 %v256
  %v1213 = vunpack.c.h.b16 %v256
  %v1214 = vunpack.c.l.b16 %v257
  %v1215 = vunpack.c.h.b16 %v257
  %v1216 = vunpack.c.l.b16 %v258
  %v1217 = vunpack.c.h.b16 %v258
  %v1218 = vunpack.c.l.b16 %v259
  %v1219 = vunpack.c.h.b16 %v259
  %v1220 = vunpack.c.l.b16 %v260
  %v1221 = vunpack.c.h.b16 %v260
  %v1222 = vunpack.c.l.b16 %v261
  %v1223 = vunpack.c.h.b16 %v261
  %v1224 = vunpack.c.l.b16 %v262
  %v1225 = vunpack.c.h.b16 %v262
  %v1226 = vunpack.c.l.b16 %v263
  %v1227 = vunpack.c.h.b16 %v263
  %v1228 = vunpack.c.l.b16 %v264
  %v1229 = vunpack.c.h.b16 %v264
  %v1230 = vunpack.c.l.b16 %v265
  %v1231 = vunpack.c.h.b16 %v265
  %v1232 = vunpack.c.l.b16 %v266
  %v1233 = vunpack.c.h.b16 %v266
  %v1234 = vunpack.c.l.b16 %v267
  %v1235 = vunpack.c.h.b16 %v267
  %v1236 = vunpack.c.l.b16 %v268
  %v1237 = vunpack.c.h.b16 %v268
  %v1238 = vunpack.c.l.b16 %v269
  %v1239 = vunpack.c.h.b16 %v269
  %v1240 = vunpack.c.l.b16 %v270
  %v1241 = vunpack.c.h.b16 %v270
  %v1242 = vunpack.c.l.b16 %v271
  %v1243 = vunpack.c.h.b16 %v271
  %v1244 = vunpack.c.l.b16 %v272
  %v1245 = vunpack.c.h.b16 %v272
  %v1246 = vunpack.c.l.b16 %v273
  %v1247 = vunpack.c.h.b16 %v273
  %v1248 = vunpack.c.l.b16 %v274
  %v1249 = vunpack.c.h.b16 %v274
  %v1250 = vunpack.c.l.b16 %v275
  %v1251 = vunpack.c.h.b16 %v275
  %v1252 = vunpack.c.l.b16 %v276
  %v1253 = vunpack.c.h.b16 %v276
  %v1254 = vunpack.c.l.b16 %v277
  %v1255 = vunpack.c.h.b16 %v277
  %v1256 = vunpack.c.l.b16 %v278
  %v1257 = vunpack.c.h.b16 %v278
  %v1258 = vunpack.c.l.b16 %v279
  %v1259 = vunpack.c.h.b16 %v279
  %v1260 = vunpack.c.l.b16 %v280
  %v1261 = vunpack.c.h.b16 %v280
  %v1262 = vunpack.c.l.b16 %v281
  %v1263 = vunpack.c.h.b16 %v281
  %v1264 = vunpack.c.l.b16 %v282
  %v1265 = vunpack.c.h.b16 %v282
  %v1266 = vunpack.c.l.b16 %v283
  %v1267 = vunpack.c.h.b16 %v283
  %v1268 = vunpack.c.l.b16 %v284
  %v1269 = vunpack.c.h.b16 %v284
  %v1270 = vunpack.c.l.b16 %v285
  %v1271 = vunpack.c.h.b16 %v285
  %v1272 = vunpack.c.l.b16 %v286
  %v1273 = vunpack.c.h.b16 %v286
  %v1274 = vunpack.c.l.b16 %v287
  %v1275 = vunpack.c.h.b16 %v287
  %v1276 = vunpack.c.l.b16 %v288
  %v1277 = vunpack.c.h.b16 %v288
  %v1278 = vunpack.c.l.b16 %v289
  %v1279 = vunpack.c.h.b16 %v289
  %v1280 = vunpack.c.l.b16 %v290
  %v1281 = vunpack.c.h.b16 %v290
  %v1282 = vunpack.c.l.b16 %v291
  %v1283 = vunpack.c.h.b16 %v291
  %v1284 = vunpack.c.l.b16 %v292
  %v1285 = vunpack.c.h.b16 %v292
  %v1286 = vunpack.c.l.b16 %v293
  %v1287 = vunpack.c.h.b16 %v293
  %v1288 = vunpack.c.l.b16 %v294
  %v1289 = vunpack.c.h.b16 %v294
  %v1290 = vunpack.c.l.b16 %v295
  %v1291 = vunpack.c.h.b16 %v295
  %v1292 = vunpack.c.l.b16 %v296
  %v1293 = vunpack.c.h.b16 %v296
  %v1294 = vunpack.c.l.b16 %v297
  %v1295 = vunpack.c.h.b16 %v297
  %v1296 = vunpack.c.l.b16 %v298
  %v1297 = vunpack.c.h.b16 %v298
  %v1298 = vunpack.c.l.b16 %v299
  %v1299 = vunpack.c.h.b16 %v299
  %v1300 = vunpack.c.l.b16 %v300
  %v1301 = vunpack.c.h.b16 %v300
  %v1302 = vunpack.c.l.b16 %v301
  %v1303 = vunpack.c.h.b16 %v301
  %v1304 = vunpack.c.l.b16 %v302
  %v1305 = vunpack.c.h.b16 %v302
  %v1306 = vunpack.c.l.b16 %v303
  %v1307 = vunpack.c.h.b16 %v303
  %v1308 = vunpack.c.l.b16 %v304
  %v1309 = vunpack.c.h.b16 %v304
  %v1310 = vunpack.c.l.b16 %v305
  %v1311 = vunpack.c.h.b16 %v305
  %v1312 = vunpack.c.l.b16 %v306
  %v1313 = vunpack.c.h.b16 %v306
  %v1314 = vunpack.c.l.b16 %v307
  %v1315 = vunpack.c.h.b16 %v307
  %v1316 = vunpack.c.l.b16 %v308
  %v1317 = vunpack.c.h.b16 %v308
  %v1318 = vunpack.c.l.b16 %v309
  %v1319 = vunpack.c.h.b16 %v309
  %v1320 = vunpack.c.l.b16 %v310
  %v1321 = vunpack.c.h.b16 %v310
  %v1322 = vunpack.c.l.b16 %v311
  %v1323 = vunpack.c.h.b16 %v311
  %v1324 = vunpack.c.l.b16 %v312
  %v1325 = vunpack.c.h.b16 %v312
  %v1326 = vunpack.c.l.b16 %v313
  %v1327 = vunpack.c.h.b16 %v313
  %v1328 = vunpack.c.l.b16 %v314
  %v1329 = vunpack.c.h.b16 %v314
  %v1330 = vunpack.c.l.b16 %v315
  %v1331 = vunpack.c.h.b16 %v315
  %v1332 = vunpack.c.l.b16 %v316
  %v1333 = vunpack.c.h.b16 %v316
  %v1334 = vunpack.c.l.b16 %v317
  %v1335 = vunpack.c.h.b16 %v317
  %v1336 = vunpack.c.l.b16 %v318
  %v1337 = vunpack.c.h.b16 %v318
  %v1338 = vunpack.c.l.b16 %v319
  %v1339 = vunpack.c.h.b16 %v319
  %v1340 = vunpack.c.l.b16 %v320
  %v1341 = vunpack.c.h.b16 %v320
  %v1342 = vunpack.c.l.b16 %v321
  %v1343 = vunpack.c.h.b16 %v321
  %v1344 = vunpack.c.l.b16 %v322
  %v1345 = vunpack.c.h.b16 %v322
  %v1346 = vunpack.c.l.b16 %v323
  %v1347 = vunpack.c.h.b16 %v323
  %v1348 = vunpack.c.l.b16 %v324
  %v1349 = vunpack.c.h.b16 %v324
  %v1350 = vunpack.c.l.b16 %v325
  %v1351 = vunpack.c.h.b16 %v325
  %v1352 = vunpack.c.l.b16 %v326
  %v1353 = vunpack.c.h.b16 %v326
  %v1354 = vunpack.c.l.b16 %v327
  %v1355 = vunpack.c.h.b16 %v327
  %v1356 = vunpack.c.l.b16 %v328
  %v1357 = vunpack.c.h.b16 %v328
  %v1358 = vpack.c.b16 %v784, %v782
  %v1359 = vpack.c.b16 %v785, %v783
  %v1360 = vpack.c.b16 %v788, %v786
  %v1361 = vpack.c.b16 %v789, %v787
  %v1362 = vpack.c.b16 %v792, %v790
  %v1363 = vpack.c.b16 %v793, %v791
  %v1364 = vpack.c.b16 %v796, %v794
  %v1365 = vpack.c.b16 %v797, %v795
  %v1366 = vpack.c.b16 %v800, %v798
  %v1367 = vpack.c.b16 %v801, %v799
  %v1368 = vpack.c.b16 %v804, %v802
  %v1369 = vpack.c.b16 %v805, %v803
  %v1370 = vpack.c.b16 %v808, %v806
  %v1371 = vpack.c.b16 %v809, %v807
  %v1372 = vpack.c.b16 %v812, %v810
  %v1373 = vpack.c.b16 %v813, %v811
  %v1374 = vpack.c.b16 %v816, %v814
  %v1375 = vpack.c.b16 %v817, %v815
  %v1376 = vpack.c.b16 %v820, %v818
  %v1377 = vpack.c.b16 %v821, %v819
  %v1378 = vpack.c.b16 %v824, %v822
  %v1379 = vpack.c.b16 %v825, %v823
  %v1380 = vpack.c.b16 %v828, %v826
  %v1381 = vpack.c.b16 %v829, %v827
  %v1382 = vpack.c.b16 %v832, %v830
  %v1383 = vpack.c.b16 %v833, %v831
  %v1384 = vpack.c.b16 %v836, %v834
  %v1385 = vpack.c.b16 %v837, %v835
  %v1386 = vpack.c.b16 %v840, %v838
  %v1387 = vpack.c.b16 %v841, %v839
  %v1388 = vpack.c.b16 %v844, %v842
  %v1389 = vpack.c.b16 %v845, %v843
  %v1390 = vpack.c.b16 %v848, %v846
  %v1391 = vpack.c.b16 %v849, %v847
  %v1392 = vpack.c.b16 %v852, %v850
  %v1393 = vpack.c.b16 %v853, %v851
  %v1394 = vpack.c.b16 %v856, %v854
  %v1395 = vpack.c.b16 %v857, %v855
  %v1396 = vpack.c.b16 %v860, %v858
  %v1397 = vpack.c.b16 %v861, %v859
  %v1398 = vpack.c.b16 %v864, %v862
  %v1399 = vpack.c.b16 %v865, %v863
  %v1400 = vpack.c.b16 %v868, %v866
  %v1401 = vpack.c.b16 %v869, %v867
  %v1402 = vpack.c.b16 %v872, %v870
  %v1403 = vpack.c.b16 %v873, %v871
  %v1404 = vpack.c.b16 %v876, %v874
  %v1405 = vpack.c.b16 %v877, %v875
  %v1406 = vpack.c.b16 %v880, %v878
  %v1407 = vpack.c.b16 %v881, %v879
  %v1408 = vpack.c.b16 %v884, %v882
  %v1409 = vpack.c.b16 %v885, %v883
  %v1410 = vpack.c.b16 %v888, %v886
  %v1411 = vpack.c.b16 %v889, %v887
  %v1412 = vpack.c.b16 %v892, %v890
  %v1413 = vpack.c.b16 %v893, %v891
  %v1414 = vpack.c.b16 %v896, %v894
  %v1415 = vpack.c.b16 %v897, %v895
  %v1416 = vpack.c.b16 %v900, %v898
  %v1417 = vpack.c.b16 %v901, %v899
  %v1418 = vpack.c.b16 %v904, %v902
  %v1419 = vpack.c.b16 %v905, %v903
  %v1420 = vpack.c.b16 %v908, %v906
  %v1421 = vpack.c.b16 %v909, %v907
  %v1422 = vpack.c.b16 %v912, %v910
  %v1423 = vpack.c.b16 %v913, %v911
  %v1424 = vpack.c.b16 %v916, %v914
  %v1425 = vpack.c.b16 %v917, %v915
  %v1426 = vpack.c.b16 %v920, %v918
  %v1427 = vpack.c.b16 %v921, %v919
  %v1428 = vpack.c.b16 %v924, %v922
  %v1429 = vpack.c.b16 %v925, %v923
  %v1430 = vpack.c.b16 %v928, %v926
  %v1431 = vpack.c.b16 %v929, %v927
  %v1432 = vpack.c.b16 %v932, %v930
  %v1433 = vpack.c.b16 %v933, %v931
  %v1434 = vpack.c.b16 %v936, %v934
  %v1435 = vpack.c.b16 %v937, %v935
  %v1436 = vpack.c.b16 %v940, %v938
  %v1437 = vpack.c.b16 %v941, %v939
  %v1438 = vpack.c.b16 %v944, %v942
  %v1439 = vpack.c.b16 %v945, %v943
  %v1440 = vpack.c.b16 %v948, %v946
  %v1441 = vpack.c.b16 %v949, %v947
  %v1442 = vpack.c.b16 %v952, %v950
  %v1443 = vpack.c.b16 %v953, %v951
  %v1444 = vpack.c.b16 %v956, %v954
  %v1445 = vpack.c.b16 %v957, %v955
  %v1446 = vpack.c.b16 %v960, %v958
  %v1447 = vpack.c.b16 %v961, %v959
  %v1448 = vpack.c.b16 %v964, %v962
  %v1449 = vpack.c.b16 %v965, %v963
  %v1450 = vpack.c.b16 %v968, %v966
  %v1451 = vpack.c.b16 %v969, %v967
  %v1452 = vpack.c.b16 %v972, %v970
  %v1453 = vpack.c.b16 %v973, %v971
  %v1454 = vpack.c.b16 %v976, %v974
  %v1455 = vpack.c.b16 %v977, %v975
  %v1456 = vpack.c.b16 %v980, %v978
  %v1457 = vpack.c.b16 %v981, %v979
  %v1458 = vpack.c.b16 %v984, %v982
  %v1459 = vpack.c.b16 %v985, %v983
  %v1460 = vpack.c.b16 %v988, %v986
  %v1461 = vpack.c.b16 %v989, %v987
  %v1462 = vpack.c.b16 %v992, %v990
  %v1463 = vpack.c.b16 %v993, %v991
  %v1464 = vpack.c.b16 %v996, %v994
  %v1465 = vpack.c.b16 %v997, %v995
  %v1466 = vpack.c.b16 %v1000, %v998
  %v1467 = vpack.c.b16 %v1001, %v999
  %v1468 = vpack.c.b16 %v1004, %v1002
  %v1469 = vpack.c.b16 %v1005, %v1003
  %v1470 = vpack.c.b16 %v1008, %v1006
  %v1471 = vpack.c.b16 %v1009, %v1007
  %v1472 = vpack.c.b16 %v1012, %v1010
  %v1473 = vpack.c.b16 %v1013, %v1011
  %v1474 = vpack.c.b16 %v1016, %v1014
  %v1475 = vpack.c.b16 %v1017, %v1015
  %v1476 = vpack.c.b16 %v1020, %v1018
  %v1477 = vpack.c.b16 %v1021, %v1019
  %v1478 = vpack.c.b16 %v1024, %v1022
  %v1479 = vpack.c.b16 %v1025, %v1023
  %v1480 = vpack.c.b16 %v1028, %v1026
  %v1481 = vpack.c.b16 %v1029, %v1027
  %v1482 = vpack.c.b16 %v1032, %v1030
  %v1483 = vpack.c.b16 %v1033, %v1031
  %v1484 = vpack.c.b16 %v1036, %v1034
  %v1485 = vpack.c.b16 %v1037, %v1035
  %v1486 = vpack.c.b16 %v1040, %v1038
  %v1487 = vpack.c.b16 %v1041, %v1039
  %v1488 = vpack.c.b16 %v1044, %v1042
  %v1489 = vpack.c.b16 %v1045, %v1043
  %v1490 = vpack.c.b16 %v1048, %v1046
  %v1491 = vpack.c.b16 %v1049, %v1047
  %v1492 = vpack.c.b16 %v1052, %v1050
  %v1493 = vpack.c.b16 %v1053, %v1051
  %v1494 = vpack.c.b16 %v1056, %v1054
  %v1495 = vpack.c.b16 %v1057, %v1055
  %v1496 = vpack.c.b16 %v1060, %v1058
  %v1497 = vpack.c.b16 %v1061, %v1059
  %v1498 = vpack.c.b16 %v1064, %v1062
  %v1499 = vpack.c.b16 %v1065, %v1063
  %v1500 = vpack.c.b16 %v1068, %v1066
  %v1501 = vpack.c.b16 %v1069, %v1067
  %v1502 = vpack.c.b16 %v1072, %v1070
  %v1503 = vpack.c.b16 %v1073, %v1071
  %v1504 = vpack.c.b16 %v1076, %v1074
  %v1505 = vpack.c.b16 %v1077, %v1075
  %v1506 = vpack.c.b16 %v1080, %v1078
  %v1507 = vpack.c.b16 %v1081, %v1079
  %v1508 = vpack.c.b16 %v1084, %v1082
  %v1509 = vpack.c.b16 %v1085, %v1083
  %v1510 = vpack.c.b16 %v1088, %v1086
  %v1511 = vpack.c.b16 %v1089, %v1087
  %v1512 = vpack.c.b16 %v1092, %v1090
  %v1513 = vpack.c.b16 %v1093, %v1091
  %v1514 = vpack.c.b16 %v1096, %v1094
  %v1515 = vpack.c.b16 %v1097, %v1095
  %v1516 = vpack.c.b16 %v1100, %v1098
  %v1517 = vpack.c.b16 %v1101, %v1099
  %v1518 = vpack.c.b16 %v1104, %v1102
  %v1519 = vpack.c.b16 %v1105, %v1103
  %v1520 = vpack.c.b16 %v1108, %v1106
  %v1521 = vpack.c.b16 %v1109, %v1107
  %v1522 = vpack.c.b16 %v1112, %v1110
  %v1523 = vpack.c.b16 %v1113, %v1111
  %v1524 = vpack.c.b16 %v1116, %v1114
  %v1525 = vpack.c.b16 %v1117, %v1115
  %v1526 = vpack.c.b16 %v1120, %v1118
  %v1527 = vpack.c.b16 %v1121, %v1119
  %v1528 = vpack.c.b16 %v1124, %v1122
  %v1529 = vpack.c.b16 %v1125, %v1123
  %v1530 = vpack.c.b16 %v1128, %v1126
  %v1531 = vpack.c.b16 %v1129, %v1127
  %v1532 = vpack.c.b16 %v1132, %v1130
  %v1533 = vpack.c.b16 %v1133, %v1131
  %v1534 = vpack.c.b16 %v1136, %v1134
  %v1535 = vpack.c.b16 %v1137, %v1135
  %v1536 = vpack.c.b16 %v1140, %v1138
  %v1537 = vpack.c.b16 %v1141, %v1139
  %v1538 = vpack.c.b16 %v1144, %v1142
  %v1539 = vpack.c.b16 %v1145, %v1143
  %v1540 = vpack.c.b16 %v1148, %v1146
  %v1541 = vpack.c.b16 %v1149, %v1147
  %v1542 = vpack.c.b16 %v1152, %v1150
  %v1543 = vpack.c.b16 %v1153, %v1151
  %v1544 = vpack.c.b16 %v1156, %v1154
  %v1545 = vpack.c.b16 %v1157, %v1155
  %v1546 = vpack.c.b16 %v1160, %v1158
  %v1547 = vpack.c.b16 %v1161, %v1159
  %v1548 = vpack.c.b16 %v1164, %v1162
  %v1549 = vpack.c.b16 %v1165, %v1163
  %v1550 = vpack.c.b16 %v1168, %v1166
  %v1551 = vpack.c.b16 %v1169, %v1167
  %v1552 = vpack.c.b16 %v1172, %v1170
  %v1553 = vpack.c.b16 %v1173, %v1171
  %v1554 = vpack.c.b16 %v1176, %v1174
  %v1555 = vpack.c.b16 %v1177, %v1175
  %v1556 = vpack.c.b16 %v1180, %v1178
  %v1557 = vpack.c.b16 %v1181, %v1179
  %v1558 = vpack.c.b16 %v1184, %v1182
  %v1559 = vpack.c.b16 %v1185, %v1183
  %v1560 = vpack.c.b16 %v1188, %v1186
  %v1561 = vpack.c.b16 %v1189, %v1187
  %v1562 = vpack.c.b16 %v1192, %v1190
  %v1563 = vpack.c.b16 %v1193, %v1191
  %v1564 = vpack.c.b16 %v1196, %v1194
  %v1565 = vpack.c.b16 %v1197, %v1195
  %v1566 = vpack.c.b16 %v1200, %v1198
  %v1567 = vpack.c.b16 %v1201, %v1199
  %v1568 = vpack.c.b16 %v1204, %v1202
  %v1569 = vpack.c.b16 %v1205, %v1203
  %v1570 = vpack.c.b16 %v1208, %v1206
  %v1571 = vpack.c.b16 %v1209, %v1207
  %v1572 = vpack.c.b16 %v1212, %v1210
  %v1573 = vpack.c.b16 %v1213, %v1211
  %v1574 = vpack.c.b16 %v1216, %v1214
  %v1575 = vpack.c.b16 %v1217, %v1215
  %v1576 = vpack.c.b16 %v1220, %v1218
  %v1577 = vpack.c.b16 %v1221, %v1219
  %v1578 = vpack.c.b16 %v1224, %v1222
  %v1579 = vpack.c.b16 %v1225, %v1223
  %v1580 = vpack.c.b16 %v1228, %v1226
  %v1581 = vpack.c.b16 %v1229, %v1227
  %v1582 = vpack.c.b16 %v1232, %v1230
  %v1583 = vpack.c.b16 %v1233, %v1231
  %v1584 = vpack.c.b16 %v1236, %v1234
  %v1585 = vpack.c.b16 %v1237, %v1235
  %v1586 = vpack.c.b16 %v1240, %v1238
  %v1587 = vpack.c.b16 %v1241, %v1239
  %v1588 = vpack.c.b16 %v1244, %v1242
  %v1589 = vpack.c.b16 %v1245, %v1243
  %v1590 = vpack.c.b16 %v1248, %v1246
  %v1591 = vpack.c.b16 %v1249, %v1247
  %v1592 = vpack.c.b16 %v1252, %v1250
  %v1593 = vpack.c.b16 %v1253, %v1251
  %v1594 = vpack.c.b16 %v1256, %v1254
  %v1595 = vpack.c.b16 %v1257, %v1255
  %v1596 = vpack.c.b16 %v1260, %v1258
  %v1597 = vpack.c.b16 %v1261, %v1259
  %v1598 = vpack.c.b16 %v1264, %v1262
  %v1599 = vpack.c.b16 %v1265, %v1263
  %v1600 = vpack.c.b16 %v1268, %v1266
  %v1601 = vpack.c.b16 %v1269, %v1267
  %v1602 = vpack.c.b16 %v1272, %v1270
  %v1603 = vpack.c.b16 %v1273, %v1271
  %v1604 = vpack.c.b16 %v1276, %v1274
  %v1605 = vpack.c.b16 %v1277, %v1275
  %v1606 = vpack.c.b16 %v1280, %v1278
  %v1607 = vpack.c.b16 %v1281, %v1279
  %v1608 = vpack.c.b16 %v1284, %v1282
  %v1609 = vpack.c.b16 %v1285, %v1283
  %v1610 = vpack.c.b16 %v1288, %v1286
  %v1611 = vpack.c.b16 %v1289, %v1287
  %v1612 = vpack.c.b16 %v1292, %v1290
  %v1613 = vpack.c.b16 %v1293, %v1291
  %v1614 = vpack.c.b16 %v1296, %v1294
  %v1615 = vpack.c.b16 %v1297, %v1295
  %v1616 = vpack.c.b16 %v1300, %v1298
  %v1617 = vpack.c.b16 %v1301, %v1299
  %v1618 = vpack.c.b16 %v1304, %v1302
  %v1619 = vpack.c.b16 %v1305, %v1303
  %v1620 = vpack.c.b16 %v1308, %v1306
  %v1621 = vpack.c.b16 %v1309, %v1307
  %v1622 = vpack.c.b16 %v1312, %v1310
  %v1623 = vpack.c.b16 %v1313, %v1311
  %v1624 = vpack.c.b16 %v1316, %v1314
  %v1625 = vpack.c.b16 %v1317, %v1315
  %v1626 = vpack.c.b16 %v1320, %v1318
  %v1627 = vpack.c.b16 %v1321, %v1319
  %v1628 = vpack.c.b16 %v1324, %v1322
  %v1629 = vpack.c.b16 %v1325, %v1323
  %v1630 = vpack.c.b16 %v1328, %v1326
  %v1631 = vpack.c.b16 %v1329, %v1327
  %v1632 = vpack.c.b16 %v1332, %v1330
  %v1633 = vpack.c.b16 %v1333, %v1331
  %v1634 = vpack.c.b16 %v1336, %v1334
  %v1635 = vpack.c.b16 %v1337, %v1335
  %v1636 = vpack.c.b16 %v1340, %v1338
  %v1637 = vpack.c.b16 %v1341, %v1339
  %v1638 = vpack.c.b16 %v1344, %v1342
  %v1639 = vpack.c.b16 %v1345, %v1343
  %v1640 = vpack.c.b16 %v1348, %v1346
  %v1641 = vpack.c.b16 %v1349, %v1347
  %v1642 = vpack.c.b16 %v1352, %v1350
  %v1643 = vpack.c.b16 %v1353, %v1351
  %v1644 = vpack.c.b16 %v1356, %v1354
  %v1645 = vpack.c.b16 %v1357, %v1355
  %1934 = vmatprep.subr.bf16.mxu0 %v1359
  %1935 = vmatpush1.bf16.msra.mxu0 %v1358
  %1936 = vmatprep.subr.bf16.mxu0 %v1361
  %1937 = vmatpush1.bf16.msra.mxu0 %v1360
  %1938 = vmatprep.subr.bf16.mxu0 %v1363
  %1939 = vmatpush1.bf16.msra.mxu0 %v1362
  %1940 = vmatprep.subr.bf16.mxu0 %v1365
  %1941 = vmatpush1.bf16.msra.mxu0 %v1364
  %1942 = vmatprep.subr.bf16.mxu0 %v1367
  %1943 = vmatpush1.bf16.msra.mxu0 %v1366
  %1944 = vmatprep.subr.bf16.mxu0 %v1369
  %1945 = vmatpush1.bf16.msra.mxu0 %v1368
  %1946 = vmatprep.subr.bf16.mxu0 %v1371
  %1947 = vmatpush1.bf16.msra.mxu0 %v1370
  %1948 = vmatprep.subr.bf16.mxu0 %v1373
  %1949 = vmatpush1.bf16.msra.mxu0 %v1372
  %1950 = vmatprep.subr.bf16.mxu0 %v1375
  %1951 = vmatpush1.bf16.msra.mxu0 %v1374
  %1952 = vmatprep.subr.bf16.mxu0 %v1377
  %1953 = vmatpush1.bf16.msra.mxu0 %v1376
  %1954 = vmatprep.subr.bf16.mxu0 %v1379
  %1955 = vmatpush1.bf16.msra.mxu0 %v1378
  %1956 = vmatprep.subr.bf16.mxu0 %v1381
  %1957 = vmatpush1.bf16.msra.mxu0 %v1380
  %1958 = vmatprep.subr.bf16.mxu0 %v1383
  %1959 = vmatpush1.bf16.msra.mxu0 %v1382
  %1960 = vmatprep.subr.bf16.mxu0 %v1385
  %1961 = vmatpush1.bf16.msra.mxu0 %v1384
  %1962 = vmatprep.subr.bf16.mxu0 %v1387
  %1963 = vmatpush1.bf16.msra.mxu0 %v1386
  %1964 = vmatprep.subr.bf16.mxu0 %v1389
  %1965 = vmatpush1.bf16.msra.mxu0 %v1388
  %1966 = vmatprep.mubr.bf16.mxu0 %v423
  %1967 = vmatmul.mubr.bf16.gmra.mrb[0].mxu0 %v422
  %v1968 = vpop.f32.mrb[0].mxu0
  %v1969 = vadd.f32 %v334, %v1968
  %v1970 = vpop.f32.mrb[0].mxu0
  %v1971 = vadd.f32 %v338, %v1970
  %v1972 = vpop.f32.mrb[0].mxu0
  %v1973 = vadd.f32 %v334, %v1972
  %v1974 = vpop.f32.mrb[0].mxu0
  %v1975 = vadd.f32 %v338, %v1974
  %1976 = vmatprep.mubr.bf16.mxu0 %v441
  %1977 = vmatmul.mubr.bf16.gmra.mrb[0].mxu0 %v440
  %v1978 = vpop.f32.mrb[0].mxu0
  %v1979 = vadd.f32 %v334, %v1978
  %v1980 = vpop.f32.mrb[0].mxu0
  %v1981 = vadd.f32 %v338, %v1980
  %v1982 = vpop.f32.mrb[0].mxu0
  %v1983 = vpop.f32.mrb[0].mxu0
  %1984 = vdwg.mxu0
  %1985 = vmatprep.subr.bf16.mxu0 %v1391
  %1986 = vmatpush1.bf16.msra.mxu0 %v1390
  %1987 = vmatprep.subr.bf16.mxu0 %v1393
  %1988 = vmatpush1.bf16.msra.mxu0 %v1392
  %1989 = vmatprep.subr.bf16.mxu0 %v1395
  %1990 = vmatpush1.bf16.msra.mxu0 %v1394
  %1991 = vmatprep.subr.bf16.mxu0 %v1397
  %1992 = vmatpush1.bf16.msra.mxu0 %v1396
  %1993 = vmatprep.subr.bf16.mxu0 %v1399
  %1994 = vmatpush1.bf16.msra.mxu0 %v1398
  %1995 = vmatprep.subr.bf16.mxu0 %v1401
  %1996 = vmatpush1.bf16.msra.mxu0 %v1400
  %1997 = vmatprep.subr.bf16.mxu0 %v1403
  %1998 = vmatpush1.bf16.msra.mxu0 %v1402
  %1999 = vmatprep.subr.bf16.mxu0 %v1405
  %2000 = vmatpush1.bf16.msra.mxu0 %v1404
  %2001 = vmatprep.subr.bf16.mxu0 %v1407
  %2002 = vmatpush1.bf16.msra.mxu0 %v1406
  %2003 = vmatprep.subr.bf16.mxu0 %v1409
  %2004 = vmatpush1.bf16.msra.mxu0 %v1408
  %2005 = vmatprep.subr.bf16.mxu0 %v1411
  %2006 = vmatpush1.bf16.msra.mxu0 %v1410
  %2007 = vmatprep.subr.bf16.mxu0 %v1413
  %2008 = vmatpush1.bf16.msra.mxu0 %v1412
  %2009 = vmatprep.subr.bf16.mxu0 %v1415
  %2010 = vmatpush1.bf16.msra.mxu0 %v1414
  %2011 = vmatprep.subr.bf16.mxu0 %v1417
  %2012 = vmatpush1.bf16.msra.mxu0 %v1416
  %2013 = vmatprep.subr.bf16.mxu0 %v1419
  %2014 = vmatpush1.bf16.msra.mxu0 %v1418
  %2015 = vmatprep.subr.bf16.mxu0 %v1421
  %2016 = vmatpush1.bf16.msra.mxu0 %v1420
  %2017 = vmatprep.mubr.bf16.mxu0 %v425
  %2018 = vmatmul.mubr.bf16.gmra.mrb[0].mxu0 %v424
  %v2019 = vpop.f32.mrb[0].mxu0
  %v2020 = vadd.f32 %v1969, %v2019
  %v2021 = vpop.f32.mrb[0].mxu0
  %v2022 = vadd.f32 %v1971, %v2021
  %v2023 = vpop.f32.mrb[0].mxu0
  %v2024 = vadd.f32 %v1973, %v2023
  %v2025 = vpop.f32.mrb[0].mxu0
  %v2026 = vadd.f32 %v1975, %v2025
  %2027 = vmatprep.mubr.bf16.mxu0 %v443
  %2028 = vmatmul.mubr.bf16.gmra.mrb[0].mxu0 %v442
  %v2029 = vpop.f32.mrb[0].mxu0
  %v2030 = vadd.f32 %v1979, %v2029
  %v2031 = vpop.f32.mrb[0].mxu0
  %v2032 = vadd.f32 %v1981, %v2031
  %v2033 = vpop.f32.mrb[0].mxu0
  %v2034 = vpop.f32.mrb[0].mxu0
  %2035 = vdwg.mxu0
  %2036 = vmatprep.subr.bf16.mxu0 %v1423
  %2037 = vmatpush1.bf16.msra.mxu0 %v1422
  %2038 = vmatprep.subr.bf16.mxu0 %v1425
  %2039 = vmatpush1.bf16.msra.mxu0 %v1424
  %2040 = vmatprep.subr.bf16.mxu0 %v1427
  %2041 = vmatpush1.bf16.msra.mxu0 %v1426
  %2042 = vmatprep.subr.bf16.mxu0 %v1429
  %2043 = vmatpush1.bf16.msra.mxu0 %v1428
  %2044 = vmatprep.subr.bf16.mxu0 %v1431
  %2045 = vmatpush1.bf16.msra.mxu0 %v1430
  %2046 = vmatprep.subr.bf16.mxu0 %v1433
  %2047 = vmatpush1.bf16.msra.mxu0 %v1432
  %2048 = vmatprep.subr.bf16.mxu0 %v1435
  %2049 = vmatpush1.bf16.msra.mxu0 %v1434
  %2050 = vmatprep.subr.bf16.mxu0 %v1437
  %2051 = vmatpush1.bf16.msra.mxu0 %v1436
  %2052 = vmatprep.subr.bf16.mxu0 %v1439
  %2053 = vmatpush1.bf16.msra.mxu0 %v1438
  %2054 = vmatprep.subr.bf16.mxu0 %v1441
  %2055 = vmatpush1.bf16.msra.mxu0 %v1440
  %2056 = vmatprep.subr.bf16.mxu0 %v1443
  %2057 = vmatpush1.bf16.msra.mxu0 %v1442
  %2058 = vmatprep.subr.bf16.mxu0 %v1445
  %2059 = vmatpush1.bf16.msra.mxu0 %v1444
  %2060 = vmatprep.subr.bf16.mxu0 %v1447
  %2061 = vmatpush1.bf16.msra.mxu0 %v1446
  %2062 = vmatprep.subr.bf16.mxu0 %v1449
  %2063 = vmatpush1.bf16.msra.mxu0 %v1448
  %2064 = vmatprep.subr.bf16.mxu0 %v1451
  %2065 = vmatpush1.bf16.msra.mxu0 %v1450
  %2066 = vmatprep.subr.bf16.mxu0 %v1453
  %2067 = vmatpush1.bf16.msra.mxu0 %v1452
  %2068 = vmatprep.mubr.bf16.mxu0 %v427
  %2069 = vmatmul.mubr.bf16.gmra.mrb[0].mxu0 %v426
  %v2070 = vpop.f32.mrb[0].mxu0
  %v2071 = vadd.f32 %v2020, %v2070
  %v2072 = vpop.f32.mrb[0].mxu0
  %v2073 = vadd.f32 %v2022, %v2072
  %v2074 = vpop.f32.mrb[0].mxu0
  %v2075 = vadd.f32 %v2024, %v2074
  %v2076 = vpop.f32.mrb[0].mxu0
  %v2077 = vadd.f32 %v2026, %v2076
  %2078 = vmatprep.mubr.bf16.mxu0 %v445
  %2079 = vmatmul.mubr.bf16.gmra.mrb[0].mxu0 %v444
  %v2080 = vpop.f32.mrb[0].mxu0
  %v2081 = vadd.f32 %v2030, %v2080
  %v2082 = vpop.f32.mrb[0].mxu0
  %v2083 = vadd.f32 %v2032, %v2082
  %v2084 = vpop.f32.mrb[0].mxu0
  %v2085 = vpop.f32.mrb[0].mxu0
  %2086 = vdwg.mxu0
  %2087 = vmatprep.subr.bf16.mxu0 %v1455
  %2088 = vmatpush1.bf16.msra.mxu0 %v1454
  %2089 = vmatprep.subr.bf16.mxu0 %v1457
  %2090 = vmatpush1.bf16.msra.mxu0 %v1456
  %2091 = vmatprep.subr.bf16.mxu0 %v1459
  %2092 = vmatpush1.bf16.msra.mxu0 %v1458
  %2093 = vmatprep.subr.bf16.mxu0 %v1461
  %2094 = vmatpush1.bf16.msra.mxu0 %v1460
  %2095 = vmatprep.subr.bf16.mxu0 %v1463
  %2096 = vmatpush1.bf16.msra.mxu0 %v1462
  %2097 = vmatprep.subr.bf16.mxu0 %v1465
  %2098 = vmatpush1.bf16.msra.mxu0 %v1464
  %2099 = vmatprep.subr.bf16.mxu0 %v1467
  %2100 = vmatpush1.bf16.msra.mxu0 %v1466
  %2101 = vmatprep.subr.bf16.mxu0 %v1469
  %2102 = vmatpush1.bf16.msra.mxu0 %v1468
  %2103 = vmatprep.subr.bf16.mxu0 %v1471
  %2104 = vmatpush1.bf16.msra.mxu0 %v1470
  %2105 = vmatprep.subr.bf16.mxu0 %v1473
  %2106 = vmatpush1.bf16.msra.mxu0 %v1472
  %2107 = vmatprep.subr.bf16.mxu0 %v1475
  %2108 = vmatpush1.bf16.msra.mxu0 %v1474
  %2109 = vmatprep.subr.bf16.mxu0 %v1477
  %2110 = vmatpush1.bf16.msra.mxu0 %v1476
  %2111 = vmatprep.subr.bf16.mxu0 %v1479
  %2112 = vmatpush1.bf16.msra.mxu0 %v1478
  %2113 = vmatprep.subr.bf16.mxu0 %v1481
  %2114 = vmatpush1.bf16.msra.mxu0 %v1480
  %2115 = vmatprep.subr.bf16.mxu0 %v1483
  %2116 = vmatpush1.bf16.msra.mxu0 %v1482
  %2117 = vmatprep.subr.bf16.mxu0 %v1485
  %2118 = vmatpush1.bf16.msra.mxu0 %v1484
  %2119 = vmatprep.mubr.bf16.mxu0 %v429
  %2120 = vmatmul.mubr.bf16.gmra.mrb[0].mxu0 %v428
  %v2121 = vpop.f32.mrb[0].mxu0
  %v2122 = vadd.f32 %v2071, %v2121
  %v2123 = vpop.f32.mrb[0].mxu0
  %v2124 = vadd.f32 %v2073, %v2123
  %v2125 = vpop.f32.mrb[0].mxu0
  %v2126 = vadd.f32 %v2075, %v2125
  %v2127 = vpop.f32.mrb[0].mxu0
  %v2128 = vadd.f32 %v2077, %v2127
  %2129 = vmatprep.mubr.bf16.mxu0 %v447
  %2130 = vmatmul.mubr.bf16.gmra.mrb[0].mxu0 %v446
  %v2131 = vpop.f32.mrb[0].mxu0
  %v2132 = vadd.f32 %v2081, %v2131
  %v2133 = vpop.f32.mrb[0].mxu0
  %v2134 = vadd.f32 %v2083, %v2133
  %v2135 = vpop.f32.mrb[0].mxu0
  %v2136 = vpop.f32.mrb[0].mxu0
  %2137 = vdwg.mxu0
  %2138 = vmatprep.subr.bf16.mxu0 %v1487
  %2139 = vmatpush1.bf16.msra.mxu0 %v1486
  %2140 = vmatprep.subr.bf16.mxu0 %v1489
  %2141 = vmatpush1.bf16.msra.mxu0 %v1488
  %2142 = vmatprep.subr.bf16.mxu0 %v1491
  %2143 = vmatpush1.bf16.msra.mxu0 %v1490
  %2144 = vmatprep.subr.bf16.mxu0 %v1493
  %2145 = vmatpush1.bf16.msra.mxu0 %v1492
  %2146 = vmatprep.subr.bf16.mxu0 %v1495
  %2147 = vmatpush1.bf16.msra.mxu0 %v1494
  %2148 = vmatprep.subr.bf16.mxu0 %v1497
  %2149 = vmatpush1.bf16.msra.mxu0 %v1496
  %2150 = vmatprep.subr.bf16.mxu0 %v1499
  %2151 = vmatpush1.bf16.msra.mxu0 %v1498
  %2152 = vmatprep.subr.bf16.mxu0 %v1501
  %2153 = vmatpush1.bf16.msra.mxu0 %v1500
  %2154 = vmatprep.subr.bf16.mxu0 %v1503
  %2155 = vmatpush1.bf16.msra.mxu0 %v1502
  %2156 = vmatprep.subr.bf16.mxu0 %v1505
  %2157 = vmatpush1.bf16.msra.mxu0 %v1504
  %2158 = vmatprep.subr.bf16.mxu0 %v1507
  %2159 = vmatpush1.bf16.msra.mxu0 %v1506
  %2160 = vmatprep.subr.bf16.mxu0 %v1509
  %2161 = vmatpush1.bf16.msra.mxu0 %v1508
  %2162 = vmatprep.subr.bf16.mxu0 %v1511
  %2163 = vmatpush1.bf16.msra.mxu0 %v1510
  %2164 = vmatprep.subr.bf16.mxu0 %v1513
  %2165 = vmatpush1.bf16.msra.mxu0 %v1512
  %2166 = vmatprep.subr.bf16.mxu0 %v1515
  %2167 = vmatpush1.bf16.msra.mxu0 %v1514
  %2168 = vmatprep.subr.bf16.mxu0 %v1517
  %2169 = vmatpush1.bf16.msra.mxu0 %v1516
  %2170 = vmatprep.mubr.bf16.mxu0 %v431
  %2171 = vmatmul.mubr.bf16.gmra.mrb[0].mxu0 %v430
  %v2172 = vpop.f32.mrb[0].mxu0
  %v2173 = vadd.f32 %v2122, %v2172
  %v2174 = vpop.f32.mrb[0].mxu0
  %v2175 = vadd.f32 %v2124, %v2174
  %v2176 = vpop.f32.mrb[0].mxu0
  %v2177 = vadd.f32 %v2126, %v2176
  %v2178 = vpop.f32.mrb[0].mxu0
  %v2179 = vadd.f32 %v2128, %v2178
  %2180 = vmatprep.mubr.bf16.mxu0 %v449
  %2181 = vmatmul.mubr.bf16.gmra.mrb[0].mxu0 %v448
  %v2182 = vpop.f32.mrb[0].mxu0
  %v2183 = vadd.f32 %v2132, %v2182
  %v2184 = vpop.f32.mrb[0].mxu0
  %v2185 = vadd.f32 %v2134, %v2184
  %v2186 = vpop.f32.mrb[0].mxu0
  %v2187 = vpop.f32.mrb[0].mxu0
  %2188 = vdwg.mxu0
  %2189 = vmatprep.subr.bf16.mxu0 %v1519
  %2190 = vmatpush1.bf16.msra.mxu0 %v1518
  %2191 = vmatprep.subr.bf16.mxu0 %v1521
  %2192 = vmatpush1.bf16.msra.mxu0 %v1520
  %2193 = vmatprep.subr.bf16.mxu0 %v1523
  %2194 = vmatpush1.bf16.msra.mxu0 %v1522
  %2195 = vmatprep.subr.bf16.mxu0 %v1525
  %2196 = vmatpush1.bf16.msra.mxu0 %v1524
  %2197 = vmatprep.subr.bf16.mxu0 %v1527
  %2198 = vmatpush1.bf16.msra.mxu0 %v1526
  %2199 = vmatprep.subr.bf16.mxu0 %v1529
  %2200 = vmatpush1.bf16.msra.mxu0 %v1528
  %2201 = vmatprep.subr.bf16.mxu0 %v1531
  %2202 = vmatpush1.bf16.msra.mxu0 %v1530
  %2203 = vmatprep.subr.bf16.mxu0 %v1533
  %2204 = vmatpush1.bf16.msra.mxu0 %v1532
  %2205 = vmatprep.subr.bf16.mxu0 %v1535
  %2206 = vmatpush1.bf16.msra.mxu0 %v1534
  %2207 = vmatprep.subr.bf16.mxu0 %v1537
  %2208 = vmatpush1.bf16.msra.mxu0 %v1536
  %2209 = vmatprep.subr.bf16.mxu0 %v1539
  %2210 = vmatpush1.bf16.msra.mxu0 %v1538
  %2211 = vmatprep.subr.bf16.mxu0 %v1541
  %2212 = vmatpush1.bf16.msra.mxu0 %v1540
  %2213 = vmatprep.subr.bf16.mxu0 %v1543
  %2214 = vmatpush1.bf16.msra.mxu0 %v1542
  %2215 = vmatprep.subr.bf16.mxu0 %v1545
  %2216 = vmatpush1.bf16.msra.mxu0 %v1544
  %2217 = vmatprep.subr.bf16.mxu0 %v1547
  %2218 = vmatpush1.bf16.msra.mxu0 %v1546
  %2219 = vmatprep.subr.bf16.mxu0 %v1549
  %2220 = vmatpush1.bf16.msra.mxu0 %v1548
  %2221 = vmatprep.mubr.bf16.mxu0 %v433
  %2222 = vmatmul.mubr.bf16.gmra.mrb[0].mxu0 %v432
  %v2223 = vpop.f32.mrb[0].mxu0
  %v2224 = vadd.f32 %v2173, %v2223
  %v2225 = vpop.f32.mrb[0].mxu0
  %v2226 = vadd.f32 %v2175, %v2225
  %v2227 = vpop.f32.mrb[0].mxu0
  %v2228 = vadd.f32 %v2177, %v2227
  %v2229 = vpop.f32.mrb[0].mxu0
  %v2230 = vadd.f32 %v2179, %v2229
  %2231 = vmatprep.mubr.bf16.mxu0 %v451
  %2232 = vmatmul.mubr.bf16.gmra.mrb[0].mxu0 %v450
  %v2233 = vpop.f32.mrb[0].mxu0
  %v2234 = vadd.f32 %v2183, %v2233
  %v2235 = vpop.f32.mrb[0].mxu0
  %v2236 = vadd.f32 %v2185, %v2235
  %v2237 = vpop.f32.mrb[0].mxu0
  %v2238 = vpop.f32.mrb[0].mxu0
  %2239 = vdwg.mxu0
  %2240 = vmatprep.subr.bf16.mxu0 %v1551
  %2241 = vmatpush1.bf16.msra.mxu0 %v1550
  %2242 = vmatprep.subr.bf16.mxu0 %v1553
  %2243 = vmatpush1.bf16.msra.mxu0 %v1552
  %2244 = vmatprep.subr.bf16.mxu0 %v1555
  %2245 = vmatpush1.bf16.msra.mxu0 %v1554
  %2246 = vmatprep.subr.bf16.mxu0 %v1557
  %2247 = vmatpush1.bf16.msra.mxu0 %v1556
  %2248 = vmatprep.subr.bf16.mxu0 %v1559
  %2249 = vmatpush1.bf16.msra.mxu0 %v1558
  %2250 = vmatprep.subr.bf16.mxu0 %v1561
  %2251 = vmatpush1.bf16.msra.mxu0 %v1560
  %2252 = vmatprep.subr.bf16.mxu0 %v1563
  %2253 = vmatpush1.bf16.msra.mxu0 %v1562
  %2254 = vmatprep.subr.bf16.mxu0 %v1565
  %2255 = vmatpush1.bf16.msra.mxu0 %v1564
  %2256 = vmatprep.subr.bf16.mxu0 %v1567
  %2257 = vmatpush1.bf16.msra.mxu0 %v1566
  %2258 = vmatprep.subr.bf16.mxu0 %v1569
  %2259 = vmatpush1.bf16.msra.mxu0 %v1568
  %2260 = vmatprep.subr.bf16.mxu0 %v1571
  %2261 = vmatpush1.bf16.msra.mxu0 %v1570
  %2262 = vmatprep.subr.bf16.mxu0 %v1573
  %2263 = vmatpush1.bf16.msra.mxu0 %v1572
  %2264 = vmatprep.subr.bf16.mxu0 %v1575
  %2265 = vmatpush1.bf16.msra.mxu0 %v1574
  %2266 = vmatprep.subr.bf16.mxu0 %v1577
  %2267 = vmatpush1.bf16.msra.mxu0 %v1576
  %2268 = vmatprep.subr.bf16.mxu0 %v1579
  %2269 = vmatpush1.bf16.msra.mxu0 %v1578
  %2270 = vmatprep.subr.bf16.mxu0 %v1581
  %2271 = vmatpush1.bf16.msra.mxu0 %v1580
  %2272 = vmatprep.mubr.bf16.mxu0 %v435
  %2273 = vmatmul.mubr.bf16.gmra.mrb[0].mxu0 %v434
  %v2274 = vpop.f32.mrb[0].mxu0
  %v2275 = vadd.f32 %v2224, %v2274
  %v2276 = vpop.f32.mrb[0].mxu0
  %v2277 = vadd.f32 %v2226, %v2276
  %v2278 = vpop.f32.mrb[0].mxu0
  %v2279 = vadd.f32 %v2228, %v2278
  %v2280 = vpop.f32.mrb[0].mxu0
  %v2281 = vadd.f32 %v2230, %v2280
  %2282 = vmatprep.mubr.bf16.mxu0 %v453
  %2283 = vmatmul.mubr.bf16.gmra.mrb[0].mxu0 %v452
  %v2284 = vpop.f32.mrb[0].mxu0
  %v2285 = vadd.f32 %v2234, %v2284
  %v2286 = vpop.f32.mrb[0].mxu0
  %v2287 = vadd.f32 %v2236, %v2286
  %v2288 = vpop.f32.mrb[0].mxu0
  %v2289 = vpop.f32.mrb[0].mxu0
  %2290 = vdwg.mxu0
  %2291 = vmatprep.subr.bf16.mxu0 %v1583
  %2292 = vmatpush1.bf16.msra.mxu0 %v1582
  %2293 = vmatprep.subr.bf16.mxu0 %v1585
  %2294 = vmatpush1.bf16.msra.mxu0 %v1584
  %2295 = vmatprep.subr.bf16.mxu0 %v1587
  %2296 = vmatpush1.bf16.msra.mxu0 %v1586
  %2297 = vmatprep.subr.bf16.mxu0 %v1589
  %2298 = vmatpush1.bf16.msra.mxu0 %v1588
  %2299 = vmatprep.subr.bf16.mxu0 %v1591
  %2300 = vmatpush1.bf16.msra.mxu0 %v1590
  %2301 = vmatprep.subr.bf16.mxu0 %v1593
  %2302 = vmatpush1.bf16.msra.mxu0 %v1592
  %2303 = vmatprep.subr.bf16.mxu0 %v1595
  %2304 = vmatpush1.bf16.msra.mxu0 %v1594
  %2305 = vmatprep.subr.bf16.mxu0 %v1597
  %2306 = vmatpush1.bf16.msra.mxu0 %v1596
  %2307 = vmatprep.subr.bf16.mxu0 %v1599
  %2308 = vmatpush1.bf16.msra.mxu0 %v1598
  %2309 = vmatprep.subr.bf16.mxu0 %v1601
  %2310 = vmatpush1.bf16.msra.mxu0 %v1600
  %2311 = vmatprep.subr.bf16.mxu0 %v1603
  %2312 = vmatpush1.bf16.msra.mxu0 %v1602
  %2313 = vmatprep.subr.bf16.mxu0 %v1605
  %2314 = vmatpush1.bf16.msra.mxu0 %v1604
  %2315 = vmatprep.subr.bf16.mxu0 %v1607
  %2316 = vmatpush1.bf16.msra.mxu0 %v1606
  %2317 = vmatprep.subr.bf16.mxu0 %v1609
  %2318 = vmatpush1.bf16.msra.mxu0 %v1608
  %2319 = vmatprep.subr.bf16.mxu0 %v1611
  %2320 = vmatpush1.bf16.msra.mxu0 %v1610
  %2321 = vmatprep.subr.bf16.mxu0 %v1613
  %2322 = vmatpush1.bf16.msra.mxu0 %v1612
  %2323 = vmatprep.mubr.bf16.mxu0 %v437
  %2324 = vmatmul.mubr.bf16.gmra.mrb[0].mxu0 %v436
  %v2325 = vpop.f32.mrb[0].mxu0
  %v2326 = vadd.f32 %v2275, %v2325
  %v2327 = vpop.f32.mrb[0].mxu0
  %v2328 = vadd.f32 %v2277, %v2327
  %v2329 = vpop.f32.mrb[0].mxu0
  %v2330 = vadd.f32 %v2279, %v2329
  %v2331 = vpop.f32.mrb[0].mxu0
  %v2332 = vadd.f32 %v2281, %v2331
  %2333 = vmatprep.mubr.bf16.mxu0 %v455
  %2334 = vmatmul.mubr.bf16.gmra.mrb[0].mxu0 %v454
  %v2335 = vpop.f32.mrb[0].mxu0
  %v2336 = vadd.f32 %v2285, %v2335
  %v2337 = vpop.f32.mrb[0].mxu0
  %v2338 = vadd.f32 %v2287, %v2337
  %v2339 = vpop.f32.mrb[0].mxu0
  %v2340 = vpop.f32.mrb[0].mxu0
  %2341 = vdwg.mxu0
  %2342 = vmatprep.subr.bf16.mxu0 %v1615
  %2343 = vmatpush1.bf16.msra.mxu0 %v1614
  %2344 = vmatprep.subr.bf16.mxu0 %v1617
  %2345 = vmatpush1.bf16.msra.mxu0 %v1616
  %2346 = vmatprep.subr.bf16.mxu0 %v1619
  %2347 = vmatpush1.bf16.msra.mxu0 %v1618
  %2348 = vmatprep.subr.bf16.mxu0 %v1621
  %2349 = vmatpush1.bf16.msra.mxu0 %v1620
  %2350 = vmatprep.subr.bf16.mxu0 %v1623
  %2351 = vmatpush1.bf16.msra.mxu0 %v1622
  %2352 = vmatprep.subr.bf16.mxu0 %v1625
  %2353 = vmatpush1.bf16.msra.mxu0 %v1624
  %2354 = vmatprep.subr.bf16.mxu0 %v1627
  %2355 = vmatpush1.bf16.msra.mxu0 %v1626
  %2356 = vmatprep.subr.bf16.mxu0 %v1629
  %2357 = vmatpush1.bf16.msra.mxu0 %v1628
  %2358 = vmatprep.subr.bf16.mxu0 %v1631
  %2359 = vmatpush1.bf16.msra.mxu0 %v1630
  %2360 = vmatprep.subr.bf16.mxu0 %v1633
  %2361 = vmatpush1.bf16.msra.mxu0 %v1632
  %2362 = vmatprep.subr.bf16.mxu0 %v1635
  %2363 = vmatpush1.bf16.msra.mxu0 %v1634
  %2364 = vmatprep.subr.bf16.mxu0 %v1637
  %2365 = vmatpush1.bf16.msra.mxu0 %v1636
  %2366 = vmatprep.subr.bf16.mxu0 %v1639
  %2367 = vmatpush1.bf16.msra.mxu0 %v1638
  %2368 = vmatprep.subr.bf16.mxu0 %v1641
  %2369 = vmatpush1.bf16.msra.mxu0 %v1640
  %2370 = vmatprep.subr.bf16.mxu0 %v1643
  %2371 = vmatpush1.bf16.msra.mxu0 %v1642
  %2372 = vmatprep.subr.bf16.mxu0 %v1645
  %2373 = vmatpush1.bf16.msra.mxu0 %v1644
  %2374 = vmatprep.mubr.bf16.mxu0 %v439
  %2375 = vmatmul.mubr.bf16.gmra.mrb[0].mxu0 %v438
  %v2376 = vpop.f32.mrb[0].mxu0
  %v2377 = vadd.f32 %v2326, %v2376
  %v2378 = vpop.f32.mrb[0].mxu0
  %v2379 = vadd.f32 %v2328, %v2378
  %v2380 = vpop.f32.mrb[0].mxu0
  %v2381 = vadd.f32 %v2330, %v2380
  %v2382 = vpop.f32.mrb[0].mxu0
  %v2383 = vadd.f32 %v2332, %v2382
  %2384 = vmatprep.mubr.bf16.mxu0 %v457
  %2385 = vmatmul.mubr.bf16.gmra.mrb[0].mxu0 %v456
  %v2386 = vpop.f32.mrb[0].mxu0
  %v2387 = vadd.f32 %v2336, %v2386
  %v2388 = vpop.f32.mrb[0].mxu0
  %v2389 = vadd.f32 %v2338, %v2388
  %v2390 = vpop.f32.mrb[0].mxu0
  %v2391 = vpop.f32.mrb[0].mxu0
  %2392 = vdwg.mxu0
  %vm2393 = vcmp.ge.f32.partialorder %v2377, 0.0
  %vm2394 = vcmp.ge.f32.partialorder %v2379, 0.0
  %vm2395 = vcmp.ge.f32.partialorder %v2381, 0.0
  %vm2396 = vcmp.ge.f32.partialorder %v2383, 0.0
  %vm2397 = vcmp.ge.f32.partialorder %v2387, 0.0
  %vm2398 = vcmp.ge.f32.partialorder %v2389, 0.0
  %v2399 = vmul.f32 %v2377, 0.01
  %v2400 = vmul.f32 %v2379, 0.01
  %v2401 = vmul.f32 %v2381, 0.01
  %v2402 = vmul.f32 %v2383, 0.01
  %v2403 = vmul.f32 %v2387, 0.01
  %v2404 = vmul.f32 %v2389, 0.01
  %v2405 = vsel %vm2393, %v2377, %v2399
  %v2406 = vsel %vm2394, %v2379, %v2400
  %v2407 = vsel %vm2395, %v2381, %v2401
  %v2408 = vsel %vm2396, %v2383, %v2402
  %v2409 = vsel %vm2397, %v2387, %v2403
  %v2410 = vsel %vm2398, %v2389, %v2404
  %v2411 = vpack.c.bf16 %v2407, %v2405
  %v2412 = vpack.c.bf16 %v2408, %v2406
  %v2413 = vpack.c.bf16 %v2409, %v2409
  %v2414 = vpack.c.bf16 %v2410, %v2410
  %v2419 = vunpack.c.l.b16 %v2411
  %v2420 = vunpack.c.l.b16 %v2412
  %v2421 = vunpack.c.h.b16 %v2411
  %v2422 = vunpack.c.h.b16 %v2412
  %v2423 = vunpack.c.l.b16 %v2413
  %v2424 = vunpack.c.l.b16 %v2414
  %v2425 = vpack.c.b16 %v2420, %v2419
  %v2426 = vpack.c.b16 %v2422, %v2421
  %v2427 = vpack.c.b16 %v2424, %v2423
  %2431 = vst [vmem:[%s3] sm:$0xff] %v2425
  %2432 = vst [vmem:[%s3 + $0x8] sm:$0xff] %v2426
  %2433 = vst [vmem:[%s3 + $0x10] sm:$0x11] %v2427
  // Predicated region
  $region14: #{discriminator_forward.10} parent=0 // pred_check
    _
  $region15: #{discriminator_forward.10} parent=0 // pred_check_branch
    %2435 = sbr.rel (0) target = $region17
  $region16: #{discriminator_forward.10} parent=0 // pred_region
    _
  $region17: #{discriminator_forward.10} parent=0 // pred_fallthru
    _
  // Predicated region
  $region18: #{discriminator_forward.10} parent=0 // pred_check
    _
  $region19: #{discriminator_forward.10} parent=0 // pred_check_branch
    %2437 = sbr.rel (0) target = $region21
  $region20: #{discriminator_forward.10} parent=0 // pred_region
    _
  $region21: #{discriminator_forward.10} parent=0 // pred_fallthru
    _

// kernel: discriminator_forward.11
$region0: #{discriminator_forward.11}
  #allocation0 [shape = 'u32[]', space=smem, size = 0x4, offset = 0x4, fixed_abs, tag = 'smem constant byte address 0x4 - core index']
  #allocation1 [shape = 'u32[144,128]{1,0:T(1,128)}', space=vmem, size = 0x12000, scoped, tag = 'internal scratch']
  #allocation2 [shape = 'f32[1,1]{1,0:T(1,128)S(1)}', space=vmem, size = 0x200, scoped, tag = 'scoped memory for discriminator_forward.11']
  %s0 = inlined_call_operand.vmem [shape: f32[2,256], index: 0, kind: input, shape index: {}]
  %s1 = inlined_call_operand.vmem [shape: f32[2,768], index: 1, kind: input, shape index: {}]
  %s2 = inlined_call_operand.vmem [shape: f32[768,256], index: 2, kind: input, shape index: {}]
  %s3 = inlined_call_operand.vmem [shape: f32[1,256], index: 3, kind: input, shape index: {}]
  %s4 = inlined_call_operand.vmem [shape: f32[1,256], index: 4, kind: input, shape index: {}]
  %s5 = inlined_call_operand.vmem [shape: f32[1,256], index: 5, kind: input, shape index: {}]
  %s6 = inlined_call_operand.<no memory space> [shape: f32[1,1], index: 6, kind: input, shape index: {}]
  %s7 = inlined_call_operand.vmem [shape: f32[2,1], index: 7, kind: output, shape index: {}]
  %s8 = sld [smem:[#allocation0]]
  $region38: #{discriminator_forward.11} parent=0
    _
  %s10 = ssub.s32 1, %s8
  %s11 = scalar_select 0, %s10, %s8
  %v12 = vstv %s6
  %13 = vst [vmem:[#allocation2] sm:$0x1] %v12
  // Predicated region
  $region2: #{discriminator_forward.11} parent=0 // pred_check
    _
  $region3: #{discriminator_forward.11} parent=0 // pred_check_branch
    %15 = sbr.rel (0) target = $region5
  $region4: #{discriminator_forward.11} parent=0 // pred_region
    _
  $region5: #{discriminator_forward.11} parent=0 // pred_fallthru
    _
  // Predicated region
  $region6: #{discriminator_forward.11} parent=0 // pred_check
    _
  $region7: #{discriminator_forward.11} parent=0 // pred_check_branch
    %17 = sbr.rel (0) target = $region9
  $region8: #{discriminator_forward.11} parent=0 // pred_region
    _
  $region9: #{discriminator_forward.11} parent=0 // pred_fallthru
    _
  // Predicated region
  $region10: #{discriminator_forward.11} parent=0 // pred_check
    _
  $region11: #{discriminator_forward.11} parent=0 // pred_check_branch
    %19 = sbr.rel (0) target = $region13
  $region12: #{discriminator_forward.11} parent=0 // pred_region
    _
  $region13: #{discriminator_forward.11} parent=0 // pred_fallthru
    _
  // Predicated region
  $region14: #{discriminator_forward.11} parent=0 // pred_check
    _
  $region15: #{discriminator_forward.11} parent=0 // pred_check_branch
    %21 = sbr.rel (0) target = $region17
  $region16: #{discriminator_forward.11} parent=0 // pred_region
    _
  $region17: #{discriminator_forward.11} parent=0 // pred_fallthru
    _
  // Predicated region
  $region18: #{discriminator_forward.11} parent=0 // pred_check
    _
  $region19: #{discriminator_forward.11} parent=0 // pred_check_branch
    %23 = sbr.rel (0) target = $region21
  $region20: #{discriminator_forward.11} parent=0 // pred_region
    _
  $region21: #{discriminator_forward.11} parent=0 // pred_fallthru
    _
  // Predicated region
  $region22: #{discriminator_forward.11} parent=0 // pred_check
    _
  $region23: #{discriminator_forward.11} parent=0 // pred_check_branch
    %25 = sbr.rel (0) target = $region25
  $region24: #{discriminator_forward.11} parent=0 // pred_region
    _
  $region25: #{discriminator_forward.11} parent=0 // pred_fallthru
    _
  // Predicated region
  $region26: #{discriminator_forward.11} parent=0 // pred_check
    _
  $region27: #{discriminator_forward.11} parent=0 // pred_check_branch
    %27 = sbr.rel (0) target = $region29
  $region28: #{discriminator_forward.11} parent=0 // pred_region
    _
  $region29: #{discriminator_forward.11} parent=0 // pred_fallthru
    _
  %v28 = vld [vmem:[%s1] sm:$0xff]
  %v29 = vld [vmem:[%s1 + $0x8] sm:$0xf]
  %v30 = vld [vmem:[%s2] sm:$0xff]
  %v31 = vld [vmem:[%s2 + $0x8] sm:$0xff]
  %v32 = vld [vmem:[%s2 + $0x10] sm:$0xff]
  %v33 = vld [vmem:[%s2 + $0x18] sm:$0xff]
  %v34 = vld [vmem:[%s2 + $0x20] sm:$0xff]
  %v35 = vld [vmem:[%s2 + $0x28] sm:$0xff]
  %v36 = vld [vmem:[%s2 + $0x30] sm:$0xff]
  %v37 = vld [vmem:[%s2 + $0x38] sm:$0xff]
  %v38 = vld [vmem:[%s2 + $0x40] sm:$0xff]
  %v39 = vld [vmem:[%s2 + $0x48] sm:$0xff]
  %v40 = vld [vmem:[%s2 + $0x50] sm:$0xff]
  %v41 = vld [vmem:[%s2 + $0x58] sm:$0xff]
  %v42 = vld [vmem:[%s2 + $0x60] sm:$0xff]
  %v43 = vld [vmem:[%s2 + $0x68] sm:$0xff]
  %v44 = vld [vmem:[%s2 + $0x70] sm:$0xff]
  %v45 = vld [vmem:[%s2 + $0x78] sm:$0xff]
  %v46 = vld [vmem:[%s2 + $0x80] sm:$0xff]
  %v47 = vld [vmem:[%s2 + $0x88] sm:$0xff]
  %v48 = vld [vmem:[%s2 + $0x90] sm:$0xff]
  %v49 = vld [vmem:[%s2 + $0x98] sm:$0xff]
  %v50 = vld [vmem:[%s2 + $0xa0] sm:$0xff]
  %v51 = vld [vmem:[%s2 + $0xa8] sm:$0xff]
  %v52 = vld [vmem:[%s2 + $0xb0] sm:$0xff]
  %v53 = vld [vmem:[%s2 + $0xb8] sm:$0xff]
  %v54 = vld [vmem:[%s2 + $0xc0] sm:$0xff]
  %v55 = vld [vmem:[%s2 + $0xc8] sm:$0xff]
  %v56 = vld [vmem:[%s2 + $0xd0] sm:$0xff]
  %v57 = vld [vmem:[%s2 + $0xd8] sm:$0xff]
  %v58 = vld [vmem:[%s2 + $0xe0] sm:$0xff]
  %v59 = vld [vmem:[%s2 + $0xe8] sm:$0xff]
  %v60 = vld [vmem:[%s2 + $0xf0] sm:$0xff]
  %v61 = vld [vmem:[%s2 + $0xf8] sm:$0xff]
  %v62 = vld [vmem:[%s2 + $0x100] sm:$0xff]
  %v63 = vld [vmem:[%s2 + $0x108] sm:$0xff]
  %v64 = vld [vmem:[%s2 + $0x110] sm:$0xff]
  %v65 = vld [vmem:[%s2 + $0x118] sm:$0xff]
  %v66 = vld [vmem:[%s2 + $0x120] sm:$0xff]
  %v67 = vld [vmem:[%s2 + $0x128] sm:$0xff]
  %v68 = vld [vmem:[%s2 + $0x130] sm:$0xff]
  %v69 = vld [vmem:[%s2 + $0x138] sm:$0xff]
  %v70 = vld [vmem:[%s2 + $0x140] sm:$0xff]
  %v71 = vld [vmem:[%s2 + $0x148] sm:$0xff]
  %v72 = vld [vmem:[%s2 + $0x150] sm:$0xff]
  %v73 = vld [vmem:[%s2 + $0x158] sm:$0xff]
  %v74 = vld [vmem:[%s2 + $0x160] sm:$0xff]
  %v75 = vld [vmem:[%s2 + $0x168] sm:$0xff]
  %v76 = vld [vmem:[%s2 + $0x170] sm:$0xff]
  %v77 = vld [vmem:[%s2 + $0x178] sm:$0xff]
  %v78 = vld [vmem:[%s2 + $0x180] sm:$0xff]
  %v79 = vld [vmem:[%s2 + $0x188] sm:$0xff]
  %v80 = vld [vmem:[%s2 + $0x190] sm:$0xff]
  %v81 = vld [vmem:[%s2 + $0x198] sm:$0xff]
  %v82 = vld [vmem:[%s2 + $0x1a0] sm:$0xff]
  %v83 = vld [vmem:[%s2 + $0x1a8] sm:$0xff]
  %v84 = vld [vmem:[%s2 + $0x1b0] sm:$0xff]
  %v85 = vld [vmem:[%s2 + $0x1b8] sm:$0xff]
  %v86 = vld [vmem:[%s2 + $0x1c0] sm:$0xff]
  %v87 = vld [vmem:[%s2 + $0x1c8] sm:$0xff]
  %v88 = vld [vmem:[%s2 + $0x1d0] sm:$0xff]
  %v89 = vld [vmem:[%s2 + $0x1d8] sm:$0xff]
  %v90 = vld [vmem:[%s2 + $0x1e0] sm:$0xff]
  %v91 = vld [vmem:[%s2 + $0x1e8] sm:$0xff]
  %v92 = vld [vmem:[%s2 + $0x1f0] sm:$0xff]
  %v93 = vld [vmem:[%s2 + $0x1f8] sm:$0xff]
  %v94 = vld [vmem:[%s2 + $0x200] sm:$0xff]
  %v95 = vld [vmem:[%s2 + $0x208] sm:$0xff]
  %v96 = vld [vmem:[%s2 + $0x210] sm:$0xff]
  %v97 = vld [vmem:[%s2 + $0x218] sm:$0xff]
  %v98 = vld [vmem:[%s2 + $0x220] sm:$0xff]
  %v99 = vld [vmem:[%s2 + $0x228] sm:$0xff]
  %v100 = vld [vmem:[%s2 + $0x230] sm:$0xff]
  %v101 = vld [vmem:[%s2 + $0x238] sm:$0xff]
  %v102 = vld [vmem:[%s2 + $0x240] sm:$0xff]
  %v103 = vld [vmem:[%s2 + $0x248] sm:$0xff]
  %v104 = vld [vmem:[%s2 + $0x250] sm:$0xff]
  %v105 = vld [vmem:[%s2 + $0x258] sm:$0xff]
  %v106 = vld [vmem:[%s2 + $0x260] sm:$0xff]
  %v107 = vld [vmem:[%s2 + $0x268] sm:$0xff]
  %v108 = vld [vmem:[%s2 + $0x270] sm:$0xff]
  %v109 = vld [vmem:[%s2 + $0x278] sm:$0xff]
  %v110 = vld [vmem:[%s2 + $0x280] sm:$0xff]
  %v111 = vld [vmem:[%s2 + $0x288] sm:$0xff]
  %v112 = vld [vmem:[%s2 + $0x290] sm:$0xff]
  %v113 = vld [vmem:[%s2 + $0x298] sm:$0xff]
  %v114 = vld [vmem:[%s2 + $0x2a0] sm:$0xff]
  %v115 = vld [vmem:[%s2 + $0x2a8] sm:$0xff]
  %v116 = vld [vmem:[%s2 + $0x2b0] sm:$0xff]
  %v117 = vld [vmem:[%s2 + $0x2b8] sm:$0xff]
  %v118 = vld [vmem:[%s2 + $0x2c0] sm:$0xff]
  %v119 = vld [vmem:[%s2 + $0x2c8] sm:$0xff]
  %v120 = vld [vmem:[%s2 + $0x2d0] sm:$0xff]
  %v121 = vld [vmem:[%s2 + $0x2d8] sm:$0xff]
  %v122 = vld [vmem:[%s2 + $0x2e0] sm:$0xff]
  %v123 = vld [vmem:[%s2 + $0x2e8] sm:$0xff]
  %v124 = vld [vmem:[%s2 + $0x2f0] sm:$0xff]
  %v125 = vld [vmem:[%s2 + $0x2f8] sm:$0xff]
  %v126 = vld [vmem:[%s2 + $0x300] sm:$0xff]
  %v127 = vld [vmem:[%s2 + $0x308] sm:$0xff]
  %v128 = vld [vmem:[%s2 + $0x310] sm:$0xff]
  %v129 = vld [vmem:[%s2 + $0x318] sm:$0xff]
  %v130 = vld [vmem:[%s2 + $0x320] sm:$0xff]
  %v131 = vld [vmem:[%s2 + $0x328] sm:$0xff]
  %v132 = vld [vmem:[%s2 + $0x330] sm:$0xff]
  %v133 = vld [vmem:[%s2 + $0x338] sm:$0xff]
  %v134 = vld [vmem:[%s2 + $0x340] sm:$0xff]
  %v135 = vld [vmem:[%s2 + $0x348] sm:$0xff]
  %v136 = vld [vmem:[%s2 + $0x350] sm:$0xff]
  %v137 = vld [vmem:[%s2 + $0x358] sm:$0xff]
  %v138 = vld [vmem:[%s2 + $0x360] sm:$0xff]
  %v139 = vld [vmem:[%s2 + $0x368] sm:$0xff]
  %v140 = vld [vmem:[%s2 + $0x370] sm:$0xff]
  %v141 = vld [vmem:[%s2 + $0x378] sm:$0xff]
  %v142 = vld [vmem:[%s2 + $0x380] sm:$0xff]
  %v143 = vld [vmem:[%s2 + $0x388] sm:$0xff]
  %v144 = vld [vmem:[%s2 + $0x390] sm:$0xff]
  %v145 = vld [vmem:[%s2 + $0x398] sm:$0xff]
  %v146 = vld [vmem:[%s2 + $0x3a0] sm:$0xff]
  %v147 = vld [vmem:[%s2 + $0x3a8] sm:$0xff]
  %v148 = vld [vmem:[%s2 + $0x3b0] sm:$0xff]
  %v149 = vld [vmem:[%s2 + $0x3b8] sm:$0xff]
  %v150 = vld [vmem:[%s2 + $0x3c0] sm:$0xff]
  %v151 = vld [vmem:[%s2 + $0x3c8] sm:$0xff]
  %v152 = vld [vmem:[%s2 + $0x3d0] sm:$0xff]
  %v153 = vld [vmem:[%s2 + $0x3d8] sm:$0xff]
  %v154 = vld [vmem:[%s2 + $0x3e0] sm:$0xff]
  %v155 = vld [vmem:[%s2 + $0x3e8] sm:$0xff]
  %v156 = vld [vmem:[%s2 + $0x3f0] sm:$0xff]
  %v157 = vld [vmem:[%s2 + $0x3f8] sm:$0xff]
  %v158 = vld [vmem:[%s2 + $0x400] sm:$0xff]
  %v159 = vld [vmem:[%s2 + $0x408] sm:$0xff]
  %v160 = vld [vmem:[%s2 + $0x410] sm:$0xff]
  %v161 = vld [vmem:[%s2 + $0x418] sm:$0xff]
  %v162 = vld [vmem:[%s2 + $0x420] sm:$0xff]
  %v163 = vld [vmem:[%s2 + $0x428] sm:$0xff]
  %v164 = vld [vmem:[%s2 + $0x430] sm:$0xff]
  %v165 = vld [vmem:[%s2 + $0x438] sm:$0xff]
  %v166 = vld [vmem:[%s2 + $0x440] sm:$0xff]
  %v167 = vld [vmem:[%s2 + $0x448] sm:$0xff]
  %v168 = vld [vmem:[%s2 + $0x450] sm:$0xff]
  %v169 = vld [vmem:[%s2 + $0x458] sm:$0xff]
  %v170 = vld [vmem:[%s2 + $0x460] sm:$0xff]
  %v171 = vld [vmem:[%s2 + $0x468] sm:$0xff]
  %v172 = vld [vmem:[%s2 + $0x470] sm:$0xff]
  %v173 = vld [vmem:[%s2 + $0x478] sm:$0xff]
  %v174 = vld [vmem:[%s2 + $0x480] sm:$0xff]
  %v175 = vld [vmem:[%s2 + $0x488] sm:$0xff]
  %v176 = vld [vmem:[%s2 + $0x490] sm:$0xff]
  %v177 = vld [vmem:[%s2 + $0x498] sm:$0xff]
  %v178 = vld [vmem:[%s2 + $0x4a0] sm:$0xff]
  %v179 = vld [vmem:[%s2 + $0x4a8] sm:$0xff]
  %v180 = vld [vmem:[%s2 + $0x4b0] sm:$0xff]
  %v181 = vld [vmem:[%s2 + $0x4b8] sm:$0xff]
  %v182 = vld [vmem:[%s2 + $0x4c0] sm:$0xff]
  %v183 = vld [vmem:[%s2 + $0x4c8] sm:$0xff]
  %v184 = vld [vmem:[%s2 + $0x4d0] sm:$0xff]
  %v185 = vld [vmem:[%s2 + $0x4d8] sm:$0xff]
  %v186 = vld [vmem:[%s2 + $0x4e0] sm:$0xff]
  %v187 = vld [vmem:[%s2 + $0x4e8] sm:$0xff]
  %v188 = vld [vmem:[%s2 + $0x4f0] sm:$0xff]
  %v189 = vld [vmem:[%s2 + $0x4f8] sm:$0xff]
  %v190 = vld [vmem:[%s2 + $0x500] sm:$0xff]
  %v191 = vld [vmem:[%s2 + $0x508] sm:$0xff]
  %v192 = vld [vmem:[%s2 + $0x510] sm:$0xff]
  %v193 = vld [vmem:[%s2 + $0x518] sm:$0xff]
  %v194 = vld [vmem:[%s2 + $0x520] sm:$0xff]
  %v195 = vld [vmem:[%s2 + $0x528] sm:$0xff]
  %v196 = vld [vmem:[%s2 + $0x530] sm:$0xff]
  %v197 = vld [vmem:[%s2 + $0x538] sm:$0xff]
  %v198 = vld [vmem:[%s2 + $0x540] sm:$0xff]
  %v199 = vld [vmem:[%s2 + $0x548] sm:$0xff]
  %v200 = vld [vmem:[%s2 + $0x550] sm:$0xff]
  %v201 = vld [vmem:[%s2 + $0x558] sm:$0xff]
  %v202 = vld [vmem:[%s2 + $0x560] sm:$0xff]
  %v203 = vld [vmem:[%s2 + $0x568] sm:$0xff]
  %v204 = vld [vmem:[%s2 + $0x570] sm:$0xff]
  %v205 = vld [vmem:[%s2 + $0x578] sm:$0xff]
  %v206 = vld [vmem:[%s2 + $0x580] sm:$0xff]
  %v207 = vld [vmem:[%s2 + $0x588] sm:$0xff]
  %v208 = vld [vmem:[%s2 + $0x590] sm:$0xff]
  %v209 = vld [vmem:[%s2 + $0x598] sm:$0xff]
  %v210 = vld [vmem:[%s2 + $0x5a0] sm:$0xff]
  %v211 = vld [vmem:[%s2 + $0x5a8] sm:$0xff]
  %v212 = vld [vmem:[%s2 + $0x5b0] sm:$0xff]
  %v213 = vld [vmem:[%s2 + $0x5b8] sm:$0xff]
  %v214 = vld [vmem:[%s2 + $0x5c0] sm:$0xff]
  %v215 = vld [vmem:[%s2 + $0x5c8] sm:$0xff]
  %v216 = vld [vmem:[%s2 + $0x5d0] sm:$0xff]
  %v217 = vld [vmem:[%s2 + $0x5d8] sm:$0xff]
  %v218 = vld [vmem:[%s2 + $0x5e0] sm:$0xff]
  %v219 = vld [vmem:[%s2 + $0x5e8] sm:$0xff]
  %v220 = vld [vmem:[%s2 + $0x5f0] sm:$0xff]
  %v221 = vld [vmem:[%s2 + $0x5f8] sm:$0xff]
  %v222 = vld [vmem:[%s3] sm:$0x3]
  %v224 = vlaneseq
  %v225 = vshrl.u32 %v224, 7
  %v226 = vsub.s32 0, %v225
  %v227 = vrot.slane %v222, %v226
  %v228 = vlaneseq
  %v229 = vshrl.u32 %v228, 7
  %v230 = vsub.s32 1, %v229
  %v231 = vrot.slane %v222, %v230
  %v236 = vcombine.high %v28, %v28
  %v238 = vunpack.c.l.s4 1983009808
  %v239 = vunpack.c.0.s8 %v238
  %v240 = vlaneseq
  %v241 = vshrl.u32 %v240, 7
  %v242 = vsub.s32 %v239, %v241
  %v243 = vrot.slane %v28, %v242
  %v245 = vunpack.c.l.s4 1983009808
  %v246 = vunpack.c.0.s8 %v245
  %v247 = vlaneseq
  %v248 = vshrl.u32 %v247, 7
  %v249 = vsub.s32 %v246, %v248
  %v250 = vrot.slane %v236, %v249
  %v251 = vcombine.high %v243, %v243
  %v252 = vcombine.high %v250, %v250
  %v254 = vunpack.c.l.s4 1983009808
  %v255 = vunpack.c.0.s8 %v254
  %v256 = vlaneseq
  %v257 = vshrl.u32 %v256, 7
  %v258 = vsub.s32 %v255, %v257
  %v259 = vrot.slane %v29, %v258
  %v260 = vcombine.high %v259, %v259
  %267 = vmatprep.subr.mxu0 %v31
  %268 = vmatpush1.msra.mxu0 %v30
  %269 = vmatprep.subr.mxu0 %v33
  %270 = vmatpush1.msra.mxu0 %v32
  %271 = vmatprep.subr.mxu0 %v35
  %272 = vmatpush1.msra.mxu0 %v34
  %273 = vmatprep.subr.mxu0 %v37
  %274 = vmatpush1.msra.mxu0 %v36
  %275 = vmatprep.subr.mxu0 %v39
  %276 = vmatpush1.msra.mxu0 %v38
  %277 = vmatprep.subr.mxu0 %v41
  %278 = vmatpush1.msra.mxu0 %v40
  %279 = vmatprep.subr.mxu0 %v43
  %280 = vmatpush1.msra.mxu0 %v42
  %281 = vmatprep.subr.mxu0 %v45
  %282 = vmatpush1.msra.mxu0 %v44
  %283 = vmatprep.subr.mxu0 %v47
  %284 = vmatpush1.msra.mxu0 %v46
  %285 = vmatprep.subr.mxu0 %v49
  %286 = vmatpush1.msra.mxu0 %v48
  %287 = vmatprep.subr.mxu0 %v51
  %288 = vmatpush1.msra.mxu0 %v50
  %289 = vmatprep.subr.mxu0 %v53
  %290 = vmatpush1.msra.mxu0 %v52
  %291 = vmatprep.subr.mxu0 %v55
  %292 = vmatpush1.msra.mxu0 %v54
  %293 = vmatprep.subr.mxu0 %v57
  %294 = vmatpush1.msra.mxu0 %v56
  %295 = vmatprep.subr.mxu0 %v59
  %296 = vmatpush1.msra.mxu0 %v58
  %297 = vmatprep.subr.mxu0 %v61
  %298 = vmatpush1.msra.mxu0 %v60
  %299 = vmatprep.subr.mxu0 %v63
  %300 = vmatpush1.msra.mxu0 %v62
  %301 = vmatprep.subr.mxu0 %v65
  %302 = vmatpush1.msra.mxu0 %v64
  %303 = vmatprep.subr.mxu0 %v67
  %304 = vmatpush1.msra.mxu0 %v66
  %305 = vmatprep.subr.mxu0 %v69
  %306 = vmatpush1.msra.mxu0 %v68
  %307 = vmatprep.subr.mxu0 %v71
  %308 = vmatpush1.msra.mxu0 %v70
  %309 = vmatprep.subr.mxu0 %v73
  %310 = vmatpush1.msra.mxu0 %v72
  %311 = vmatprep.subr.mxu0 %v75
  %312 = vmatpush1.msra.mxu0 %v74
  %313 = vmatprep.subr.mxu0 %v77
  %314 = vmatpush1.msra.mxu0 %v76
  %315 = vmatprep.subr.mxu0 %v79
  %316 = vmatpush1.msra.mxu0 %v78
  %317 = vmatprep.subr.mxu0 %v81
  %318 = vmatpush1.msra.mxu0 %v80
  %319 = vmatprep.subr.mxu0 %v83
  %320 = vmatpush1.msra.mxu0 %v82
  %321 = vmatprep.subr.mxu0 %v85
  %322 = vmatpush1.msra.mxu0 %v84
  %323 = vmatprep.subr.mxu0 %v87
  %324 = vmatpush1.msra.mxu0 %v86
  %325 = vmatprep.subr.mxu0 %v89
  %326 = vmatpush1.msra.mxu0 %v88
  %327 = vmatprep.subr.mxu0 %v91
  %328 = vmatpush1.msra.mxu0 %v90
  %329 = vmatprep.subr.mxu0 %v93
  %330 = vmatpush1.msra.mxu0 %v92
  %331 = vmatprep.mubr.f32.mxu0 %v251
  %332 = vmatmul.mubr.f32.gmra.mrb[0].mxu0 %v243
  %v333 = vpop.f32.mrb[0].mxu0
  %v334 = vadd.f32 %v227, %v333
  %v335 = vpop.f32.mrb[0].mxu0
  %v336 = vadd.f32 %v231, %v335
  %337 = vdwg.mxu0
  %338 = vmatprep.subr.mxu0 %v95
  %339 = vmatpush1.msra.mxu0 %v94
  %340 = vmatprep.subr.mxu0 %v97
  %341 = vmatpush1.msra.mxu0 %v96
  %342 = vmatprep.subr.mxu0 %v99
  %343 = vmatpush1.msra.mxu0 %v98
  %344 = vmatprep.subr.mxu0 %v101
  %345 = vmatpush1.msra.mxu0 %v100
  %346 = vmatprep.subr.mxu0 %v103
  %347 = vmatpush1.msra.mxu0 %v102
  %348 = vmatprep.subr.mxu0 %v105
  %349 = vmatpush1.msra.mxu0 %v104
  %350 = vmatprep.subr.mxu0 %v107
  %351 = vmatpush1.msra.mxu0 %v106
  %352 = vmatprep.subr.mxu0 %v109
  %353 = vmatpush1.msra.mxu0 %v108
  %354 = vmatprep.subr.mxu0 %v111
  %355 = vmatpush1.msra.mxu0 %v110
  %356 = vmatprep.subr.mxu0 %v113
  %357 = vmatpush1.msra.mxu0 %v112
  %358 = vmatprep.subr.mxu0 %v115
  %359 = vmatpush1.msra.mxu0 %v114
  %360 = vmatprep.subr.mxu0 %v117
  %361 = vmatpush1.msra.mxu0 %v116
  %362 = vmatprep.subr.mxu0 %v119
  %363 = vmatpush1.msra.mxu0 %v118
  %364 = vmatprep.subr.mxu0 %v121
  %365 = vmatpush1.msra.mxu0 %v120
  %366 = vmatprep.subr.mxu0 %v123
  %367 = vmatpush1.msra.mxu0 %v122
  %368 = vmatprep.subr.mxu0 %v125
  %369 = vmatpush1.msra.mxu0 %v124
  %370 = vmatprep.subr.mxu0 %v127
  %371 = vmatpush1.msra.mxu0 %v126
  %372 = vmatprep.subr.mxu0 %v129
  %373 = vmatpush1.msra.mxu0 %v128
  %374 = vmatprep.subr.mxu0 %v131
  %375 = vmatpush1.msra.mxu0 %v130
  %376 = vmatprep.subr.mxu0 %v133
  %377 = vmatpush1.msra.mxu0 %v132
  %378 = vmatprep.subr.mxu0 %v135
  %379 = vmatpush1.msra.mxu0 %v134
  %380 = vmatprep.subr.mxu0 %v137
  %381 = vmatpush1.msra.mxu0 %v136
  %382 = vmatprep.subr.mxu0 %v139
  %383 = vmatpush1.msra.mxu0 %v138
  %384 = vmatprep.subr.mxu0 %v141
  %385 = vmatpush1.msra.mxu0 %v140
  %386 = vmatprep.subr.mxu0 %v143
  %387 = vmatpush1.msra.mxu0 %v142
  %388 = vmatprep.subr.mxu0 %v145
  %389 = vmatpush1.msra.mxu0 %v144
  %390 = vmatprep.subr.mxu0 %v147
  %391 = vmatpush1.msra.mxu0 %v146
  %392 = vmatprep.subr.mxu0 %v149
  %393 = vmatpush1.msra.mxu0 %v148
  %394 = vmatprep.subr.mxu0 %v151
  %395 = vmatpush1.msra.mxu0 %v150
  %396 = vmatprep.subr.mxu0 %v153
  %397 = vmatpush1.msra.mxu0 %v152
  %398 = vmatprep.subr.mxu0 %v155
  %399 = vmatpush1.msra.mxu0 %v154
  %400 = vmatprep.subr.mxu0 %v157
  %401 = vmatpush1.msra.mxu0 %v156
  %402 = vmatprep.mubr.f32.mxu0 %v252
  %403 = vmatmul.mubr.f32.gmra.mrb[0].mxu0 %v250
  %v404 = vpop.f32.mrb[0].mxu0
  %v405 = vadd.f32 %v334, %v404
  %v406 = vpop.f32.mrb[0].mxu0
  %v407 = vadd.f32 %v336, %v406
  %408 = vdwg.mxu0
  %409 = vmatprep.subr.mxu0 %v159
  %410 = vmatpush1.msra.mxu0 %v158
  %411 = vmatprep.subr.mxu0 %v161
  %412 = vmatpush1.msra.mxu0 %v160
  %413 = vmatprep.subr.mxu0 %v163
  %414 = vmatpush1.msra.mxu0 %v162
  %415 = vmatprep.subr.mxu0 %v165
  %416 = vmatpush1.msra.mxu0 %v164
  %417 = vmatprep.subr.mxu0 %v167
  %418 = vmatpush1.msra.mxu0 %v166
  %419 = vmatprep.subr.mxu0 %v169
  %420 = vmatpush1.msra.mxu0 %v168
  %421 = vmatprep.subr.mxu0 %v171
  %422 = vmatpush1.msra.mxu0 %v170
  %423 = vmatprep.subr.mxu0 %v173
  %424 = vmatpush1.msra.mxu0 %v172
  %425 = vmatprep.subr.mxu0 %v175
  %426 = vmatpush1.msra.mxu0 %v174
  %427 = vmatprep.subr.mxu0 %v177
  %428 = vmatpush1.msra.mxu0 %v176
  %429 = vmatprep.subr.mxu0 %v179
  %430 = vmatpush1.msra.mxu0 %v178
  %431 = vmatprep.subr.mxu0 %v181
  %432 = vmatpush1.msra.mxu0 %v180
  %433 = vmatprep.subr.mxu0 %v183
  %434 = vmatpush1.msra.mxu0 %v182
  %435 = vmatprep.subr.mxu0 %v185
  %436 = vmatpush1.msra.mxu0 %v184
  %437 = vmatprep.subr.mxu0 %v187
  %438 = vmatpush1.msra.mxu0 %v186
  %439 = vmatprep.subr.mxu0 %v189
  %440 = vmatpush1.msra.mxu0 %v188
  %441 = vmatprep.subr.mxu0 %v191
  %442 = vmatpush1.msra.mxu0 %v190
  %443 = vmatprep.subr.mxu0 %v193
  %444 = vmatpush1.msra.mxu0 %v192
  %445 = vmatprep.subr.mxu0 %v195
  %446 = vmatpush1.msra.mxu0 %v194
  %447 = vmatprep.subr.mxu0 %v197
  %448 = vmatpush1.msra.mxu0 %v196
  %449 = vmatprep.subr.mxu0 %v199
  %450 = vmatpush1.msra.mxu0 %v198
  %451 = vmatprep.subr.mxu0 %v201
  %452 = vmatpush1.msra.mxu0 %v200
  %453 = vmatprep.subr.mxu0 %v203
  %454 = vmatpush1.msra.mxu0 %v202
  %455 = vmatprep.subr.mxu0 %v205
  %456 = vmatpush1.msra.mxu0 %v204
  %457 = vmatprep.subr.mxu0 %v207
  %458 = vmatpush1.msra.mxu0 %v206
  %459 = vmatprep.subr.mxu0 %v209
  %460 = vmatpush1.msra.mxu0 %v208
  %461 = vmatprep.subr.mxu0 %v211
  %462 = vmatpush1.msra.mxu0 %v210
  %463 = vmatprep.subr.mxu0 %v213
  %464 = vmatpush1.msra.mxu0 %v212
  %465 = vmatprep.subr.mxu0 %v215
  %466 = vmatpush1.msra.mxu0 %v214
  %467 = vmatprep.subr.mxu0 %v217
  %468 = vmatpush1.msra.mxu0 %v216
  %469 = vmatprep.subr.mxu0 %v219
  %470 = vmatpush1.msra.mxu0 %v218
  %471 = vmatprep.subr.mxu0 %v221
  %472 = vmatpush1.msra.mxu0 %v220
  %473 = vmatprep.mubr.f32.mxu0 %v260
  %474 = vmatmul.mubr.f32.gmra.mrb[0].mxu0 %v259
  %v475 = vpop.f32.mrb[0].mxu0
  %v476 = vadd.f32 %v405, %v475
  %v477 = vpop.f32.mrb[0].mxu0
  %v478 = vadd.f32 %v407, %v477
  %479 = vdwg.mxu0
  %v480 = vld [vmem:[%s0] sm:$0xf]
  %v481 = vld [vmem:[%s4] sm:$0x3]
  %v483 = vlaneseq
  %v484 = vshrl.u32 %v483, 7
  %v485 = vsub.s32 0, %v484
  %v486 = vrot.slane %v481, %v485
  %v487 = vlaneseq
  %v488 = vshrl.u32 %v487, 7
  %v489 = vsub.s32 1, %v488
  %v490 = vrot.slane %v481, %v489
  %v491 = vcombine.low %v486, %v490
  %v493 = vunpack.c.l.s4 1983009808
  %v494 = vunpack.c.0.s8 %v493
  %v495 = vlaneseq
  %v496 = vshrl.u32 %v495, 7
  %v497 = vsub.s32 %v494, %v496
  %v498 = vrot.slane %v491, %v497
  %v500 = vmul.f32 %v480, %v498
  %v503 = vunpack.c.l.s4 1983009808
  %v504 = vunpack.c.0.s8 %v503
  %v505 = vlaneseq
  %v506 = vshrl.u32 %v505, 7
  %v507 = vsub.s32 %v504, %v506
  %v508 = vrot.slane %v500, %v507
  %v509 = vcombine.high %v508, %v508
  %vm512 = vcmask 1041408
  %v513 = vsel %vm512, %v508, 0.0
  %v514 = vsel %vm512, %v509, 0.0
  %v515 = vadd.f32 %v513, %v514
  %516 = vadd.xlane.f32.xlu0 %v515
  %v517 = vpop.xlane.xlu0 %516
  %v518 = vld [vmem:[%s5] sm:$0x3]
  %v520 = vlaneseq
  %v521 = vshrl.u32 %v520, 7
  %v522 = vsub.s32 0, %v521
  %v523 = vrot.slane %v518, %v522
  %v524 = vlaneseq
  %v525 = vshrl.u32 %v524, 7
  %v526 = vsub.s32 1, %v525
  %v527 = vrot.slane %v518, %v526
  %v530 = vmul.f32 %v476, %v523
  %v531 = vmul.f32 %v478, %v527
  %v532 = vsel %vm512, %v530, 0.0
  %v533 = vsel %vm512, %v531, 0.0
  %v534 = vadd.f32 %v532, %v533
  %535 = vadd.xlane.f32.xlu0 %v534
  %v536 = vpop.xlane.xlu0 %535
  %v537 = vadd.f32 %v517, %v536
  %v538 = vld [vmem:[#allocation2] sm:$0x1]
  %v540 = vlaneseq
  %v541 = vshrl.u32 %v540, 7
  %v542 = vsub.s32 0, %v541
  %v543 = vrot.slane %v538, %v542
  %v545 = vadd.f32 %v537, %v543
  %vm546 = vcmask 1024
  %547 = vst.msk [vmem:[%s7] sm:$0x3] %vm546, %v545
  // Predicated region
  $region30: #{discriminator_forward.11} parent=0 // pred_check
    _
  $region31: #{discriminator_forward.11} parent=0 // pred_check_branch
    %549 = sbr.rel (0) target = $region33
  $region32: #{discriminator_forward.11} parent=0 // pred_region
    _
  $region33: #{discriminator_forward.11} parent=0 // pred_fallthru
    _
  // Predicated region
  $region34: #{discriminator_forward.11} parent=0 // pred_check
    _
  $region35: #{discriminator_forward.11} parent=0 // pred_check_branch
    %551 = sbr.rel (0) target = $region37
  $region36: #{discriminator_forward.11} parent=0 // pred_region
    _
  $region37: #{discriminator_forward.11} parent=0 // pred_fallthru
    _

</llo_original>
